<compile_context>
chip_gen: v6e
topology: v6e:2x2x1
jax: 0.10.0
libtpu: 0.0.40
codegen_flags: <defaults>
</compile_context>

<pallas_src>
import functools
import math

import numpy as np
import jax
import jax.numpy as jnp
from jax.experimental import pallas as pl
from jax.experimental.pallas import tpu as pltpu

DEFAULT_EXP_CLAMP = math.log(100000000.0)
DEFAULT_SCALE_CLAMP = math.log(1000.0 / 16)

LANE = 128
VMEM_LIMIT = 24 * 1024 * 1024      # fits v5e/v6e (128 MiB) and v7x (64 MiB)


def _round_up(x, m):
    return ((x + m - 1) // m) * m


# ----------------------------------------------------------------------------
# Padded-row ("input layout") geometry for 3x3 'same' convs at one resolution.
# ----------------------------------------------------------------------------
class _RowGeom:
    """Real pixel (y, x) lives at row (y+1)*Wp + (x+1) of a per-image block of
    `rows` rows (lanes = channels); ring rows are zero.  Padding is chosen so
    that
      * shift = Wp + 1 is a multiple of 8  (sublane-aligned conv outputs), and
      * rows is a multiple of 8            (clean per-image blocks, no halo).
    A 3x3 conv is then a matmul whose im2col is the 9 row shifts d = ky*Wp + kx
    of the same block (with `shift` rows of in-register zeros on each side).
    """

    def __init__(self, h, w):
        self.h, self.w = h, w
        pr = (7 - (w + 1)) % 8 or 8          # right pad  -> Wp % 8 == 7
        pb = (-(h + 1)) % 8 or 8             # bottom pad -> rows % 8 == 0
        self.wp = w + 1 + pr
        self.pb = pb
        self.rows = (h + 1 + pb) * self.wp
        self.shift = self.wp + 1             # multiple of 8 by construction
        self.taps = tuple(ky * self.wp + kx for ky in range(3) for kx in range(3))

    def row_mask(self):
        m = np.zeros((self.h + 1 + self.pb, self.wp), np.float32)
        m[1:1 + self.h, 1:1 + self.w] = 1.0
        return jnp.asarray(m.reshape(self.rows, 1))

    def embed(self, x):
        """[..., H, W, C] -> [..., rows, C] input-layout rows (zero ring)."""
        pad = [(0, 0)] * (x.ndim - 3) + [(1, self.pb), (1, self.wp - self.w - 1), (0, 0)]
        xp = jnp.pad(x, pad)
        return xp.reshape(x.shape[:-3] + (self.rows, x.shape[-1]))

    def extract(self, x):
        """[..., rows, C] -> [..., H, W, C]."""
        x = x.reshape(x.shape[:-2] + (self.h + 1 + self.pb, self.wp, x.shape[-1]))
        return x[..., 1:1 + self.h, 1:1 + self.w, :]


# ----------------------------------------------------------------------------
# In-kernel 3x3 'same' conv on input-layout rows (all operands in VMEM).
# ----------------------------------------------------------------------------
def _conv_same_rows(x, w, taps, shift):
    """x: [rows, Cin] bf16 (input layout); w: [9*Cin, Cout] bf16 -> [rows, Cout] f32.

    Output row r is the conv centred on the pixel stored at row r (garbage on
    ring rows -- the caller masks them).
    """
    rows, c = x.shape
    z = jnp.zeros((shift, c), x.dtype)
    xz = jnp.concatenate([z, x, z], axis=0)                     # [rows + 2*shift, Cin]
    col = jnp.concatenate([xz[d:d + rows, :] for d in taps], axis=-1)
    return jnp.dot(col, w, preferred_element_type=jnp.float32)


# ----------------------------------------------------------------------------
# Backbone stand-in: conv3x3 + ReLU fused with the stride-s average pool.
# ----------------------------------------------------------------------------
def _backbone_pool_kernel(x_ref, w_ref, b_ref, p_ref, o_ref):
    x = x_ref[0]                                                # [HW, KP] bf16
    conv = jnp.dot(x, w_ref[...], preferred_element_type=jnp.float32) + b_ref[...]
    conv = jnp.maximum(conv, 0.0).astype(jnp.bfloat16)          # [HW, bkp]
    pooled = jnp.dot(p_ref[...], conv, preferred_element_type=jnp.float32)
    o_ref[0] = pooled.astype(o_ref.dtype)                       # [rows, bkp]


def backbone_pool(x_col, w, b, pool_mat):
    bt, hw, kp = x_col.shape
    rows = pool_mat.shape[0]
    bkp = w.shape[-1]
    flops = int(bt * (2 * hw * kp * bkp + 2 * rows * hw * bkp))
    bytes_acc = int(x_col.size * 2 + pool_mat.size * 2 + w.size * 2 + bt * rows * bkp * 2)
    return pl.pallas_call(
        _backbone_pool_kernel,
        out_shape=jax.ShapeDtypeStruct((bt, rows, bkp), jnp.bfloat16),
        grid=(bt,),
        in_specs=[
            pl.BlockSpec((1, hw, kp), lambda i: (i, 0, 0)),
            pl.BlockSpec((kp, bkp), lambda i: (0, 0)),
            pl.BlockSpec((1, bkp), lambda i: (0, 0)),
            pl.BlockSpec((rows, hw), lambda i: (0, 0)),
        ],
        out_specs=pl.BlockSpec((1, rows, bkp), lambda i: (i, 0, 0)),
        compiler_params=pltpu.CompilerParams(
            dimension_semantics=("parallel",), vmem_limit_bytes=VMEM_LIMIT),
        cost_estimate=pl.CostEstimate(flops=flops, transcendentals=0,
                                      bytes_accessed=bytes_acc),
    )(x_col, w, b, pool_mat)


# ----------------------------------------------------------------------------
# Fused ConvLSTM: grid (B parallel, T arbitrary); h in the resident output
# block, c in VMEM scratch, sublane-aligned stores.
# ----------------------------------------------------------------------------
def _convlstm_kernel(x_ref, wx_ref, wh_ref, b_ref, m_ref, h_ref, c_ref,
                     *, taps, shift, hp):
    t = pl.program_id(1)

    @pl.when(t == 0)
    def _init():
        h_ref[...] = jnp.zeros_like(h_ref)
        c_ref[...] = jnp.zeros_like(c_ref)

    x = x_ref[0, 0]                                             # [rows, bkp] bf16
    h = h_ref[0].astype(jnp.bfloat16)                           # [rows, hp]
    gates = (_conv_same_rows(x, wx_ref[...], taps, shift)
             + _conv_same_rows(h, wh_ref[...], taps, shift)
             + b_ref[...])                                      # [rows, 4*hp] f32
    m = m_ref[...]
    gi = jax.nn.sigmoid(gates[:, 0 * hp:1 * hp])
    gf = jax.nn.sigmoid(gates[:, 1 * hp:2 * hp])
    go = jax.nn.sigmoid(gates[:, 2 * hp:3 * hp])
    gg = jnp.tanh(gates[:, 3 * hp:4 * hp])
    c_new = (gf * c_ref[...] + gi * gg) * m                     # zero the ring rows
    c_ref[...] = c_new
    h_ref[0] = go * jnp.tanh(c_new) * m


def convlstm(x_t, wx, wh, bias, mask, *, taps, shift, hp):
    bsz, t_len, rows, bkp = x_t.shape
    kern = functools.partial(_convlstm_kernel, taps=taps, shift=shift, hp=hp)
    flops = int(bsz * t_len * (2 * rows * wx.shape[0] * wx.shape[1]
                               + 2 * rows * wh.shape[0] * wh.shape[1]))
    trans = int(bsz * t_len * rows * 5 * hp)
    bytes_acc = int(x_t.size * 2 + wx.size * 2 + wh.size * 2 + bsz * rows * hp * 4)
    return pl.pallas_call(
        kern,
        out_shape=jax.ShapeDtypeStruct((bsz, rows, hp), jnp.float32),
        grid=(bsz, t_len),
        in_specs=[
            pl.BlockSpec((1, 1, rows, bkp), lambda b, t: (b, t, 0, 0)),
            pl.BlockSpec(wx.shape, lambda b, t: (0, 0)),
            pl.BlockSpec(wh.shape, lambda b, t: (0, 0)),
            pl.BlockSpec((1, bias.shape[-1]), lambda b, t: (0, 0)),
            pl.BlockSpec((rows, 1), lambda b, t: (0, 0)),
        ],
        out_specs=pl.BlockSpec((1, rows, hp), lambda b, t: (b, 0, 0)),
        scratch_shapes=[pltpu.VMEM((rows, hp), jnp.float32)],
        compiler_params=pltpu.CompilerParams(
            dimension_semantics=("parallel", "arbitrary"),
            vmem_limit_bytes=VMEM_LIMIT),
        cost_estimate=pl.CostEstimate(flops=flops, transcendentals=trans,
                                      bytes_accessed=bytes_acc),
    )(x_t, wx, wh, bias, mask)


# ----------------------------------------------------------------------------
# Fused head conv + prediction convs + decode_output + decode_boxes epilogue.
# ----------------------------------------------------------------------------
def _head_pred_decode_kernel(h_ref, wh_ref, bh_ref, wp_ref, bp_ref, anc_ref, m_ref,
                             o_ref, *, taps, shift, nc, ka, grp, ogrp, ctr_clamp):
    h = h_ref[0].astype(jnp.bfloat16)                           # [rows, hp]
    m = m_ref[...]
    feats = _conv_same_rows(h, wh_ref[...], taps, shift) + bh_ref[...]
    feats = (jnp.maximum(feats, 0.0) * m).astype(jnp.bfloat16)  # [rows, 2*hdp]
    pred = _conv_same_rows(feats, wp_ref[...], taps, shift) + bp_ref[...]
    anc = anc_ref[...]
    rows = pred.shape[0]
    parts = []
    for a in range(ka):
        g = pred[:, a * grp:(a + 1) * grp]                      # 32-lane anchor group
        cls_a = g[:, :nc]
        act_a = g[:, nc:nc + 1]
        reg_a = g[:, nc + 1:nc + 5]
        anc_a = anc[:, a * grp:a * grp + 4]
        # decode_output: normalized cls logits
        denom = jnp.log(1.0
                        + jnp.exp(jnp.minimum(cls_a, DEFAULT_EXP_CLAMP))
                        + jnp.exp(jnp.minimum(act_a, DEFAULT_EXP_CLAMP)))
        ncls = cls_a + act_a - denom
        # decode_boxes
        off = reg_a[:, :2] * anc_a[:, 2:4]
        if ctr_clamp is not None:
            off = jnp.clip(off, -ctr_clamp, ctr_clamp)
        ctr = anc_a[:, :2] + off
        wh = anc_a[:, 2:4] * jnp.exp(jnp.minimum(reg_a[:, 2:4], DEFAULT_SCALE_CLAMP))
        grp_out = [ncls, ctr - 0.5 * wh, ctr + 0.5 * wh, reg_a]
        pad = ogrp - (nc + 8)
        if pad > 0:
            grp_out.append(jnp.zeros((rows, pad), jnp.float32))
        parts.append(jnp.concatenate(grp_out, axis=-1))
    out_pad = o_ref.shape[-1] - ka * ogrp
    if out_pad > 0:
        parts.append(jnp.zeros((rows, out_pad), jnp.float32))
    o_ref[0] = jnp.concatenate(parts, axis=-1) * m              # lane-dense [rows, outp]


def head_pred_decode(h_rows, w_head, b_head, w_pred, b_pred, anc_rows, mask,
                     *, taps, shift, nc, ka, grp, ogrp, outp, ctr_clamp):
    bsz, rows, hp = h_rows.shape
    kern = functools.partial(_head_pred_decode_kernel, taps=taps, shift=shift,
                             nc=nc, ka=ka, grp=grp, ogrp=ogrp, ctr_clamp=ctr_clamp)
    flops = int(bsz * (2 * rows * w_head.shape[0] * w_head.shape[1]
                       + 2 * rows * w_pred.shape[0] * w_pred.shape[1]))
    trans = int(bsz * rows * ka * (nc + 4))
    bytes_acc = int(h_rows.size * 4 + w_head.size * 2 + w_pred.size * 2
                    + anc_rows.size * 4 + bsz * rows * outp * 4)
    return pl.pallas_call(
        kern,
        out_shape=jax.ShapeDtypeStruct((bsz, rows, outp), jnp.float32),
        grid=(bsz,),
        in_specs=[
            pl.BlockSpec((1, rows, hp), lambda i: (i, 0, 0)),
            pl.BlockSpec(w_head.shape, lambda i: (0, 0)),
            pl.BlockSpec((1, b_head.shape[-1]), lambda i: (0, 0)),
            pl.BlockSpec(w_pred.shape, lambda i: (0, 0)),
            pl.BlockSpec((1, b_pred.shape[-1]), lambda i: (0, 0)),
            pl.BlockSpec(anc_rows.shape, lambda i: (0, 0)),
            pl.BlockSpec((rows, 1), lambda i: (0, 0)),
        ],
        out_specs=pl.BlockSpec((1, rows, outp), lambda i: (i, 0, 0)),
        compiler_params=pltpu.CompilerParams(
            dimension_semantics=("parallel",), vmem_limit_bytes=VMEM_LIMIT),
        cost_estimate=pl.CostEstimate(flops=flops, transcendentals=trans,
                                      bytes_accessed=bytes_acc),
    )(h_rows, w_head, b_head, w_pred, b_pred, anc_rows, mask)


# ----------------------------------------------------------------------------
# YOWOF (Pallas)
# ----------------------------------------------------------------------------
class YOWOFPallas:
    def __init__(self, cfg, img_size, anchor_size, len_clip, num_classes=20):
        self.cfg = cfg
        self.img_size = img_size
        self.stride = cfg["stride"]
        self.len_clip = len_clip
        self.num_classes = num_classes
        self.num_anchors = len(anchor_size)
        self.anchor_size = jnp.asarray(anchor_size, jnp.float32)
        self.bk_dim = cfg["bk_dim"]
        self.hid = cfg["lstm_hidden"]
        self.head_dim = cfg["head_dim"]
        self.anchor_boxes = self.generate_anchors(img_size)

        hf = wf = img_size // self.stride
        self.geom = _RowGeom(hf, wf)

        # lane-padded widths (zero weights on pad lanes keep semantics)
        ka, nc = self.num_anchors, self.num_classes
        self.kp = _round_up(9 * 3, 8)                    # backbone im2col K (27 -> 32)
        self.bkp = _round_up(self.bk_dim, LANE)
        self.hp = _round_up(self.hid, LANE)
        self.hdp = _round_up(self.head_dim, LANE)
        self.grp = _round_up(nc + 1 + 4, 32)             # per-anchor pred group (cls|act|reg)
        self.ogrp = _round_up(nc + 8, 32)                # per-anchor out group (ncls|box|reg)
        self.predp = _round_up(ka * self.grp, LANE)
        self.outp = _round_up(ka * self.ogrp, LANE)

        self.pool_mat = self._build_pool_matrix(img_size, img_size, self.stride)
        self.mask_rows = self.geom.row_mask()
        self.anc_rows = self._anchor_rows(hf, wf)

        key = jax.random.PRNGKey(0)
        ks = jax.random.split(key, 8)

        def winit(k, shape, std=0.05):
            return std * jax.random.normal(k, shape, jnp.float32)

        # TODO(synk): build_backbone is an external builder; deterministic
        # stand-in = one 3x3 conv + ReLU followed by stride-s average pooling.
        self.w_bk = self._pack_backbone_w(winit(ks[0], (3, 3, 3, self.bk_dim)))
        self.b_bk = jnp.zeros((1, self.bkp), jnp.float32)

        # TODO(synk): build_convlstm is an external builder; stand-in = single
        # ConvLSTM cell applied over the T backbone feature maps.
        self.w_gx = self._pack_gate_w(winit(ks[1], (3, 3, self.bk_dim, 4 * self.hid)),
                                      self.bk_dim, self.bkp)
        self.w_gh = self._pack_gate_w(winit(ks[2], (3, 3, self.hid, 4 * self.hid)),
                                      self.hid, self.hp)
        self.b_g = jnp.zeros((1, 4 * self.hp), jnp.float32)

        # TODO(synk): build_head is an external builder; stand-in = one 3x3
        # conv + ReLU per (cls, reg) branch, fused into a single conv.
        self.w_head = self._pack_head_w(winit(ks[3], (3, 3, self.hid, self.head_dim)),
                                        winit(ks[4], (3, 3, self.hid, self.head_dim)))
        self.b_head = jnp.zeros((1, 2 * self.hdp), jnp.float32)

        # Prediction layers (act/cls/reg), fused into one lane-dense conv.
        init_prob = 0.01
        bias_value = -math.log((1.0 - init_prob) / init_prob)
        w_cls = winit(ks[5], (3, 3, self.head_dim, nc * ka), std=0.01)
        w_act = winit(ks[6], (3, 3, self.head_dim, 1 * ka))
        w_reg = winit(ks[7], (3, 3, self.head_dim, 4 * ka), std=0.01)
        self.w_pred = self._pack_pred_w(w_cls, w_act, w_reg)
        b_pred = jnp.zeros((self.predp,), jnp.float32)
        for a in range(ka):
            b_pred = b_pred.at[a * self.grp:a * self.grp + nc].set(bias_value)
        self.b_pred = b_pred.reshape(1, self.predp)

    # ---------------- constant / weight packing -------------------------------
    def _build_pool_matrix(self, H, W, s):
        """[rows, H*W] bf16: avg-pools s x s windows AND places pooled pixel
        (py, px) directly at its padded-row-layout row (zero ring for free)."""
        g = self.geom
        ys, xs = np.meshgrid(np.arange(H), np.arange(W), indexing="ij")
        target = ((ys // s + 1) * g.wp + (xs // s + 1)).reshape(-1)
        P = np.zeros((g.rows, H * W), np.float32)
        P[target, np.arange(H * W)] = 1.0 / (s * s)
        return jnp.asarray(P, jnp.bfloat16)

    def _pack_backbone_w(self, w):
        k = w.reshape(9 * 3, self.bk_dim)
        wp = jnp.zeros((self.kp, self.bkp), jnp.float32).at[:9 * 3, :self.bk_dim].set(k)
        return wp.astype(jnp.bfloat16)

    def _pack_gate_w(self, w, cin, cin_p):
        hid, hp = self.hid, self.hp
        w = w.reshape(3, 3, cin, 4, hid)
        wp = jnp.zeros((3, 3, cin_p, 4, hp), jnp.float32)
        wp = wp.at[:, :, :cin, :, :hid].set(w)
        return wp.reshape(9 * cin_p, 4 * hp).astype(jnp.bfloat16)

    def _pack_head_w(self, w_cls, w_reg):
        hid, hp, hd, hdp = self.hid, self.hp, self.head_dim, self.hdp
        wp = jnp.zeros((3, 3, hp, 2 * hdp), jnp.float32)
        wp = wp.at[:, :, :hid, :hd].set(w_cls)
        wp = wp.at[:, :, :hid, hdp:hdp + hd].set(w_reg)
        return wp.reshape(9 * hp, 2 * hdp).astype(jnp.bfloat16)

    def _pack_pred_w(self, w_cls, w_act, w_reg):
        hd, hdp = self.head_dim, self.hdp
        ka, nc, grp = self.num_anchors, self.num_classes, self.grp
        wp = jnp.zeros((3, 3, 2 * hdp, self.predp), jnp.float32)
        for a in range(ka):
            o = a * grp
            wp = wp.at[:, :, :hd, o:o + nc].set(w_cls[..., a * nc:(a + 1) * nc])
            wp = wp.at[:, :, hdp:hdp + hd, o + nc:o + nc + 1].set(w_act[..., a:a + 1])
            wp = wp.at[:, :, hdp:hdp + hd, o + nc + 1:o + nc + 5].set(
                w_reg[..., a * 4:(a + 1) * 4])
        return wp.reshape(9 * 2 * hdp, self.predp).astype(jnp.bfloat16)

    # ---------------- anchors --------------------------------------------------
    def generate_anchors(self, img_size):
        fmp_h = fmp_w = img_size // self.stride
        ay, ax = jnp.meshgrid(jnp.arange(fmp_h), jnp.arange(fmp_w), indexing="ij")
        anchor_xy = jnp.stack([ax, ay], axis=-1).astype(jnp.float32).reshape(-1, 2) + 0.5
        anchor_xy = jnp.repeat(anchor_xy[:, None, :], self.num_anchors, axis=1)
        anchor_xy = anchor_xy * self.stride
        anchor_wh = jnp.tile(self.anchor_size[None, :, :], (fmp_h * fmp_w, 1, 1))
        anchor_boxes = jnp.concatenate([anchor_xy, anchor_wh], axis=-1)
        return anchor_boxes.reshape(-1, 4)

    def _anchor_rows(self, hf, wf):
        ka, grp = self.num_anchors, self.grp
        anc = self.anchor_boxes.reshape(hf, wf, ka, 4)
        anc_g = jnp.zeros((hf, wf, ka, grp), jnp.float32).at[..., :4].set(anc)
        anc_g = anc_g.reshape(hf, wf, ka * grp)
        anc_g = jnp.pad(anc_g, ((0, 0), (0, 0), (0, self.predp - ka * grp)))
        return self.geom.embed(anc_g)                        # [rows, predp]

    # ---------------- wrapper-side im2col for the Cin=3 backbone layer --------
    def _im2col_rgb(self, x_nhwc):
        bt, H, W, c = x_nhwc.shape
        xp = jnp.pad(x_nhwc, ((0, 0), (1, 1), (1, 1), (0, 0)))
        cols = [xp[:, ky:ky + H, kx:kx + W, :] for ky in range(3) for kx in range(3)]
        col = jnp.concatenate(cols, axis=-1).reshape(bt, H * W, 9 * c)
        col = jnp.pad(col, ((0, 0), (0, 0), (0, self.kp - 9 * c)))
        return col.astype(jnp.bfloat16)

    # ---------------- forward --------------------------------------------------
    def forward(self, video_clips):
        """video_clips: [B, T, 3, H, W] (NCHW per frame, like the torch module)."""
        B, T, C, H, W = video_clips.shape
        s = self.stride
        hf, wf = H // s, W // s
        ka, nc = self.num_anchors, self.num_classes
        g = self.geom
        BT = B * T

        # ---- backbone (stand-in conv3x3+ReLU) fused with the stride-s avg pool ----
        x = video_clips.reshape(BT, C, H, W).transpose(0, 2, 3, 1)       # NHWC f32
        x_col = self._im2col_rgb(x)                                      # [BT, H*W, kp]
        feat_rows = backbone_pool(x_col, self.w_bk, self.b_bk, self.pool_mat)
        xt = feat_rows.reshape(B, T, g.rows, self.bkp)                   # padded rows, bf16

        # ---- temporal encoder: fused ConvLSTM (B parallel, T arbitrary) ----
        h_rows = convlstm(xt, self.w_gx, self.w_gh, self.b_g, self.mask_rows,
                          taps=g.taps, shift=g.shift, hp=self.hp)        # [B, rows, hp]

        # ---- head + prediction convs + decode_output + decode_boxes (fused) ----
        dec = head_pred_decode(h_rows, self.w_head, self.b_head,
                               self.w_pred, self.b_pred,
                               self.anc_rows, self.mask_rows,
                               taps=g.taps, shift=g.shift, nc=nc, ka=ka,
                               grp=self.grp, ogrp=self.ogrp, outp=self.outp,
                               ctr_clamp=self.cfg["ctr_clamp"])          # [B, rows, outp]

        dec = g.extract(dec)[..., :ka * self.ogrp]                       # [B, hf, wf, ka*ogrp]
        dec = dec.reshape(B, hf * wf * ka, self.ogrp)
        cls_preds = dec[..., :nc]
        box_preds = dec[..., nc:nc + 4]
        reg_preds = dec[..., nc + 4:nc + 8]

        # TODO(synk): sigmoid / top-k / per-class NMS post-processing is host-side
        # numpy in the reference module; omitted from the TPU kernel path.
        return {"cls_preds": cls_preds, "reg_preds": reg_preds,
                "box_preds": box_preds, "anchors": self.anchor_boxes,
                "strides": self.stride}


# ----------------------------------------------------------------------------
# Main
# ----------------------------------------------------------------------------
if __name__ == "__main__":
    cfg = {
        "stride": 8,
        "bk_dim": 16,
        "lstm_hidden": 16,
        "head_dim": 32,
        "ctr_clamp": 32.0,
    }
    img_size = 32
    anchor_size = [[8.0, 8.0], [16.0, 16.0], [24.0, 12.0]]
    B, T = 2, 4
    num_classes = 20

    model = YOWOFPallas(cfg, img_size, anchor_size, len_clip=T, num_classes=num_classes)

    key = jax.random.PRNGKey(0)
    video_clips = jax.random.normal(key, (B, T, 3, img_size, img_size), jnp.float32)

    out = jax.jit(model.forward)(video_clips)
    out = jax.tree_util.tree_map(jax.block_until_ready, out)

    M = (img_size // cfg["stride"]) ** 2 * len(anchor_size)
    assert out["cls_preds"].shape == (B, M, num_classes)
    assert out["box_preds"].shape == (B, M, 4)
    assert out["reg_preds"].shape == (B, M, 4)
    assert bool(jnp.all(jnp.isfinite(out["cls_preds"])))
    assert bool(jnp.all(jnp.isfinite(out["box_preds"])))
    assert bool(jnp.all(jnp.isfinite(out["reg_preds"])))
    print("KERNEL_OK")
</pallas_src>

<mosaic_0001>
module attributes {stable_mosaic.version = 11 : i64} {
  func.func @_backbone_pool_kernel(%arg0: i32, %arg1: memref<1x1024x32xbf16, #tpu.memory_space<vmem>>, %arg2: memref<32x128xbf16, #tpu.memory_space<vmem>>, %arg3: memref<1x128xf32, #tpu.memory_space<vmem>>, %arg4: memref<56x1024xbf16, #tpu.memory_space<vmem>>, %arg5: memref<1x56x128xbf16, #tpu.memory_space<vmem>>) attributes {dimension_semantics = [#tpu.dimension_semantics<parallel>], iteration_bounds = array<i64: 8>, scalar_prefetch = 0 : i64, scratch_operands = 0 : i64, tpu.core_type = #tpu.core_type<tc>, window_params = [{transform_indices = @transform_0, window_bounds = array<i64: 1, 1024, 32>}, {pipeline_mode = #tpu.pipeline_mode<synchronous>, transform_indices = @transform_1, window_bounds = array<i64: 32, 128>}, {pipeline_mode = #tpu.pipeline_mode<synchronous>, transform_indices = @transform_2, window_bounds = array<i64: 1, 128>}, {pipeline_mode = #tpu.pipeline_mode<synchronous>, transform_indices = @transform_3, window_bounds = array<i64: 56, 1024>}, {transform_indices = @transform_4, window_bounds = array<i64: 1, 56, 128>}]} {
    %c0 = arith.constant 0 : index
    %c0_0 = arith.constant 0 : index
    %c0_1 = arith.constant 0 : index
    %0 = vector.load %arg1[%c0, %c0_0, %c0_1] : memref<1x1024x32xbf16, #tpu.memory_space<vmem>>, vector<1x1024x32xbf16>
    %1 = vector.shape_cast %0 : vector<1x1024x32xbf16> to vector<1024x32xbf16>
    %c0_2 = arith.constant 0 : index
    %c0_3 = arith.constant 0 : index
    %2 = vector.load %arg2[%c0_2, %c0_3] : memref<32x128xbf16, #tpu.memory_space<vmem>>, vector<32x128xbf16>
    %cst = arith.constant dense<0.000000e+00> : vector<1024x128xf32>
    %3 = tpu.matmul %1, %2, %cst {dimension_numbers = #tpu.dot_dimension_numbers<[1], [0], [0], [1], [0, 0, 1, 1], [], []>} : vector<1024x32xbf16>, vector<32x128xbf16>, vector<1024x128xf32> -> vector<1024x128xf32>
    %c0_4 = arith.constant 0 : index
    %c0_5 = arith.constant 0 : index
    %4 = vector.load %arg3[%c0_4, %c0_5] : memref<1x128xf32, #tpu.memory_space<vmem>>, vector<1x128xf32>
    %5 = vector.broadcast %4 : vector<1x128xf32> to vector<1024x128xf32>
    %6 = arith.addf %3, %5 : vector<1024x128xf32>
    %cst_6 = arith.constant 0.000000e+00 : f32
    %7 = vector.broadcast %cst_6 : f32 to vector<1024x128xf32>
    %8 = arith.maximumf %6, %7 : vector<1024x128xf32>
    %9 = arith.truncf %8 : vector<1024x128xf32> to vector<1024x128xbf16>
    %c0_7 = arith.constant 0 : index
    %c0_8 = arith.constant 0 : index
    %10 = vector.load %arg4[%c0_7, %c0_8] : memref<56x1024xbf16, #tpu.memory_space<vmem>>, vector<56x1024xbf16>
    %cst_9 = arith.constant dense<0.000000e+00> : vector<56x128xf32>
    %11 = tpu.matmul %10, %9, %cst_9 {dimension_numbers = #tpu.dot_dimension_numbers<[1], [0], [0], [1], [0, 0, 1, 1], [], []>} : vector<56x1024xbf16>, vector<1024x128xbf16>, vector<56x128xf32> -> vector<56x128xf32>
    %12 = arith.truncf %11 : vector<56x128xf32> to vector<56x128xbf16>
    %c0_10 = arith.constant 0 : index
    %c0_11 = arith.constant 0 : index
    %c0_12 = arith.constant 0 : index
    %13 = vector.load %arg5[%c0_10, %c0_11, %c0_12] : memref<1x56x128xbf16, #tpu.memory_space<vmem>>, vector<1x56x128xbf16>
    %14 = vector.shape_cast %13 : vector<1x56x128xbf16> to vector<56x128xbf16>
    %15 = vector.shape_cast %12 : vector<56x128xbf16> to vector<1x56x128xbf16>
    tpu.vector_store %arg5[%c0_10, %c0_11, %c0_12], %15 {strides = array<i32>} : memref<1x56x128xbf16, #tpu.memory_space<vmem>>, vector<1x56x128xbf16>,
    return
  }
  func.func @transform_0(%arg0: i32) -> (i32, i32, i32) {
    %c0_i32 = arith.constant 0 : i32
    %c0_i32_0 = arith.constant 0 : i32
    %c0_i32_1 = arith.constant 0 : i32
    return %arg0, %c0_i32, %c0_i32_0 : i32, i32, i32
  }
  func.func @transform_1(%arg0: i32) -> (i32, i32) {
    %c0_i32 = arith.constant 0 : i32
    %c0_i32_0 = arith.constant 0 : i32
    %c0_i32_1 = arith.constant 0 : i32
    return %c0_i32, %c0_i32_0 : i32, i32
  }
  func.func @transform_2(%arg0: i32) -> (i32, i32) {
    %c0_i32 = arith.constant 0 : i32
    %c0_i32_0 = arith.constant 0 : i32
    %c0_i32_1 = arith.constant 0 : i32
    return %c0_i32, %c0_i32_0 : i32, i32
  }
  func.func @transform_3(%arg0: i32) -> (i32, i32) {
    %c0_i32 = arith.constant 0 : i32
    %c0_i32_0 = arith.constant 0 : i32
    %c0_i32_1 = arith.constant 0 : i32
    return %c0_i32, %c0_i32_0 : i32, i32
  }
  func.func @transform_4(%arg0: i32) -> (i32, i32, i32) {
    %c0_i32 = arith.constant 0 : i32
    %c0_i32_0 = arith.constant 0 : i32
    %c0_i32_1 = arith.constant 0 : i32
    return %arg0, %c0_i32, %c0_i32_0 : i32, i32, i32
  }
}

module attributes {stable_mosaic.version = 11 : i64} {
  func.func @_convlstm_kernel(%arg0: i32, %arg1: i32, %arg2: memref<1x1x56x128xbf16, #tpu.memory_space<vmem>>, %arg3: memref<1152x512xbf16, #tpu.memory_space<vmem>>, %arg4: memref<1152x512xbf16, #tpu.memory_space<vmem>>, %arg5: memref<1x512xf32, #tpu.memory_space<vmem>>, %arg6: memref<56x1xf32, #tpu.memory_space<vmem>>, %arg7: memref<1x56x128xf32, #tpu.memory_space<vmem>>, %arg8: memref<56x128xf32, #tpu.memory_space<vmem>>) attributes {dimension_semantics = [#tpu.dimension_semantics<parallel>, #tpu.dimension_semantics<arbitrary>], iteration_bounds = array<i64: 2, 4>, scalar_prefetch = 0 : i64, scratch_operands = 1 : i64, tpu.core_type = #tpu.core_type<tc>, window_params = [{transform_indices = @transform_0, window_bounds = array<i64: 1, 1, 56, 128>}, {pipeline_mode = #tpu.pipeline_mode<synchronous>, transform_indices = @transform_1, window_bounds = array<i64: 1152, 512>}, {pipeline_mode = #tpu.pipeline_mode<synchronous>, transform_indices = @transform_2, window_bounds = array<i64: 1152, 512>}, {pipeline_mode = #tpu.pipeline_mode<synchronous>, transform_indices = @transform_3, window_bounds = array<i64: 1, 512>}, {pipeline_mode = #tpu.pipeline_mode<synchronous>, transform_indices = @transform_4, window_bounds = array<i64: 56, 1>}, {transform_indices = @transform_5, window_bounds = array<i64: 1, 56, 128>}]} {
    %c0_i32 = arith.constant 0 : i32
    %0 = arith.cmpi eq, %arg1, %c0_i32 : i32
    %1 = arith.extui %0 : i1 to i32
    %c0_i32_0 = arith.constant 0 : i32
    %2 = arith.cmpi ne, %1, %c0_i32_0 : i32
    scf.if %2 {
      %cst_28 = arith.constant 0.000000e+00 : f32
      %75 = vector.broadcast %cst_28 : f32 to vector<1x56x128xf32>
      %c0_29 = arith.constant 0 : index
      %c0_30 = arith.constant 0 : index
      %c0_31 = arith.constant 0 : index
      %76 = vector.load %arg7[%c0_29, %c0_30, %c0_31] : memref<1x56x128xf32, #tpu.memory_space<vmem>>, vector<1x56x128xf32>
      tpu.vector_store %arg7[%c0_29, %c0_30, %c0_31], %75 {strides = array<i32>} : memref<1x56x128xf32, #tpu.memory_space<vmem>>, vector<1x56x128xf32>,
      %cst_32 = arith.constant 0.000000e+00 : f32
      %77 = vector.broadcast %cst_32 : f32 to vector<56x128xf32>
      %c0_33 = arith.constant 0 : index
      %c0_34 = arith.constant 0 : index
      %78 = vector.load %arg8[%c0_33, %c0_34] : memref<56x128xf32, #tpu.memory_space<vmem>>, vector<56x128xf32>
      tpu.vector_store %arg8[%c0_33, %c0_34], %77 {strides = array<i32>} : memref<56x128xf32, #tpu.memory_space<vmem>>, vector<56x128xf32>,
    } else {
    }
    %c0 = arith.constant 0 : index
    %c0_1 = arith.constant 0 : index
    %c0_2 = arith.constant 0 : index
    %c0_3 = arith.constant 0 : index
    %3 = vector.load %arg2[%c0, %c0_1, %c0_2, %c0_3] : memref<1x1x56x128xbf16, #tpu.memory_space<vmem>>, vector<1x1x56x128xbf16>
    %4 = vector.shape_cast %3 : vector<1x1x56x128xbf16> to vector<56x128xbf16>
    %c0_4 = arith.constant 0 : index
    %c0_5 = arith.constant 0 : index
    %c0_6 = arith.constant 0 : index
    %5 = vector.load %arg7[%c0_4, %c0_5, %c0_6] : memref<1x56x128xf32, #tpu.memory_space<vmem>>, vector<1x56x128xf32>
    %6 = vector.shape_cast %5 : vector<1x56x128xf32> to vector<56x128xf32>
    %7 = arith.truncf %6 : vector<56x128xf32> to vector<56x128xbf16>
    %c0_7 = arith.constant 0 : index
    %c0_8 = arith.constant 0 : index
    %8 = vector.load %arg3[%c0_7, %c0_8] : memref<1152x512xbf16, #tpu.memory_space<vmem>>, vector<1152x512xbf16>
    %cst = arith.constant 0.000000e+00 : bf16
    %9 = vector.broadcast %cst : bf16 to vector<8x128xbf16>
    %10 = tpu.concatenate %9, %4, %9 in 0 : vector<8x128xbf16>, vector<56x128xbf16>, vector<8x128xbf16> -> vector<72x128xbf16>
    %11 = vector.extract_strided_slice %10 {offsets = [0, 0], sizes = [56, 128], strides = [1, 1]} : vector<72x128xbf16> to vector<56x128xbf16>
    %12 = vector.extract_strided_slice %10 {offsets = [1, 0], sizes = [56, 128], strides = [1, 1]} : vector<72x128xbf16> to vector<56x128xbf16>
    %13 = vector.extract_strided_slice %10 {offsets = [2, 0], sizes = [56, 128], strides = [1, 1]} : vector<72x128xbf16> to vector<56x128xbf16>
    %14 = vector.extract_strided_slice %10 {offsets = [7, 0], sizes = [56, 128], strides = [1, 1]} : vector<72x128xbf16> to vector<56x128xbf16>
    %15 = vector.extract_strided_slice %10 {offsets = [8, 0], sizes = [56, 128], strides = [1, 1]} : vector<72x128xbf16> to vector<56x128xbf16>
    %16 = vector.extract_strided_slice %10 {offsets = [9, 0], sizes = [56, 128], strides = [1, 1]} : vector<72x128xbf16> to vector<56x128xbf16>
    %17 = vector.extract_strided_slice %10 {offsets = [14, 0], sizes = [56, 128], strides = [1, 1]} : vector<72x128xbf16> to vector<56x128xbf16>
    %18 = vector.extract_strided_slice %10 {offsets = [15, 0], sizes = [56, 128], strides = [1, 1]} : vector<72x128xbf16> to vector<56x128xbf16>
    %19 = vector.extract_strided_slice %10 {offsets = [16, 0], sizes = [56, 128], strides = [1, 1]} : vector<72x128xbf16> to vector<56x128xbf16>
    %20 = tpu.concatenate %11, %12, %13, %14, %15, %16, %17, %18, %19 in 1 : vector<56x128xbf16>, vector<56x128xbf16>, vector<56x128xbf16>, vector<56x128xbf16>, vector<56x128xbf16>, vector<56x128xbf16>, vector<56x128xbf16>, vector<56x128xbf16>, vector<56x128xbf16> -> vector<56x1152xbf16>
    %cst_9 = arith.constant dense<0.000000e+00> : vector<56x512xf32>
    %21 = tpu.matmul %20, %8, %cst_9 {dimension_numbers = #tpu.dot_dimension_numbers<[1], [0], [0], [1], [0, 0, 1, 1], [], []>} : vector<56x1152xbf16>, vector<1152x512xbf16>, vector<56x512xf32> -> vector<56x512xf32>
    %c0_10 = arith.constant 0 : index
    %c0_11 = arith.constant 0 : index
    %22 = vector.load %arg4[%c0_10, %c0_11] : memref<1152x512xbf16, #tpu.memory_space<vmem>>, vector<1152x512xbf16>
    %cst_12 = arith.constant 0.000000e+00 : bf16
    %23 = vector.broadcast %cst_12 : bf16 to vector<8x128xbf16>
    %24 = tpu.concatenate %23, %7, %23 in 0 : vector<8x128xbf16>, vector<56x128xbf16>, vector<8x128xbf16> -> vector<72x128xbf16>
    %25 = vector.extract_strided_slice %24 {offsets = [0, 0], sizes = [56, 128], strides = [1, 1]} : vector<72x128xbf16> to vector<56x128xbf16>
    %26 = vector.extract_strided_slice %24 {offsets = [1, 0], sizes = [56, 128], strides = [1, 1]} : vector<72x128xbf16> to vector<56x128xbf16>
    %27 = vector.extract_strided_slice %24 {offsets = [2, 0], sizes = [56, 128], strides = [1, 1]} : vector<72x128xbf16> to vector<56x128xbf16>
    %28 = vector.extract_strided_slice %24 {offsets = [7, 0], sizes = [56, 128], strides = [1, 1]} : vector<72x128xbf16> to vector<56x128xbf16>
    %29 = vector.extract_strided_slice %24 {offsets = [8, 0], sizes = [56, 128], strides = [1, 1]} : vector<72x128xbf16> to vector<56x128xbf16>
    %30 = vector.extract_strided_slice %24 {offsets = [9, 0], sizes = [56, 128], strides = [1, 1]} : vector<72x128xbf16> to vector<56x128xbf16>
    %31 = vector.extract_strided_slice %24 {offsets = [14, 0], sizes = [56, 128], strides = [1, 1]} : vector<72x128xbf16> to vector<56x128xbf16>
    %32 = vector.extract_strided_slice %24 {offsets = [15, 0], sizes = [56, 128], strides = [1, 1]} : vector<72x128xbf16> to vector<56x128xbf16>
    %33 = vector.extract_strided_slice %24 {offsets = [16, 0], sizes = [56, 128], strides = [1, 1]} : vector<72x128xbf16> to vector<56x128xbf16>
    %34 = tpu.concatenate %25, %26, %27, %28, %29, %30, %31, %32, %33 in 1 : vector<56x128xbf16>, vector<56x128xbf16>, vector<56x128xbf16>, vector<56x128xbf16>, vector<56x128xbf16>, vector<56x128xbf16>, vector<56x128xbf16>, vector<56x128xbf16>, vector<56x128xbf16> -> vector<56x1152xbf16>
    %cst_13 = arith.constant dense<0.000000e+00> : vector<56x512xf32>
    %35 = tpu.matmul %34, %22, %cst_13 {dimension_numbers = #tpu.dot_dimension_numbers<[1], [0], [0], [1], [0, 0, 1, 1], [], []>} : vector<56x1152xbf16>, vector<1152x512xbf16>, vector<56x512xf32> -> vector<56x512xf32>
    %36 = arith.addf %21, %35 : vector<56x512xf32>
    %c0_14 = arith.constant 0 : index
    %c0_15 = arith.constant 0 : index
    %37 = vector.load %arg5[%c0_14, %c0_15] : memref<1x512xf32, #tpu.memory_space<vmem>>, vector<1x512xf32>
    %38 = vector.broadcast %37 : vector<1x512xf32> to vector<56x512xf32>
    %39 = arith.addf %36, %38 : vector<56x512xf32>
    %c0_16 = arith.constant 0 : index
    %c0_17 = arith.constant 0 : index
    %40 = vector.load %arg6[%c0_16, %c0_17] : memref<56x1xf32, #tpu.memory_space<vmem>>, vector<56x1xf32>
    %41 = vector.extract_strided_slice %39 {offsets = [0, 0], sizes = [56, 128], strides = [1, 1]} : vector<56x512xf32> to vector<56x128xf32>
    %42 = arith.negf %41 : vector<56x128xf32>
    %43 = math.exp %42 : vector<56x128xf32>
    %cst_18 = arith.constant 1.000000e+00 : f32
    %44 = vector.broadcast %cst_18 : f32 to vector<56x128xf32>
    %45 = arith.addf %44, %43 : vector<56x128xf32>
    %46 = arith.divf %44, %45 : vector<56x128xf32>
    %47 = vector.extract_strided_slice %39 {offsets = [0, 128], sizes = [56, 128], strides = [1, 1]} : vector<56x512xf32> to vector<56x128xf32>
    %48 = arith.negf %47 : vector<56x128xf32>
    %49 = math.exp %48 : vector<56x128xf32>
    %cst_19 = arith.constant 1.000000e+00 : f32
    %50 = vector.broadcast %cst_19 : f32 to vector<56x128xf32>
    %51 = arith.addf %50, %49 : vector<56x128xf32>
    %52 = arith.divf %50, %51 : vector<56x128xf32>
    %53 = vector.extract_strided_slice %39 {offsets = [0, 256], sizes = [56, 128], strides = [1, 1]} : vector<56x512xf32> to vector<56x128xf32>
    %54 = arith.negf %53 : vector<56x128xf32>
    %55 = math.exp %54 : vector<56x128xf32>
    %cst_20 = arith.constant 1.000000e+00 : f32
    %56 = vector.broadcast %cst_20 : f32 to vector<56x128xf32>
    %57 = arith.addf %56, %55 : vector<56x128xf32>
    %58 = arith.divf %56, %57 : vector<56x128xf32>
    %59 = vector.extract_strided_slice %39 {offsets = [0, 384], sizes = [56, 128], strides = [1, 1]} : vector<56x512xf32> to vector<56x128xf32>
    %60 = math.tanh %59 : vector<56x128xf32>
    %c0_21 = arith.constant 0 : index
    %c0_22 = arith.constant 0 : index
    %61 = vector.load %arg8[%c0_21, %c0_22] : memref<56x128xf32, #tpu.memory_space<vmem>>, vector<56x128xf32>
    %62 = arith.mulf %52, %61 : vector<56x128xf32>
    %63 = arith.mulf %46, %60 : vector<56x128xf32>
    %64 = arith.addf %62, %63 : vector<56x128xf32>
    %65 = vector.broadcast %40 : vector<56x1xf32> to vector<56x128xf32>
    %66 = arith.mulf %64, %65 : vector<56x128xf32>
    %c0_23 = arith.constant 0 : index
    %c0_24 = arith.constant 0 : index
    %67 = vector.load %arg8[%c0_23, %c0_24] : memref<56x128xf32, #tpu.memory_space<vmem>>, vector<56x128xf32>
    tpu.vector_store %arg8[%c0_23, %c0_24], %66 {strides = array<i32>} : memref<56x128xf32, #tpu.memory_space<vmem>>, vector<56x128xf32>,
    %68 = math.tanh %66 : vector<56x128xf32>
    %69 = arith.mulf %58, %68 : vector<56x128xf32>
    %70 = vector.broadcast %40 : vector<56x1xf32> to vector<56x128xf32>
    %71 = arith.mulf %69, %70 : vector<56x128xf32>
    %c0_25 = arith.constant 0 : index
    %c0_26 = arith.constant 0 : index
    %c0_27 = arith.constant 0 : index
    %72 = vector.load %arg7[%c0_25, %c0_26, %c0_27] : memref<1x56x128xf32, #tpu.memory_space<vmem>>, vector<1x56x128xf32>
    %73 = vector.shape_cast %72 : vector<1x56x128xf32> to vector<56x128xf32>
    %74 = vector.shape_cast %71 : vector<56x128xf32> to vector<1x56x128xf32>
    tpu.vector_store %arg7[%c0_25, %c0_26, %c0_27], %74 {strides = array<i32>} : memref<1x56x128xf32, #tpu.memory_space<vmem>>, vector<1x56x128xf32>,
    return
  }
  func.func @transform_0(%arg0: i32, %arg1: i32) -> (i32, i32, i32, i32) {
    %c0_i32 = arith.constant 0 : i32
    %c0_i32_0 = arith.constant 0 : i32
    %c0_i32_1 = arith.constant 0 : i32
    return %arg0, %arg1, %c0_i32, %c0_i32_0 : i32, i32, i32, i32
  }
  func.func @transform_1(%arg0: i32, %arg1: i32) -> (i32, i32) {
    %c0_i32 = arith.constant 0 : i32
    %c0_i32_0 = arith.constant 0 : i32
    %c0_i32_1 = arith.constant 0 : i32
    return %c0_i32, %c0_i32_0 : i32, i32
  }
  func.func @transform_2(%arg0: i32, %arg1: i32) -> (i32, i32) {
    %c0_i32 = arith.constant 0 : i32
    %c0_i32_0 = arith.constant 0 : i32
    %c0_i32_1 = arith.constant 0 : i32
    return %c0_i32, %c0_i32_0 : i32, i32
  }
  func.func @transform_3(%arg0: i32, %arg1: i32) -> (i32, i32) {
    %c0_i32 = arith.constant 0 : i32
    %c0_i32_0 = arith.constant 0 : i32
    %c0_i32_1 = arith.constant 0 : i32
    return %c0_i32, %c0_i32_0 : i32, i32
  }
  func.func @transform_4(%arg0: i32, %arg1: i32) -> (i32, i32) {
    %c0_i32 = arith.constant 0 : i32
    %c0_i32_0 = arith.constant 0 : i32
    %c0_i32_1 = arith.constant 0 : i32
    return %c0_i32, %c0_i32_0 : i32, i32
  }
  func.func @transform_5(%arg0: i32, %arg1: i32) -> (i32, i32, i32) {
    %c0_i32 = arith.constant 0 : i32
    %c0_i32_0 = arith.constant 0 : i32
    %c0_i32_1 = arith.constant 0 : i32
    return %arg0, %c0_i32, %c0_i32_0 : i32, i32, i32
  }
}

module attributes {stable_mosaic.version = 11 : i64} {
  func.func @_head_pred_decode_kernel(%arg0: i32, %arg1: memref<1x56x128xf32, #tpu.memory_space<vmem>>, %arg2: memref<1152x256xbf16, #tpu.memory_space<vmem>>, %arg3: memref<1x256xf32, #tpu.memory_space<vmem>>, %arg4: memref<2304x128xbf16, #tpu.memory_space<vmem>>, %arg5: memref<1x128xf32, #tpu.memory_space<vmem>>, %arg6: memref<56x128xf32, #tpu.memory_space<vmem>>, %arg7: memref<56x1xf32, #tpu.memory_space<vmem>>, %arg8: memref<1x56x128xf32, #tpu.memory_space<vmem>>) attributes {dimension_semantics = [#tpu.dimension_semantics<parallel>], iteration_bounds = array<i64: 2>, scalar_prefetch = 0 : i64, scratch_operands = 0 : i64, tpu.core_type = #tpu.core_type<tc>, window_params = [{transform_indices = @transform_0, window_bounds = array<i64: 1, 56, 128>}, {pipeline_mode = #tpu.pipeline_mode<synchronous>, transform_indices = @transform_1, window_bounds = array<i64: 1152, 256>}, {pipeline_mode = #tpu.pipeline_mode<synchronous>, transform_indices = @transform_2, window_bounds = array<i64: 1, 256>}, {pipeline_mode = #tpu.pipeline_mode<synchronous>, transform_indices = @transform_3, window_bounds = array<i64: 2304, 128>}, {pipeline_mode = #tpu.pipeline_mode<synchronous>, transform_indices = @transform_4, window_bounds = array<i64: 1, 128>}, {pipeline_mode = #tpu.pipeline_mode<synchronous>, transform_indices = @transform_5, window_bounds = array<i64: 56, 128>}, {pipeline_mode = #tpu.pipeline_mode<synchronous>, transform_indices = @transform_6, window_bounds = array<i64: 56, 1>}, {transform_indices = @transform_7, window_bounds = array<i64: 1, 56, 128>}]} {
    %c0 = arith.constant 0 : index
    %c0_0 = arith.constant 0 : index
    %c0_1 = arith.constant 0 : index
    %0 = vector.load %arg1[%c0, %c0_0, %c0_1] : memref<1x56x128xf32, #tpu.memory_space<vmem>>, vector<1x56x128xf32>
    %1 = vector.shape_cast %0 : vector<1x56x128xf32> to vector<56x128xf32>
    %2 = arith.truncf %1 : vector<56x128xf32> to vector<56x128xbf16>
    %c0_2 = arith.constant 0 : index
    %c0_3 = arith.constant 0 : index
    %3 = vector.load %arg7[%c0_2, %c0_3] : memref<56x1xf32, #tpu.memory_space<vmem>>, vector<56x1xf32>
    %c0_4 = arith.constant 0 : index
    %c0_5 = arith.constant 0 : index
    %4 = vector.load %arg2[%c0_4, %c0_5] : memref<1152x256xbf16, #tpu.memory_space<vmem>>, vector<1152x256xbf16>
    %cst = arith.constant 0.000000e+00 : bf16
    %5 = vector.broadcast %cst : bf16 to vector<8x128xbf16>
    %6 = tpu.concatenate %5, %2, %5 in 0 : vector<8x128xbf16>, vector<56x128xbf16>, vector<8x128xbf16> -> vector<72x128xbf16>
    %7 = vector.extract_strided_slice %6 {offsets = [0, 0], sizes = [56, 128], strides = [1, 1]} : vector<72x128xbf16> to vector<56x128xbf16>
    %8 = vector.extract_strided_slice %6 {offsets = [1, 0], sizes = [56, 128], strides = [1, 1]} : vector<72x128xbf16> to vector<56x128xbf16>
    %9 = vector.extract_strided_slice %6 {offsets = [2, 0], sizes = [56, 128], strides = [1, 1]} : vector<72x128xbf16> to vector<56x128xbf16>
    %10 = vector.extract_strided_slice %6 {offsets = [7, 0], sizes = [56, 128], strides = [1, 1]} : vector<72x128xbf16> to vector<56x128xbf16>
    %11 = vector.extract_strided_slice %6 {offsets = [8, 0], sizes = [56, 128], strides = [1, 1]} : vector<72x128xbf16> to vector<56x128xbf16>
    %12 = vector.extract_strided_slice %6 {offsets = [9, 0], sizes = [56, 128], strides = [1, 1]} : vector<72x128xbf16> to vector<56x128xbf16>
    %13 = vector.extract_strided_slice %6 {offsets = [14, 0], sizes = [56, 128], strides = [1, 1]} : vector<72x128xbf16> to vector<56x128xbf16>
    %14 = vector.extract_strided_slice %6 {offsets = [15, 0], sizes = [56, 128], strides = [1, 1]} : vector<72x128xbf16> to vector<56x128xbf16>
    %15 = vector.extract_strided_slice %6 {offsets = [16, 0], sizes = [56, 128], strides = [1, 1]} : vector<72x128xbf16> to vector<56x128xbf16>
    %16 = tpu.concatenate %7, %8, %9, %10, %11, %12, %13, %14, %15 in 1 : vector<56x128xbf16>, vector<56x128xbf16>, vector<56x128xbf16>, vector<56x128xbf16>, vector<56x128xbf16>, vector<56x128xbf16>, vector<56x128xbf16>, vector<56x128xbf16>, vector<56x128xbf16> -> vector<56x1152xbf16>
    %cst_6 = arith.constant dense<0.000000e+00> : vector<56x256xf32>
    %17 = tpu.matmul %16, %4, %cst_6 {dimension_numbers = #tpu.dot_dimension_numbers<[1], [0], [0], [1], [0, 0, 1, 1], [], []>} : vector<56x1152xbf16>, vector<1152x256xbf16>, vector<56x256xf32> -> vector<56x256xf32>
    %c0_7 = arith.constant 0 : index
    %c0_8 = arith.constant 0 : index
    %18 = vector.load %arg3[%c0_7, %c0_8] : memref<1x256xf32, #tpu.memory_space<vmem>>, vector<1x256xf32>
    %19 = vector.broadcast %18 : vector<1x256xf32> to vector<56x256xf32>
    %20 = arith.addf %17, %19 : vector<56x256xf32>
    %cst_9 = arith.constant 0.000000e+00 : f32
    %21 = vector.broadcast %cst_9 : f32 to vector<56x256xf32>
    %22 = arith.maximumf %20, %21 : vector<56x256xf32>
    %23 = vector.broadcast %3 : vector<56x1xf32> to vector<56x256xf32>
    %24 = arith.mulf %22, %23 : vector<56x256xf32>
    %25 = arith.truncf %24 : vector<56x256xf32> to vector<56x256xbf16>
    %c0_10 = arith.constant 0 : index
    %c0_11 = arith.constant 0 : index
    %26 = vector.load %arg4[%c0_10, %c0_11] : memref<2304x128xbf16, #tpu.memory_space<vmem>>, vector<2304x128xbf16>
    %cst_12 = arith.constant 0.000000e+00 : bf16
    %27 = vector.broadcast %cst_12 : bf16 to vector<8x256xbf16>
    %28 = tpu.concatenate %27, %25, %27 in 0 : vector<8x256xbf16>, vector<56x256xbf16>, vector<8x256xbf16> -> vector<72x256xbf16>
    %29 = vector.extract_strided_slice %28 {offsets = [0, 0], sizes = [56, 256], strides = [1, 1]} : vector<72x256xbf16> to vector<56x256xbf16>
    %30 = vector.extract_strided_slice %28 {offsets = [1, 0], sizes = [56, 256], strides = [1, 1]} : vector<72x256xbf16> to vector<56x256xbf16>
    %31 = vector.extract_strided_slice %28 {offsets = [2, 0], sizes = [56, 256], strides = [1, 1]} : vector<72x256xbf16> to vector<56x256xbf16>
    %32 = vector.extract_strided_slice %28 {offsets = [7, 0], sizes = [56, 256], strides = [1, 1]} : vector<72x256xbf16> to vector<56x256xbf16>
    %33 = vector.extract_strided_slice %28 {offsets = [8, 0], sizes = [56, 256], strides = [1, 1]} : vector<72x256xbf16> to vector<56x256xbf16>
    %34 = vector.extract_strided_slice %28 {offsets = [9, 0], sizes = [56, 256], strides = [1, 1]} : vector<72x256xbf16> to vector<56x256xbf16>
    %35 = vector.extract_strided_slice %28 {offsets = [14, 0], sizes = [56, 256], strides = [1, 1]} : vector<72x256xbf16> to vector<56x256xbf16>
    %36 = vector.extract_strided_slice %28 {offsets = [15, 0], sizes = [56, 256], strides = [1, 1]} : vector<72x256xbf16> to vector<56x256xbf16>
    %37 = vector.extract_strided_slice %28 {offsets = [16, 0], sizes = [56, 256], strides = [1, 1]} : vector<72x256xbf16> to vector<56x256xbf16>
    %38 = tpu.concatenate %29, %30, %31, %32, %33, %34, %35, %36, %37 in 1 : vector<56x256xbf16>, vector<56x256xbf16>, vector<56x256xbf16>, vector<56x256xbf16>, vector<56x256xbf16>, vector<56x256xbf16>, vector<56x256xbf16>, vector<56x256xbf16>, vector<56x256xbf16> -> vector<56x2304xbf16>
    %cst_13 = arith.constant dense<0.000000e+00> : vector<56x128xf32>
    %39 = tpu.matmul %38, %26, %cst_13 {dimension_numbers = #tpu.dot_dimension_numbers<[1], [0], [0], [1], [0, 0, 1, 1], [], []>} : vector<56x2304xbf16>, vector<2304x128xbf16>, vector<56x128xf32> -> vector<56x128xf32>
    %c0_14 = arith.constant 0 : index
    %c0_15 = arith.constant 0 : index
    %40 = vector.load %arg5[%c0_14, %c0_15] : memref<1x128xf32, #tpu.memory_space<vmem>>, vector<1x128xf32>
    %41 = vector.broadcast %40 : vector<1x128xf32> to vector<56x128xf32>
    %42 = arith.addf %39, %41 : vector<56x128xf32>
    %c0_16 = arith.constant 0 : index
    %c0_17 = arith.constant 0 : index
    %43 = vector.load %arg6[%c0_16, %c0_17] : memref<56x128xf32, #tpu.memory_space<vmem>>, vector<56x128xf32>
    %44 = vector.extract_strided_slice %42 {offsets = [0, 0], sizes = [56, 32], strides = [1, 1]} : vector<56x128xf32> to vector<56x32xf32>
    %45 = vector.extract_strided_slice %44 {offsets = [0, 0], sizes = [56, 20], strides = [1, 1]} : vector<56x32xf32> to vector<56x20xf32>
    %46 = vector.extract_strided_slice %44 {offsets = [0, 20], sizes = [56, 1], strides = [1, 1]} : vector<56x32xf32> to vector<56x1xf32>
    %47 = vector.extract_strided_slice %44 {offsets = [0, 21], sizes = [56, 4], strides = [1, 1]} : vector<56x32xf32> to vector<56x4xf32>
    %48 = vector.extract_strided_slice %43 {offsets = [0, 0], sizes = [56, 4], strides = [1, 1]} : vector<56x128xf32> to vector<56x4xf32>
    %cst_18 = arith.constant 18.420681 : f32
    %49 = vector.broadcast %cst_18 : f32 to vector<56x20xf32>
    %50 = arith.minimumf %45, %49 : vector<56x20xf32>
    %51 = math.exp %50 : vector<56x20xf32>
    %cst_19 = arith.constant 1.000000e+00 : f32
    %52 = vector.broadcast %cst_19 : f32 to vector<56x20xf32>
    %53 = arith.addf %52, %51 : vector<56x20xf32>
    %cst_20 = arith.constant 18.420681 : f32
    %54 = vector.broadcast %cst_20 : f32 to vector<56x1xf32>
    %55 = arith.minimumf %46, %54 : vector<56x1xf32>
    %56 = math.exp %55 : vector<56x1xf32>
    %57 = vector.broadcast %56 : vector<56x1xf32> to vector<56x20xf32>
    %58 = arith.addf %53, %57 : vector<56x20xf32>
    %59 = math.log %58 : vector<56x20xf32>
    %60 = vector.broadcast %46 : vector<56x1xf32> to vector<56x20xf32>
    %61 = arith.addf %45, %60 : vector<56x20xf32>
    %62 = arith.subf %61, %59 : vector<56x20xf32>
    %63 = vector.extract_strided_slice %47 {offsets = [0, 0], sizes = [56, 2], strides = [1, 1]} : vector<56x4xf32> to vector<56x2xf32>
    %64 = vector.extract_strided_slice %48 {offsets = [0, 2], sizes = [56, 2], strides = [1, 1]} : vector<56x4xf32> to vector<56x2xf32>
    %65 = arith.mulf %63, %64 : vector<56x2xf32>
    %cst_21 = arith.constant -3.200000e+01 : f32
    %cst_22 = arith.constant 3.200000e+01 : f32
    %66 = vector.broadcast %cst_21 : f32 to vector<56x2xf32>
    %67 = arith.maximumf %66, %65 : vector<56x2xf32>
    %68 = vector.broadcast %cst_22 : f32 to vector<56x2xf32>
    %69 = arith.minimumf %68, %67 : vector<56x2xf32>
    %70 = vector.extract_strided_slice %48 {offsets = [0, 0], sizes = [56, 2], strides = [1, 1]} : vector<56x4xf32> to vector<56x2xf32>
    %71 = arith.addf %70, %69 : vector<56x2xf32>
    %72 = vector.extract_strided_slice %48 {offsets = [0, 2], sizes = [56, 2], strides = [1, 1]} : vector<56x4xf32> to vector<56x2xf32>
    %73 = vector.extract_strided_slice %47 {offsets = [0, 2], sizes = [56, 2], strides = [1, 1]} : vector<56x4xf32> to vector<56x2xf32>
    %cst_23 = arith.constant 4.13516665 : f32
    %74 = vector.broadcast %cst_23 : f32 to vector<56x2xf32>
    %75 = arith.minimumf %73, %74 : vector<56x2xf32>
    %76 = math.exp %75 : vector<56x2xf32>
    %77 = arith.mulf %72, %76 : vector<56x2xf32>
    %cst_24 = arith.constant 5.000000e-01 : f32
    %78 = vector.broadcast %cst_24 : f32 to vector<56x2xf32>
    %79 = arith.mulf %78, %77 : vector<56x2xf32>
    %80 = arith.subf %71, %79 : vector<56x2xf32>
    %cst_25 = arith.constant 5.000000e-01 : f32
    %81 = vector.broadcast %cst_25 : f32 to vector<56x2xf32>
    %82 = arith.mulf %81, %77 : vector<56x2xf32>
    %83 = arith.addf %71, %82 : vector<56x2xf32>
    %cst_26 = arith.constant 0.000000e+00 : f32
    %84 = vector.broadcast %cst_26 : f32 to vector<56x4xf32>
    %85 = tpu.concatenate %62, %80, %83, %47, %84 in 1 : vector<56x20xf32>, vector<56x2xf32>, vector<56x2xf32>, vector<56x4xf32>, vector<56x4xf32> -> vector<56x32xf32>
    %86 = vector.extract_strided_slice %42 {offsets = [0, 32], sizes = [56, 32], strides = [1, 1]} : vector<56x128xf32> to vector<56x32xf32>
    %87 = vector.extract_strided_slice %86 {offsets = [0, 0], sizes = [56, 20], strides = [1, 1]} : vector<56x32xf32> to vector<56x20xf32>
    %88 = vector.extract_strided_slice %86 {offsets = [0, 20], sizes = [56, 1], strides = [1, 1]} : vector<56x32xf32> to vector<56x1xf32>
    %89 = vector.extract_strided_slice %86 {offsets = [0, 21], sizes = [56, 4], strides = [1, 1]} : vector<56x32xf32> to vector<56x4xf32>
    %90 = vector.extract_strided_slice %43 {offsets = [0, 32], sizes = [56, 4], strides = [1, 1]} : vector<56x128xf32> to vector<56x4xf32>
    %cst_27 = arith.constant 18.420681 : f32
    %91 = vector.broadcast %cst_27 : f32 to vector<56x20xf32>
    %92 = arith.minimumf %87, %91 : vector<56x20xf32>
    %93 = math.exp %92 : vector<56x20xf32>
    %cst_28 = arith.constant 1.000000e+00 : f32
    %94 = vector.broadcast %cst_28 : f32 to vector<56x20xf32>
    %95 = arith.addf %94, %93 : vector<56x20xf32>
    %cst_29 = arith.constant 18.420681 : f32
    %96 = vector.broadcast %cst_29 : f32 to vector<56x1xf32>
    %97 = arith.minimumf %88, %96 : vector<56x1xf32>
    %98 = math.exp %97 : vector<56x1xf32>
    %99 = vector.broadcast %98 : vector<56x1xf32> to vector<56x20xf32>
    %100 = arith.addf %95, %99 : vector<56x20xf32>
    %101 = math.log %100 : vector<56x20xf32>
    %102 = vector.broadcast %88 : vector<56x1xf32> to vector<56x20xf32>
    %103 = arith.addf %87, %102 : vector<56x20xf32>
    %104 = arith.subf %103, %101 : vector<56x20xf32>
    %105 = vector.extract_strided_slice %89 {offsets = [0, 0], sizes = [56, 2], strides = [1, 1]} : vector<56x4xf32> to vector<56x2xf32>
    %106 = vector.extract_strided_slice %90 {offsets = [0, 2], sizes = [56, 2], strides = [1, 1]} : vector<56x4xf32> to vector<56x2xf32>
    %107 = arith.mulf %105, %106 : vector<56x2xf32>
    %cst_30 = arith.constant -3.200000e+01 : f32
    %cst_31 = arith.constant 3.200000e+01 : f32
    %108 = vector.broadcast %cst_30 : f32 to vector<56x2xf32>
    %109 = arith.maximumf %108, %107 : vector<56x2xf32>
    %110 = vector.broadcast %cst_31 : f32 to vector<56x2xf32>
    %111 = arith.minimumf %110, %109 : vector<56x2xf32>
    %112 = vector.extract_strided_slice %90 {offsets = [0, 0], sizes = [56, 2], strides = [1, 1]} : vector<56x4xf32> to vector<56x2xf32>
    %113 = arith.addf %112, %111 : vector<56x2xf32>
    %114 = vector.extract_strided_slice %90 {offsets = [0, 2], sizes = [56, 2], strides = [1, 1]} : vector<56x4xf32> to vector<56x2xf32>
    %115 = vector.extract_strided_slice %89 {offsets = [0, 2], sizes = [56, 2], strides = [1, 1]} : vector<56x4xf32> to vector<56x2xf32>
    %cst_32 = arith.constant 4.13516665 : f32
    %116 = vector.broadcast %cst_32 : f32 to vector<56x2xf32>
    %117 = arith.minimumf %115, %116 : vector<56x2xf32>
    %118 = math.exp %117 : vector<56x2xf32>
    %119 = arith.mulf %114, %118 : vector<56x2xf32>
    %cst_33 = arith.constant 5.000000e-01 : f32
    %120 = vector.broadcast %cst_33 : f32 to vector<56x2xf32>
    %121 = arith.mulf %120, %119 : vector<56x2xf32>
    %122 = arith.subf %113, %121 : vector<56x2xf32>
    %cst_34 = arith.constant 5.000000e-01 : f32
    %123 = vector.broadcast %cst_34 : f32 to vector<56x2xf32>
    %124 = arith.mulf %123, %119 : vector<56x2xf32>
    %125 = arith.addf %113, %124 : vector<56x2xf32>
    %cst_35 = arith.constant 0.000000e+00 : f32
    %126 = vector.broadcast %cst_35 : f32 to vector<56x4xf32>
    %127 = tpu.concatenate %104, %122, %125, %89, %126 in 1 : vector<56x20xf32>, vector<56x2xf32>, vector<56x2xf32>, vector<56x4xf32>, vector<56x4xf32> -> vector<56x32xf32>
    %128 = vector.extract_strided_slice %42 {offsets = [0, 64], sizes = [56, 32], strides = [1, 1]} : vector<56x128xf32> to vector<56x32xf32>
    %129 = vector.extract_strided_slice %128 {offsets = [0, 0], sizes = [56, 20], strides = [1, 1]} : vector<56x32xf32> to vector<56x20xf32>
    %130 = vector.extract_strided_slice %128 {offsets = [0, 20], sizes = [56, 1], strides = [1, 1]} : vector<56x32xf32> to vector<56x1xf32>
    %131 = vector.extract_strided_slice %128 {offsets = [0, 21], sizes = [56, 4], strides = [1, 1]} : vector<56x32xf32> to vector<56x4xf32>
    %132 = vector.extract_strided_slice %43 {offsets = [0, 64], sizes = [56, 4], strides = [1, 1]} : vector<56x128xf32> to vector<56x4xf32>
    %cst_36 = arith.constant 18.420681 : f32
    %133 = vector.broadcast %cst_36 : f32 to vector<56x20xf32>
    %134 = arith.minimumf %129, %133 : vector<56x20xf32>
    %135 = math.exp %134 : vector<56x20xf32>
    %cst_37 = arith.constant 1.000000e+00 : f32
    %136 = vector.broadcast %cst_37 : f32 to vector<56x20xf32>
    %137 = arith.addf %136, %135 : vector<56x20xf32>
    %cst_38 = arith.constant 18.420681 : f32
    %138 = vector.broadcast %cst_38 : f32 to vector<56x1xf32>
    %139 = arith.minimumf %130, %138 : vector<56x1xf32>
    %140 = math.exp %139 : vector<56x1xf32>
    %141 = vector.broadcast %140 : vector<56x1xf32> to vector<56x20xf32>
    %142 = arith.addf %137, %141 : vector<56x20xf32>
    %143 = math.log %142 : vector<56x20xf32>
    %144 = vector.broadcast %130 : vector<56x1xf32> to vector<56x20xf32>
    %145 = arith.addf %129, %144 : vector<56x20xf32>
    %146 = arith.subf %145, %143 : vector<56x20xf32>
    %147 = vector.extract_strided_slice %131 {offsets = [0, 0], sizes = [56, 2], strides = [1, 1]} : vector<56x4xf32> to vector<56x2xf32>
    %148 = vector.extract_strided_slice %132 {offsets = [0, 2], sizes = [56, 2], strides = [1, 1]} : vector<56x4xf32> to vector<56x2xf32>
    %149 = arith.mulf %147, %148 : vector<56x2xf32>
    %cst_39 = arith.constant -3.200000e+01 : f32
    %cst_40 = arith.constant 3.200000e+01 : f32
    %150 = vector.broadcast %cst_39 : f32 to vector<56x2xf32>
    %151 = arith.maximumf %150, %149 : vector<56x2xf32>
    %152 = vector.broadcast %cst_40 : f32 to vector<56x2xf32>
    %153 = arith.minimumf %152, %151 : vector<56x2xf32>
    %154 = vector.extract_strided_slice %132 {offsets = [0, 0], sizes = [56, 2], strides = [1, 1]} : vector<56x4xf32> to vector<56x2xf32>
    %155 = arith.addf %154, %153 : vector<56x2xf32>
    %156 = vector.extract_strided_slice %132 {offsets = [0, 2], sizes = [56, 2], strides = [1, 1]} : vector<56x4xf32> to vector<56x2xf32>
    %157 = vector.extract_strided_slice %131 {offsets = [0, 2], sizes = [56, 2], strides = [1, 1]} : vector<56x4xf32> to vector<56x2xf32>
    %cst_41 = arith.constant 4.13516665 : f32
    %158 = vector.broadcast %cst_41 : f32 to vector<56x2xf32>
    %159 = arith.minimumf %157, %158 : vector<56x2xf32>
    %160 = math.exp %159 : vector<56x2xf32>
    %161 = arith.mulf %156, %160 : vector<56x2xf32>
    %cst_42 = arith.constant 5.000000e-01 : f32
    %162 = vector.broadcast %cst_42 : f32 to vector<56x2xf32>
    %163 = arith.mulf %162, %161 : vector<56x2xf32>
    %164 = arith.subf %155, %163 : vector<56x2xf32>
    %cst_43 = arith.constant 5.000000e-01 : f32
    %165 = vector.broadcast %cst_43 : f32 to vector<56x2xf32>
    %166 = arith.mulf %165, %161 : vector<56x2xf32>
    %167 = arith.addf %155, %166 : vector<56x2xf32>
    %cst_44 = arith.constant 0.000000e+00 : f32
    %168 = vector.broadcast %cst_44 : f32 to vector<56x4xf32>
    %169 = tpu.concatenate %146, %164, %167, %131, %168 in 1 : vector<56x20xf32>, vector<56x2xf32>, vector<56x2xf32>, vector<56x4xf32>, vector<56x4xf32> -> vector<56x32xf32>
    %cst_45 = arith.constant 0.000000e+00 : f32
    %170 = vector.broadcast %cst_45 : f32 to vector<56x32xf32>
    %171 = tpu.concatenate %85, %127, %169, %170 in 1 : vector<56x32xf32>, vector<56x32xf32>, vector<56x32xf32>, vector<56x32xf32> -> vector<56x128xf32>
    %172 = vector.broadcast %3 : vector<56x1xf32> to vector<56x128xf32>
    %173 = arith.mulf %171, %172 : vector<56x128xf32>
    %c0_46 = arith.constant 0 : index
    %c0_47 = arith.constant 0 : index
    %c0_48 = arith.constant 0 : index
    %174 = vector.load %arg8[%c0_46, %c0_47, %c0_48] : memref<1x56x128xf32, #tpu.memory_space<vmem>>, vector<1x56x128xf32>
    %175 = vector.shape_cast %174 : vector<1x56x128xf32> to vector<56x128xf32>
    %176 = vector.shape_cast %173 : vector<56x128xf32> to vector<1x56x128xf32>
    tpu.vector_store %arg8[%c0_46, %c0_47, %c0_48], %176 {strides = array<i32>} : memref<1x56x128xf32, #tpu.memory_space<vmem>>, vector<1x56x128xf32>,
    return
  }
  func.func @transform_0(%arg0: i32) -> (i32, i32, i32) {
    %c0_i32 = arith.constant 0 : i32
    %c0_i32_0 = arith.constant 0 : i32
    %c0_i32_1 = arith.constant 0 : i32
    return %arg0, %c0_i32, %c0_i32_0 : i32, i32, i32
  }
  func.func @transform_1(%arg0: i32) -> (i32, i32) {
    %c0_i32 = arith.constant 0 : i32
    %c0_i32_0 = arith.constant 0 : i32
    %c0_i32_1 = arith.constant 0 : i32
    return %c0_i32, %c0_i32_0 : i32, i32
  }
  func.func @transform_2(%arg0: i32) -> (i32, i32) {
    %c0_i32 = arith.constant 0 : i32
    %c0_i32_0 = arith.constant 0 : i32
    %c0_i32_1 = arith.constant 0 : i32
    return %c0_i32, %c0_i32_0 : i32, i32
  }
  func.func @transform_3(%arg0: i32) -> (i32, i32) {
    %c0_i32 = arith.constant 0 : i32
    %c0_i32_0 = arith.constant 0 : i32
    %c0_i32_1 = arith.constant 0 : i32
    return %c0_i32, %c0_i32_0 : i32, i32
  }
  func.func @transform_4(%arg0: i32) -> (i32, i32) {
    %c0_i32 = arith.constant 0 : i32
    %c0_i32_0 = arith.constant 0 : i32
    %c0_i32_1 = arith.constant 0 : i32
    return %c0_i32, %c0_i32_0 : i32, i32
  }
  func.func @transform_5(%arg0: i32) -> (i32, i32) {
    %c0_i32 = arith.constant 0 : i32
    %c0_i32_0 = arith.constant 0 : i32
    %c0_i32_1 = arith.constant 0 : i32
    return %c0_i32, %c0_i32_0 : i32, i32
  }
  func.func @transform_6(%arg0: i32) -> (i32, i32) {
    %c0_i32 = arith.constant 0 : i32
    %c0_i32_0 = arith.constant 0 : i32
    %c0_i32_1 = arith.constant 0 : i32
    return %c0_i32, %c0_i32_0 : i32, i32
  }
  func.func @transform_7(%arg0: i32) -> (i32, i32, i32) {
    %c0_i32 = arith.constant 0 : i32
    %c0_i32_0 = arith.constant 0 : i32
    %c0_i32_1 = arith.constant 0 : i32
    return %arg0, %c0_i32, %c0_i32_0 : i32, i32, i32
  }
}

</mosaic_0001>

<llo_original>
// kernel: forward.3
$region0: #{forward.3}
  #allocation0 [shape = 'u32[]', space=smem, size = 0x4, offset = 0x4, fixed_abs, tag = 'smem constant byte address 0x4 - core index']
  #allocation1 [shape = 'u32[144,128]{1,0:T(1,128)}', space=vmem, size = 0x12000, scoped, tag = 'internal scratch']
  %s0 = inlined_call_operand.vmem [shape: bf16[8,1024,32], index: 0, kind: input, shape index: {}]
  %s1 = inlined_call_operand.vmem [shape: bf16[32,128], index: 1, kind: input, shape index: {}]
  %s2 = inlined_call_operand.vmem [shape: f32[1,128], index: 2, kind: input, shape index: {}]
  %s3 = inlined_call_operand.vmem [shape: bf16[56,1024], index: 3, kind: input, shape index: {}]
  %s4 = inlined_call_operand.vmem [shape: bf16[8,56,128], index: 4, kind: output, shape index: {}]
  %s5 = sld [smem:[#allocation0]]
  $region49: #{forward.3} parent=0
    _
  %s7 = ssub.s32 1, %s5
  %s8 = scalar_select 0, %s7, %s5
  loop: start=0, step=1, limit=10
  $region2: #{forward.3} parent=0 // loop_pre_header
    _
  $region3: #{forward.3} parent=0 // loop_header
    %s10 = sphi 0, %s14
    %p11 = scmp.ge.s32.totalorder %s10, 10
    %s20 = sphi 0, %s22
    %s23 = sphi 0, %s20
    %s24 = sphi 0, %s23
    %s40 = sphi 0, %s24
    %s44 = sphi 0, %s44
    %s46 = sphi 0, %s44
    %s47 = sphi 0, %s46
    %s61 = sphi 0, %s47
    %s65 = sphi 0, %s65
    %s67 = sphi 0, %s65
    %s68 = sphi 0, %s67
    %s82 = sphi 0, %s68
    %s86 = sphi 0, %s86
    %s88 = sphi 0, %s86
    %s89 = sphi 0, %s88
    %s103 = sphi 0, %s89
    %s109 = sphi 0, %s111
    %s112 = sphi 0, %s109
    %s113 = sphi 0, %s112
    %s129 = sphi 0, %s113
  $region4: #{forward.3} parent=0 // loop_header_branch
    %13 = sbr.rel (%p11) target = $region8
  $region5: #{forward.3} parent=0 // loop_body
    %s15 = ssub.s32 %s10, 1
    %s16 = ssub.s32 %s10, 2
    %s17 = sadd.s32 %s10, 1
    %s18 = ssub.s32 %s10, %s17
    %p19 = scmp.eq.s32.totalorder %s18, 0
    %s21 = sadd.s32 %s20, 1
    %s22 = scalar_select %p19, %s20, %s21
    %p25 = pneg %p19
    %p26 = scmp.eq.s32.totalorder %s10, 7
    %p27 = por %p25, %p26
    %p28 = scmp.ne.s32.totalorder %s20, %s23
    %p29 = scmp.eq.s32.totalorder %s10, 0
    %p30 = por %p28, %p29
    %p31 = scmp.ne.s32.totalorder %s20, %s23
    %p32 = scmp.eq.s32.totalorder %s15, 7
    %p33 = por %p31, %p32
    %p34 = scmp.ne.s32.totalorder %s23, %s24
    %p35 = scmp.eq.s32.totalorder %s15, 0
    %p36 = por %p34, %p35
    %p37 = scmp.ne.s32.totalorder %s23, %s24
    %p38 = scmp.eq.s32.totalorder %s16, 7
    %p39 = por %p37, %p38
    %p41 = scmp.ne.s32.totalorder %s24, %s40
    %p42 = scmp.eq.s32.totalorder %s16, 0
    %p43 = por %p41, %p42
    %s45 = sadd.s32 %s44, 1
    %p48 = scmp.eq.s32.totalorder %s10, 7
    %p49 = scmp.ne.s32.totalorder %s44, %s46
    %p50 = scmp.eq.s32.totalorder %s10, 0
    %p51 = por %p49, %p50
    %p52 = scmp.ne.s32.totalorder %s44, %s46
    %p53 = scmp.eq.s32.totalorder %s15, 7
    %p54 = por %p52, %p53
    %p55 = scmp.ne.s32.totalorder %s46, %s47
    %p56 = scmp.eq.s32.totalorder %s15, 0
    %p57 = por %p55, %p56
    %p58 = scmp.ne.s32.totalorder %s46, %s47
    %p59 = scmp.eq.s32.totalorder %s16, 7
    %p60 = por %p58, %p59
    %p62 = scmp.ne.s32.totalorder %s47, %s61
    %p63 = scmp.eq.s32.totalorder %s16, 0
    %p64 = por %p62, %p63
    %s66 = sadd.s32 %s65, 1
    %p69 = scmp.eq.s32.totalorder %s10, 7
    %p70 = scmp.ne.s32.totalorder %s65, %s67
    %p71 = scmp.eq.s32.totalorder %s10, 0
    %p72 = por %p70, %p71
    %p73 = scmp.ne.s32.totalorder %s65, %s67
    %p74 = scmp.eq.s32.totalorder %s15, 7
    %p75 = por %p73, %p74
    %p76 = scmp.ne.s32.totalorder %s67, %s68
    %p77 = scmp.eq.s32.totalorder %s15, 0
    %p78 = por %p76, %p77
    %p79 = scmp.ne.s32.totalorder %s67, %s68
    %p80 = scmp.eq.s32.totalorder %s16, 7
    %p81 = por %p79, %p80
    %p83 = scmp.ne.s32.totalorder %s68, %s82
    %p84 = scmp.eq.s32.totalorder %s16, 0
    %p85 = por %p83, %p84
    %s87 = sadd.s32 %s86, 1
    %p90 = scmp.eq.s32.totalorder %s10, 7
    %p91 = scmp.ne.s32.totalorder %s86, %s88
    %p92 = scmp.eq.s32.totalorder %s10, 0
    %p93 = por %p91, %p92
    %p94 = scmp.ne.s32.totalorder %s86, %s88
    %p95 = scmp.eq.s32.totalorder %s15, 7
    %p96 = por %p94, %p95
    %p97 = scmp.ne.s32.totalorder %s88, %s89
    %p98 = scmp.eq.s32.totalorder %s15, 0
    %p99 = por %p97, %p98
    %p100 = scmp.ne.s32.totalorder %s88, %s89
    %p101 = scmp.eq.s32.totalorder %s16, 7
    %p102 = por %p100, %p101
    %p104 = scmp.ne.s32.totalorder %s89, %s103
    %p105 = scmp.eq.s32.totalorder %s16, 0
    %p106 = por %p104, %p105
    %s107 = ssub.s32 %s10, %s17
    %p108 = scmp.eq.s32.totalorder %s107, 0
    %s110 = sadd.s32 %s109, 1
    %s111 = scalar_select %p108, %s109, %s110
    %p114 = pneg %p108
    %p115 = scmp.eq.s32.totalorder %s10, 7
    %p116 = por %p114, %p115
    %p117 = scmp.ne.s32.totalorder %s109, %s112
    %p118 = scmp.eq.s32.totalorder %s10, 0
    %p119 = por %p117, %p118
    %p120 = scmp.ne.s32.totalorder %s109, %s112
    %p121 = scmp.eq.s32.totalorder %s15, 7
    %p122 = por %p120, %p121
    %p123 = scmp.ne.s32.totalorder %s112, %s113
    %p124 = scmp.eq.s32.totalorder %s15, 0
    %p125 = por %p123, %p124
    %p126 = scmp.ne.s32.totalorder %s112, %s113
    %p127 = scmp.eq.s32.totalorder %s16, 7
    %p128 = por %p126, %p127
    %p130 = scmp.ne.s32.totalorder %s113, %s129
    %p131 = scmp.eq.s32.totalorder %s16, 0
    %p132 = por %p130, %p131
    %p133 = scmp.le.s32.totalorder 1, %s10
    %p134 = scmp.lt.s32.totalorder %s10, 9
    %p135 = pnand %p133, %p134
    %p136 = pneg %p135
    // Predicated region
    $region9: #{forward.3} parent=5 // pred_check
      _
    $region10: #{forward.3} parent=5 // pred_check_branch
      %138 = sbr.rel (%p135) target = $region12
    $region11: #{forward.3} parent=5 // pred_region
      %s139 = ssub.s32 %s10, 1
      // Predicated region
      $region13: #{forward.3} parent=11 // pred_check
        %p140 = pneg %p57
      $region14: #{forward.3} parent=11 // pred_check_branch
        %142 = sbr.rel (%p140) target = $region16
      $region15: #{forward.3} parent=11 // pred_region
        _
      $region16: #{forward.3} parent=11 // pred_fallthru
        _
      // Predicated region
      $region17: #{forward.3} parent=11 // pred_check
        %p143 = pneg %p78
      $region18: #{forward.3} parent=11 // pred_check_branch
        %145 = sbr.rel (%p143) target = $region20
      $region19: #{forward.3} parent=11 // pred_region
        _
      $region20: #{forward.3} parent=11 // pred_fallthru
        _
      // Predicated region
      $region21: #{forward.3} parent=11 // pred_check
        %p146 = pneg %p99
      $region22: #{forward.3} parent=11 // pred_check_branch
        %148 = sbr.rel (%p146) target = $region24
      $region23: #{forward.3} parent=11 // pred_region
        _
      $region24: #{forward.3} parent=11 // pred_fallthru
        _
    $region12: #{forward.3} parent=5 // pred_fallthru
      _
    %p149 = scmp.lt.s32.totalorder %s10, 8
    // Predicated region
    $region25: #{forward.3} parent=5 // pred_check
      %p150 = pneg %p149
    $region26: #{forward.3} parent=5 // pred_check_branch
      %152 = sbr.rel (%p150) target = $region28
    $region27: #{forward.3} parent=5 // pred_region
      // Predicated region
      $region29: #{forward.3} parent=27 // pred_check
        %p153 = pneg %p30
      $region30: #{forward.3} parent=27 // pred_check_branch
        %155 = sbr.rel (%p153) target = $region32
      $region31: #{forward.3} parent=27 // pred_region
        %p156 = scmp.lt.s32.totalorder %s10, 7
        %s157 = scalar_select %p156, %s10, 7
        %s158 = smul.addr %s157, 128
        %s159 = smul.addr %s158, 4
        %s160 = scalar_lea.vmem %s0, %s159
      $region32: #{forward.3} parent=27 // pred_fallthru
        _
    $region28: #{forward.3} parent=5 // pred_fallthru
      _
    %p161 = scmp.le.s32.totalorder 1, %s10
    %p162 = scmp.lt.s32.totalorder %s10, 9
    %p163 = pnand %p161, %p162
    %p164 = pneg %p163
    // Predicated region
    $region33: #{forward.3} parent=5 // pred_check
      _
    $region34: #{forward.3} parent=5 // pred_check_branch
      %166 = sbr.rel (%p163) target = $region36
    $region35: #{forward.3} parent=5 // pred_region
      %s167 = ssub.s32 %s10, 1
      %p168 = scmp.lt.s32.totalorder %s15, 7
      %s169 = scalar_select %p168, %s15, 7
      %s170 = smul.addr %s169, 128
      %s171 = smul.addr %s170, 4
      %s172 = scalar_lea.vmem %s0, %s171
      %p173 = pneg %p36
      %p174 = pneg %p33
      %p175 = pneg %p57
      %p176 = pneg %p54
      %p177 = pneg %p78
      %p178 = pneg %p75
      %p179 = pneg %p99
      %p180 = pneg %p96
      %p181 = pneg %p125
      %p182 = pneg %p122
      %p183 = scmp.lt.s32.totalorder %s15, 7
      %s184 = scalar_select %p183, %s15, 7
      %s185 = smul.addr %s184, 7
      %s186 = smul.addr %s185, 4
      %s187 = scalar_lea.vmem %s4, %s186
      %p188 = scmp.lt.s32.totalorder %s15, 7
      %s189 = scalar_select %p188, %s15, 7
      %s190 = smul.addr %s189, 128
      %s191 = smul.addr %s190, 4
      %s192 = scalar_lea.vmem %s0, %s191
      %p193 = scmp.lt.s32.totalorder %s15, 7
      %s194 = scalar_select %p193, %s15, 7
      %s195 = smul.addr %s194, 7
      %s196 = smul.addr %s195, 4
      %s197 = scalar_lea.vmem %s4, %s196
      %v199 = vld [vmem:[%s192] sm:$0xf]
      %v200 = vld [vmem:[%s192 + $0x4] sm:$0xf]
      %v201 = vld [vmem:[%s192 + $0x8] sm:$0xf]
      %v202 = vld [vmem:[%s192 + $0xc] sm:$0xf]
      %v203 = vld [vmem:[%s192 + $0x10] sm:$0xf]
      %v204 = vld [vmem:[%s192 + $0x14] sm:$0xf]
      %v205 = vld [vmem:[%s192 + $0x18] sm:$0xf]
      %v206 = vld [vmem:[%s192 + $0x1c] sm:$0xf]
      %v207 = vld [vmem:[%s192 + $0x20] sm:$0xf]
      %v208 = vld [vmem:[%s192 + $0x24] sm:$0xf]
      %v209 = vld [vmem:[%s192 + $0x28] sm:$0xf]
      %v210 = vld [vmem:[%s192 + $0x2c] sm:$0xf]
      %v211 = vld [vmem:[%s192 + $0x30] sm:$0xf]
      %v212 = vld [vmem:[%s192 + $0x34] sm:$0xf]
      %v213 = vld [vmem:[%s192 + $0x38] sm:$0xf]
      %v214 = vld [vmem:[%s192 + $0x3c] sm:$0xf]
      %v215 = vld [vmem:[%s192 + $0x40] sm:$0xf]
      %v216 = vld [vmem:[%s192 + $0x44] sm:$0xf]
      %v217 = vld [vmem:[%s192 + $0x48] sm:$0xf]
      %v218 = vld [vmem:[%s192 + $0x4c] sm:$0xf]
      %v219 = vld [vmem:[%s192 + $0x50] sm:$0xf]
      %v220 = vld [vmem:[%s192 + $0x54] sm:$0xf]
      %v221 = vld [vmem:[%s192 + $0x58] sm:$0xf]
      %v222 = vld [vmem:[%s192 + $0x5c] sm:$0xf]
      %v223 = vld [vmem:[%s192 + $0x60] sm:$0xf]
      %v224 = vld [vmem:[%s192 + $0x64] sm:$0xf]
      %v225 = vld [vmem:[%s192 + $0x68] sm:$0xf]
      %v226 = vld [vmem:[%s192 + $0x6c] sm:$0xf]
      %v227 = vld [vmem:[%s192 + $0x70] sm:$0xf]
      %v228 = vld [vmem:[%s192 + $0x74] sm:$0xf]
      %v229 = vld [vmem:[%s192 + $0x78] sm:$0xf]
      %v230 = vld [vmem:[%s192 + $0x7c] sm:$0xf]
      %v231 = vld [vmem:[%s192 + $0x80] sm:$0xf]
      %v232 = vld [vmem:[%s192 + $0x84] sm:$0xf]
      %v233 = vld [vmem:[%s192 + $0x88] sm:$0xf]
      %v234 = vld [vmem:[%s192 + $0x8c] sm:$0xf]
      %v235 = vld [vmem:[%s192 + $0x90] sm:$0xf]
      %v236 = vld [vmem:[%s192 + $0x94] sm:$0xf]
      %v237 = vld [vmem:[%s192 + $0x98] sm:$0xf]
      %v238 = vld [vmem:[%s192 + $0x9c] sm:$0xf]
      %v239 = vld [vmem:[%s192 + $0xa0] sm:$0xf]
      %v240 = vld [vmem:[%s192 + $0xa4] sm:$0xf]
      %v241 = vld [vmem:[%s192 + $0xa8] sm:$0xf]
      %v242 = vld [vmem:[%s192 + $0xac] sm:$0xf]
      %v243 = vld [vmem:[%s192 + $0xb0] sm:$0xf]
      %v244 = vld [vmem:[%s192 + $0xb4] sm:$0xf]
      %v245 = vld [vmem:[%s192 + $0xb8] sm:$0xf]
      %v246 = vld [vmem:[%s192 + $0xbc] sm:$0xf]
      %v247 = vld [vmem:[%s192 + $0xc0] sm:$0xf]
      %v248 = vld [vmem:[%s192 + $0xc4] sm:$0xf]
      %v249 = vld [vmem:[%s192 + $0xc8] sm:$0xf]
      %v250 = vld [vmem:[%s192 + $0xcc] sm:$0xf]
      %v251 = vld [vmem:[%s192 + $0xd0] sm:$0xf]
      %v252 = vld [vmem:[%s192 + $0xd4] sm:$0xf]
      %v253 = vld [vmem:[%s192 + $0xd8] sm:$0xf]
      %v254 = vld [vmem:[%s192 + $0xdc] sm:$0xf]
      %v255 = vld [vmem:[%s192 + $0xe0] sm:$0xf]
      %v256 = vld [vmem:[%s192 + $0xe4] sm:$0xf]
      %v257 = vld [vmem:[%s192 + $0xe8] sm:$0xf]
      %v258 = vld [vmem:[%s192 + $0xec] sm:$0xf]
      %v259 = vld [vmem:[%s192 + $0xf0] sm:$0xf]
      %v260 = vld [vmem:[%s192 + $0xf4] sm:$0xf]
      %v261 = vld [vmem:[%s192 + $0xf8] sm:$0xf]
      %v262 = vld [vmem:[%s192 + $0xfc] sm:$0xf]
      %v263 = vld [vmem:[%s192 + $0x100] sm:$0xf]
      %v264 = vld [vmem:[%s192 + $0x104] sm:$0xf]
      %v265 = vld [vmem:[%s192 + $0x108] sm:$0xf]
      %v266 = vld [vmem:[%s192 + $0x10c] sm:$0xf]
      %v267 = vld [vmem:[%s192 + $0x110] sm:$0xf]
      %v268 = vld [vmem:[%s192 + $0x114] sm:$0xf]
      %v269 = vld [vmem:[%s192 + $0x118] sm:$0xf]
      %v270 = vld [vmem:[%s192 + $0x11c] sm:$0xf]
      %v271 = vld [vmem:[%s192 + $0x120] sm:$0xf]
      %v272 = vld [vmem:[%s192 + $0x124] sm:$0xf]
      %v273 = vld [vmem:[%s192 + $0x128] sm:$0xf]
      %v274 = vld [vmem:[%s192 + $0x12c] sm:$0xf]
      %v275 = vld [vmem:[%s192 + $0x130] sm:$0xf]
      %v276 = vld [vmem:[%s192 + $0x134] sm:$0xf]
      %v277 = vld [vmem:[%s192 + $0x138] sm:$0xf]
      %v278 = vld [vmem:[%s192 + $0x13c] sm:$0xf]
      %v279 = vld [vmem:[%s192 + $0x140] sm:$0xf]
      %v280 = vld [vmem:[%s192 + $0x144] sm:$0xf]
      %v281 = vld [vmem:[%s192 + $0x148] sm:$0xf]
      %v282 = vld [vmem:[%s192 + $0x14c] sm:$0xf]
      %v283 = vld [vmem:[%s192 + $0x150] sm:$0xf]
      %v284 = vld [vmem:[%s192 + $0x154] sm:$0xf]
      %v285 = vld [vmem:[%s192 + $0x158] sm:$0xf]
      %v286 = vld [vmem:[%s192 + $0x15c] sm:$0xf]
      %v287 = vld [vmem:[%s192 + $0x160] sm:$0xf]
      %v288 = vld [vmem:[%s192 + $0x164] sm:$0xf]
      %v289 = vld [vmem:[%s192 + $0x168] sm:$0xf]
      %v290 = vld [vmem:[%s192 + $0x16c] sm:$0xf]
      %v291 = vld [vmem:[%s192 + $0x170] sm:$0xf]
      %v292 = vld [vmem:[%s192 + $0x174] sm:$0xf]
      %v293 = vld [vmem:[%s192 + $0x178] sm:$0xf]
      %v294 = vld [vmem:[%s192 + $0x17c] sm:$0xf]
      %v295 = vld [vmem:[%s192 + $0x180] sm:$0xf]
      %v296 = vld [vmem:[%s192 + $0x184] sm:$0xf]
      %v297 = vld [vmem:[%s192 + $0x188] sm:$0xf]
      %v298 = vld [vmem:[%s192 + $0x18c] sm:$0xf]
      %v299 = vld [vmem:[%s192 + $0x190] sm:$0xf]
      %v300 = vld [vmem:[%s192 + $0x194] sm:$0xf]
      %v301 = vld [vmem:[%s192 + $0x198] sm:$0xf]
      %v302 = vld [vmem:[%s192 + $0x19c] sm:$0xf]
      %v303 = vld [vmem:[%s192 + $0x1a0] sm:$0xf]
      %v304 = vld [vmem:[%s192 + $0x1a4] sm:$0xf]
      %v305 = vld [vmem:[%s192 + $0x1a8] sm:$0xf]
      %v306 = vld [vmem:[%s192 + $0x1ac] sm:$0xf]
      %v307 = vld [vmem:[%s192 + $0x1b0] sm:$0xf]
      %v308 = vld [vmem:[%s192 + $0x1b4] sm:$0xf]
      %v309 = vld [vmem:[%s192 + $0x1b8] sm:$0xf]
      %v310 = vld [vmem:[%s192 + $0x1bc] sm:$0xf]
      %v311 = vld [vmem:[%s192 + $0x1c0] sm:$0xf]
      %v312 = vld [vmem:[%s192 + $0x1c4] sm:$0xf]
      %v313 = vld [vmem:[%s192 + $0x1c8] sm:$0xf]
      %v314 = vld [vmem:[%s192 + $0x1cc] sm:$0xf]
      %v315 = vld [vmem:[%s192 + $0x1d0] sm:$0xf]
      %v316 = vld [vmem:[%s192 + $0x1d4] sm:$0xf]
      %v317 = vld [vmem:[%s192 + $0x1d8] sm:$0xf]
      %v318 = vld [vmem:[%s192 + $0x1dc] sm:$0xf]
      %v319 = vld [vmem:[%s192 + $0x1e0] sm:$0xf]
      %v320 = vld [vmem:[%s192 + $0x1e4] sm:$0xf]
      %v321 = vld [vmem:[%s192 + $0x1e8] sm:$0xf]
      %v322 = vld [vmem:[%s192 + $0x1ec] sm:$0xf]
      %v323 = vld [vmem:[%s192 + $0x1f0] sm:$0xf]
      %v324 = vld [vmem:[%s192 + $0x1f4] sm:$0xf]
      %v325 = vld [vmem:[%s192 + $0x1f8] sm:$0xf]
      %v326 = vld [vmem:[%s192 + $0x1fc] sm:$0xf]
      %v327 = vld [vmem:[%s1] sm:$0xf]
      %v328 = vld [vmem:[%s1 + $0x4] sm:$0xf]
      %v329 = vld [vmem:[%s1 + $0x8] sm:$0xf]
      %v330 = vld [vmem:[%s1 + $0xc] sm:$0xf]
      %v331 = vld [vmem:[%s2] sm:$0x1]
      %v333 = vlaneseq
      %v334 = vshrl.u32 %v333, 7
      %v335 = vsub.s32 0, %v334
      %v336 = vrot.slane %v331, %v335
      %v466 = vunpack.c.l.b16 %v199
      %v467 = vunpack.c.l.b16 %v200
      %v468 = vunpack.c.l.b16 %v201
      %v469 = vunpack.c.l.b16 %v202
      %v470 = vunpack.c.l.b16 %v203
      %v471 = vunpack.c.l.b16 %v204
      %v472 = vunpack.c.l.b16 %v205
      %v473 = vunpack.c.l.b16 %v206
      %v474 = vunpack.c.l.b16 %v207
      %v475 = vunpack.c.l.b16 %v208
      %v476 = vunpack.c.l.b16 %v209
      %v477 = vunpack.c.l.b16 %v210
      %v478 = vunpack.c.l.b16 %v211
      %v479 = vunpack.c.l.b16 %v212
      %v480 = vunpack.c.l.b16 %v213
      %v481 = vunpack.c.l.b16 %v214
      %v482 = vunpack.c.l.b16 %v215
      %v483 = vunpack.c.l.b16 %v216
      %v484 = vunpack.c.l.b16 %v217
      %v485 = vunpack.c.l.b16 %v218
      %v486 = vunpack.c.l.b16 %v219
      %v487 = vunpack.c.l.b16 %v220
      %v488 = vunpack.c.l.b16 %v221
      %v489 = vunpack.c.l.b16 %v222
      %v490 = vunpack.c.l.b16 %v223
      %v491 = vunpack.c.l.b16 %v224
      %v492 = vunpack.c.l.b16 %v225
      %v493 = vunpack.c.l.b16 %v226
      %v494 = vunpack.c.l.b16 %v227
      %v495 = vunpack.c.l.b16 %v228
      %v496 = vunpack.c.l.b16 %v229
      %v497 = vunpack.c.l.b16 %v230
      %v498 = vunpack.c.l.b16 %v231
      %v499 = vunpack.c.l.b16 %v232
      %v500 = vunpack.c.l.b16 %v233
      %v501 = vunpack.c.l.b16 %v234
      %v502 = vunpack.c.l.b16 %v235
      %v503 = vunpack.c.l.b16 %v236
      %v504 = vunpack.c.l.b16 %v237
      %v505 = vunpack.c.l.b16 %v238
      %v506 = vunpack.c.l.b16 %v239
      %v507 = vunpack.c.l.b16 %v240
      %v508 = vunpack.c.l.b16 %v241
      %v509 = vunpack.c.l.b16 %v242
      %v510 = vunpack.c.l.b16 %v243
      %v511 = vunpack.c.l.b16 %v244
      %v512 = vunpack.c.l.b16 %v245
      %v513 = vunpack.c.l.b16 %v246
      %v514 = vunpack.c.l.b16 %v247
      %v515 = vunpack.c.l.b16 %v248
      %v516 = vunpack.c.l.b16 %v249
      %v517 = vunpack.c.l.b16 %v250
      %v518 = vunpack.c.l.b16 %v251
      %v519 = vunpack.c.l.b16 %v252
      %v520 = vunpack.c.l.b16 %v253
      %v521 = vunpack.c.l.b16 %v254
      %v522 = vunpack.c.l.b16 %v255
      %v523 = vunpack.c.l.b16 %v256
      %v524 = vunpack.c.l.b16 %v257
      %v525 = vunpack.c.l.b16 %v258
      %v526 = vunpack.c.l.b16 %v259
      %v527 = vunpack.c.l.b16 %v260
      %v528 = vunpack.c.l.b16 %v261
      %v529 = vunpack.c.l.b16 %v262
      %v530 = vunpack.c.l.b16 %v263
      %v531 = vunpack.c.l.b16 %v264
      %v532 = vunpack.c.l.b16 %v265
      %v533 = vunpack.c.l.b16 %v266
      %v534 = vunpack.c.l.b16 %v267
      %v535 = vunpack.c.l.b16 %v268
      %v536 = vunpack.c.l.b16 %v269
      %v537 = vunpack.c.l.b16 %v270
      %v538 = vunpack.c.l.b16 %v271
      %v539 = vunpack.c.l.b16 %v272
      %v540 = vunpack.c.l.b16 %v273
      %v541 = vunpack.c.l.b16 %v274
      %v542 = vunpack.c.l.b16 %v275
      %v543 = vunpack.c.l.b16 %v276
      %v544 = vunpack.c.l.b16 %v277
      %v545 = vunpack.c.l.b16 %v278
      %v546 = vunpack.c.l.b16 %v279
      %v547 = vunpack.c.l.b16 %v280
      %v548 = vunpack.c.l.b16 %v281
      %v549 = vunpack.c.l.b16 %v282
      %v550 = vunpack.c.l.b16 %v283
      %v551 = vunpack.c.l.b16 %v284
      %v552 = vunpack.c.l.b16 %v285
      %v553 = vunpack.c.l.b16 %v286
      %v554 = vunpack.c.l.b16 %v287
      %v555 = vunpack.c.l.b16 %v288
      %v556 = vunpack.c.l.b16 %v289
      %v557 = vunpack.c.l.b16 %v290
      %v558 = vunpack.c.l.b16 %v291
      %v559 = vunpack.c.l.b16 %v292
      %v560 = vunpack.c.l.b16 %v293
      %v561 = vunpack.c.l.b16 %v294
      %v562 = vunpack.c.l.b16 %v295
      %v563 = vunpack.c.l.b16 %v296
      %v564 = vunpack.c.l.b16 %v297
      %v565 = vunpack.c.l.b16 %v298
      %v566 = vunpack.c.l.b16 %v299
      %v567 = vunpack.c.l.b16 %v300
      %v568 = vunpack.c.l.b16 %v301
      %v569 = vunpack.c.l.b16 %v302
      %v570 = vunpack.c.l.b16 %v303
      %v571 = vunpack.c.l.b16 %v304
      %v572 = vunpack.c.l.b16 %v305
      %v573 = vunpack.c.l.b16 %v306
      %v574 = vunpack.c.l.b16 %v307
      %v575 = vunpack.c.l.b16 %v308
      %v576 = vunpack.c.l.b16 %v309
      %v577 = vunpack.c.l.b16 %v310
      %v578 = vunpack.c.l.b16 %v311
      %v579 = vunpack.c.l.b16 %v312
      %v580 = vunpack.c.l.b16 %v313
      %v581 = vunpack.c.l.b16 %v314
      %v582 = vunpack.c.l.b16 %v315
      %v583 = vunpack.c.l.b16 %v316
      %v584 = vunpack.c.l.b16 %v317
      %v585 = vunpack.c.l.b16 %v318
      %v586 = vunpack.c.l.b16 %v319
      %v587 = vunpack.c.l.b16 %v320
      %v588 = vunpack.c.l.b16 %v321
      %v589 = vunpack.c.l.b16 %v322
      %v590 = vunpack.c.l.b16 %v323
      %v591 = vunpack.c.l.b16 %v324
      %v592 = vunpack.c.l.b16 %v325
      %v593 = vunpack.c.l.b16 %v326
      %v594 = vpack.c.b16 %v467, %v466
      %v595 = vpack.c.b16 %v469, %v468
      %v596 = vpack.c.b16 %v471, %v470
      %v597 = vpack.c.b16 %v473, %v472
      %v598 = vpack.c.b16 %v475, %v474
      %v599 = vpack.c.b16 %v477, %v476
      %v600 = vpack.c.b16 %v479, %v478
      %v601 = vpack.c.b16 %v481, %v480
      %v602 = vpack.c.b16 %v483, %v482
      %v603 = vpack.c.b16 %v485, %v484
      %v604 = vpack.c.b16 %v487, %v486
      %v605 = vpack.c.b16 %v489, %v488
      %v606 = vpack.c.b16 %v491, %v490
      %v607 = vpack.c.b16 %v493, %v492
      %v608 = vpack.c.b16 %v495, %v494
      %v609 = vpack.c.b16 %v497, %v496
      %v610 = vpack.c.b16 %v499, %v498
      %v611 = vpack.c.b16 %v501, %v500
      %v612 = vpack.c.b16 %v503, %v502
      %v613 = vpack.c.b16 %v505, %v504
      %v614 = vpack.c.b16 %v507, %v506
      %v615 = vpack.c.b16 %v509, %v508
      %v616 = vpack.c.b16 %v511, %v510
      %v617 = vpack.c.b16 %v513, %v512
      %v618 = vpack.c.b16 %v515, %v514
      %v619 = vpack.c.b16 %v517, %v516
      %v620 = vpack.c.b16 %v519, %v518
      %v621 = vpack.c.b16 %v521, %v520
      %v622 = vpack.c.b16 %v523, %v522
      %v623 = vpack.c.b16 %v525, %v524
      %v624 = vpack.c.b16 %v527, %v526
      %v625 = vpack.c.b16 %v529, %v528
      %v626 = vpack.c.b16 %v531, %v530
      %v627 = vpack.c.b16 %v533, %v532
      %v628 = vpack.c.b16 %v535, %v534
      %v629 = vpack.c.b16 %v537, %v536
      %v630 = vpack.c.b16 %v539, %v538
      %v631 = vpack.c.b16 %v541, %v540
      %v632 = vpack.c.b16 %v543, %v542
      %v633 = vpack.c.b16 %v545, %v544
      %v634 = vpack.c.b16 %v547, %v546
      %v635 = vpack.c.b16 %v549, %v548
      %v636 = vpack.c.b16 %v551, %v550
      %v637 = vpack.c.b16 %v553, %v552
      %v638 = vpack.c.b16 %v555, %v554
      %v639 = vpack.c.b16 %v557, %v556
      %v640 = vpack.c.b16 %v559, %v558
      %v641 = vpack.c.b16 %v561, %v560
      %v642 = vpack.c.b16 %v563, %v562
      %v643 = vpack.c.b16 %v565, %v564
      %v644 = vpack.c.b16 %v567, %v566
      %v645 = vpack.c.b16 %v569, %v568
      %v646 = vpack.c.b16 %v571, %v570
      %v647 = vpack.c.b16 %v573, %v572
      %v648 = vpack.c.b16 %v575, %v574
      %v649 = vpack.c.b16 %v577, %v576
      %v650 = vpack.c.b16 %v579, %v578
      %v651 = vpack.c.b16 %v581, %v580
      %v652 = vpack.c.b16 %v583, %v582
      %v653 = vpack.c.b16 %v585, %v584
      %v654 = vpack.c.b16 %v587, %v586
      %v655 = vpack.c.b16 %v589, %v588
      %v656 = vpack.c.b16 %v591, %v590
      %v657 = vpack.c.b16 %v593, %v592
      %v662 = vunpack.c.l.b16 %v327
      %v663 = vunpack.c.l.b16 %v328
      %v664 = vunpack.c.l.b16 %v329
      %v665 = vunpack.c.l.b16 %v330
      %v666 = vpack.c.b16 %v663, %v662
      %v667 = vpack.c.b16 %v665, %v664
      %vm670 = vcmask 261120
      %v672 = vsel %vm670, %v594, 0
      %v675 = vsel %vm670, %v595, 0
      %v678 = vsel %vm670, %v596, 0
      %v681 = vsel %vm670, %v597, 0
      %v684 = vsel %vm670, %v598, 0
      %v687 = vsel %vm670, %v599, 0
      %v690 = vsel %vm670, %v600, 0
      %v693 = vsel %vm670, %v601, 0
      %v696 = vsel %vm670, %v602, 0
      %v699 = vsel %vm670, %v603, 0
      %v702 = vsel %vm670, %v604, 0
      %v705 = vsel %vm670, %v605, 0
      %v708 = vsel %vm670, %v606, 0
      %v711 = vsel %vm670, %v607, 0
      %v714 = vsel %vm670, %v608, 0
      %v717 = vsel %vm670, %v609, 0
      %v720 = vsel %vm670, %v610, 0
      %v723 = vsel %vm670, %v611, 0
      %v726 = vsel %vm670, %v612, 0
      %v729 = vsel %vm670, %v613, 0
      %v732 = vsel %vm670, %v614, 0
      %v735 = vsel %vm670, %v615, 0
      %v738 = vsel %vm670, %v616, 0
      %v741 = vsel %vm670, %v617, 0
      %v744 = vsel %vm670, %v618, 0
      %v747 = vsel %vm670, %v619, 0
      %v750 = vsel %vm670, %v620, 0
      %v753 = vsel %vm670, %v621, 0
      %v756 = vsel %vm670, %v622, 0
      %v759 = vsel %vm670, %v623, 0
      %v762 = vsel %vm670, %v624, 0
      %v765 = vsel %vm670, %v625, 0
      %v768 = vsel %vm670, %v626, 0
      %v771 = vsel %vm670, %v627, 0
      %v774 = vsel %vm670, %v628, 0
      %v777 = vsel %vm670, %v629, 0
      %v780 = vsel %vm670, %v630, 0
      %v783 = vsel %vm670, %v631, 0
      %v786 = vsel %vm670, %v632, 0
      %v789 = vsel %vm670, %v633, 0
      %v792 = vsel %vm670, %v634, 0
      %v795 = vsel %vm670, %v635, 0
      %v798 = vsel %vm670, %v636, 0
      %v801 = vsel %vm670, %v637, 0
      %v804 = vsel %vm670, %v638, 0
      %v807 = vsel %vm670, %v639, 0
      %v810 = vsel %vm670, %v640, 0
      %v813 = vsel %vm670, %v641, 0
      %v816 = vsel %vm670, %v642, 0
      %v819 = vsel %vm670, %v643, 0
      %v822 = vsel %vm670, %v644, 0
      %v825 = vsel %vm670, %v645, 0
      %v828 = vsel %vm670, %v646, 0
      %v831 = vsel %vm670, %v647, 0
      %v834 = vsel %vm670, %v648, 0
      %v837 = vsel %vm670, %v649, 0
      %v840 = vsel %vm670, %v650, 0
      %v843 = vsel %vm670, %v651, 0
      %v846 = vsel %vm670, %v652, 0
      %v849 = vsel %vm670, %v653, 0
      %v852 = vsel %vm670, %v654, 0
      %v855 = vsel %vm670, %v655, 0
      %v858 = vsel %vm670, %v656, 0
      %v861 = vsel %vm670, %v657, 0
      %863 = vmatprep.subr.bf16.mxu0 0
      %864 = vmatpush1.bf16.msra.mxu0 0
      %865 = vmatprep.subr.bf16.mxu0 0
      %866 = vmatpush1.bf16.msra.mxu0 0
      %867 = vmatprep.subr.bf16.mxu0 0
      %868 = vmatpush1.bf16.msra.mxu0 0
      %869 = vmatprep.subr.bf16.mxu0 0
      %870 = vmatpush1.bf16.msra.mxu0 0
      %871 = vmatprep.subr.bf16.mxu0 0
      %872 = vmatpush1.bf16.msra.mxu0 0
      %873 = vmatprep.subr.bf16.mxu0 0
      %874 = vmatpush1.bf16.msra.mxu0 0
      %875 = vmatprep.subr.bf16.mxu0 0
      %876 = vmatpush1.bf16.msra.mxu0 %v667
      %877 = vmatprep.subr.bf16.mxu0 0
      %878 = vmatpush1.bf16.msra.mxu0 %v666
      %879 = vmatprep.subr.bf16.mxu0 0
      %880 = vmatpush2.bf16.msra.mxu0 0
      %881 = vmatprep.subr.bf16.mxu0 0
      %882 = vmatpush2.bf16.msra.mxu0 0
      %883 = vmatprep.subr.bf16.mxu0 0
      %884 = vmatpush2.bf16.msra.mxu0 0
      %885 = vmatprep.subr.bf16.mxu0 0
      %886 = vmatpush2.bf16.msra.mxu0 0
      %887 = vmatprep.subr.bf16.mxu0 0
      %888 = vmatpush2.bf16.msra.mxu0 0
      %889 = vmatprep.subr.bf16.mxu0 0
      %890 = vmatpush2.bf16.msra.mxu0 0
      %891 = vmatprep.subr.bf16.mxu0 0
      %892 = vmatpush2.bf16.msra.mxu0 0
      %893 = vmatprep.subr.bf16.mxu0 0
      %894 = vmatpush2.bf16.msra.mxu0 0
      %895 = vmatprep.mubr.bf16.mxu0 0
      %896 = vmatmul.mubr.bf16.gmra.mxu0 %v672
      %v897 = vpop.f32.mrf.mxu0
      %v898 = vadd.f32 %v336, %v897
      %v899 = vpop.f32.mrf.mxu0
      %v900 = vpop.f32.mrf.mxu0
      %v901 = vadd.f32 %v336, %v900
      %v902 = vpop.f32.mrf.mxu0
      %903 = vmatprep.mubr.bf16.mxu0 0
      %904 = vmatmul.mubr.bf16.gmra.mxu0 %v675
      %v905 = vpop.f32.mrf.mxu0
      %v906 = vadd.f32 %v336, %v905
      %v907 = vpop.f32.mrf.mxu0
      %v908 = vpop.f32.mrf.mxu0
      %v909 = vadd.f32 %v336, %v908
      %v910 = vpop.f32.mrf.mxu0
      %911 = vmatprep.mubr.bf16.mxu0 0
      %912 = vmatmul.mubr.bf16.gmra.mxu0 %v678
      %v913 = vpop.f32.mrf.mxu0
      %v914 = vadd.f32 %v336, %v913
      %v915 = vpop.f32.mrf.mxu0
      %v916 = vpop.f32.mrf.mxu0
      %v917 = vadd.f32 %v336, %v916
      %v918 = vpop.f32.mrf.mxu0
      %919 = vmatprep.mubr.bf16.mxu0 0
      %920 = vmatmul.mubr.bf16.gmra.mxu0 %v681
      %v921 = vpop.f32.mrf.mxu0
      %v922 = vadd.f32 %v336, %v921
      %v923 = vpop.f32.mrf.mxu0
      %v924 = vpop.f32.mrf.mxu0
      %v925 = vadd.f32 %v336, %v924
      %v926 = vpop.f32.mrf.mxu0
      %927 = vmatprep.mubr.bf16.mxu0 0
      %928 = vmatmul.mubr.bf16.gmra.mxu0 %v684
      %v929 = vpop.f32.mrf.mxu0
      %v930 = vadd.f32 %v336, %v929
      %v931 = vpop.f32.mrf.mxu0
      %v932 = vpop.f32.mrf.mxu0
      %v933 = vadd.f32 %v336, %v932
      %v934 = vpop.f32.mrf.mxu0
      %935 = vmatprep.mubr.bf16.mxu0 0
      %936 = vmatmul.mubr.bf16.gmra.mxu0 %v687
      %v937 = vpop.f32.mrf.mxu0
      %v938 = vadd.f32 %v336, %v937
      %v939 = vpop.f32.mrf.mxu0
      %v940 = vpop.f32.mrf.mxu0
      %v941 = vadd.f32 %v336, %v940
      %v942 = vpop.f32.mrf.mxu0
      %943 = vmatprep.mubr.bf16.mxu0 0
      %944 = vmatmul.mubr.bf16.gmra.mxu0 %v690
      %v945 = vpop.f32.mrf.mxu0
      %v946 = vadd.f32 %v336, %v945
      %v947 = vpop.f32.mrf.mxu0
      %v948 = vpop.f32.mrf.mxu0
      %v949 = vadd.f32 %v336, %v948
      %v950 = vpop.f32.mrf.mxu0
      %951 = vmatprep.mubr.bf16.mxu0 0
      %952 = vmatmul.mubr.bf16.gmra.mxu0 %v693
      %v953 = vpop.f32.mrf.mxu0
      %v954 = vadd.f32 %v336, %v953
      %v955 = vpop.f32.mrf.mxu0
      %v956 = vpop.f32.mrf.mxu0
      %v957 = vadd.f32 %v336, %v956
      %v958 = vpop.f32.mrf.mxu0
      %959 = vmatprep.mubr.bf16.mxu0 0
      %960 = vmatmul.mubr.bf16.gmra.mxu0 %v696
      %v961 = vpop.f32.mrf.mxu0
      %v962 = vadd.f32 %v336, %v961
      %v963 = vpop.f32.mrf.mxu0
      %v964 = vpop.f32.mrf.mxu0
      %v965 = vadd.f32 %v336, %v964
      %v966 = vpop.f32.mrf.mxu0
      %967 = vmatprep.mubr.bf16.mxu0 0
      %968 = vmatmul.mubr.bf16.gmra.mxu0 %v699
      %v969 = vpop.f32.mrf.mxu0
      %v970 = vadd.f32 %v336, %v969
      %v971 = vpop.f32.mrf.mxu0
      %v972 = vpop.f32.mrf.mxu0
      %v973 = vadd.f32 %v336, %v972
      %v974 = vpop.f32.mrf.mxu0
      %975 = vmatprep.mubr.bf16.mxu0 0
      %976 = vmatmul.mubr.bf16.gmra.mxu0 %v702
      %v977 = vpop.f32.mrf.mxu0
      %v978 = vadd.f32 %v336, %v977
      %v979 = vpop.f32.mrf.mxu0
      %v980 = vpop.f32.mrf.mxu0
      %v981 = vadd.f32 %v336, %v980
      %v982 = vpop.f32.mrf.mxu0
      %983 = vmatprep.mubr.bf16.mxu0 0
      %984 = vmatmul.mubr.bf16.gmra.mxu0 %v705
      %v985 = vpop.f32.mrf.mxu0
      %v986 = vadd.f32 %v336, %v985
      %v987 = vpop.f32.mrf.mxu0
      %v988 = vpop.f32.mrf.mxu0
      %v989 = vadd.f32 %v336, %v988
      %v990 = vpop.f32.mrf.mxu0
      %991 = vmatprep.mubr.bf16.mxu0 0
      %992 = vmatmul.mubr.bf16.gmra.mxu0 %v708
      %v993 = vpop.f32.mrf.mxu0
      %v994 = vadd.f32 %v336, %v993
      %v995 = vpop.f32.mrf.mxu0
      %v996 = vpop.f32.mrf.mxu0
      %v997 = vadd.f32 %v336, %v996
      %v998 = vpop.f32.mrf.mxu0
      %999 = vmatprep.mubr.bf16.mxu0 0
      %1000 = vmatmul.mubr.bf16.gmra.mxu0 %v711
      %v1001 = vpop.f32.mrf.mxu0
      %v1002 = vadd.f32 %v336, %v1001
      %v1003 = vpop.f32.mrf.mxu0
      %v1004 = vpop.f32.mrf.mxu0
      %v1005 = vadd.f32 %v336, %v1004
      %v1006 = vpop.f32.mrf.mxu0
      %1007 = vmatprep.mubr.bf16.mxu0 0
      %1008 = vmatmul.mubr.bf16.gmra.mxu0 %v714
      %v1009 = vpop.f32.mrf.mxu0
      %v1010 = vadd.f32 %v336, %v1009
      %v1011 = vpop.f32.mrf.mxu0
      %v1012 = vpop.f32.mrf.mxu0
      %v1013 = vadd.f32 %v336, %v1012
      %v1014 = vpop.f32.mrf.mxu0
      %1015 = vmatprep.mubr.bf16.mxu0 0
      %1016 = vmatmul.mubr.bf16.gmra.mxu0 %v717
      %v1017 = vpop.f32.mrf.mxu0
      %v1018 = vadd.f32 %v336, %v1017
      %v1019 = vpop.f32.mrf.mxu0
      %v1020 = vpop.f32.mrf.mxu0
      %v1021 = vadd.f32 %v336, %v1020
      %v1022 = vpop.f32.mrf.mxu0
      %1023 = vmatprep.mubr.bf16.mxu0 0
      %1024 = vmatmul.mubr.bf16.gmra.mxu0 %v720
      %v1025 = vpop.f32.mrf.mxu0
      %v1026 = vadd.f32 %v336, %v1025
      %v1027 = vpop.f32.mrf.mxu0
      %v1028 = vpop.f32.mrf.mxu0
      %v1029 = vadd.f32 %v336, %v1028
      %v1030 = vpop.f32.mrf.mxu0
      %1031 = vmatprep.mubr.bf16.mxu0 0
      %1032 = vmatmul.mubr.bf16.gmra.mxu0 %v723
      %v1033 = vpop.f32.mrf.mxu0
      %v1034 = vadd.f32 %v336, %v1033
      %v1035 = vpop.f32.mrf.mxu0
      %v1036 = vpop.f32.mrf.mxu0
      %v1037 = vadd.f32 %v336, %v1036
      %v1038 = vpop.f32.mrf.mxu0
      %1039 = vmatprep.mubr.bf16.mxu0 0
      %1040 = vmatmul.mubr.bf16.gmra.mxu0 %v726
      %v1041 = vpop.f32.mrf.mxu0
      %v1042 = vadd.f32 %v336, %v1041
      %v1043 = vpop.f32.mrf.mxu0
      %v1044 = vpop.f32.mrf.mxu0
      %v1045 = vadd.f32 %v336, %v1044
      %v1046 = vpop.f32.mrf.mxu0
      %1047 = vmatprep.mubr.bf16.mxu0 0
      %1048 = vmatmul.mubr.bf16.gmra.mxu0 %v729
      %v1049 = vpop.f32.mrf.mxu0
      %v1050 = vadd.f32 %v336, %v1049
      %v1051 = vpop.f32.mrf.mxu0
      %v1052 = vpop.f32.mrf.mxu0
      %v1053 = vadd.f32 %v336, %v1052
      %v1054 = vpop.f32.mrf.mxu0
      %1055 = vmatprep.mubr.bf16.mxu0 0
      %1056 = vmatmul.mubr.bf16.gmra.mxu0 %v732
      %v1057 = vpop.f32.mrf.mxu0
      %v1058 = vadd.f32 %v336, %v1057
      %v1059 = vpop.f32.mrf.mxu0
      %v1060 = vpop.f32.mrf.mxu0
      %v1061 = vadd.f32 %v336, %v1060
      %v1062 = vpop.f32.mrf.mxu0
      %1063 = vmatprep.mubr.bf16.mxu0 0
      %1064 = vmatmul.mubr.bf16.gmra.mxu0 %v735
      %v1065 = vpop.f32.mrf.mxu0
      %v1066 = vadd.f32 %v336, %v1065
      %v1067 = vpop.f32.mrf.mxu0
      %v1068 = vpop.f32.mrf.mxu0
      %v1069 = vadd.f32 %v336, %v1068
      %v1070 = vpop.f32.mrf.mxu0
      %1071 = vmatprep.mubr.bf16.mxu0 0
      %1072 = vmatmul.mubr.bf16.gmra.mxu0 %v738
      %v1073 = vpop.f32.mrf.mxu0
      %v1074 = vadd.f32 %v336, %v1073
      %v1075 = vpop.f32.mrf.mxu0
      %v1076 = vpop.f32.mrf.mxu0
      %v1077 = vadd.f32 %v336, %v1076
      %v1078 = vpop.f32.mrf.mxu0
      %1079 = vmatprep.mubr.bf16.mxu0 0
      %1080 = vmatmul.mubr.bf16.gmra.mxu0 %v741
      %v1081 = vpop.f32.mrf.mxu0
      %v1082 = vadd.f32 %v336, %v1081
      %v1083 = vpop.f32.mrf.mxu0
      %v1084 = vpop.f32.mrf.mxu0
      %v1085 = vadd.f32 %v336, %v1084
      %v1086 = vpop.f32.mrf.mxu0
      %1087 = vmatprep.mubr.bf16.mxu0 0
      %1088 = vmatmul.mubr.bf16.gmra.mxu0 %v744
      %v1089 = vpop.f32.mrf.mxu0
      %v1090 = vadd.f32 %v336, %v1089
      %v1091 = vpop.f32.mrf.mxu0
      %v1092 = vpop.f32.mrf.mxu0
      %v1093 = vadd.f32 %v336, %v1092
      %v1094 = vpop.f32.mrf.mxu0
      %1095 = vmatprep.mubr.bf16.mxu0 0
      %1096 = vmatmul.mubr.bf16.gmra.mxu0 %v747
      %v1097 = vpop.f32.mrf.mxu0
      %v1098 = vadd.f32 %v336, %v1097
      %v1099 = vpop.f32.mrf.mxu0
      %v1100 = vpop.f32.mrf.mxu0
      %v1101 = vadd.f32 %v336, %v1100
      %v1102 = vpop.f32.mrf.mxu0
      %1103 = vmatprep.mubr.bf16.mxu0 0
      %1104 = vmatmul.mubr.bf16.gmra.mxu0 %v750
      %v1105 = vpop.f32.mrf.mxu0
      %v1106 = vadd.f32 %v336, %v1105
      %v1107 = vpop.f32.mrf.mxu0
      %v1108 = vpop.f32.mrf.mxu0
      %v1109 = vadd.f32 %v336, %v1108
      %v1110 = vpop.f32.mrf.mxu0
      %1111 = vmatprep.mubr.bf16.mxu0 0
      %1112 = vmatmul.mubr.bf16.gmra.mxu0 %v753
      %v1113 = vpop.f32.mrf.mxu0
      %v1114 = vadd.f32 %v336, %v1113
      %v1115 = vpop.f32.mrf.mxu0
      %v1116 = vpop.f32.mrf.mxu0
      %v1117 = vadd.f32 %v336, %v1116
      %v1118 = vpop.f32.mrf.mxu0
      %1119 = vmatprep.mubr.bf16.mxu0 0
      %1120 = vmatmul.mubr.bf16.gmra.mxu0 %v756
      %v1121 = vpop.f32.mrf.mxu0
      %v1122 = vadd.f32 %v336, %v1121
      %v1123 = vpop.f32.mrf.mxu0
      %v1124 = vpop.f32.mrf.mxu0
      %v1125 = vadd.f32 %v336, %v1124
      %v1126 = vpop.f32.mrf.mxu0
      %1127 = vmatprep.mubr.bf16.mxu0 0
      %1128 = vmatmul.mubr.bf16.gmra.mxu0 %v759
      %v1129 = vpop.f32.mrf.mxu0
      %v1130 = vadd.f32 %v336, %v1129
      %v1131 = vpop.f32.mrf.mxu0
      %v1132 = vpop.f32.mrf.mxu0
      %v1133 = vadd.f32 %v336, %v1132
      %v1134 = vpop.f32.mrf.mxu0
      %1135 = vmatprep.mubr.bf16.mxu0 0
      %1136 = vmatmul.mubr.bf16.gmra.mxu0 %v762
      %v1137 = vpop.f32.mrf.mxu0
      %v1138 = vadd.f32 %v336, %v1137
      %v1139 = vpop.f32.mrf.mxu0
      %v1140 = vpop.f32.mrf.mxu0
      %v1141 = vadd.f32 %v336, %v1140
      %v1142 = vpop.f32.mrf.mxu0
      %1143 = vmatprep.mubr.bf16.mxu0 0
      %1144 = vmatmul.mubr.bf16.gmra.mxu0 %v765
      %v1145 = vpop.f32.mrf.mxu0
      %v1146 = vadd.f32 %v336, %v1145
      %v1147 = vpop.f32.mrf.mxu0
      %v1148 = vpop.f32.mrf.mxu0
      %v1149 = vadd.f32 %v336, %v1148
      %v1150 = vpop.f32.mrf.mxu0
      %1151 = vmatprep.mubr.bf16.mxu0 0
      %1152 = vmatmul.mubr.bf16.gmra.mxu0 %v768
      %v1153 = vpop.f32.mrf.mxu0
      %v1154 = vadd.f32 %v336, %v1153
      %v1155 = vpop.f32.mrf.mxu0
      %v1156 = vpop.f32.mrf.mxu0
      %v1157 = vadd.f32 %v336, %v1156
      %v1158 = vpop.f32.mrf.mxu0
      %1159 = vmatprep.mubr.bf16.mxu0 0
      %1160 = vmatmul.mubr.bf16.gmra.mxu0 %v771
      %v1161 = vpop.f32.mrf.mxu0
      %v1162 = vadd.f32 %v336, %v1161
      %v1163 = vpop.f32.mrf.mxu0
      %v1164 = vpop.f32.mrf.mxu0
      %v1165 = vadd.f32 %v336, %v1164
      %v1166 = vpop.f32.mrf.mxu0
      %1167 = vmatprep.mubr.bf16.mxu0 0
      %1168 = vmatmul.mubr.bf16.gmra.mxu0 %v774
      %v1169 = vpop.f32.mrf.mxu0
      %v1170 = vadd.f32 %v336, %v1169
      %v1171 = vpop.f32.mrf.mxu0
      %v1172 = vpop.f32.mrf.mxu0
      %v1173 = vadd.f32 %v336, %v1172
      %v1174 = vpop.f32.mrf.mxu0
      %1175 = vmatprep.mubr.bf16.mxu0 0
      %1176 = vmatmul.mubr.bf16.gmra.mxu0 %v777
      %v1177 = vpop.f32.mrf.mxu0
      %v1178 = vadd.f32 %v336, %v1177
      %v1179 = vpop.f32.mrf.mxu0
      %v1180 = vpop.f32.mrf.mxu0
      %v1181 = vadd.f32 %v336, %v1180
      %v1182 = vpop.f32.mrf.mxu0
      %1183 = vmatprep.mubr.bf16.mxu0 0
      %1184 = vmatmul.mubr.bf16.gmra.mxu0 %v780
      %v1185 = vpop.f32.mrf.mxu0
      %v1186 = vadd.f32 %v336, %v1185
      %v1187 = vpop.f32.mrf.mxu0
      %v1188 = vpop.f32.mrf.mxu0
      %v1189 = vadd.f32 %v336, %v1188
      %v1190 = vpop.f32.mrf.mxu0
      %1191 = vmatprep.mubr.bf16.mxu0 0
      %1192 = vmatmul.mubr.bf16.gmra.mxu0 %v783
      %v1193 = vpop.f32.mrf.mxu0
      %v1194 = vadd.f32 %v336, %v1193
      %v1195 = vpop.f32.mrf.mxu0
      %v1196 = vpop.f32.mrf.mxu0
      %v1197 = vadd.f32 %v336, %v1196
      %v1198 = vpop.f32.mrf.mxu0
      %1199 = vmatprep.mubr.bf16.mxu0 0
      %1200 = vmatmul.mubr.bf16.gmra.mxu0 %v786
      %v1201 = vpop.f32.mrf.mxu0
      %v1202 = vadd.f32 %v336, %v1201
      %v1203 = vpop.f32.mrf.mxu0
      %v1204 = vpop.f32.mrf.mxu0
      %v1205 = vadd.f32 %v336, %v1204
      %v1206 = vpop.f32.mrf.mxu0
      %1207 = vmatprep.mubr.bf16.mxu0 0
      %1208 = vmatmul.mubr.bf16.gmra.mxu0 %v789
      %v1209 = vpop.f32.mrf.mxu0
      %v1210 = vadd.f32 %v336, %v1209
      %v1211 = vpop.f32.mrf.mxu0
      %v1212 = vpop.f32.mrf.mxu0
      %v1213 = vadd.f32 %v336, %v1212
      %v1214 = vpop.f32.mrf.mxu0
      %1215 = vmatprep.mubr.bf16.mxu0 0
      %1216 = vmatmul.mubr.bf16.gmra.mxu0 %v792
      %v1217 = vpop.f32.mrf.mxu0
      %v1218 = vadd.f32 %v336, %v1217
      %v1219 = vpop.f32.mrf.mxu0
      %v1220 = vpop.f32.mrf.mxu0
      %v1221 = vadd.f32 %v336, %v1220
      %v1222 = vpop.f32.mrf.mxu0
      %1223 = vmatprep.mubr.bf16.mxu0 0
      %1224 = vmatmul.mubr.bf16.gmra.mxu0 %v795
      %v1225 = vpop.f32.mrf.mxu0
      %v1226 = vadd.f32 %v336, %v1225
      %v1227 = vpop.f32.mrf.mxu0
      %v1228 = vpop.f32.mrf.mxu0
      %v1229 = vadd.f32 %v336, %v1228
      %v1230 = vpop.f32.mrf.mxu0
      %1231 = vmatprep.mubr.bf16.mxu0 0
      %1232 = vmatmul.mubr.bf16.gmra.mxu0 %v798
      %v1233 = vpop.f32.mrf.mxu0
      %v1234 = vadd.f32 %v336, %v1233
      %v1235 = vpop.f32.mrf.mxu0
      %v1236 = vpop.f32.mrf.mxu0
      %v1237 = vadd.f32 %v336, %v1236
      %v1238 = vpop.f32.mrf.mxu0
      %1239 = vmatprep.mubr.bf16.mxu0 0
      %1240 = vmatmul.mubr.bf16.gmra.mxu0 %v801
      %v1241 = vpop.f32.mrf.mxu0
      %v1242 = vadd.f32 %v336, %v1241
      %v1243 = vpop.f32.mrf.mxu0
      %v1244 = vpop.f32.mrf.mxu0
      %v1245 = vadd.f32 %v336, %v1244
      %v1246 = vpop.f32.mrf.mxu0
      %1247 = vmatprep.mubr.bf16.mxu0 0
      %1248 = vmatmul.mubr.bf16.gmra.mxu0 %v804
      %v1249 = vpop.f32.mrf.mxu0
      %v1250 = vadd.f32 %v336, %v1249
      %v1251 = vpop.f32.mrf.mxu0
      %v1252 = vpop.f32.mrf.mxu0
      %v1253 = vadd.f32 %v336, %v1252
      %v1254 = vpop.f32.mrf.mxu0
      %1255 = vmatprep.mubr.bf16.mxu0 0
      %1256 = vmatmul.mubr.bf16.gmra.mxu0 %v807
      %v1257 = vpop.f32.mrf.mxu0
      %v1258 = vadd.f32 %v336, %v1257
      %v1259 = vpop.f32.mrf.mxu0
      %v1260 = vpop.f32.mrf.mxu0
      %v1261 = vadd.f32 %v336, %v1260
      %v1262 = vpop.f32.mrf.mxu0
      %1263 = vmatprep.mubr.bf16.mxu0 0
      %1264 = vmatmul.mubr.bf16.gmra.mxu0 %v810
      %v1265 = vpop.f32.mrf.mxu0
      %v1266 = vadd.f32 %v336, %v1265
      %v1267 = vpop.f32.mrf.mxu0
      %v1268 = vpop.f32.mrf.mxu0
      %v1269 = vadd.f32 %v336, %v1268
      %v1270 = vpop.f32.mrf.mxu0
      %1271 = vmatprep.mubr.bf16.mxu0 0
      %1272 = vmatmul.mubr.bf16.gmra.mxu0 %v813
      %v1273 = vpop.f32.mrf.mxu0
      %v1274 = vadd.f32 %v336, %v1273
      %v1275 = vpop.f32.mrf.mxu0
      %v1276 = vpop.f32.mrf.mxu0
      %v1277 = vadd.f32 %v336, %v1276
      %v1278 = vpop.f32.mrf.mxu0
      %1279 = vmatprep.mubr.bf16.mxu0 0
      %1280 = vmatmul.mubr.bf16.gmra.mxu0 %v816
      %v1281 = vpop.f32.mrf.mxu0
      %v1282 = vadd.f32 %v336, %v1281
      %v1283 = vpop.f32.mrf.mxu0
      %v1284 = vpop.f32.mrf.mxu0
      %v1285 = vadd.f32 %v336, %v1284
      %v1286 = vpop.f32.mrf.mxu0
      %1287 = vmatprep.mubr.bf16.mxu0 0
      %1288 = vmatmul.mubr.bf16.gmra.mxu0 %v819
      %v1289 = vpop.f32.mrf.mxu0
      %v1290 = vadd.f32 %v336, %v1289
      %v1291 = vpop.f32.mrf.mxu0
      %v1292 = vpop.f32.mrf.mxu0
      %v1293 = vadd.f32 %v336, %v1292
      %v1294 = vpop.f32.mrf.mxu0
      %1295 = vmatprep.mubr.bf16.mxu0 0
      %1296 = vmatmul.mubr.bf16.gmra.mxu0 %v822
      %v1297 = vpop.f32.mrf.mxu0
      %v1298 = vadd.f32 %v336, %v1297
      %v1299 = vpop.f32.mrf.mxu0
      %v1300 = vpop.f32.mrf.mxu0
      %v1301 = vadd.f32 %v336, %v1300
      %v1302 = vpop.f32.mrf.mxu0
      %1303 = vmatprep.mubr.bf16.mxu0 0
      %1304 = vmatmul.mubr.bf16.gmra.mxu0 %v825
      %v1305 = vpop.f32.mrf.mxu0
      %v1306 = vadd.f32 %v336, %v1305
      %v1307 = vpop.f32.mrf.mxu0
      %v1308 = vpop.f32.mrf.mxu0
      %v1309 = vadd.f32 %v336, %v1308
      %v1310 = vpop.f32.mrf.mxu0
      %1311 = vmatprep.mubr.bf16.mxu0 0
      %1312 = vmatmul.mubr.bf16.gmra.mxu0 %v828
      %v1313 = vpop.f32.mrf.mxu0
      %v1314 = vadd.f32 %v336, %v1313
      %v1315 = vpop.f32.mrf.mxu0
      %v1316 = vpop.f32.mrf.mxu0
      %v1317 = vadd.f32 %v336, %v1316
      %v1318 = vpop.f32.mrf.mxu0
      %1319 = vmatprep.mubr.bf16.mxu0 0
      %1320 = vmatmul.mubr.bf16.gmra.mxu0 %v831
      %v1321 = vpop.f32.mrf.mxu0
      %v1322 = vadd.f32 %v336, %v1321
      %v1323 = vpop.f32.mrf.mxu0
      %v1324 = vpop.f32.mrf.mxu0
      %v1325 = vadd.f32 %v336, %v1324
      %v1326 = vpop.f32.mrf.mxu0
      %1327 = vmatprep.mubr.bf16.mxu0 0
      %1328 = vmatmul.mubr.bf16.gmra.mxu0 %v834
      %v1329 = vpop.f32.mrf.mxu0
      %v1330 = vadd.f32 %v336, %v1329
      %v1331 = vpop.f32.mrf.mxu0
      %v1332 = vpop.f32.mrf.mxu0
      %v1333 = vadd.f32 %v336, %v1332
      %v1334 = vpop.f32.mrf.mxu0
      %1335 = vmatprep.mubr.bf16.mxu0 0
      %1336 = vmatmul.mubr.bf16.gmra.mxu0 %v837
      %v1337 = vpop.f32.mrf.mxu0
      %v1338 = vadd.f32 %v336, %v1337
      %v1339 = vpop.f32.mrf.mxu0
      %v1340 = vpop.f32.mrf.mxu0
      %v1341 = vadd.f32 %v336, %v1340
      %v1342 = vpop.f32.mrf.mxu0
      %1343 = vmatprep.mubr.bf16.mxu0 0
      %1344 = vmatmul.mubr.bf16.gmra.mxu0 %v840
      %v1345 = vpop.f32.mrf.mxu0
      %v1346 = vadd.f32 %v336, %v1345
      %v1347 = vpop.f32.mrf.mxu0
      %v1348 = vpop.f32.mrf.mxu0
      %v1349 = vadd.f32 %v336, %v1348
      %v1350 = vpop.f32.mrf.mxu0
      %1351 = vmatprep.mubr.bf16.mxu0 0
      %1352 = vmatmul.mubr.bf16.gmra.mxu0 %v843
      %v1353 = vpop.f32.mrf.mxu0
      %v1354 = vadd.f32 %v336, %v1353
      %v1355 = vpop.f32.mrf.mxu0
      %v1356 = vpop.f32.mrf.mxu0
      %v1357 = vadd.f32 %v336, %v1356
      %v1358 = vpop.f32.mrf.mxu0
      %1359 = vmatprep.mubr.bf16.mxu0 0
      %1360 = vmatmul.mubr.bf16.gmra.mxu0 %v846
      %v1361 = vpop.f32.mrf.mxu0
      %v1362 = vadd.f32 %v336, %v1361
      %v1363 = vpop.f32.mrf.mxu0
      %v1364 = vpop.f32.mrf.mxu0
      %v1365 = vadd.f32 %v336, %v1364
      %v1366 = vpop.f32.mrf.mxu0
      %1367 = vmatprep.mubr.bf16.mxu0 0
      %1368 = vmatmul.mubr.bf16.gmra.mxu0 %v849
      %v1369 = vpop.f32.mrf.mxu0
      %v1370 = vadd.f32 %v336, %v1369
      %v1371 = vpop.f32.mrf.mxu0
      %v1372 = vpop.f32.mrf.mxu0
      %v1373 = vadd.f32 %v336, %v1372
      %v1374 = vpop.f32.mrf.mxu0
      %1375 = vmatprep.mubr.bf16.mxu0 0
      %1376 = vmatmul.mubr.bf16.gmra.mxu0 %v852
      %v1377 = vpop.f32.mrf.mxu0
      %v1378 = vadd.f32 %v336, %v1377
      %v1379 = vpop.f32.mrf.mxu0
      %v1380 = vpop.f32.mrf.mxu0
      %v1381 = vadd.f32 %v336, %v1380
      %v1382 = vpop.f32.mrf.mxu0
      %1383 = vmatprep.mubr.bf16.mxu0 0
      %1384 = vmatmul.mubr.bf16.gmra.mxu0 %v855
      %v1385 = vpop.f32.mrf.mxu0
      %v1386 = vadd.f32 %v336, %v1385
      %v1387 = vpop.f32.mrf.mxu0
      %v1388 = vpop.f32.mrf.mxu0
      %v1389 = vadd.f32 %v336, %v1388
      %v1390 = vpop.f32.mrf.mxu0
      %1391 = vmatprep.mubr.bf16.mxu0 0
      %1392 = vmatmul.mubr.bf16.gmra.mxu0 %v858
      %v1393 = vpop.f32.mrf.mxu0
      %v1394 = vadd.f32 %v336, %v1393
      %v1395 = vpop.f32.mrf.mxu0
      %v1396 = vpop.f32.mrf.mxu0
      %v1397 = vadd.f32 %v336, %v1396
      %v1398 = vpop.f32.mrf.mxu0
      %1399 = vmatprep.mubr.bf16.mxu0 0
      %1400 = vmatmul.mubr.bf16.gmra.mxu0 %v861
      %v1401 = vpop.f32.mrf.mxu0
      %v1402 = vadd.f32 %v336, %v1401
      %v1403 = vpop.f32.mrf.mxu0
      %v1404 = vpop.f32.mrf.mxu0
      %v1405 = vadd.f32 %v336, %v1404
      %v1406 = vpop.f32.mrf.mxu0
      %1407 = vdwg.mxu0
      %v1408 = vmax.f32 %v898, 0.0
      %v1409 = vmax.f32 %v901, 0.0
      %v1410 = vmax.f32 %v906, 0.0
      %v1411 = vmax.f32 %v909, 0.0
      %v1412 = vmax.f32 %v914, 0.0
      %v1413 = vmax.f32 %v917, 0.0
      %v1414 = vmax.f32 %v922, 0.0
      %v1415 = vmax.f32 %v925, 0.0
      %v1416 = vmax.f32 %v930, 0.0
      %v1417 = vmax.f32 %v933, 0.0
      %v1418 = vmax.f32 %v938, 0.0
      %v1419 = vmax.f32 %v941, 0.0
      %v1420 = vmax.f32 %v946, 0.0
      %v1421 = vmax.f32 %v949, 0.0
      %v1422 = vmax.f32 %v954, 0.0
      %v1423 = vmax.f32 %v957, 0.0
      %v1424 = vmax.f32 %v962, 0.0
      %v1425 = vmax.f32 %v965, 0.0
      %v1426 = vmax.f32 %v970, 0.0
      %v1427 = vmax.f32 %v973, 0.0
      %v1428 = vmax.f32 %v978, 0.0
      %v1429 = vmax.f32 %v981, 0.0
      %v1430 = vmax.f32 %v986, 0.0
      %v1431 = vmax.f32 %v989, 0.0
      %v1432 = vmax.f32 %v994, 0.0
      %v1433 = vmax.f32 %v997, 0.0
      %v1434 = vmax.f32 %v1002, 0.0
      %v1435 = vmax.f32 %v1005, 0.0
      %v1436 = vmax.f32 %v1010, 0.0
      %v1437 = vmax.f32 %v1013, 0.0
      %v1438 = vmax.f32 %v1018, 0.0
      %v1439 = vmax.f32 %v1021, 0.0
      %v1440 = vmax.f32 %v1026, 0.0
      %v1441 = vmax.f32 %v1029, 0.0
      %v1442 = vmax.f32 %v1034, 0.0
      %v1443 = vmax.f32 %v1037, 0.0
      %v1444 = vmax.f32 %v1042, 0.0
      %v1445 = vmax.f32 %v1045, 0.0
      %v1446 = vmax.f32 %v1050, 0.0
      %v1447 = vmax.f32 %v1053, 0.0
      %v1448 = vmax.f32 %v1058, 0.0
      %v1449 = vmax.f32 %v1061, 0.0
      %v1450 = vmax.f32 %v1066, 0.0
      %v1451 = vmax.f32 %v1069, 0.0
      %v1452 = vmax.f32 %v1074, 0.0
      %v1453 = vmax.f32 %v1077, 0.0
      %v1454 = vmax.f32 %v1082, 0.0
      %v1455 = vmax.f32 %v1085, 0.0
      %v1456 = vmax.f32 %v1090, 0.0
      %v1457 = vmax.f32 %v1093, 0.0
      %v1458 = vmax.f32 %v1098, 0.0
      %v1459 = vmax.f32 %v1101, 0.0
      %v1460 = vmax.f32 %v1106, 0.0
      %v1461 = vmax.f32 %v1109, 0.0
      %v1462 = vmax.f32 %v1114, 0.0
      %v1463 = vmax.f32 %v1117, 0.0
      %v1464 = vmax.f32 %v1122, 0.0
      %v1465 = vmax.f32 %v1125, 0.0
      %v1466 = vmax.f32 %v1130, 0.0
      %v1467 = vmax.f32 %v1133, 0.0
      %v1468 = vmax.f32 %v1138, 0.0
      %v1469 = vmax.f32 %v1141, 0.0
      %v1470 = vmax.f32 %v1146, 0.0
      %v1471 = vmax.f32 %v1149, 0.0
      %v1472 = vmax.f32 %v1154, 0.0
      %v1473 = vmax.f32 %v1157, 0.0
      %v1474 = vmax.f32 %v1162, 0.0
      %v1475 = vmax.f32 %v1165, 0.0
      %v1476 = vmax.f32 %v1170, 0.0
      %v1477 = vmax.f32 %v1173, 0.0
      %v1478 = vmax.f32 %v1178, 0.0
      %v1479 = vmax.f32 %v1181, 0.0
      %v1480 = vmax.f32 %v1186, 0.0
      %v1481 = vmax.f32 %v1189, 0.0
      %v1482 = vmax.f32 %v1194, 0.0
      %v1483 = vmax.f32 %v1197, 0.0
      %v1484 = vmax.f32 %v1202, 0.0
      %v1485 = vmax.f32 %v1205, 0.0
      %v1486 = vmax.f32 %v1210, 0.0
      %v1487 = vmax.f32 %v1213, 0.0
      %v1488 = vmax.f32 %v1218, 0.0
      %v1489 = vmax.f32 %v1221, 0.0
      %v1490 = vmax.f32 %v1226, 0.0
      %v1491 = vmax.f32 %v1229, 0.0
      %v1492 = vmax.f32 %v1234, 0.0
      %v1493 = vmax.f32 %v1237, 0.0
      %v1494 = vmax.f32 %v1242, 0.0
      %v1495 = vmax.f32 %v1245, 0.0
      %v1496 = vmax.f32 %v1250, 0.0
      %v1497 = vmax.f32 %v1253, 0.0
      %v1498 = vmax.f32 %v1258, 0.0
      %v1499 = vmax.f32 %v1261, 0.0
      %v1500 = vmax.f32 %v1266, 0.0
      %v1501 = vmax.f32 %v1269, 0.0
      %v1502 = vmax.f32 %v1274, 0.0
      %v1503 = vmax.f32 %v1277, 0.0
      %v1504 = vmax.f32 %v1282, 0.0
      %v1505 = vmax.f32 %v1285, 0.0
      %v1506 = vmax.f32 %v1290, 0.0
      %v1507 = vmax.f32 %v1293, 0.0
      %v1508 = vmax.f32 %v1298, 0.0
      %v1509 = vmax.f32 %v1301, 0.0
      %v1510 = vmax.f32 %v1306, 0.0
      %v1511 = vmax.f32 %v1309, 0.0
      %v1512 = vmax.f32 %v1314, 0.0
      %v1513 = vmax.f32 %v1317, 0.0
      %v1514 = vmax.f32 %v1322, 0.0
      %v1515 = vmax.f32 %v1325, 0.0
      %v1516 = vmax.f32 %v1330, 0.0
      %v1517 = vmax.f32 %v1333, 0.0
      %v1518 = vmax.f32 %v1338, 0.0
      %v1519 = vmax.f32 %v1341, 0.0
      %v1520 = vmax.f32 %v1346, 0.0
      %v1521 = vmax.f32 %v1349, 0.0
      %v1522 = vmax.f32 %v1354, 0.0
      %v1523 = vmax.f32 %v1357, 0.0
      %v1524 = vmax.f32 %v1362, 0.0
      %v1525 = vmax.f32 %v1365, 0.0
      %v1526 = vmax.f32 %v1370, 0.0
      %v1527 = vmax.f32 %v1373, 0.0
      %v1528 = vmax.f32 %v1378, 0.0
      %v1529 = vmax.f32 %v1381, 0.0
      %v1530 = vmax.f32 %v1386, 0.0
      %v1531 = vmax.f32 %v1389, 0.0
      %v1532 = vmax.f32 %v1394, 0.0
      %v1533 = vmax.f32 %v1397, 0.0
      %v1534 = vmax.f32 %v1402, 0.0
      %v1535 = vmax.f32 %v1405, 0.0
      %v1536 = vpack.c.bf16 %v1409, %v1408
      %v1537 = vpack.c.bf16 %v1411, %v1410
      %v1538 = vpack.c.bf16 %v1413, %v1412
      %v1539 = vpack.c.bf16 %v1415, %v1414
      %v1540 = vpack.c.bf16 %v1417, %v1416
      %v1541 = vpack.c.bf16 %v1419, %v1418
      %v1542 = vpack.c.bf16 %v1421, %v1420
      %v1543 = vpack.c.bf16 %v1423, %v1422
      %v1544 = vpack.c.bf16 %v1425, %v1424
      %v1545 = vpack.c.bf16 %v1427, %v1426
      %v1546 = vpack.c.bf16 %v1429, %v1428
      %v1547 = vpack.c.bf16 %v1431, %v1430
      %v1548 = vpack.c.bf16 %v1433, %v1432
      %v1549 = vpack.c.bf16 %v1435, %v1434
      %v1550 = vpack.c.bf16 %v1437, %v1436
      %v1551 = vpack.c.bf16 %v1439, %v1438
      %v1552 = vpack.c.bf16 %v1441, %v1440
      %v1553 = vpack.c.bf16 %v1443, %v1442
      %v1554 = vpack.c.bf16 %v1445, %v1444
      %v1555 = vpack.c.bf16 %v1447, %v1446
      %v1556 = vpack.c.bf16 %v1449, %v1448
      %v1557 = vpack.c.bf16 %v1451, %v1450
      %v1558 = vpack.c.bf16 %v1453, %v1452
      %v1559 = vpack.c.bf16 %v1455, %v1454
      %v1560 = vpack.c.bf16 %v1457, %v1456
      %v1561 = vpack.c.bf16 %v1459, %v1458
      %v1562 = vpack.c.bf16 %v1461, %v1460
      %v1563 = vpack.c.bf16 %v1463, %v1462
      %v1564 = vpack.c.bf16 %v1465, %v1464
      %v1565 = vpack.c.bf16 %v1467, %v1466
      %v1566 = vpack.c.bf16 %v1469, %v1468
      %v1567 = vpack.c.bf16 %v1471, %v1470
      %v1568 = vpack.c.bf16 %v1473, %v1472
      %v1569 = vpack.c.bf16 %v1475, %v1474
      %v1570 = vpack.c.bf16 %v1477, %v1476
      %v1571 = vpack.c.bf16 %v1479, %v1478
      %v1572 = vpack.c.bf16 %v1481, %v1480
      %v1573 = vpack.c.bf16 %v1483, %v1482
      %v1574 = vpack.c.bf16 %v1485, %v1484
      %v1575 = vpack.c.bf16 %v1487, %v1486
      %v1576 = vpack.c.bf16 %v1489, %v1488
      %v1577 = vpack.c.bf16 %v1491, %v1490
      %v1578 = vpack.c.bf16 %v1493, %v1492
      %v1579 = vpack.c.bf16 %v1495, %v1494
      %v1580 = vpack.c.bf16 %v1497, %v1496
      %v1581 = vpack.c.bf16 %v1499, %v1498
      %v1582 = vpack.c.bf16 %v1501, %v1500
      %v1583 = vpack.c.bf16 %v1503, %v1502
      %v1584 = vpack.c.bf16 %v1505, %v1504
      %v1585 = vpack.c.bf16 %v1507, %v1506
      %v1586 = vpack.c.bf16 %v1509, %v1508
      %v1587 = vpack.c.bf16 %v1511, %v1510
      %v1588 = vpack.c.bf16 %v1513, %v1512
      %v1589 = vpack.c.bf16 %v1515, %v1514
      %v1590 = vpack.c.bf16 %v1517, %v1516
      %v1591 = vpack.c.bf16 %v1519, %v1518
      %v1592 = vpack.c.bf16 %v1521, %v1520
      %v1593 = vpack.c.bf16 %v1523, %v1522
      %v1594 = vpack.c.bf16 %v1525, %v1524
      %v1595 = vpack.c.bf16 %v1527, %v1526
      %v1596 = vpack.c.bf16 %v1529, %v1528
      %v1597 = vpack.c.bf16 %v1531, %v1530
      %v1598 = vpack.c.bf16 %v1533, %v1532
      %v1599 = vpack.c.bf16 %v1535, %v1534
      %v1600 = vld [vmem:[%s3] sm:$0xff]
      %v1601 = vld [vmem:[%s3 + $0x8] sm:$0xff]
      %v1602 = vld [vmem:[%s3 + $0x10] sm:$0xff]
      %v1603 = vld [vmem:[%s3 + $0x18] sm:$0xff]
      %v1604 = vld [vmem:[%s3 + $0x20] sm:$0xff]
      %v1605 = vld [vmem:[%s3 + $0x28] sm:$0xff]
      %v1606 = vld [vmem:[%s3 + $0x30] sm:$0xff]
      %v1607 = vld [vmem:[%s3 + $0x38] sm:$0xff]
      %v1608 = vld [vmem:[%s3 + $0x40] sm:$0xff]
      %v1609 = vld [vmem:[%s3 + $0x48] sm:$0xff]
      %v1610 = vld [vmem:[%s3 + $0x50] sm:$0xff]
      %v1611 = vld [vmem:[%s3 + $0x58] sm:$0xff]
      %v1612 = vld [vmem:[%s3 + $0x60] sm:$0xff]
      %v1613 = vld [vmem:[%s3 + $0x68] sm:$0xff]
      %v1614 = vld [vmem:[%s3 + $0x70] sm:$0xff]
      %v1615 = vld [vmem:[%s3 + $0x78] sm:$0xff]
      %v1616 = vld [vmem:[%s3 + $0x80] sm:$0xff]
      %v1617 = vld [vmem:[%s3 + $0x88] sm:$0xff]
      %v1618 = vld [vmem:[%s3 + $0x90] sm:$0xff]
      %v1619 = vld [vmem:[%s3 + $0x98] sm:$0xff]
      %v1620 = vld [vmem:[%s3 + $0xa0] sm:$0xff]
      %v1621 = vld [vmem:[%s3 + $0xa8] sm:$0xff]
      %v1622 = vld [vmem:[%s3 + $0xb0] sm:$0xff]
      %v1623 = vld [vmem:[%s3 + $0xb8] sm:$0xff]
      %v1624 = vld [vmem:[%s3 + $0xc0] sm:$0xff]
      %v1625 = vld [vmem:[%s3 + $0xc8] sm:$0xff]
      %v1626 = vld [vmem:[%s3 + $0xd0] sm:$0xff]
      %v1627 = vld [vmem:[%s3 + $0xd8] sm:$0xff]
      %v1656 = vunpack.c.l.b16 %v1600
      %v1657 = vunpack.c.h.b16 %v1600
      %v1658 = vunpack.c.l.b16 %v1601
      %v1659 = vunpack.c.h.b16 %v1601
      %v1660 = vunpack.c.l.b16 %v1602
      %v1661 = vunpack.c.h.b16 %v1602
      %v1662 = vunpack.c.l.b16 %v1603
      %v1663 = vunpack.c.h.b16 %v1603
      %v1664 = vunpack.c.l.b16 %v1604
      %v1665 = vunpack.c.h.b16 %v1604
      %v1666 = vunpack.c.l.b16 %v1605
      %v1667 = vunpack.c.h.b16 %v1605
      %v1668 = vunpack.c.l.b16 %v1606
      %v1669 = vunpack.c.h.b16 %v1606
      %v1670 = vunpack.c.l.b16 %v1607
      %v1671 = vunpack.c.h.b16 %v1607
      %v1672 = vunpack.c.l.b16 %v1608
      %v1673 = vunpack.c.h.b16 %v1608
      %v1674 = vunpack.c.l.b16 %v1609
      %v1675 = vunpack.c.h.b16 %v1609
      %v1676 = vunpack.c.l.b16 %v1610
      %v1677 = vunpack.c.h.b16 %v1610
      %v1678 = vunpack.c.l.b16 %v1611
      %v1679 = vunpack.c.h.b16 %v1611
      %v1680 = vunpack.c.l.b16 %v1612
      %v1681 = vunpack.c.h.b16 %v1612
      %v1682 = vunpack.c.l.b16 %v1613
      %v1683 = vunpack.c.h.b16 %v1613
      %v1684 = vunpack.c.l.b16 %v1614
      %v1685 = vunpack.c.h.b16 %v1614
      %v1686 = vunpack.c.l.b16 %v1615
      %v1687 = vunpack.c.h.b16 %v1615
      %v1688 = vunpack.c.l.b16 %v1616
      %v1689 = vunpack.c.h.b16 %v1616
      %v1690 = vunpack.c.l.b16 %v1617
      %v1691 = vunpack.c.h.b16 %v1617
      %v1692 = vunpack.c.l.b16 %v1618
      %v1693 = vunpack.c.h.b16 %v1618
      %v1694 = vunpack.c.l.b16 %v1619
      %v1695 = vunpack.c.h.b16 %v1619
      %v1696 = vunpack.c.l.b16 %v1620
      %v1697 = vunpack.c.h.b16 %v1620
      %v1698 = vunpack.c.l.b16 %v1621
      %v1699 = vunpack.c.h.b16 %v1621
      %v1700 = vunpack.c.l.b16 %v1622
      %v1701 = vunpack.c.h.b16 %v1622
      %v1702 = vunpack.c.l.b16 %v1623
      %v1703 = vunpack.c.h.b16 %v1623
      %v1704 = vunpack.c.l.b16 %v1624
      %v1705 = vunpack.c.h.b16 %v1624
      %v1706 = vunpack.c.l.b16 %v1625
      %v1707 = vunpack.c.h.b16 %v1625
      %v1708 = vunpack.c.l.b16 %v1626
      %v1709 = vunpack.c.h.b16 %v1626
      %v1710 = vunpack.c.l.b16 %v1627
      %v1711 = vunpack.c.h.b16 %v1627
      %v1712 = vpack.c.b16 %v1664, %v1656
      %v1713 = vpack.c.b16 %v1665, %v1657
      %v1714 = vpack.c.b16 %v1666, %v1658
      %v1715 = vpack.c.b16 %v1667, %v1659
      %v1716 = vpack.c.b16 %v1668, %v1660
      %v1717 = vpack.c.b16 %v1669, %v1661
      %v1718 = vpack.c.b16 %v1670, %v1662
      %v1719 = vpack.c.b16 %v1671, %v1663
      %v1720 = vpack.c.b16 %v1680, %v1672
      %v1721 = vpack.c.b16 %v1681, %v1673
      %v1722 = vpack.c.b16 %v1682, %v1674
      %v1723 = vpack.c.b16 %v1683, %v1675
      %v1724 = vpack.c.b16 %v1684, %v1676
      %v1725 = vpack.c.b16 %v1685, %v1677
      %v1726 = vpack.c.b16 %v1686, %v1678
      %v1727 = vpack.c.b16 %v1687, %v1679
      %v1728 = vpack.c.b16 %v1696, %v1688
      %v1729 = vpack.c.b16 %v1697, %v1689
      %v1730 = vpack.c.b16 %v1698, %v1690
      %v1731 = vpack.c.b16 %v1699, %v1691
      %v1732 = vpack.c.b16 %v1700, %v1692
      %v1733 = vpack.c.b16 %v1701, %v1693
      %v1734 = vpack.c.b16 %v1702, %v1694
      %v1735 = vpack.c.b16 %v1703, %v1695
      %v1736 = vpack.c.b16 %v1704, %v1704
      %v1737 = vpack.c.b16 %v1705, %v1705
      %v1738 = vpack.c.b16 %v1706, %v1706
      %v1739 = vpack.c.b16 %v1707, %v1707
      %v1740 = vpack.c.b16 %v1708, %v1708
      %v1741 = vpack.c.b16 %v1709, %v1709
      %v1742 = vpack.c.b16 %v1710, %v1710
      %v1743 = vpack.c.b16 %v1711, %v1711
      %1776 = vmatprep.subr.bf16.mxu0 0
      %1777 = vmatpush1.bf16.msra.mxu0 %v1543
      %1778 = vmatprep.subr.bf16.mxu0 0
      %1779 = vmatpush1.bf16.msra.mxu0 %v1542
      %1780 = vmatprep.subr.bf16.mxu0 0
      %1781 = vmatpush1.bf16.msra.mxu0 %v1541
      %1782 = vmatprep.subr.bf16.mxu0 0
      %1783 = vmatpush1.bf16.msra.mxu0 %v1540
      %1784 = vmatprep.subr.bf16.mxu0 0
      %1785 = vmatpush1.bf16.msra.mxu0 %v1539
      %1786 = vmatprep.subr.bf16.mxu0 0
      %1787 = vmatpush1.bf16.msra.mxu0 %v1538
      %1788 = vmatprep.subr.bf16.mxu0 0
      %1789 = vmatpush1.bf16.msra.mxu0 %v1537
      %1790 = vmatprep.subr.bf16.mxu0 0
      %1791 = vmatpush1.bf16.msra.mxu0 %v1536
      %1792 = vmatprep.subr.bf16.mxu0 0
      %1793 = vmatpush2.bf16.msra.mxu0 %v1551
      %1794 = vmatprep.subr.bf16.mxu0 0
      %1795 = vmatpush2.bf16.msra.mxu0 %v1550
      %1796 = vmatprep.subr.bf16.mxu0 0
      %1797 = vmatpush2.bf16.msra.mxu0 %v1549
      %1798 = vmatprep.subr.bf16.mxu0 0
      %1799 = vmatpush2.bf16.msra.mxu0 %v1548
      %1800 = vmatprep.subr.bf16.mxu0 0
      %1801 = vmatpush2.bf16.msra.mxu0 %v1547
      %1802 = vmatprep.subr.bf16.mxu0 0
      %1803 = vmatpush2.bf16.msra.mxu0 %v1546
      %1804 = vmatprep.subr.bf16.mxu0 0
      %1805 = vmatpush2.bf16.msra.mxu0 %v1545
      %1806 = vmatprep.subr.bf16.mxu0 0
      %1807 = vmatpush2.bf16.msra.mxu0 %v1544
      %1808 = vmatprep.mubr.bf16.mxu0 %v1713
      %1809 = vmatmul.mubr.bf16.gmra.mxu0 %v1712
      %v1810 = vpop.f32.mrf.mxu0
      %v1811 = vadd.f32 0.0, %v1810
      %v1812 = vpop.f32.mrf.mxu0
      %v1813 = vpop.f32.mrf.mxu0
      %v1814 = vadd.f32 0.0, %v1813
      %v1815 = vpop.f32.mrf.mxu0
      %1816 = vmatprep.mubr.bf16.mxu0 %v1721
      %1817 = vmatmul.mubr.bf16.gmra.mxu0 %v1720
      %v1818 = vpop.f32.mrf.mxu0
      %v1819 = vadd.f32 0.0, %v1818
      %v1820 = vpop.f32.mrf.mxu0
      %v1821 = vpop.f32.mrf.mxu0
      %v1822 = vadd.f32 0.0, %v1821
      %v1823 = vpop.f32.mrf.mxu0
      %1824 = vmatprep.mubr.bf16.mxu0 %v1729
      %1825 = vmatmul.mubr.bf16.gmra.mxu0 %v1728
      %v1826 = vpop.f32.mrf.mxu0
      %v1827 = vadd.f32 0.0, %v1826
      %v1828 = vpop.f32.mrf.mxu0
      %v1829 = vpop.f32.mrf.mxu0
      %v1830 = vadd.f32 0.0, %v1829
      %v1831 = vpop.f32.mrf.mxu0
      %1832 = vmatprep.mubr.bf16.mxu0 %v1737
      %1833 = vmatmul.mubr.bf16.gmra.mxu0 %v1736
      %v1834 = vpop.f32.mrf.mxu0
      %v1835 = vadd.f32 0.0, %v1834
      %v1836 = vpop.f32.mrf.mxu0
      %v1837 = vpop.f32.mrf.mxu0
      %v1838 = vpop.f32.mrf.mxu0
      %1839 = vdwg.mxu0
      %1840 = vmatprep.subr.bf16.mxu0 0
      %1841 = vmatpush1.bf16.msra.mxu0 %v1559
      %1842 = vmatprep.subr.bf16.mxu0 0
      %1843 = vmatpush1.bf16.msra.mxu0 %v1558
      %1844 = vmatprep.subr.bf16.mxu0 0
      %1845 = vmatpush1.bf16.msra.mxu0 %v1557
      %1846 = vmatprep.subr.bf16.mxu0 0
      %1847 = vmatpush1.bf16.msra.mxu0 %v1556
      %1848 = vmatprep.subr.bf16.mxu0 0
      %1849 = vmatpush1.bf16.msra.mxu0 %v1555
      %1850 = vmatprep.subr.bf16.mxu0 0
      %1851 = vmatpush1.bf16.msra.mxu0 %v1554
      %1852 = vmatprep.subr.bf16.mxu0 0
      %1853 = vmatpush1.bf16.msra.mxu0 %v1553
      %1854 = vmatprep.subr.bf16.mxu0 0
      %1855 = vmatpush1.bf16.msra.mxu0 %v1552
      %1856 = vmatprep.subr.bf16.mxu0 0
      %1857 = vmatpush2.bf16.msra.mxu0 %v1567
      %1858 = vmatprep.subr.bf16.mxu0 0
      %1859 = vmatpush2.bf16.msra.mxu0 %v1566
      %1860 = vmatprep.subr.bf16.mxu0 0
      %1861 = vmatpush2.bf16.msra.mxu0 %v1565
      %1862 = vmatprep.subr.bf16.mxu0 0
      %1863 = vmatpush2.bf16.msra.mxu0 %v1564
      %1864 = vmatprep.subr.bf16.mxu0 0
      %1865 = vmatpush2.bf16.msra.mxu0 %v1563
      %1866 = vmatprep.subr.bf16.mxu0 0
      %1867 = vmatpush2.bf16.msra.mxu0 %v1562
      %1868 = vmatprep.subr.bf16.mxu0 0
      %1869 = vmatpush2.bf16.msra.mxu0 %v1561
      %1870 = vmatprep.subr.bf16.mxu0 0
      %1871 = vmatpush2.bf16.msra.mxu0 %v1560
      %1872 = vmatprep.mubr.bf16.mxu0 %v1715
      %1873 = vmatmul.mubr.bf16.gmra.mxu0 %v1714
      %v1874 = vpop.f32.mrf.mxu0
      %v1875 = vadd.f32 %v1811, %v1874
      %v1876 = vpop.f32.mrf.mxu0
      %v1877 = vpop.f32.mrf.mxu0
      %v1878 = vadd.f32 %v1814, %v1877
      %v1879 = vpop.f32.mrf.mxu0
      %1880 = vmatprep.mubr.bf16.mxu0 %v1723
      %1881 = vmatmul.mubr.bf16.gmra.mxu0 %v1722
      %v1882 = vpop.f32.mrf.mxu0
      %v1883 = vadd.f32 %v1819, %v1882
      %v1884 = vpop.f32.mrf.mxu0
      %v1885 = vpop.f32.mrf.mxu0
      %v1886 = vadd.f32 %v1822, %v1885
      %v1887 = vpop.f32.mrf.mxu0
      %1888 = vmatprep.mubr.bf16.mxu0 %v1731
      %1889 = vmatmul.mubr.bf16.gmra.mxu0 %v1730
      %v1890 = vpop.f32.mrf.mxu0
      %v1891 = vadd.f32 %v1827, %v1890
      %v1892 = vpop.f32.mrf.mxu0
      %v1893 = vpop.f32.mrf.mxu0
      %v1894 = vadd.f32 %v1830, %v1893
      %v1895 = vpop.f32.mrf.mxu0
      %1896 = vmatprep.mubr.bf16.mxu0 %v1739
      %1897 = vmatmul.mubr.bf16.gmra.mxu0 %v1738
      %v1898 = vpop.f32.mrf.mxu0
      %v1899 = vadd.f32 %v1835, %v1898
      %v1900 = vpop.f32.mrf.mxu0
      %v1901 = vpop.f32.mrf.mxu0
      %v1902 = vpop.f32.mrf.mxu0
      %1903 = vdwg.mxu0
      %1904 = vmatprep.subr.bf16.mxu0 0
      %1905 = vmatpush1.bf16.msra.mxu0 %v1575
      %1906 = vmatprep.subr.bf16.mxu0 0
      %1907 = vmatpush1.bf16.msra.mxu0 %v1574
      %1908 = vmatprep.subr.bf16.mxu0 0
      %1909 = vmatpush1.bf16.msra.mxu0 %v1573
      %1910 = vmatprep.subr.bf16.mxu0 0
      %1911 = vmatpush1.bf16.msra.mxu0 %v1572
      %1912 = vmatprep.subr.bf16.mxu0 0
      %1913 = vmatpush1.bf16.msra.mxu0 %v1571
      %1914 = vmatprep.subr.bf16.mxu0 0
      %1915 = vmatpush1.bf16.msra.mxu0 %v1570
      %1916 = vmatprep.subr.bf16.mxu0 0
      %1917 = vmatpush1.bf16.msra.mxu0 %v1569
      %1918 = vmatprep.subr.bf16.mxu0 0
      %1919 = vmatpush1.bf16.msra.mxu0 %v1568
      %1920 = vmatprep.subr.bf16.mxu0 0
      %1921 = vmatpush2.bf16.msra.mxu0 %v1583
      %1922 = vmatprep.subr.bf16.mxu0 0
      %1923 = vmatpush2.bf16.msra.mxu0 %v1582
      %1924 = vmatprep.subr.bf16.mxu0 0
      %1925 = vmatpush2.bf16.msra.mxu0 %v1581
      %1926 = vmatprep.subr.bf16.mxu0 0
      %1927 = vmatpush2.bf16.msra.mxu0 %v1580
      %1928 = vmatprep.subr.bf16.mxu0 0
      %1929 = vmatpush2.bf16.msra.mxu0 %v1579
      %1930 = vmatprep.subr.bf16.mxu0 0
      %1931 = vmatpush2.bf16.msra.mxu0 %v1578
      %1932 = vmatprep.subr.bf16.mxu0 0
      %1933 = vmatpush2.bf16.msra.mxu0 %v1577
      %1934 = vmatprep.subr.bf16.mxu0 0
      %1935 = vmatpush2.bf16.msra.mxu0 %v1576
      %1936 = vmatprep.mubr.bf16.mxu0 %v1717
      %1937 = vmatmul.mubr.bf16.gmra.mxu0 %v1716
      %v1938 = vpop.f32.mrf.mxu0
      %v1939 = vadd.f32 %v1875, %v1938
      %v1940 = vpop.f32.mrf.mxu0
      %v1941 = vpop.f32.mrf.mxu0
      %v1942 = vadd.f32 %v1878, %v1941
      %v1943 = vpop.f32.mrf.mxu0
      %1944 = vmatprep.mubr.bf16.mxu0 %v1725
      %1945 = vmatmul.mubr.bf16.gmra.mxu0 %v1724
      %v1946 = vpop.f32.mrf.mxu0
      %v1947 = vadd.f32 %v1883, %v1946
      %v1948 = vpop.f32.mrf.mxu0
      %v1949 = vpop.f32.mrf.mxu0
      %v1950 = vadd.f32 %v1886, %v1949
      %v1951 = vpop.f32.mrf.mxu0
      %1952 = vmatprep.mubr.bf16.mxu0 %v1733
      %1953 = vmatmul.mubr.bf16.gmra.mxu0 %v1732
      %v1954 = vpop.f32.mrf.mxu0
      %v1955 = vadd.f32 %v1891, %v1954
      %v1956 = vpop.f32.mrf.mxu0
      %v1957 = vpop.f32.mrf.mxu0
      %v1958 = vadd.f32 %v1894, %v1957
      %v1959 = vpop.f32.mrf.mxu0
      %1960 = vmatprep.mubr.bf16.mxu0 %v1741
      %1961 = vmatmul.mubr.bf16.gmra.mxu0 %v1740
      %v1962 = vpop.f32.mrf.mxu0
      %v1963 = vadd.f32 %v1899, %v1962
      %v1964 = vpop.f32.mrf.mxu0
      %v1965 = vpop.f32.mrf.mxu0
      %v1966 = vpop.f32.mrf.mxu0
      %1967 = vdwg.mxu0
      %1968 = vmatprep.subr.bf16.mxu0 0
      %1969 = vmatpush1.bf16.msra.mxu0 %v1591
      %1970 = vmatprep.subr.bf16.mxu0 0
      %1971 = vmatpush1.bf16.msra.mxu0 %v1590
      %1972 = vmatprep.subr.bf16.mxu0 0
      %1973 = vmatpush1.bf16.msra.mxu0 %v1589
      %1974 = vmatprep.subr.bf16.mxu0 0
      %1975 = vmatpush1.bf16.msra.mxu0 %v1588
      %1976 = vmatprep.subr.bf16.mxu0 0
      %1977 = vmatpush1.bf16.msra.mxu0 %v1587
      %1978 = vmatprep.subr.bf16.mxu0 0
      %1979 = vmatpush1.bf16.msra.mxu0 %v1586
      %1980 = vmatprep.subr.bf16.mxu0 0
      %1981 = vmatpush1.bf16.msra.mxu0 %v1585
      %1982 = vmatprep.subr.bf16.mxu0 0
      %1983 = vmatpush1.bf16.msra.mxu0 %v1584
      %1984 = vmatprep.subr.bf16.mxu0 0
      %1985 = vmatpush2.bf16.msra.mxu0 %v1599
      %1986 = vmatprep.subr.bf16.mxu0 0
      %1987 = vmatpush2.bf16.msra.mxu0 %v1598
      %1988 = vmatprep.subr.bf16.mxu0 0
      %1989 = vmatpush2.bf16.msra.mxu0 %v1597
      %1990 = vmatprep.subr.bf16.mxu0 0
      %1991 = vmatpush2.bf16.msra.mxu0 %v1596
      %1992 = vmatprep.subr.bf16.mxu0 0
      %1993 = vmatpush2.bf16.msra.mxu0 %v1595
      %1994 = vmatprep.subr.bf16.mxu0 0
      %1995 = vmatpush2.bf16.msra.mxu0 %v1594
      %1996 = vmatprep.subr.bf16.mxu0 0
      %1997 = vmatpush2.bf16.msra.mxu0 %v1593
      %1998 = vmatprep.subr.bf16.mxu0 0
      %1999 = vmatpush2.bf16.msra.mxu0 %v1592
      %2000 = vmatprep.mubr.bf16.mxu0 %v1719
      %2001 = vmatmul.mubr.bf16.gmra.mxu0 %v1718
      %v2002 = vpop.f32.mrf.mxu0
      %v2003 = vadd.f32 %v1939, %v2002
      %v2004 = vpop.f32.mrf.mxu0
      %v2005 = vpop.f32.mrf.mxu0
      %v2006 = vadd.f32 %v1942, %v2005
      %v2007 = vpop.f32.mrf.mxu0
      %2008 = vmatprep.mubr.bf16.mxu0 %v1727
      %2009 = vmatmul.mubr.bf16.gmra.mxu0 %v1726
      %v2010 = vpop.f32.mrf.mxu0
      %v2011 = vadd.f32 %v1947, %v2010
      %v2012 = vpop.f32.mrf.mxu0
      %v2013 = vpop.f32.mrf.mxu0
      %v2014 = vadd.f32 %v1950, %v2013
      %v2015 = vpop.f32.mrf.mxu0
      %2016 = vmatprep.mubr.bf16.mxu0 %v1735
      %2017 = vmatmul.mubr.bf16.gmra.mxu0 %v1734
      %v2018 = vpop.f32.mrf.mxu0
      %v2019 = vadd.f32 %v1955, %v2018
      %v2020 = vpop.f32.mrf.mxu0
      %v2021 = vpop.f32.mrf.mxu0
      %v2022 = vadd.f32 %v1958, %v2021
      %v2023 = vpop.f32.mrf.mxu0
      %2024 = vmatprep.mubr.bf16.mxu0 %v1743
      %2025 = vmatmul.mubr.bf16.gmra.mxu0 %v1742
      %v2026 = vpop.f32.mrf.mxu0
      %v2027 = vadd.f32 %v1963, %v2026
      %v2028 = vpop.f32.mrf.mxu0
      %v2029 = vpop.f32.mrf.mxu0
      %v2030 = vpop.f32.mrf.mxu0
      %2031 = vdwg.mxu0
      %v2032 = vpack.c.bf16 %v2006, %v2003
      %v2033 = vpack.c.bf16 %v2014, %v2011
      %v2034 = vpack.c.bf16 %v2022, %v2019
      %v2035 = vpack.c.bf16 %v2027, %v2027
      %v2040 = vunpack.c.l.b16 %v2032
      %v2041 = vunpack.c.h.b16 %v2032
      %v2042 = vunpack.c.l.b16 %v2033
      %v2043 = vunpack.c.h.b16 %v2033
      %v2044 = vunpack.c.l.b16 %v2034
      %v2045 = vunpack.c.h.b16 %v2034
      %v2046 = vunpack.c.l.b16 %v2035
      %v2047 = vpack.c.b16 %v2040, %v2040
      %v2048 = vpack.c.b16 %v2041, %v2041
      %v2049 = vpack.c.b16 %v2042, %v2042
      %v2050 = vpack.c.b16 %v2043, %v2043
      %v2051 = vpack.c.b16 %v2044, %v2044
      %v2052 = vpack.c.b16 %v2045, %v2045
      %v2053 = vpack.c.b16 %v2046, %v2046
      %2061 = vst [vmem:[%s197] sm:$0xf] %v2047
      %2062 = vst [vmem:[%s197 + $0x4] sm:$0xf] %v2048
      %2063 = vst [vmem:[%s197 + $0x8] sm:$0xf] %v2049
      %2064 = vst [vmem:[%s197 + $0xc] sm:$0xf] %v2050
      %2065 = vst [vmem:[%s197 + $0x10] sm:$0xf] %v2051
      %2066 = vst [vmem:[%s197 + $0x14] sm:$0xf] %v2052
      %2067 = vst [vmem:[%s197 + $0x18] sm:$0xf] %v2053
      %p2068 = scmp.lt.s32.totalorder %s15, 7
      %s2069 = scalar_select %p2068, %s15, 7
      %s2070 = smul.addr %s2069, 7
      %s2071 = smul.addr %s2070, 4
      %s2072 = scalar_lea.vmem %s4, %s2071
      // Predicated region
      $region37: #{forward.3} parent=35 // pred_check
        %p2073 = pneg %p122
      $region38: #{forward.3} parent=35 // pred_check_branch
        %2075 = sbr.rel (%p2073) target = $region40
      $region39: #{forward.3} parent=35 // pred_region
        _
      $region40: #{forward.3} parent=35 // pred_fallthru
        _
    $region36: #{forward.3} parent=5 // pred_fallthru
      _
    %p2076 = scmp.le.s32.totalorder 2, %s10
    // Predicated region
    $region41: #{forward.3} parent=5 // pred_check
      %p2077 = pneg %p2076
    $region42: #{forward.3} parent=5 // pred_check_branch
      %2079 = sbr.rel (%p2077) target = $region44
    $region43: #{forward.3} parent=5 // pred_region
      %s2080 = ssub.s32 %s10, 2
      // Predicated region
      $region45: #{forward.3} parent=43 // pred_check
        %p2081 = pneg %p128
      $region46: #{forward.3} parent=43 // pred_check_branch
        %2083 = sbr.rel (%p2081) target = $region48
      $region47: #{forward.3} parent=43 // pred_region
        %p2084 = scmp.lt.s32.totalorder %s16, 7
        %s2085 = scalar_select %p2084, %s16, 7
        %s2086 = smul.addr %s2085, 7
        %s2087 = smul.addr %s2086, 4
        %s2088 = scalar_lea.vmem %s4, %s2087
      $region48: #{forward.3} parent=43 // pred_fallthru
        _
    $region44: #{forward.3} parent=5 // pred_fallthru
      _
  $region6: #{forward.3} parent=0 // loop_footer
    %s14 = sadd.s32 1, %s10
  $region7: #{forward.3} parent=0 // loop_footer_branch
    %9 = sbr.rel target = $region3
  $region8: #{forward.3} parent=0 // loop_exit
    _

// kernel: forward.4
$region0: #{forward.4}
  #allocation0 [shape = 'u32[]', space=smem, size = 0x4, offset = 0x4, fixed_abs, tag = 'smem constant byte address 0x4 - core index']
  #allocation1 [shape = 'u32[144,128]{1,0:T(1,128)}', space=vmem, size = 0x12000, scoped, tag = 'internal scratch']
  #allocation2 [shape = 'f32[56,128]{1,0:T(8,128)}', space=vmem, size = 0x7000, scoped, tag = 'scratch operand']
  %s0 = inlined_call_operand.vmem [shape: bf16[2,4,56,128], index: 0, kind: input, shape index: {}]
  %s1 = inlined_call_operand.vmem [shape: bf16[1152,512], index: 1, kind: input, shape index: {}]
  %s2 = inlined_call_operand.vmem [shape: bf16[1152,512], index: 2, kind: input, shape index: {}]
  %s3 = inlined_call_operand.vmem [shape: f32[1,512], index: 3, kind: input, shape index: {}]
  %s4 = inlined_call_operand.vmem [shape: f32[56,1], index: 4, kind: input, shape index: {}]
  %s5 = inlined_call_operand.vmem [shape: f32[2,56,128], index: 5, kind: output, shape index: {}]
  %s6 = sld [smem:[#allocation0]]
  $region57: #{forward.4} parent=0
    _
  %s8 = ssub.s32 1, %s6
  %s9 = scalar_select 0, %s8, %s6
  loop: start=0, step=1, limit=10
  $region2: #{forward.4} parent=0 // loop_pre_header
    _
  $region3: #{forward.4} parent=0 // loop_header
    %s11 = sphi 0, %s15
    %p12 = scmp.ge.s32.totalorder %s11, 10
    %s18 = sphi 0, %s30
    %s19 = sphi 0, %s26
    %s20 = sphi 0, %s18
    %s21 = sphi 0, %s19
    %s22 = sphi 0, %s20
    %s23 = sphi 0, %s21
    %s35 = sphi 0, %s37
    %s38 = sphi 0, %s35
    %s39 = sphi 0, %s38
    %s55 = sphi 0, %s39
    %s59 = sphi 0, %s59
    %s61 = sphi 0, %s59
    %s62 = sphi 0, %s61
    %s76 = sphi 0, %s62
    %s80 = sphi 0, %s80
    %s82 = sphi 0, %s80
    %s83 = sphi 0, %s82
    %s97 = sphi 0, %s83
    %s101 = sphi 0, %s101
    %s103 = sphi 0, %s101
    %s104 = sphi 0, %s103
    %s118 = sphi 0, %s104
    %s122 = sphi 0, %s122
    %s124 = sphi 0, %s122
    %s125 = sphi 0, %s124
    %s139 = sphi 0, %s125
    %s145 = sphi 0, %s147
    %s148 = sphi 0, %s145
    %s149 = sphi 0, %s148
    %s165 = sphi 0, %s149
  $region4: #{forward.4} parent=0 // loop_header_branch
    %14 = sbr.rel (%p12) target = $region8
  $region5: #{forward.4} parent=0 // loop_body
    %s16 = ssub.s32 %s11, 1
    %s17 = ssub.s32 %s11, 2
    %s24 = sadd.s32 1, %s19
    %p25 = scmp.ge.s32.totalorder %s24, 4
    %s26 = scalar_select %p25, 0, %s24
    %s27 = sadd.s32 1, %s18
    %s28 = scalar_select %p25, %s27, %s18
    %p29 = scmp.ge.s32.totalorder %s28, 2
    %s30 = scalar_select %p29, 0, %s28
    %s31 = ssub.s32 %s18, %s30
    %s32 = ssub.s32 %s19, %s26
    %s33 = sor.u32 %s31, %s32
    %p34 = scmp.eq.s32.totalorder %s33, 0
    %s36 = sadd.s32 %s35, 1
    %s37 = scalar_select %p34, %s35, %s36
    %p40 = pneg %p34
    %p41 = scmp.eq.s32.totalorder %s11, 7
    %p42 = por %p40, %p41
    %p43 = scmp.ne.s32.totalorder %s35, %s38
    %p44 = scmp.eq.s32.totalorder %s11, 0
    %p45 = por %p43, %p44
    %p46 = scmp.ne.s32.totalorder %s35, %s38
    %p47 = scmp.eq.s32.totalorder %s16, 7
    %p48 = por %p46, %p47
    %p49 = scmp.ne.s32.totalorder %s38, %s39
    %p50 = scmp.eq.s32.totalorder %s16, 0
    %p51 = por %p49, %p50
    %p52 = scmp.ne.s32.totalorder %s38, %s39
    %p53 = scmp.eq.s32.totalorder %s17, 7
    %p54 = por %p52, %p53
    %p56 = scmp.ne.s32.totalorder %s39, %s55
    %p57 = scmp.eq.s32.totalorder %s17, 0
    %p58 = por %p56, %p57
    %s60 = sadd.s32 %s59, 1
    %p63 = scmp.eq.s32.totalorder %s11, 7
    %p64 = scmp.ne.s32.totalorder %s59, %s61
    %p65 = scmp.eq.s32.totalorder %s11, 0
    %p66 = por %p64, %p65
    %p67 = scmp.ne.s32.totalorder %s59, %s61
    %p68 = scmp.eq.s32.totalorder %s16, 7
    %p69 = por %p67, %p68
    %p70 = scmp.ne.s32.totalorder %s61, %s62
    %p71 = scmp.eq.s32.totalorder %s16, 0
    %p72 = por %p70, %p71
    %p73 = scmp.ne.s32.totalorder %s61, %s62
    %p74 = scmp.eq.s32.totalorder %s17, 7
    %p75 = por %p73, %p74
    %p77 = scmp.ne.s32.totalorder %s62, %s76
    %p78 = scmp.eq.s32.totalorder %s17, 0
    %p79 = por %p77, %p78
    %s81 = sadd.s32 %s80, 1
    %p84 = scmp.eq.s32.totalorder %s11, 7
    %p85 = scmp.ne.s32.totalorder %s80, %s82
    %p86 = scmp.eq.s32.totalorder %s11, 0
    %p87 = por %p85, %p86
    %p88 = scmp.ne.s32.totalorder %s80, %s82
    %p89 = scmp.eq.s32.totalorder %s16, 7
    %p90 = por %p88, %p89
    %p91 = scmp.ne.s32.totalorder %s82, %s83
    %p92 = scmp.eq.s32.totalorder %s16, 0
    %p93 = por %p91, %p92
    %p94 = scmp.ne.s32.totalorder %s82, %s83
    %p95 = scmp.eq.s32.totalorder %s17, 7
    %p96 = por %p94, %p95
    %p98 = scmp.ne.s32.totalorder %s83, %s97
    %p99 = scmp.eq.s32.totalorder %s17, 0
    %p100 = por %p98, %p99
    %s102 = sadd.s32 %s101, 1
    %p105 = scmp.eq.s32.totalorder %s11, 7
    %p106 = scmp.ne.s32.totalorder %s101, %s103
    %p107 = scmp.eq.s32.totalorder %s11, 0
    %p108 = por %p106, %p107
    %p109 = scmp.ne.s32.totalorder %s101, %s103
    %p110 = scmp.eq.s32.totalorder %s16, 7
    %p111 = por %p109, %p110
    %p112 = scmp.ne.s32.totalorder %s103, %s104
    %p113 = scmp.eq.s32.totalorder %s16, 0
    %p114 = por %p112, %p113
    %p115 = scmp.ne.s32.totalorder %s103, %s104
    %p116 = scmp.eq.s32.totalorder %s17, 7
    %p117 = por %p115, %p116
    %p119 = scmp.ne.s32.totalorder %s104, %s118
    %p120 = scmp.eq.s32.totalorder %s17, 0
    %p121 = por %p119, %p120
    %s123 = sadd.s32 %s122, 1
    %p126 = scmp.eq.s32.totalorder %s11, 7
    %p127 = scmp.ne.s32.totalorder %s122, %s124
    %p128 = scmp.eq.s32.totalorder %s11, 0
    %p129 = por %p127, %p128
    %p130 = scmp.ne.s32.totalorder %s122, %s124
    %p131 = scmp.eq.s32.totalorder %s16, 7
    %p132 = por %p130, %p131
    %p133 = scmp.ne.s32.totalorder %s124, %s125
    %p134 = scmp.eq.s32.totalorder %s16, 0
    %p135 = por %p133, %p134
    %p136 = scmp.ne.s32.totalorder %s124, %s125
    %p137 = scmp.eq.s32.totalorder %s17, 7
    %p138 = por %p136, %p137
    %p140 = scmp.ne.s32.totalorder %s125, %s139
    %p141 = scmp.eq.s32.totalorder %s17, 0
    %p142 = por %p140, %p141
    %s143 = ssub.s32 %s18, %s30
    %p144 = scmp.eq.s32.totalorder %s143, 0
    %s146 = sadd.s32 %s145, 1
    %s147 = scalar_select %p144, %s145, %s146
    %p150 = pneg %p144
    %p151 = scmp.eq.s32.totalorder %s11, 7
    %p152 = por %p150, %p151
    %p153 = scmp.ne.s32.totalorder %s145, %s148
    %p154 = scmp.eq.s32.totalorder %s11, 0
    %p155 = por %p153, %p154
    %p156 = scmp.ne.s32.totalorder %s145, %s148
    %p157 = scmp.eq.s32.totalorder %s16, 7
    %p158 = por %p156, %p157
    %p159 = scmp.ne.s32.totalorder %s148, %s149
    %p160 = scmp.eq.s32.totalorder %s16, 0
    %p161 = por %p159, %p160
    %p162 = scmp.ne.s32.totalorder %s148, %s149
    %p163 = scmp.eq.s32.totalorder %s17, 7
    %p164 = por %p162, %p163
    %p166 = scmp.ne.s32.totalorder %s149, %s165
    %p167 = scmp.eq.s32.totalorder %s17, 0
    %p168 = por %p166, %p167
    %p169 = scmp.le.s32.totalorder 1, %s11
    %p170 = scmp.lt.s32.totalorder %s11, 9
    %p171 = pnand %p169, %p170
    %p172 = pneg %p171
    // Predicated region
    $region9: #{forward.4} parent=5 // pred_check
      _
    $region10: #{forward.4} parent=5 // pred_check_branch
      %174 = sbr.rel (%p171) target = $region12
    $region11: #{forward.4} parent=5 // pred_region
      %s175 = ssub.s32 %s11, 1
      // Predicated region
      $region13: #{forward.4} parent=11 // pred_check
        %p176 = pneg %p72
      $region14: #{forward.4} parent=11 // pred_check_branch
        %178 = sbr.rel (%p176) target = $region16
      $region15: #{forward.4} parent=11 // pred_region
        _
      $region16: #{forward.4} parent=11 // pred_fallthru
        _
      // Predicated region
      $region17: #{forward.4} parent=11 // pred_check
        %p179 = pneg %p93
      $region18: #{forward.4} parent=11 // pred_check_branch
        %181 = sbr.rel (%p179) target = $region20
      $region19: #{forward.4} parent=11 // pred_region
        _
      $region20: #{forward.4} parent=11 // pred_fallthru
        _
      // Predicated region
      $region21: #{forward.4} parent=11 // pred_check
        %p182 = pneg %p114
      $region22: #{forward.4} parent=11 // pred_check_branch
        %184 = sbr.rel (%p182) target = $region24
      $region23: #{forward.4} parent=11 // pred_region
        _
      $region24: #{forward.4} parent=11 // pred_fallthru
        _
      // Predicated region
      $region25: #{forward.4} parent=11 // pred_check
        %p185 = pneg %p135
      $region26: #{forward.4} parent=11 // pred_check_branch
        %187 = sbr.rel (%p185) target = $region28
      $region27: #{forward.4} parent=11 // pred_region
        _
      $region28: #{forward.4} parent=11 // pred_fallthru
        _
    $region12: #{forward.4} parent=5 // pred_fallthru
      _
    %p188 = scmp.lt.s32.totalorder %s11, 8
    // Predicated region
    $region29: #{forward.4} parent=5 // pred_check
      %p189 = pneg %p188
    $region30: #{forward.4} parent=5 // pred_check_branch
      %191 = sbr.rel (%p189) target = $region32
    $region31: #{forward.4} parent=5 // pred_region
      // Predicated region
      $region33: #{forward.4} parent=31 // pred_check
        %p192 = pneg %p45
      $region34: #{forward.4} parent=31 // pred_check_branch
        %194 = sbr.rel (%p192) target = $region36
      $region35: #{forward.4} parent=31 // pred_region
        %p195 = scmp.lt.s32.totalorder %s18, 1
        %s196 = scalar_select %p195, %s18, 1
        %p197 = scmp.lt.s32.totalorder %s19, 3
        %s198 = scalar_select %p197, %s19, 3
        %s199 = smul.addr %s198, 7
        %s200 = smul.addr %s196, 28
        %s201 = sadd.s32 %s199, %s200
        %s202 = smul.addr %s201, 4
        %s203 = scalar_lea.vmem %s0, %s202
      $region36: #{forward.4} parent=31 // pred_fallthru
        _
    $region32: #{forward.4} parent=5 // pred_fallthru
      _
    %p204 = scmp.le.s32.totalorder 1, %s11
    %p205 = scmp.lt.s32.totalorder %s11, 9
    %p206 = pnand %p204, %p205
    %p207 = pneg %p206
    // Predicated region
    $region37: #{forward.4} parent=5 // pred_check
      _
    $region38: #{forward.4} parent=5 // pred_check_branch
      %209 = sbr.rel (%p206) target = $region40
    $region39: #{forward.4} parent=5 // pred_region
      %s210 = ssub.s32 %s11, 1
      %p211 = scmp.lt.s32.totalorder %s20, 1
      %s212 = scalar_select %p211, %s20, 1
      %p213 = scmp.lt.s32.totalorder %s21, 3
      %s214 = scalar_select %p213, %s21, 3
      %s215 = smul.addr %s214, 7
      %s216 = smul.addr %s212, 28
      %s217 = sadd.s32 %s215, %s216
      %s218 = smul.addr %s217, 4
      %s219 = scalar_lea.vmem %s0, %s218
      %p220 = pneg %p51
      %p221 = pneg %p48
      %p222 = pneg %p72
      %p223 = pneg %p69
      %p224 = pneg %p93
      %p225 = pneg %p90
      %p226 = pneg %p114
      %p227 = pneg %p111
      %p228 = pneg %p135
      %p229 = pneg %p132
      %p230 = pneg %p161
      %p231 = pneg %p158
      %p232 = scmp.lt.s32.totalorder %s20, 1
      %s233 = scalar_select %p232, %s20, 1
      %s234 = smul.addr %s233, 7
      %s235 = smul.addr %s234, 8
      %s236 = scalar_lea.vmem %s5, %s235
      %p237 = scmp.lt.s32.totalorder %s20, 1
      %s238 = scalar_select %p237, %s20, 1
      %p239 = scmp.lt.s32.totalorder %s21, 3
      %s240 = scalar_select %p239, %s21, 3
      %s241 = smul.addr %s240, 7
      %s242 = smul.addr %s238, 28
      %s243 = sadd.s32 %s241, %s242
      %s244 = smul.addr %s243, 4
      %s245 = scalar_lea.vmem %s0, %s244
      %p246 = scmp.lt.s32.totalorder %s20, 1
      %s247 = scalar_select %p246, %s20, 1
      %s248 = smul.addr %s247, 7
      %s249 = smul.addr %s248, 8
      %s250 = scalar_lea.vmem %s5, %s249
      %p252 = scmp.eq.s32.totalorder %s21, 0
      // Predicated region
      $region41: #{forward.4} parent=39 // pred_check
        %p253 = pneg %p252
      $region42: #{forward.4} parent=39 // pred_check_branch
        %255 = sbr.rel (%p253) target = $region44
      $region43: #{forward.4} parent=39 // pred_region
        %256 = vst [vmem:[%s250] sm:$0xff] 0.0
        %257 = vst [vmem:[%s250 + $0x8] sm:$0xff] 0.0
        %258 = vst [vmem:[%s250 + $0x10] sm:$0xff] 0.0
        %259 = vst [vmem:[%s250 + $0x18] sm:$0xff] 0.0
        %260 = vst [vmem:[%s250 + $0x20] sm:$0xff] 0.0
        %261 = vst [vmem:[%s250 + $0x28] sm:$0xff] 0.0
        %262 = vst [vmem:[%s250 + $0x30] sm:$0xff] 0.0
        %263 = vst [vmem:[#allocation2] sm:$0xff] 0.0
        %264 = vst [vmem:[#allocation2 + $0x8] sm:$0xff] 0.0
        %265 = vst [vmem:[#allocation2 + $0x10] sm:$0xff] 0.0
        %266 = vst [vmem:[#allocation2 + $0x18] sm:$0xff] 0.0
        %267 = vst [vmem:[#allocation2 + $0x20] sm:$0xff] 0.0
        %268 = vst [vmem:[#allocation2 + $0x28] sm:$0xff] 0.0
        %269 = vst [vmem:[#allocation2 + $0x30] sm:$0xff] 0.0
      $region44: #{forward.4} parent=39 // pred_fallthru
        _
      %v270 = vld [vmem:[%s245] sm:$0xf]
      %v271 = vld [vmem:[%s245 + $0x4] sm:$0xf]
      %v272 = vld [vmem:[%s245 + $0x8] sm:$0xf]
      %v273 = vld [vmem:[%s245 + $0xc] sm:$0xf]
      %v274 = vld [vmem:[%s245 + $0x10] sm:$0xf]
      %v275 = vld [vmem:[%s245 + $0x14] sm:$0xf]
      %v276 = vld [vmem:[%s245 + $0x18] sm:$0xf]
      %v277 = vld [vmem:[%s250] sm:$0xff]
      %v278 = vld [vmem:[%s250 + $0x8] sm:$0xff]
      %v279 = vld [vmem:[%s250 + $0x10] sm:$0xff]
      %v280 = vld [vmem:[%s250 + $0x18] sm:$0xff]
      %v281 = vld [vmem:[%s250 + $0x20] sm:$0xff]
      %v282 = vld [vmem:[%s250 + $0x28] sm:$0xff]
      %v283 = vld [vmem:[%s250 + $0x30] sm:$0xff]
      %v284 = vpack.c.bf16 %v278, %v277
      %v285 = vpack.c.bf16 %v280, %v279
      %v286 = vpack.c.bf16 %v282, %v281
      %v287 = vpack.c.bf16 %v283, %v283
      %v288 = vld [vmem:[%s1] sm:$0xff]
      %v289 = vld [vmem:[%s1 + $0x8] sm:$0xff]
      %v290 = vld [vmem:[%s1 + $0x10] sm:$0xff]
      %v291 = vld [vmem:[%s1 + $0x18] sm:$0xff]
      %v292 = vld [vmem:[%s1 + $0x20] sm:$0xff]
      %v293 = vld [vmem:[%s1 + $0x28] sm:$0xff]
      %v294 = vld [vmem:[%s1 + $0x30] sm:$0xff]
      %v295 = vld [vmem:[%s1 + $0x38] sm:$0xff]
      %v296 = vld [vmem:[%s1 + $0x40] sm:$0xff]
      %v297 = vld [vmem:[%s1 + $0x48] sm:$0xff]
      %v298 = vld [vmem:[%s1 + $0x50] sm:$0xff]
      %v299 = vld [vmem:[%s1 + $0x58] sm:$0xff]
      %v300 = vld [vmem:[%s1 + $0x60] sm:$0xff]
      %v301 = vld [vmem:[%s1 + $0x68] sm:$0xff]
      %v302 = vld [vmem:[%s1 + $0x70] sm:$0xff]
      %v303 = vld [vmem:[%s1 + $0x78] sm:$0xff]
      %v304 = vld [vmem:[%s1 + $0x80] sm:$0xff]
      %v305 = vld [vmem:[%s1 + $0x88] sm:$0xff]
      %v306 = vld [vmem:[%s1 + $0x90] sm:$0xff]
      %v307 = vld [vmem:[%s1 + $0x98] sm:$0xff]
      %v308 = vld [vmem:[%s1 + $0xa0] sm:$0xff]
      %v309 = vld [vmem:[%s1 + $0xa8] sm:$0xff]
      %v310 = vld [vmem:[%s1 + $0xb0] sm:$0xff]
      %v311 = vld [vmem:[%s1 + $0xb8] sm:$0xff]
      %v312 = vld [vmem:[%s1 + $0xc0] sm:$0xff]
      %v313 = vld [vmem:[%s1 + $0xc8] sm:$0xff]
      %v314 = vld [vmem:[%s1 + $0xd0] sm:$0xff]
      %v315 = vld [vmem:[%s1 + $0xd8] sm:$0xff]
      %v316 = vld [vmem:[%s1 + $0xe0] sm:$0xff]
      %v317 = vld [vmem:[%s1 + $0xe8] sm:$0xff]
      %v318 = vld [vmem:[%s1 + $0xf0] sm:$0xff]
      %v319 = vld [vmem:[%s1 + $0xf8] sm:$0xff]
      %v320 = vld [vmem:[%s1 + $0x100] sm:$0xff]
      %v321 = vld [vmem:[%s1 + $0x108] sm:$0xff]
      %v322 = vld [vmem:[%s1 + $0x110] sm:$0xff]
      %v323 = vld [vmem:[%s1 + $0x118] sm:$0xff]
      %v324 = vld [vmem:[%s1 + $0x120] sm:$0xff]
      %v325 = vld [vmem:[%s1 + $0x128] sm:$0xff]
      %v326 = vld [vmem:[%s1 + $0x130] sm:$0xff]
      %v327 = vld [vmem:[%s1 + $0x138] sm:$0xff]
      %v328 = vld [vmem:[%s1 + $0x140] sm:$0xff]
      %v329 = vld [vmem:[%s1 + $0x148] sm:$0xff]
      %v330 = vld [vmem:[%s1 + $0x150] sm:$0xff]
      %v331 = vld [vmem:[%s1 + $0x158] sm:$0xff]
      %v332 = vld [vmem:[%s1 + $0x160] sm:$0xff]
      %v333 = vld [vmem:[%s1 + $0x168] sm:$0xff]
      %v334 = vld [vmem:[%s1 + $0x170] sm:$0xff]
      %v335 = vld [vmem:[%s1 + $0x178] sm:$0xff]
      %v336 = vld [vmem:[%s1 + $0x180] sm:$0xff]
      %v337 = vld [vmem:[%s1 + $0x188] sm:$0xff]
      %v338 = vld [vmem:[%s1 + $0x190] sm:$0xff]
      %v339 = vld [vmem:[%s1 + $0x198] sm:$0xff]
      %v340 = vld [vmem:[%s1 + $0x1a0] sm:$0xff]
      %v341 = vld [vmem:[%s1 + $0x1a8] sm:$0xff]
      %v342 = vld [vmem:[%s1 + $0x1b0] sm:$0xff]
      %v343 = vld [vmem:[%s1 + $0x1b8] sm:$0xff]
      %v344 = vld [vmem:[%s1 + $0x1c0] sm:$0xff]
      %v345 = vld [vmem:[%s1 + $0x1c8] sm:$0xff]
      %v346 = vld [vmem:[%s1 + $0x1d0] sm:$0xff]
      %v347 = vld [vmem:[%s1 + $0x1d8] sm:$0xff]
      %v348 = vld [vmem:[%s1 + $0x1e0] sm:$0xff]
      %v349 = vld [vmem:[%s1 + $0x1e8] sm:$0xff]
      %v350 = vld [vmem:[%s1 + $0x1f0] sm:$0xff]
      %v351 = vld [vmem:[%s1 + $0x1f8] sm:$0xff]
      %v352 = vld [vmem:[%s1 + $0x200] sm:$0xff]
      %v353 = vld [vmem:[%s1 + $0x208] sm:$0xff]
      %v354 = vld [vmem:[%s1 + $0x210] sm:$0xff]
      %v355 = vld [vmem:[%s1 + $0x218] sm:$0xff]
      %v356 = vld [vmem:[%s1 + $0x220] sm:$0xff]
      %v357 = vld [vmem:[%s1 + $0x228] sm:$0xff]
      %v358 = vld [vmem:[%s1 + $0x230] sm:$0xff]
      %v359 = vld [vmem:[%s1 + $0x238] sm:$0xff]
      %v360 = vld [vmem:[%s1 + $0x240] sm:$0xff]
      %v361 = vld [vmem:[%s1 + $0x248] sm:$0xff]
      %v362 = vld [vmem:[%s1 + $0x250] sm:$0xff]
      %v363 = vld [vmem:[%s1 + $0x258] sm:$0xff]
      %v364 = vld [vmem:[%s1 + $0x260] sm:$0xff]
      %v365 = vld [vmem:[%s1 + $0x268] sm:$0xff]
      %v366 = vld [vmem:[%s1 + $0x270] sm:$0xff]
      %v367 = vld [vmem:[%s1 + $0x278] sm:$0xff]
      %v368 = vld [vmem:[%s1 + $0x280] sm:$0xff]
      %v369 = vld [vmem:[%s1 + $0x288] sm:$0xff]
      %v370 = vld [vmem:[%s1 + $0x290] sm:$0xff]
      %v371 = vld [vmem:[%s1 + $0x298] sm:$0xff]
      %v372 = vld [vmem:[%s1 + $0x2a0] sm:$0xff]
      %v373 = vld [vmem:[%s1 + $0x2a8] sm:$0xff]
      %v374 = vld [vmem:[%s1 + $0x2b0] sm:$0xff]
      %v375 = vld [vmem:[%s1 + $0x2b8] sm:$0xff]
      %v376 = vld [vmem:[%s1 + $0x2c0] sm:$0xff]
      %v377 = vld [vmem:[%s1 + $0x2c8] sm:$0xff]
      %v378 = vld [vmem:[%s1 + $0x2d0] sm:$0xff]
      %v379 = vld [vmem:[%s1 + $0x2d8] sm:$0xff]
      %v380 = vld [vmem:[%s1 + $0x2e0] sm:$0xff]
      %v381 = vld [vmem:[%s1 + $0x2e8] sm:$0xff]
      %v382 = vld [vmem:[%s1 + $0x2f0] sm:$0xff]
      %v383 = vld [vmem:[%s1 + $0x2f8] sm:$0xff]
      %v384 = vld [vmem:[%s1 + $0x300] sm:$0xff]
      %v385 = vld [vmem:[%s1 + $0x308] sm:$0xff]
      %v386 = vld [vmem:[%s1 + $0x310] sm:$0xff]
      %v387 = vld [vmem:[%s1 + $0x318] sm:$0xff]
      %v388 = vld [vmem:[%s1 + $0x320] sm:$0xff]
      %v389 = vld [vmem:[%s1 + $0x328] sm:$0xff]
      %v390 = vld [vmem:[%s1 + $0x330] sm:$0xff]
      %v391 = vld [vmem:[%s1 + $0x338] sm:$0xff]
      %v392 = vld [vmem:[%s1 + $0x340] sm:$0xff]
      %v393 = vld [vmem:[%s1 + $0x348] sm:$0xff]
      %v394 = vld [vmem:[%s1 + $0x350] sm:$0xff]
      %v395 = vld [vmem:[%s1 + $0x358] sm:$0xff]
      %v396 = vld [vmem:[%s1 + $0x360] sm:$0xff]
      %v397 = vld [vmem:[%s1 + $0x368] sm:$0xff]
      %v398 = vld [vmem:[%s1 + $0x370] sm:$0xff]
      %v399 = vld [vmem:[%s1 + $0x378] sm:$0xff]
      %v400 = vld [vmem:[%s1 + $0x380] sm:$0xff]
      %v401 = vld [vmem:[%s1 + $0x388] sm:$0xff]
      %v402 = vld [vmem:[%s1 + $0x390] sm:$0xff]
      %v403 = vld [vmem:[%s1 + $0x398] sm:$0xff]
      %v404 = vld [vmem:[%s1 + $0x3a0] sm:$0xff]
      %v405 = vld [vmem:[%s1 + $0x3a8] sm:$0xff]
      %v406 = vld [vmem:[%s1 + $0x3b0] sm:$0xff]
      %v407 = vld [vmem:[%s1 + $0x3b8] sm:$0xff]
      %v408 = vld [vmem:[%s1 + $0x3c0] sm:$0xff]
      %v409 = vld [vmem:[%s1 + $0x3c8] sm:$0xff]
      %v410 = vld [vmem:[%s1 + $0x3d0] sm:$0xff]
      %v411 = vld [vmem:[%s1 + $0x3d8] sm:$0xff]
      %v412 = vld [vmem:[%s1 + $0x3e0] sm:$0xff]
      %v413 = vld [vmem:[%s1 + $0x3e8] sm:$0xff]
      %v414 = vld [vmem:[%s1 + $0x3f0] sm:$0xff]
      %v415 = vld [vmem:[%s1 + $0x3f8] sm:$0xff]
      %v416 = vld [vmem:[%s1 + $0x400] sm:$0xff]
      %v417 = vld [vmem:[%s1 + $0x408] sm:$0xff]
      %v418 = vld [vmem:[%s1 + $0x410] sm:$0xff]
      %v419 = vld [vmem:[%s1 + $0x418] sm:$0xff]
      %v420 = vld [vmem:[%s1 + $0x420] sm:$0xff]
      %v421 = vld [vmem:[%s1 + $0x428] sm:$0xff]
      %v422 = vld [vmem:[%s1 + $0x430] sm:$0xff]
      %v423 = vld [vmem:[%s1 + $0x438] sm:$0xff]
      %v424 = vld [vmem:[%s1 + $0x440] sm:$0xff]
      %v425 = vld [vmem:[%s1 + $0x448] sm:$0xff]
      %v426 = vld [vmem:[%s1 + $0x450] sm:$0xff]
      %v427 = vld [vmem:[%s1 + $0x458] sm:$0xff]
      %v428 = vld [vmem:[%s1 + $0x460] sm:$0xff]
      %v429 = vld [vmem:[%s1 + $0x468] sm:$0xff]
      %v430 = vld [vmem:[%s1 + $0x470] sm:$0xff]
      %v431 = vld [vmem:[%s1 + $0x478] sm:$0xff]
      %v432 = vld [vmem:[%s1 + $0x480] sm:$0xff]
      %v433 = vld [vmem:[%s1 + $0x488] sm:$0xff]
      %v434 = vld [vmem:[%s1 + $0x490] sm:$0xff]
      %v435 = vld [vmem:[%s1 + $0x498] sm:$0xff]
      %v436 = vld [vmem:[%s1 + $0x4a0] sm:$0xff]
      %v437 = vld [vmem:[%s1 + $0x4a8] sm:$0xff]
      %v438 = vld [vmem:[%s1 + $0x4b0] sm:$0xff]
      %v439 = vld [vmem:[%s1 + $0x4b8] sm:$0xff]
      %v440 = vld [vmem:[%s1 + $0x4c0] sm:$0xff]
      %v441 = vld [vmem:[%s1 + $0x4c8] sm:$0xff]
      %v442 = vld [vmem:[%s1 + $0x4d0] sm:$0xff]
      %v443 = vld [vmem:[%s1 + $0x4d8] sm:$0xff]
      %v444 = vld [vmem:[%s1 + $0x4e0] sm:$0xff]
      %v445 = vld [vmem:[%s1 + $0x4e8] sm:$0xff]
      %v446 = vld [vmem:[%s1 + $0x4f0] sm:$0xff]
      %v447 = vld [vmem:[%s1 + $0x4f8] sm:$0xff]
      %v448 = vld [vmem:[%s1 + $0x500] sm:$0xff]
      %v449 = vld [vmem:[%s1 + $0x508] sm:$0xff]
      %v450 = vld [vmem:[%s1 + $0x510] sm:$0xff]
      %v451 = vld [vmem:[%s1 + $0x518] sm:$0xff]
      %v452 = vld [vmem:[%s1 + $0x520] sm:$0xff]
      %v453 = vld [vmem:[%s1 + $0x528] sm:$0xff]
      %v454 = vld [vmem:[%s1 + $0x530] sm:$0xff]
      %v455 = vld [vmem:[%s1 + $0x538] sm:$0xff]
      %v456 = vld [vmem:[%s1 + $0x540] sm:$0xff]
      %v457 = vld [vmem:[%s1 + $0x548] sm:$0xff]
      %v458 = vld [vmem:[%s1 + $0x550] sm:$0xff]
      %v459 = vld [vmem:[%s1 + $0x558] sm:$0xff]
      %v460 = vld [vmem:[%s1 + $0x560] sm:$0xff]
      %v461 = vld [vmem:[%s1 + $0x568] sm:$0xff]
      %v462 = vld [vmem:[%s1 + $0x570] sm:$0xff]
      %v463 = vld [vmem:[%s1 + $0x578] sm:$0xff]
      %v464 = vld [vmem:[%s1 + $0x580] sm:$0xff]
      %v465 = vld [vmem:[%s1 + $0x588] sm:$0xff]
      %v466 = vld [vmem:[%s1 + $0x590] sm:$0xff]
      %v467 = vld [vmem:[%s1 + $0x598] sm:$0xff]
      %v468 = vld [vmem:[%s1 + $0x5a0] sm:$0xff]
      %v469 = vld [vmem:[%s1 + $0x5a8] sm:$0xff]
      %v470 = vld [vmem:[%s1 + $0x5b0] sm:$0xff]
      %v471 = vld [vmem:[%s1 + $0x5b8] sm:$0xff]
      %v472 = vld [vmem:[%s1 + $0x5c0] sm:$0xff]
      %v473 = vld [vmem:[%s1 + $0x5c8] sm:$0xff]
      %v474 = vld [vmem:[%s1 + $0x5d0] sm:$0xff]
      %v475 = vld [vmem:[%s1 + $0x5d8] sm:$0xff]
      %v476 = vld [vmem:[%s1 + $0x5e0] sm:$0xff]
      %v477 = vld [vmem:[%s1 + $0x5e8] sm:$0xff]
      %v478 = vld [vmem:[%s1 + $0x5f0] sm:$0xff]
      %v479 = vld [vmem:[%s1 + $0x5f8] sm:$0xff]
      %v480 = vld [vmem:[%s1 + $0x600] sm:$0xff]
      %v481 = vld [vmem:[%s1 + $0x608] sm:$0xff]
      %v482 = vld [vmem:[%s1 + $0x610] sm:$0xff]
      %v483 = vld [vmem:[%s1 + $0x618] sm:$0xff]
      %v484 = vld [vmem:[%s1 + $0x620] sm:$0xff]
      %v485 = vld [vmem:[%s1 + $0x628] sm:$0xff]
      %v486 = vld [vmem:[%s1 + $0x630] sm:$0xff]
      %v487 = vld [vmem:[%s1 + $0x638] sm:$0xff]
      %v488 = vld [vmem:[%s1 + $0x640] sm:$0xff]
      %v489 = vld [vmem:[%s1 + $0x648] sm:$0xff]
      %v490 = vld [vmem:[%s1 + $0x650] sm:$0xff]
      %v491 = vld [vmem:[%s1 + $0x658] sm:$0xff]
      %v492 = vld [vmem:[%s1 + $0x660] sm:$0xff]
      %v493 = vld [vmem:[%s1 + $0x668] sm:$0xff]
      %v494 = vld [vmem:[%s1 + $0x670] sm:$0xff]
      %v495 = vld [vmem:[%s1 + $0x678] sm:$0xff]
      %v496 = vld [vmem:[%s1 + $0x680] sm:$0xff]
      %v497 = vld [vmem:[%s1 + $0x688] sm:$0xff]
      %v498 = vld [vmem:[%s1 + $0x690] sm:$0xff]
      %v499 = vld [vmem:[%s1 + $0x698] sm:$0xff]
      %v500 = vld [vmem:[%s1 + $0x6a0] sm:$0xff]
      %v501 = vld [vmem:[%s1 + $0x6a8] sm:$0xff]
      %v502 = vld [vmem:[%s1 + $0x6b0] sm:$0xff]
      %v503 = vld [vmem:[%s1 + $0x6b8] sm:$0xff]
      %v504 = vld [vmem:[%s1 + $0x6c0] sm:$0xff]
      %v505 = vld [vmem:[%s1 + $0x6c8] sm:$0xff]
      %v506 = vld [vmem:[%s1 + $0x6d0] sm:$0xff]
      %v507 = vld [vmem:[%s1 + $0x6d8] sm:$0xff]
      %v508 = vld [vmem:[%s1 + $0x6e0] sm:$0xff]
      %v509 = vld [vmem:[%s1 + $0x6e8] sm:$0xff]
      %v510 = vld [vmem:[%s1 + $0x6f0] sm:$0xff]
      %v511 = vld [vmem:[%s1 + $0x6f8] sm:$0xff]
      %v512 = vld [vmem:[%s1 + $0x700] sm:$0xff]
      %v513 = vld [vmem:[%s1 + $0x708] sm:$0xff]
      %v514 = vld [vmem:[%s1 + $0x710] sm:$0xff]
      %v515 = vld [vmem:[%s1 + $0x718] sm:$0xff]
      %v516 = vld [vmem:[%s1 + $0x720] sm:$0xff]
      %v517 = vld [vmem:[%s1 + $0x728] sm:$0xff]
      %v518 = vld [vmem:[%s1 + $0x730] sm:$0xff]
      %v519 = vld [vmem:[%s1 + $0x738] sm:$0xff]
      %v520 = vld [vmem:[%s1 + $0x740] sm:$0xff]
      %v521 = vld [vmem:[%s1 + $0x748] sm:$0xff]
      %v522 = vld [vmem:[%s1 + $0x750] sm:$0xff]
      %v523 = vld [vmem:[%s1 + $0x758] sm:$0xff]
      %v524 = vld [vmem:[%s1 + $0x760] sm:$0xff]
      %v525 = vld [vmem:[%s1 + $0x768] sm:$0xff]
      %v526 = vld [vmem:[%s1 + $0x770] sm:$0xff]
      %v527 = vld [vmem:[%s1 + $0x778] sm:$0xff]
      %v528 = vld [vmem:[%s1 + $0x780] sm:$0xff]
      %v529 = vld [vmem:[%s1 + $0x788] sm:$0xff]
      %v530 = vld [vmem:[%s1 + $0x790] sm:$0xff]
      %v531 = vld [vmem:[%s1 + $0x798] sm:$0xff]
      %v532 = vld [vmem:[%s1 + $0x7a0] sm:$0xff]
      %v533 = vld [vmem:[%s1 + $0x7a8] sm:$0xff]
      %v534 = vld [vmem:[%s1 + $0x7b0] sm:$0xff]
      %v535 = vld [vmem:[%s1 + $0x7b8] sm:$0xff]
      %v536 = vld [vmem:[%s1 + $0x7c0] sm:$0xff]
      %v537 = vld [vmem:[%s1 + $0x7c8] sm:$0xff]
      %v538 = vld [vmem:[%s1 + $0x7d0] sm:$0xff]
      %v539 = vld [vmem:[%s1 + $0x7d8] sm:$0xff]
      %v540 = vld [vmem:[%s1 + $0x7e0] sm:$0xff]
      %v541 = vld [vmem:[%s1 + $0x7e8] sm:$0xff]
      %v542 = vld [vmem:[%s1 + $0x7f0] sm:$0xff]
      %v543 = vld [vmem:[%s1 + $0x7f8] sm:$0xff]
      %v544 = vld [vmem:[%s1 + $0x800] sm:$0xff]
      %v545 = vld [vmem:[%s1 + $0x808] sm:$0xff]
      %v546 = vld [vmem:[%s1 + $0x810] sm:$0xff]
      %v547 = vld [vmem:[%s1 + $0x818] sm:$0xff]
      %v548 = vld [vmem:[%s1 + $0x820] sm:$0xff]
      %v549 = vld [vmem:[%s1 + $0x828] sm:$0xff]
      %v550 = vld [vmem:[%s1 + $0x830] sm:$0xff]
      %v551 = vld [vmem:[%s1 + $0x838] sm:$0xff]
      %v552 = vld [vmem:[%s1 + $0x840] sm:$0xff]
      %v553 = vld [vmem:[%s1 + $0x848] sm:$0xff]
      %v554 = vld [vmem:[%s1 + $0x850] sm:$0xff]
      %v555 = vld [vmem:[%s1 + $0x858] sm:$0xff]
      %v556 = vld [vmem:[%s1 + $0x860] sm:$0xff]
      %v557 = vld [vmem:[%s1 + $0x868] sm:$0xff]
      %v558 = vld [vmem:[%s1 + $0x870] sm:$0xff]
      %v559 = vld [vmem:[%s1 + $0x878] sm:$0xff]
      %v560 = vld [vmem:[%s1 + $0x880] sm:$0xff]
      %v561 = vld [vmem:[%s1 + $0x888] sm:$0xff]
      %v562 = vld [vmem:[%s1 + $0x890] sm:$0xff]
      %v563 = vld [vmem:[%s1 + $0x898] sm:$0xff]
      %v564 = vld [vmem:[%s1 + $0x8a0] sm:$0xff]
      %v565 = vld [vmem:[%s1 + $0x8a8] sm:$0xff]
      %v566 = vld [vmem:[%s1 + $0x8b0] sm:$0xff]
      %v567 = vld [vmem:[%s1 + $0x8b8] sm:$0xff]
      %v568 = vld [vmem:[%s1 + $0x8c0] sm:$0xff]
      %v569 = vld [vmem:[%s1 + $0x8c8] sm:$0xff]
      %v570 = vld [vmem:[%s1 + $0x8d0] sm:$0xff]
      %v571 = vld [vmem:[%s1 + $0x8d8] sm:$0xff]
      %v572 = vld [vmem:[%s1 + $0x8e0] sm:$0xff]
      %v573 = vld [vmem:[%s1 + $0x8e8] sm:$0xff]
      %v574 = vld [vmem:[%s1 + $0x8f0] sm:$0xff]
      %v575 = vld [vmem:[%s1 + $0x8f8] sm:$0xff]
      %v583 = vunpack.c.l.b16 %v270
      %v584 = vunpack.c.l.b16 %v271
      %v585 = vunpack.c.l.b16 %v272
      %v586 = vunpack.c.l.b16 %v273
      %v587 = vunpack.c.l.b16 %v274
      %v588 = vunpack.c.l.b16 %v275
      %v589 = vunpack.c.l.b16 %v276
      %v590 = vpack.c.b16 %v583, %v583
      %v591 = vpack.c.b16 %v585, %v584
      %v592 = vpack.c.b16 %v587, %v586
      %v593 = vpack.c.b16 %v589, %v588
      %vm597 = vcmask 1043456
      %v600 = vsel %vm597, 0, %v590
      %vm602 = vsmask.f32 7424
      %v603 = vshrl.u32 %v600, 16
      %v605 = vshll.u32 %v600, 16
      %v607 = vrot.slane %v605, 1
      %v608 = vor.u32 %v603, %v607
      %v610 = vshll.u32 %v591, 16
      %v612 = vrot.slane %v610, 1
      %v613 = vsel %vm602, %v608, %v612
      %v614 = vshrl.u32 %v591, 16
      %v616 = vor.u32 %v614, %v612
      %v618 = vshll.u32 %v592, 16
      %v620 = vrot.slane %v618, 1
      %v621 = vsel %vm602, %v616, %v620
      %v622 = vshrl.u32 %v592, 16
      %v624 = vor.u32 %v622, %v620
      %v626 = vshll.u32 %v593, 16
      %v628 = vrot.slane %v626, 1
      %v629 = vsel %vm602, %v624, %v628
      %v630 = vshrl.u32 %v593, 16
      %v632 = vor.u32 %v630, %v628
      %vm638 = vcmask 1046528
      %v639 = vrot.slane %v600, 1
      %v640 = vrot.slane %v591, 1
      %v641 = vsel %vm638, %v639, %v640
      %v642 = vrot.slane %v592, 1
      %v643 = vsel %vm638, %v640, %v642
      %v644 = vrot.slane %v593, 1
      %v645 = vsel %vm638, %v642, %v644
      %vm650 = vsmask.f32 4352
      %v651 = vrot.slane %v603, 3
      %v652 = vrot.slane %v605, 4
      %v653 = vor.u32 %v651, %v652
      %v654 = vrot.slane %v614, 3
      %v655 = vrot.slane %v610, 4
      %v656 = vor.u32 %v654, %v655
      %v657 = vsel %vm650, %v653, %v656
      %v658 = vrot.slane %v622, 3
      %v659 = vrot.slane %v618, 4
      %v660 = vor.u32 %v658, %v659
      %v661 = vsel %vm650, %v656, %v660
      %v662 = vrot.slane %v630, 3
      %v663 = vrot.slane %v626, 4
      %v664 = vor.u32 %v662, %v663
      %v665 = vsel %vm650, %v660, %v664
      %vm670 = vcmask 1043456
      %v671 = vrot.slane %v600, 4
      %v672 = vrot.slane %v591, 4
      %v673 = vsel %vm670, %v671, %v672
      %v674 = vrot.slane %v592, 4
      %v675 = vsel %vm670, %v672, %v674
      %v676 = vrot.slane %v593, 4
      %v677 = vsel %vm670, %v674, %v676
      %vm682 = vsmask.f32 3328
      %v683 = vrot.slane %v603, 4
      %v684 = vrot.slane %v605, 5
      %v685 = vor.u32 %v683, %v684
      %v686 = vrot.slane %v614, 4
      %v687 = vrot.slane %v610, 5
      %v688 = vor.u32 %v686, %v687
      %v689 = vsel %vm682, %v685, %v688
      %v690 = vrot.slane %v622, 4
      %v691 = vrot.slane %v618, 5
      %v692 = vor.u32 %v690, %v691
      %v693 = vsel %vm682, %v688, %v692
      %v694 = vrot.slane %v630, 4
      %v695 = vrot.slane %v626, 5
      %v696 = vor.u32 %v694, %v695
      %v697 = vsel %vm682, %v692, %v696
      %v698 = vshll.u32 0, 16
      %v700 = vrot.slane %v698, 5
      %v701 = vsel %vm682, %v696, %v700
      %vm707 = vcmask 1040384
      %v708 = vrot.slane %v600, 7
      %v709 = vrot.slane %v591, 7
      %v710 = vsel %vm707, %v708, %v709
      %v711 = vrot.slane %v592, 7
      %v712 = vsel %vm707, %v709, %v711
      %v713 = vrot.slane %v593, 7
      %v714 = vsel %vm707, %v711, %v713
      %v715 = vrot.slane 0, 7
      %v716 = vsel %vm707, %v713, %v715
      %vm721 = vsmask.f32 256
      %v722 = vrot.slane %v603, 7
      %v723 = vrot.slane %v614, 7
      %v724 = vor.u32 %v723, %v610
      %v725 = vsel %vm721, %v722, %v724
      %v726 = vrot.slane %v622, 7
      %v727 = vor.u32 %v726, %v618
      %v728 = vsel %vm721, %v723, %v727
      %v729 = vrot.slane %v630, 7
      %v730 = vor.u32 %v729, %v626
      %v731 = vsel %vm721, %v726, %v730
      %v732 = vshrl.u32 0, 16
      %v734 = vrot.slane %v732, 7
      %v735 = vor.u32 %v734, %v698
      %v736 = vsel %vm721, %v729, %v735
      %v741 = vld [vmem:[%s2] sm:$0xff]
      %v742 = vld [vmem:[%s2 + $0x8] sm:$0xff]
      %v743 = vld [vmem:[%s2 + $0x10] sm:$0xff]
      %v744 = vld [vmem:[%s2 + $0x18] sm:$0xff]
      %v745 = vld [vmem:[%s2 + $0x20] sm:$0xff]
      %v746 = vld [vmem:[%s2 + $0x28] sm:$0xff]
      %v747 = vld [vmem:[%s2 + $0x30] sm:$0xff]
      %v748 = vld [vmem:[%s2 + $0x38] sm:$0xff]
      %v749 = vld [vmem:[%s2 + $0x40] sm:$0xff]
      %v750 = vld [vmem:[%s2 + $0x48] sm:$0xff]
      %v751 = vld [vmem:[%s2 + $0x50] sm:$0xff]
      %v752 = vld [vmem:[%s2 + $0x58] sm:$0xff]
      %v753 = vld [vmem:[%s2 + $0x60] sm:$0xff]
      %v754 = vld [vmem:[%s2 + $0x68] sm:$0xff]
      %v755 = vld [vmem:[%s2 + $0x70] sm:$0xff]
      %v756 = vld [vmem:[%s2 + $0x78] sm:$0xff]
      %v757 = vld [vmem:[%s2 + $0x80] sm:$0xff]
      %v758 = vld [vmem:[%s2 + $0x88] sm:$0xff]
      %v759 = vld [vmem:[%s2 + $0x90] sm:$0xff]
      %v760 = vld [vmem:[%s2 + $0x98] sm:$0xff]
      %v761 = vld [vmem:[%s2 + $0xa0] sm:$0xff]
      %v762 = vld [vmem:[%s2 + $0xa8] sm:$0xff]
      %v763 = vld [vmem:[%s2 + $0xb0] sm:$0xff]
      %v764 = vld [vmem:[%s2 + $0xb8] sm:$0xff]
      %v765 = vld [vmem:[%s2 + $0xc0] sm:$0xff]
      %v766 = vld [vmem:[%s2 + $0xc8] sm:$0xff]
      %v767 = vld [vmem:[%s2 + $0xd0] sm:$0xff]
      %v768 = vld [vmem:[%s2 + $0xd8] sm:$0xff]
      %v769 = vld [vmem:[%s2 + $0xe0] sm:$0xff]
      %v770 = vld [vmem:[%s2 + $0xe8] sm:$0xff]
      %v771 = vld [vmem:[%s2 + $0xf0] sm:$0xff]
      %v772 = vld [vmem:[%s2 + $0xf8] sm:$0xff]
      %v773 = vld [vmem:[%s2 + $0x100] sm:$0xff]
      %v774 = vld [vmem:[%s2 + $0x108] sm:$0xff]
      %v775 = vld [vmem:[%s2 + $0x110] sm:$0xff]
      %v776 = vld [vmem:[%s2 + $0x118] sm:$0xff]
      %v777 = vld [vmem:[%s2 + $0x120] sm:$0xff]
      %v778 = vld [vmem:[%s2 + $0x128] sm:$0xff]
      %v779 = vld [vmem:[%s2 + $0x130] sm:$0xff]
      %v780 = vld [vmem:[%s2 + $0x138] sm:$0xff]
      %v781 = vld [vmem:[%s2 + $0x140] sm:$0xff]
      %v782 = vld [vmem:[%s2 + $0x148] sm:$0xff]
      %v783 = vld [vmem:[%s2 + $0x150] sm:$0xff]
      %v784 = vld [vmem:[%s2 + $0x158] sm:$0xff]
      %v785 = vld [vmem:[%s2 + $0x160] sm:$0xff]
      %v786 = vld [vmem:[%s2 + $0x168] sm:$0xff]
      %v787 = vld [vmem:[%s2 + $0x170] sm:$0xff]
      %v788 = vld [vmem:[%s2 + $0x178] sm:$0xff]
      %v789 = vld [vmem:[%s2 + $0x180] sm:$0xff]
      %v790 = vld [vmem:[%s2 + $0x188] sm:$0xff]
      %v791 = vld [vmem:[%s2 + $0x190] sm:$0xff]
      %v792 = vld [vmem:[%s2 + $0x198] sm:$0xff]
      %v793 = vld [vmem:[%s2 + $0x1a0] sm:$0xff]
      %v794 = vld [vmem:[%s2 + $0x1a8] sm:$0xff]
      %v795 = vld [vmem:[%s2 + $0x1b0] sm:$0xff]
      %v796 = vld [vmem:[%s2 + $0x1b8] sm:$0xff]
      %v797 = vld [vmem:[%s2 + $0x1c0] sm:$0xff]
      %v798 = vld [vmem:[%s2 + $0x1c8] sm:$0xff]
      %v799 = vld [vmem:[%s2 + $0x1d0] sm:$0xff]
      %v800 = vld [vmem:[%s2 + $0x1d8] sm:$0xff]
      %v801 = vld [vmem:[%s2 + $0x1e0] sm:$0xff]
      %v802 = vld [vmem:[%s2 + $0x1e8] sm:$0xff]
      %v803 = vld [vmem:[%s2 + $0x1f0] sm:$0xff]
      %v804 = vld [vmem:[%s2 + $0x1f8] sm:$0xff]
      %v805 = vld [vmem:[%s2 + $0x200] sm:$0xff]
      %v806 = vld [vmem:[%s2 + $0x208] sm:$0xff]
      %v807 = vld [vmem:[%s2 + $0x210] sm:$0xff]
      %v808 = vld [vmem:[%s2 + $0x218] sm:$0xff]
      %v809 = vld [vmem:[%s2 + $0x220] sm:$0xff]
      %v810 = vld [vmem:[%s2 + $0x228] sm:$0xff]
      %v811 = vld [vmem:[%s2 + $0x230] sm:$0xff]
      %v812 = vld [vmem:[%s2 + $0x238] sm:$0xff]
      %v813 = vld [vmem:[%s2 + $0x240] sm:$0xff]
      %v814 = vld [vmem:[%s2 + $0x248] sm:$0xff]
      %v815 = vld [vmem:[%s2 + $0x250] sm:$0xff]
      %v816 = vld [vmem:[%s2 + $0x258] sm:$0xff]
      %v817 = vld [vmem:[%s2 + $0x260] sm:$0xff]
      %v818 = vld [vmem:[%s2 + $0x268] sm:$0xff]
      %v819 = vld [vmem:[%s2 + $0x270] sm:$0xff]
      %v820 = vld [vmem:[%s2 + $0x278] sm:$0xff]
      %v821 = vld [vmem:[%s2 + $0x280] sm:$0xff]
      %v822 = vld [vmem:[%s2 + $0x288] sm:$0xff]
      %v823 = vld [vmem:[%s2 + $0x290] sm:$0xff]
      %v824 = vld [vmem:[%s2 + $0x298] sm:$0xff]
      %v825 = vld [vmem:[%s2 + $0x2a0] sm:$0xff]
      %v826 = vld [vmem:[%s2 + $0x2a8] sm:$0xff]
      %v827 = vld [vmem:[%s2 + $0x2b0] sm:$0xff]
      %v828 = vld [vmem:[%s2 + $0x2b8] sm:$0xff]
      %v829 = vld [vmem:[%s2 + $0x2c0] sm:$0xff]
      %v830 = vld [vmem:[%s2 + $0x2c8] sm:$0xff]
      %v831 = vld [vmem:[%s2 + $0x2d0] sm:$0xff]
      %v832 = vld [vmem:[%s2 + $0x2d8] sm:$0xff]
      %v833 = vld [vmem:[%s2 + $0x2e0] sm:$0xff]
      %v834 = vld [vmem:[%s2 + $0x2e8] sm:$0xff]
      %v835 = vld [vmem:[%s2 + $0x2f0] sm:$0xff]
      %v836 = vld [vmem:[%s2 + $0x2f8] sm:$0xff]
      %v837 = vld [vmem:[%s2 + $0x300] sm:$0xff]
      %v838 = vld [vmem:[%s2 + $0x308] sm:$0xff]
      %v839 = vld [vmem:[%s2 + $0x310] sm:$0xff]
      %v840 = vld [vmem:[%s2 + $0x318] sm:$0xff]
      %v841 = vld [vmem:[%s2 + $0x320] sm:$0xff]
      %v842 = vld [vmem:[%s2 + $0x328] sm:$0xff]
      %v843 = vld [vmem:[%s2 + $0x330] sm:$0xff]
      %v844 = vld [vmem:[%s2 + $0x338] sm:$0xff]
      %v845 = vld [vmem:[%s2 + $0x340] sm:$0xff]
      %v846 = vld [vmem:[%s2 + $0x348] sm:$0xff]
      %v847 = vld [vmem:[%s2 + $0x350] sm:$0xff]
      %v848 = vld [vmem:[%s2 + $0x358] sm:$0xff]
      %v849 = vld [vmem:[%s2 + $0x360] sm:$0xff]
      %v850 = vld [vmem:[%s2 + $0x368] sm:$0xff]
      %v851 = vld [vmem:[%s2 + $0x370] sm:$0xff]
      %v852 = vld [vmem:[%s2 + $0x378] sm:$0xff]
      %v853 = vld [vmem:[%s2 + $0x380] sm:$0xff]
      %v854 = vld [vmem:[%s2 + $0x388] sm:$0xff]
      %v855 = vld [vmem:[%s2 + $0x390] sm:$0xff]
      %v856 = vld [vmem:[%s2 + $0x398] sm:$0xff]
      %v857 = vld [vmem:[%s2 + $0x3a0] sm:$0xff]
      %v858 = vld [vmem:[%s2 + $0x3a8] sm:$0xff]
      %v859 = vld [vmem:[%s2 + $0x3b0] sm:$0xff]
      %v860 = vld [vmem:[%s2 + $0x3b8] sm:$0xff]
      %v861 = vld [vmem:[%s2 + $0x3c0] sm:$0xff]
      %v862 = vld [vmem:[%s2 + $0x3c8] sm:$0xff]
      %v863 = vld [vmem:[%s2 + $0x3d0] sm:$0xff]
      %v864 = vld [vmem:[%s2 + $0x3d8] sm:$0xff]
      %v865 = vld [vmem:[%s2 + $0x3e0] sm:$0xff]
      %v866 = vld [vmem:[%s2 + $0x3e8] sm:$0xff]
      %v867 = vld [vmem:[%s2 + $0x3f0] sm:$0xff]
      %v868 = vld [vmem:[%s2 + $0x3f8] sm:$0xff]
      %v869 = vld [vmem:[%s2 + $0x400] sm:$0xff]
      %v870 = vld [vmem:[%s2 + $0x408] sm:$0xff]
      %v871 = vld [vmem:[%s2 + $0x410] sm:$0xff]
      %v872 = vld [vmem:[%s2 + $0x418] sm:$0xff]
      %v873 = vld [vmem:[%s2 + $0x420] sm:$0xff]
      %v874 = vld [vmem:[%s2 + $0x428] sm:$0xff]
      %v875 = vld [vmem:[%s2 + $0x430] sm:$0xff]
      %v876 = vld [vmem:[%s2 + $0x438] sm:$0xff]
      %v877 = vld [vmem:[%s2 + $0x440] sm:$0xff]
      %v878 = vld [vmem:[%s2 + $0x448] sm:$0xff]
      %v879 = vld [vmem:[%s2 + $0x450] sm:$0xff]
      %v880 = vld [vmem:[%s2 + $0x458] sm:$0xff]
      %v881 = vld [vmem:[%s2 + $0x460] sm:$0xff]
      %v882 = vld [vmem:[%s2 + $0x468] sm:$0xff]
      %v883 = vld [vmem:[%s2 + $0x470] sm:$0xff]
      %v884 = vld [vmem:[%s2 + $0x478] sm:$0xff]
      %v885 = vld [vmem:[%s2 + $0x480] sm:$0xff]
      %v886 = vld [vmem:[%s2 + $0x488] sm:$0xff]
      %v887 = vld [vmem:[%s2 + $0x490] sm:$0xff]
      %v888 = vld [vmem:[%s2 + $0x498] sm:$0xff]
      %v889 = vld [vmem:[%s2 + $0x4a0] sm:$0xff]
      %v890 = vld [vmem:[%s2 + $0x4a8] sm:$0xff]
      %v891 = vld [vmem:[%s2 + $0x4b0] sm:$0xff]
      %v892 = vld [vmem:[%s2 + $0x4b8] sm:$0xff]
      %v893 = vld [vmem:[%s2 + $0x4c0] sm:$0xff]
      %v894 = vld [vmem:[%s2 + $0x4c8] sm:$0xff]
      %v895 = vld [vmem:[%s2 + $0x4d0] sm:$0xff]
      %v896 = vld [vmem:[%s2 + $0x4d8] sm:$0xff]
      %v897 = vld [vmem:[%s2 + $0x4e0] sm:$0xff]
      %v898 = vld [vmem:[%s2 + $0x4e8] sm:$0xff]
      %v899 = vld [vmem:[%s2 + $0x4f0] sm:$0xff]
      %v900 = vld [vmem:[%s2 + $0x4f8] sm:$0xff]
      %v901 = vld [vmem:[%s2 + $0x500] sm:$0xff]
      %v902 = vld [vmem:[%s2 + $0x508] sm:$0xff]
      %v903 = vld [vmem:[%s2 + $0x510] sm:$0xff]
      %v904 = vld [vmem:[%s2 + $0x518] sm:$0xff]
      %v905 = vld [vmem:[%s2 + $0x520] sm:$0xff]
      %v906 = vld [vmem:[%s2 + $0x528] sm:$0xff]
      %v907 = vld [vmem:[%s2 + $0x530] sm:$0xff]
      %v908 = vld [vmem:[%s2 + $0x538] sm:$0xff]
      %v909 = vld [vmem:[%s2 + $0x540] sm:$0xff]
      %v910 = vld [vmem:[%s2 + $0x548] sm:$0xff]
      %v911 = vld [vmem:[%s2 + $0x550] sm:$0xff]
      %v912 = vld [vmem:[%s2 + $0x558] sm:$0xff]
      %v913 = vld [vmem:[%s2 + $0x560] sm:$0xff]
      %v914 = vld [vmem:[%s2 + $0x568] sm:$0xff]
      %v915 = vld [vmem:[%s2 + $0x570] sm:$0xff]
      %v916 = vld [vmem:[%s2 + $0x578] sm:$0xff]
      %v917 = vld [vmem:[%s2 + $0x580] sm:$0xff]
      %v918 = vld [vmem:[%s2 + $0x588] sm:$0xff]
      %v919 = vld [vmem:[%s2 + $0x590] sm:$0xff]
      %v920 = vld [vmem:[%s2 + $0x598] sm:$0xff]
      %v921 = vld [vmem:[%s2 + $0x5a0] sm:$0xff]
      %v922 = vld [vmem:[%s2 + $0x5a8] sm:$0xff]
      %v923 = vld [vmem:[%s2 + $0x5b0] sm:$0xff]
      %v924 = vld [vmem:[%s2 + $0x5b8] sm:$0xff]
      %v925 = vld [vmem:[%s2 + $0x5c0] sm:$0xff]
      %v926 = vld [vmem:[%s2 + $0x5c8] sm:$0xff]
      %v927 = vld [vmem:[%s2 + $0x5d0] sm:$0xff]
      %v928 = vld [vmem:[%s2 + $0x5d8] sm:$0xff]
      %v929 = vld [vmem:[%s2 + $0x5e0] sm:$0xff]
      %v930 = vld [vmem:[%s2 + $0x5e8] sm:$0xff]
      %v931 = vld [vmem:[%s2 + $0x5f0] sm:$0xff]
      %v932 = vld [vmem:[%s2 + $0x5f8] sm:$0xff]
      %v933 = vld [vmem:[%s2 + $0x600] sm:$0xff]
      %v934 = vld [vmem:[%s2 + $0x608] sm:$0xff]
      %v935 = vld [vmem:[%s2 + $0x610] sm:$0xff]
      %v936 = vld [vmem:[%s2 + $0x618] sm:$0xff]
      %v937 = vld [vmem:[%s2 + $0x620] sm:$0xff]
      %v938 = vld [vmem:[%s2 + $0x628] sm:$0xff]
      %v939 = vld [vmem:[%s2 + $0x630] sm:$0xff]
      %v940 = vld [vmem:[%s2 + $0x638] sm:$0xff]
      %v941 = vld [vmem:[%s2 + $0x640] sm:$0xff]
      %v942 = vld [vmem:[%s2 + $0x648] sm:$0xff]
      %v943 = vld [vmem:[%s2 + $0x650] sm:$0xff]
      %v944 = vld [vmem:[%s2 + $0x658] sm:$0xff]
      %v945 = vld [vmem:[%s2 + $0x660] sm:$0xff]
      %v946 = vld [vmem:[%s2 + $0x668] sm:$0xff]
      %v947 = vld [vmem:[%s2 + $0x670] sm:$0xff]
      %v948 = vld [vmem:[%s2 + $0x678] sm:$0xff]
      %v949 = vld [vmem:[%s2 + $0x680] sm:$0xff]
      %v950 = vld [vmem:[%s2 + $0x688] sm:$0xff]
      %v951 = vld [vmem:[%s2 + $0x690] sm:$0xff]
      %v952 = vld [vmem:[%s2 + $0x698] sm:$0xff]
      %v953 = vld [vmem:[%s2 + $0x6a0] sm:$0xff]
      %v954 = vld [vmem:[%s2 + $0x6a8] sm:$0xff]
      %v955 = vld [vmem:[%s2 + $0x6b0] sm:$0xff]
      %v956 = vld [vmem:[%s2 + $0x6b8] sm:$0xff]
      %v957 = vld [vmem:[%s2 + $0x6c0] sm:$0xff]
      %v958 = vld [vmem:[%s2 + $0x6c8] sm:$0xff]
      %v959 = vld [vmem:[%s2 + $0x6d0] sm:$0xff]
      %v960 = vld [vmem:[%s2 + $0x6d8] sm:$0xff]
      %v961 = vld [vmem:[%s2 + $0x6e0] sm:$0xff]
      %v962 = vld [vmem:[%s2 + $0x6e8] sm:$0xff]
      %v963 = vld [vmem:[%s2 + $0x6f0] sm:$0xff]
      %v964 = vld [vmem:[%s2 + $0x6f8] sm:$0xff]
      %v965 = vld [vmem:[%s2 + $0x700] sm:$0xff]
      %v966 = vld [vmem:[%s2 + $0x708] sm:$0xff]
      %v967 = vld [vmem:[%s2 + $0x710] sm:$0xff]
      %v968 = vld [vmem:[%s2 + $0x718] sm:$0xff]
      %v969 = vld [vmem:[%s2 + $0x720] sm:$0xff]
      %v970 = vld [vmem:[%s2 + $0x728] sm:$0xff]
      %v971 = vld [vmem:[%s2 + $0x730] sm:$0xff]
      %v972 = vld [vmem:[%s2 + $0x738] sm:$0xff]
      %v973 = vld [vmem:[%s2 + $0x740] sm:$0xff]
      %v974 = vld [vmem:[%s2 + $0x748] sm:$0xff]
      %v975 = vld [vmem:[%s2 + $0x750] sm:$0xff]
      %v976 = vld [vmem:[%s2 + $0x758] sm:$0xff]
      %v977 = vld [vmem:[%s2 + $0x760] sm:$0xff]
      %v978 = vld [vmem:[%s2 + $0x768] sm:$0xff]
      %v979 = vld [vmem:[%s2 + $0x770] sm:$0xff]
      %v980 = vld [vmem:[%s2 + $0x778] sm:$0xff]
      %v981 = vld [vmem:[%s2 + $0x780] sm:$0xff]
      %v982 = vld [vmem:[%s2 + $0x788] sm:$0xff]
      %v983 = vld [vmem:[%s2 + $0x790] sm:$0xff]
      %v984 = vld [vmem:[%s2 + $0x798] sm:$0xff]
      %v985 = vld [vmem:[%s2 + $0x7a0] sm:$0xff]
      %v986 = vld [vmem:[%s2 + $0x7a8] sm:$0xff]
      %v987 = vld [vmem:[%s2 + $0x7b0] sm:$0xff]
      %v988 = vld [vmem:[%s2 + $0x7b8] sm:$0xff]
      %v989 = vld [vmem:[%s2 + $0x7c0] sm:$0xff]
      %v990 = vld [vmem:[%s2 + $0x7c8] sm:$0xff]
      %v991 = vld [vmem:[%s2 + $0x7d0] sm:$0xff]
      %v992 = vld [vmem:[%s2 + $0x7d8] sm:$0xff]
      %v993 = vld [vmem:[%s2 + $0x7e0] sm:$0xff]
      %v994 = vld [vmem:[%s2 + $0x7e8] sm:$0xff]
      %v995 = vld [vmem:[%s2 + $0x7f0] sm:$0xff]
      %v996 = vld [vmem:[%s2 + $0x7f8] sm:$0xff]
      %v997 = vld [vmem:[%s2 + $0x800] sm:$0xff]
      %v998 = vld [vmem:[%s2 + $0x808] sm:$0xff]
      %v999 = vld [vmem:[%s2 + $0x810] sm:$0xff]
      %v1000 = vld [vmem:[%s2 + $0x818] sm:$0xff]
      %v1001 = vld [vmem:[%s2 + $0x820] sm:$0xff]
      %v1002 = vld [vmem:[%s2 + $0x828] sm:$0xff]
      %v1003 = vld [vmem:[%s2 + $0x830] sm:$0xff]
      %v1004 = vld [vmem:[%s2 + $0x838] sm:$0xff]
      %v1005 = vld [vmem:[%s2 + $0x840] sm:$0xff]
      %v1006 = vld [vmem:[%s2 + $0x848] sm:$0xff]
      %v1007 = vld [vmem:[%s2 + $0x850] sm:$0xff]
      %v1008 = vld [vmem:[%s2 + $0x858] sm:$0xff]
      %v1009 = vld [vmem:[%s2 + $0x860] sm:$0xff]
      %v1010 = vld [vmem:[%s2 + $0x868] sm:$0xff]
      %v1011 = vld [vmem:[%s2 + $0x870] sm:$0xff]
      %v1012 = vld [vmem:[%s2 + $0x878] sm:$0xff]
      %v1013 = vld [vmem:[%s2 + $0x880] sm:$0xff]
      %v1014 = vld [vmem:[%s2 + $0x888] sm:$0xff]
      %v1015 = vld [vmem:[%s2 + $0x890] sm:$0xff]
      %v1016 = vld [vmem:[%s2 + $0x898] sm:$0xff]
      %v1017 = vld [vmem:[%s2 + $0x8a0] sm:$0xff]
      %v1018 = vld [vmem:[%s2 + $0x8a8] sm:$0xff]
      %v1019 = vld [vmem:[%s2 + $0x8b0] sm:$0xff]
      %v1020 = vld [vmem:[%s2 + $0x8b8] sm:$0xff]
      %v1021 = vld [vmem:[%s2 + $0x8c0] sm:$0xff]
      %v1022 = vld [vmem:[%s2 + $0x8c8] sm:$0xff]
      %v1023 = vld [vmem:[%s2 + $0x8d0] sm:$0xff]
      %v1024 = vld [vmem:[%s2 + $0x8d8] sm:$0xff]
      %v1025 = vld [vmem:[%s2 + $0x8e0] sm:$0xff]
      %v1026 = vld [vmem:[%s2 + $0x8e8] sm:$0xff]
      %v1027 = vld [vmem:[%s2 + $0x8f0] sm:$0xff]
      %v1028 = vld [vmem:[%s2 + $0x8f8] sm:$0xff]
      %v1033 = vrot.slane %v284, 4
      %v1034 = vrot.slane %v285, 4
      %v1035 = vsel %vm670, %v1033, %v1034
      %v1036 = vrot.slane %v286, 4
      %v1037 = vsel %vm670, %v1034, %v1036
      %v1038 = vrot.slane %v287, 4
      %v1039 = vsel %vm670, %v1036, %v1038
      %v1044 = vsel %vm597, 0, %v1033
      %v1046 = vshrl.u32 %v1044, 16
      %v1048 = vshll.u32 %v1044, 16
      %v1050 = vrot.slane %v1048, 1
      %v1051 = vor.u32 %v1046, %v1050
      %v1053 = vshll.u32 %v1035, 16
      %v1055 = vrot.slane %v1053, 1
      %v1056 = vsel %vm602, %v1051, %v1055
      %v1057 = vshrl.u32 %v1035, 16
      %v1059 = vor.u32 %v1057, %v1055
      %v1061 = vshll.u32 %v1037, 16
      %v1063 = vrot.slane %v1061, 1
      %v1064 = vsel %vm602, %v1059, %v1063
      %v1065 = vshrl.u32 %v1037, 16
      %v1067 = vor.u32 %v1065, %v1063
      %v1069 = vshll.u32 %v1039, 16
      %v1071 = vrot.slane %v1069, 1
      %v1072 = vsel %vm602, %v1067, %v1071
      %v1073 = vshrl.u32 %v1039, 16
      %v1075 = vor.u32 %v1073, %v1071
      %v1081 = vrot.slane %v1044, 1
      %v1082 = vrot.slane %v1035, 1
      %v1083 = vsel %vm638, %v1081, %v1082
      %v1084 = vrot.slane %v1037, 1
      %v1085 = vsel %vm638, %v1082, %v1084
      %v1086 = vrot.slane %v1039, 1
      %v1087 = vsel %vm638, %v1084, %v1086
      %v1092 = vrot.slane %v1046, 3
      %v1093 = vrot.slane %v1048, 4
      %v1094 = vor.u32 %v1092, %v1093
      %v1095 = vrot.slane %v1057, 3
      %v1096 = vrot.slane %v1053, 4
      %v1097 = vor.u32 %v1095, %v1096
      %v1098 = vsel %vm650, %v1094, %v1097
      %v1099 = vrot.slane %v1065, 3
      %v1100 = vrot.slane %v1061, 4
      %v1101 = vor.u32 %v1099, %v1100
      %v1102 = vsel %vm650, %v1097, %v1101
      %v1103 = vrot.slane %v1073, 3
      %v1104 = vrot.slane %v1069, 4
      %v1105 = vor.u32 %v1103, %v1104
      %v1106 = vsel %vm650, %v1101, %v1105
      %v1111 = vrot.slane %v1044, 4
      %v1112 = vrot.slane %v1035, 4
      %v1113 = vsel %vm670, %v1111, %v1112
      %v1114 = vrot.slane %v1037, 4
      %v1115 = vsel %vm670, %v1112, %v1114
      %v1116 = vrot.slane %v1039, 4
      %v1117 = vsel %vm670, %v1114, %v1116
      %v1122 = vrot.slane %v1046, 4
      %v1123 = vrot.slane %v1048, 5
      %v1124 = vor.u32 %v1122, %v1123
      %v1125 = vrot.slane %v1057, 4
      %v1126 = vrot.slane %v1053, 5
      %v1127 = vor.u32 %v1125, %v1126
      %v1128 = vsel %vm682, %v1124, %v1127
      %v1129 = vrot.slane %v1065, 4
      %v1130 = vrot.slane %v1061, 5
      %v1131 = vor.u32 %v1129, %v1130
      %v1132 = vsel %vm682, %v1127, %v1131
      %v1133 = vrot.slane %v1073, 4
      %v1134 = vrot.slane %v1069, 5
      %v1135 = vor.u32 %v1133, %v1134
      %v1136 = vsel %vm682, %v1131, %v1135
      %v1137 = vsel %vm682, %v1135, %v700
      %v1142 = vrot.slane %v1044, 7
      %v1143 = vrot.slane %v1035, 7
      %v1144 = vsel %vm707, %v1142, %v1143
      %v1145 = vrot.slane %v1037, 7
      %v1146 = vsel %vm707, %v1143, %v1145
      %v1147 = vrot.slane %v1039, 7
      %v1148 = vsel %vm707, %v1145, %v1147
      %v1149 = vsel %vm707, %v1147, %v715
      %v1154 = vrot.slane %v1046, 7
      %v1155 = vrot.slane %v1057, 7
      %v1156 = vor.u32 %v1155, %v1053
      %v1157 = vsel %vm721, %v1154, %v1156
      %v1158 = vrot.slane %v1065, 7
      %v1159 = vor.u32 %v1158, %v1061
      %v1160 = vsel %vm721, %v1155, %v1159
      %v1161 = vrot.slane %v1073, 7
      %v1162 = vor.u32 %v1161, %v1069
      %v1163 = vsel %vm721, %v1158, %v1162
      %v1164 = vsel %vm721, %v1161, %v735
      %v1457 = vunpack.c.l.b16 %v741
      %v1458 = vunpack.c.h.b16 %v741
      %v1459 = vunpack.c.l.b16 %v742
      %v1460 = vunpack.c.h.b16 %v742
      %v1461 = vunpack.c.l.b16 %v743
      %v1462 = vunpack.c.h.b16 %v743
      %v1463 = vunpack.c.l.b16 %v744
      %v1464 = vunpack.c.h.b16 %v744
      %v1465 = vunpack.c.l.b16 %v745
      %v1466 = vunpack.c.h.b16 %v745
      %v1467 = vunpack.c.l.b16 %v746
      %v1468 = vunpack.c.h.b16 %v746
      %v1469 = vunpack.c.l.b16 %v747
      %v1470 = vunpack.c.h.b16 %v747
      %v1471 = vunpack.c.l.b16 %v748
      %v1472 = vunpack.c.h.b16 %v748
      %v1473 = vunpack.c.l.b16 %v749
      %v1474 = vunpack.c.h.b16 %v749
      %v1475 = vunpack.c.l.b16 %v750
      %v1476 = vunpack.c.h.b16 %v750
      %v1477 = vunpack.c.l.b16 %v751
      %v1478 = vunpack.c.h.b16 %v751
      %v1479 = vunpack.c.l.b16 %v752
      %v1480 = vunpack.c.h.b16 %v752
      %v1481 = vunpack.c.l.b16 %v753
      %v1482 = vunpack.c.h.b16 %v753
      %v1483 = vunpack.c.l.b16 %v754
      %v1484 = vunpack.c.h.b16 %v754
      %v1485 = vunpack.c.l.b16 %v755
      %v1486 = vunpack.c.h.b16 %v755
      %v1487 = vunpack.c.l.b16 %v756
      %v1488 = vunpack.c.h.b16 %v756
      %v1489 = vunpack.c.l.b16 %v757
      %v1490 = vunpack.c.h.b16 %v757
      %v1491 = vunpack.c.l.b16 %v758
      %v1492 = vunpack.c.h.b16 %v758
      %v1493 = vunpack.c.l.b16 %v759
      %v1494 = vunpack.c.h.b16 %v759
      %v1495 = vunpack.c.l.b16 %v760
      %v1496 = vunpack.c.h.b16 %v760
      %v1497 = vunpack.c.l.b16 %v761
      %v1498 = vunpack.c.h.b16 %v761
      %v1499 = vunpack.c.l.b16 %v762
      %v1500 = vunpack.c.h.b16 %v762
      %v1501 = vunpack.c.l.b16 %v763
      %v1502 = vunpack.c.h.b16 %v763
      %v1503 = vunpack.c.l.b16 %v764
      %v1504 = vunpack.c.h.b16 %v764
      %v1505 = vunpack.c.l.b16 %v765
      %v1506 = vunpack.c.h.b16 %v765
      %v1507 = vunpack.c.l.b16 %v766
      %v1508 = vunpack.c.h.b16 %v766
      %v1509 = vunpack.c.l.b16 %v767
      %v1510 = vunpack.c.h.b16 %v767
      %v1511 = vunpack.c.l.b16 %v768
      %v1512 = vunpack.c.h.b16 %v768
      %v1513 = vunpack.c.l.b16 %v769
      %v1514 = vunpack.c.h.b16 %v769
      %v1515 = vunpack.c.l.b16 %v770
      %v1516 = vunpack.c.h.b16 %v770
      %v1517 = vunpack.c.l.b16 %v771
      %v1518 = vunpack.c.h.b16 %v771
      %v1519 = vunpack.c.l.b16 %v772
      %v1520 = vunpack.c.h.b16 %v772
      %v1521 = vunpack.c.l.b16 %v773
      %v1522 = vunpack.c.h.b16 %v773
      %v1523 = vunpack.c.l.b16 %v774
      %v1524 = vunpack.c.h.b16 %v774
      %v1525 = vunpack.c.l.b16 %v775
      %v1526 = vunpack.c.h.b16 %v775
      %v1527 = vunpack.c.l.b16 %v776
      %v1528 = vunpack.c.h.b16 %v776
      %v1529 = vunpack.c.l.b16 %v777
      %v1530 = vunpack.c.h.b16 %v777
      %v1531 = vunpack.c.l.b16 %v778
      %v1532 = vunpack.c.h.b16 %v778
      %v1533 = vunpack.c.l.b16 %v779
      %v1534 = vunpack.c.h.b16 %v779
      %v1535 = vunpack.c.l.b16 %v780
      %v1536 = vunpack.c.h.b16 %v780
      %v1537 = vunpack.c.l.b16 %v781
      %v1538 = vunpack.c.h.b16 %v781
      %v1539 = vunpack.c.l.b16 %v782
      %v1540 = vunpack.c.h.b16 %v782
      %v1541 = vunpack.c.l.b16 %v783
      %v1542 = vunpack.c.h.b16 %v783
      %v1543 = vunpack.c.l.b16 %v784
      %v1544 = vunpack.c.h.b16 %v784
      %v1545 = vunpack.c.l.b16 %v785
      %v1546 = vunpack.c.h.b16 %v785
      %v1547 = vunpack.c.l.b16 %v786
      %v1548 = vunpack.c.h.b16 %v786
      %v1549 = vunpack.c.l.b16 %v787
      %v1550 = vunpack.c.h.b16 %v787
      %v1551 = vunpack.c.l.b16 %v788
      %v1552 = vunpack.c.h.b16 %v788
      %v1553 = vunpack.c.l.b16 %v789
      %v1554 = vunpack.c.h.b16 %v789
      %v1555 = vunpack.c.l.b16 %v790
      %v1556 = vunpack.c.h.b16 %v790
      %v1557 = vunpack.c.l.b16 %v791
      %v1558 = vunpack.c.h.b16 %v791
      %v1559 = vunpack.c.l.b16 %v792
      %v1560 = vunpack.c.h.b16 %v792
      %v1561 = vunpack.c.l.b16 %v793
      %v1562 = vunpack.c.h.b16 %v793
      %v1563 = vunpack.c.l.b16 %v794
      %v1564 = vunpack.c.h.b16 %v794
      %v1565 = vunpack.c.l.b16 %v795
      %v1566 = vunpack.c.h.b16 %v795
      %v1567 = vunpack.c.l.b16 %v796
      %v1568 = vunpack.c.h.b16 %v796
      %v1569 = vunpack.c.l.b16 %v797
      %v1570 = vunpack.c.h.b16 %v797
      %v1571 = vunpack.c.l.b16 %v798
      %v1572 = vunpack.c.h.b16 %v798
      %v1573 = vunpack.c.l.b16 %v799
      %v1574 = vunpack.c.h.b16 %v799
      %v1575 = vunpack.c.l.b16 %v800
      %v1576 = vunpack.c.h.b16 %v800
      %v1577 = vunpack.c.l.b16 %v801
      %v1578 = vunpack.c.h.b16 %v801
      %v1579 = vunpack.c.l.b16 %v802
      %v1580 = vunpack.c.h.b16 %v802
      %v1581 = vunpack.c.l.b16 %v803
      %v1582 = vunpack.c.h.b16 %v803
      %v1583 = vunpack.c.l.b16 %v804
      %v1584 = vunpack.c.h.b16 %v804
      %v1585 = vunpack.c.l.b16 %v805
      %v1586 = vunpack.c.h.b16 %v805
      %v1587 = vunpack.c.l.b16 %v806
      %v1588 = vunpack.c.h.b16 %v806
      %v1589 = vunpack.c.l.b16 %v807
      %v1590 = vunpack.c.h.b16 %v807
      %v1591 = vunpack.c.l.b16 %v808
      %v1592 = vunpack.c.h.b16 %v808
      %v1593 = vunpack.c.l.b16 %v809
      %v1594 = vunpack.c.h.b16 %v809
      %v1595 = vunpack.c.l.b16 %v810
      %v1596 = vunpack.c.h.b16 %v810
      %v1597 = vunpack.c.l.b16 %v811
      %v1598 = vunpack.c.h.b16 %v811
      %v1599 = vunpack.c.l.b16 %v812
      %v1600 = vunpack.c.h.b16 %v812
      %v1601 = vunpack.c.l.b16 %v813
      %v1602 = vunpack.c.h.b16 %v813
      %v1603 = vunpack.c.l.b16 %v814
      %v1604 = vunpack.c.h.b16 %v814
      %v1605 = vunpack.c.l.b16 %v815
      %v1606 = vunpack.c.h.b16 %v815
      %v1607 = vunpack.c.l.b16 %v816
      %v1608 = vunpack.c.h.b16 %v816
      %v1609 = vunpack.c.l.b16 %v817
      %v1610 = vunpack.c.h.b16 %v817
      %v1611 = vunpack.c.l.b16 %v818
      %v1612 = vunpack.c.h.b16 %v818
      %v1613 = vunpack.c.l.b16 %v819
      %v1614 = vunpack.c.h.b16 %v819
      %v1615 = vunpack.c.l.b16 %v820
      %v1616 = vunpack.c.h.b16 %v820
      %v1617 = vunpack.c.l.b16 %v821
      %v1618 = vunpack.c.h.b16 %v821
      %v1619 = vunpack.c.l.b16 %v822
      %v1620 = vunpack.c.h.b16 %v822
      %v1621 = vunpack.c.l.b16 %v823
      %v1622 = vunpack.c.h.b16 %v823
      %v1623 = vunpack.c.l.b16 %v824
      %v1624 = vunpack.c.h.b16 %v824
      %v1625 = vunpack.c.l.b16 %v825
      %v1626 = vunpack.c.h.b16 %v825
      %v1627 = vunpack.c.l.b16 %v826
      %v1628 = vunpack.c.h.b16 %v826
      %v1629 = vunpack.c.l.b16 %v827
      %v1630 = vunpack.c.h.b16 %v827
      %v1631 = vunpack.c.l.b16 %v828
      %v1632 = vunpack.c.h.b16 %v828
      %v1633 = vunpack.c.l.b16 %v829
      %v1634 = vunpack.c.h.b16 %v829
      %v1635 = vunpack.c.l.b16 %v830
      %v1636 = vunpack.c.h.b16 %v830
      %v1637 = vunpack.c.l.b16 %v831
      %v1638 = vunpack.c.h.b16 %v831
      %v1639 = vunpack.c.l.b16 %v832
      %v1640 = vunpack.c.h.b16 %v832
      %v1641 = vunpack.c.l.b16 %v833
      %v1642 = vunpack.c.h.b16 %v833
      %v1643 = vunpack.c.l.b16 %v834
      %v1644 = vunpack.c.h.b16 %v834
      %v1645 = vunpack.c.l.b16 %v835
      %v1646 = vunpack.c.h.b16 %v835
      %v1647 = vunpack.c.l.b16 %v836
      %v1648 = vunpack.c.h.b16 %v836
      %v1649 = vunpack.c.l.b16 %v837
      %v1650 = vunpack.c.h.b16 %v837
      %v1651 = vunpack.c.l.b16 %v838
      %v1652 = vunpack.c.h.b16 %v838
      %v1653 = vunpack.c.l.b16 %v839
      %v1654 = vunpack.c.h.b16 %v839
      %v1655 = vunpack.c.l.b16 %v840
      %v1656 = vunpack.c.h.b16 %v840
      %v1657 = vunpack.c.l.b16 %v841
      %v1658 = vunpack.c.h.b16 %v841
      %v1659 = vunpack.c.l.b16 %v842
      %v1660 = vunpack.c.h.b16 %v842
      %v1661 = vunpack.c.l.b16 %v843
      %v1662 = vunpack.c.h.b16 %v843
      %v1663 = vunpack.c.l.b16 %v844
      %v1664 = vunpack.c.h.b16 %v844
      %v1665 = vunpack.c.l.b16 %v845
      %v1666 = vunpack.c.h.b16 %v845
      %v1667 = vunpack.c.l.b16 %v846
      %v1668 = vunpack.c.h.b16 %v846
      %v1669 = vunpack.c.l.b16 %v847
      %v1670 = vunpack.c.h.b16 %v847
      %v1671 = vunpack.c.l.b16 %v848
      %v1672 = vunpack.c.h.b16 %v848
      %v1673 = vunpack.c.l.b16 %v849
      %v1674 = vunpack.c.h.b16 %v849
      %v1675 = vunpack.c.l.b16 %v850
      %v1676 = vunpack.c.h.b16 %v850
      %v1677 = vunpack.c.l.b16 %v851
      %v1678 = vunpack.c.h.b16 %v851
      %v1679 = vunpack.c.l.b16 %v852
      %v1680 = vunpack.c.h.b16 %v852
      %v1681 = vunpack.c.l.b16 %v853
      %v1682 = vunpack.c.h.b16 %v853
      %v1683 = vunpack.c.l.b16 %v854
      %v1684 = vunpack.c.h.b16 %v854
      %v1685 = vunpack.c.l.b16 %v855
      %v1686 = vunpack.c.h.b16 %v855
      %v1687 = vunpack.c.l.b16 %v856
      %v1688 = vunpack.c.h.b16 %v856
      %v1689 = vunpack.c.l.b16 %v857
      %v1690 = vunpack.c.h.b16 %v857
      %v1691 = vunpack.c.l.b16 %v858
      %v1692 = vunpack.c.h.b16 %v858
      %v1693 = vunpack.c.l.b16 %v859
      %v1694 = vunpack.c.h.b16 %v859
      %v1695 = vunpack.c.l.b16 %v860
      %v1696 = vunpack.c.h.b16 %v860
      %v1697 = vunpack.c.l.b16 %v861
      %v1698 = vunpack.c.h.b16 %v861
      %v1699 = vunpack.c.l.b16 %v862
      %v1700 = vunpack.c.h.b16 %v862
      %v1701 = vunpack.c.l.b16 %v863
      %v1702 = vunpack.c.h.b16 %v863
      %v1703 = vunpack.c.l.b16 %v864
      %v1704 = vunpack.c.h.b16 %v864
      %v1705 = vunpack.c.l.b16 %v865
      %v1706 = vunpack.c.h.b16 %v865
      %v1707 = vunpack.c.l.b16 %v866
      %v1708 = vunpack.c.h.b16 %v866
      %v1709 = vunpack.c.l.b16 %v867
      %v1710 = vunpack.c.h.b16 %v867
      %v1711 = vunpack.c.l.b16 %v868
      %v1712 = vunpack.c.h.b16 %v868
      %v1713 = vunpack.c.l.b16 %v869
      %v1714 = vunpack.c.h.b16 %v869
      %v1715 = vunpack.c.l.b16 %v870
      %v1716 = vunpack.c.h.b16 %v870
      %v1717 = vunpack.c.l.b16 %v871
      %v1718 = vunpack.c.h.b16 %v871
      %v1719 = vunpack.c.l.b16 %v872
      %v1720 = vunpack.c.h.b16 %v872
      %v1721 = vunpack.c.l.b16 %v873
      %v1722 = vunpack.c.h.b16 %v873
      %v1723 = vunpack.c.l.b16 %v874
      %v1724 = vunpack.c.h.b16 %v874
      %v1725 = vunpack.c.l.b16 %v875
      %v1726 = vunpack.c.h.b16 %v875
      %v1727 = vunpack.c.l.b16 %v876
      %v1728 = vunpack.c.h.b16 %v876
      %v1729 = vunpack.c.l.b16 %v877
      %v1730 = vunpack.c.h.b16 %v877
      %v1731 = vunpack.c.l.b16 %v878
      %v1732 = vunpack.c.h.b16 %v878
      %v1733 = vunpack.c.l.b16 %v879
      %v1734 = vunpack.c.h.b16 %v879
      %v1735 = vunpack.c.l.b16 %v880
      %v1736 = vunpack.c.h.b16 %v880
      %v1737 = vunpack.c.l.b16 %v881
      %v1738 = vunpack.c.h.b16 %v881
      %v1739 = vunpack.c.l.b16 %v882
      %v1740 = vunpack.c.h.b16 %v882
      %v1741 = vunpack.c.l.b16 %v883
      %v1742 = vunpack.c.h.b16 %v883
      %v1743 = vunpack.c.l.b16 %v884
      %v1744 = vunpack.c.h.b16 %v884
      %v1745 = vunpack.c.l.b16 %v885
      %v1746 = vunpack.c.h.b16 %v885
      %v1747 = vunpack.c.l.b16 %v886
      %v1748 = vunpack.c.h.b16 %v886
      %v1749 = vunpack.c.l.b16 %v887
      %v1750 = vunpack.c.h.b16 %v887
      %v1751 = vunpack.c.l.b16 %v888
      %v1752 = vunpack.c.h.b16 %v888
      %v1753 = vunpack.c.l.b16 %v889
      %v1754 = vunpack.c.h.b16 %v889
      %v1755 = vunpack.c.l.b16 %v890
      %v1756 = vunpack.c.h.b16 %v890
      %v1757 = vunpack.c.l.b16 %v891
      %v1758 = vunpack.c.h.b16 %v891
      %v1759 = vunpack.c.l.b16 %v892
      %v1760 = vunpack.c.h.b16 %v892
      %v1761 = vunpack.c.l.b16 %v893
      %v1762 = vunpack.c.h.b16 %v893
      %v1763 = vunpack.c.l.b16 %v894
      %v1764 = vunpack.c.h.b16 %v894
      %v1765 = vunpack.c.l.b16 %v895
      %v1766 = vunpack.c.h.b16 %v895
      %v1767 = vunpack.c.l.b16 %v896
      %v1768 = vunpack.c.h.b16 %v896
      %v1769 = vunpack.c.l.b16 %v897
      %v1770 = vunpack.c.h.b16 %v897
      %v1771 = vunpack.c.l.b16 %v898
      %v1772 = vunpack.c.h.b16 %v898
      %v1773 = vunpack.c.l.b16 %v899
      %v1774 = vunpack.c.h.b16 %v899
      %v1775 = vunpack.c.l.b16 %v900
      %v1776 = vunpack.c.h.b16 %v900
      %v1777 = vunpack.c.l.b16 %v901
      %v1778 = vunpack.c.h.b16 %v901
      %v1779 = vunpack.c.l.b16 %v902
      %v1780 = vunpack.c.h.b16 %v902
      %v1781 = vunpack.c.l.b16 %v903
      %v1782 = vunpack.c.h.b16 %v903
      %v1783 = vunpack.c.l.b16 %v904
      %v1784 = vunpack.c.h.b16 %v904
      %v1785 = vunpack.c.l.b16 %v905
      %v1786 = vunpack.c.h.b16 %v905
      %v1787 = vunpack.c.l.b16 %v906
      %v1788 = vunpack.c.h.b16 %v906
      %v1789 = vunpack.c.l.b16 %v907
      %v1790 = vunpack.c.h.b16 %v907
      %v1791 = vunpack.c.l.b16 %v908
      %v1792 = vunpack.c.h.b16 %v908
      %v1793 = vunpack.c.l.b16 %v909
      %v1794 = vunpack.c.h.b16 %v909
      %v1795 = vunpack.c.l.b16 %v910
      %v1796 = vunpack.c.h.b16 %v910
      %v1797 = vunpack.c.l.b16 %v911
      %v1798 = vunpack.c.h.b16 %v911
      %v1799 = vunpack.c.l.b16 %v912
      %v1800 = vunpack.c.h.b16 %v912
      %v1801 = vunpack.c.l.b16 %v913
      %v1802 = vunpack.c.h.b16 %v913
      %v1803 = vunpack.c.l.b16 %v914
      %v1804 = vunpack.c.h.b16 %v914
      %v1805 = vunpack.c.l.b16 %v915
      %v1806 = vunpack.c.h.b16 %v915
      %v1807 = vunpack.c.l.b16 %v916
      %v1808 = vunpack.c.h.b16 %v916
      %v1809 = vunpack.c.l.b16 %v917
      %v1810 = vunpack.c.h.b16 %v917
      %v1811 = vunpack.c.l.b16 %v918
      %v1812 = vunpack.c.h.b16 %v918
      %v1813 = vunpack.c.l.b16 %v919
      %v1814 = vunpack.c.h.b16 %v919
      %v1815 = vunpack.c.l.b16 %v920
      %v1816 = vunpack.c.h.b16 %v920
      %v1817 = vunpack.c.l.b16 %v921
      %v1818 = vunpack.c.h.b16 %v921
      %v1819 = vunpack.c.l.b16 %v922
      %v1820 = vunpack.c.h.b16 %v922
      %v1821 = vunpack.c.l.b16 %v923
      %v1822 = vunpack.c.h.b16 %v923
      %v1823 = vunpack.c.l.b16 %v924
      %v1824 = vunpack.c.h.b16 %v924
      %v1825 = vunpack.c.l.b16 %v925
      %v1826 = vunpack.c.h.b16 %v925
      %v1827 = vunpack.c.l.b16 %v926
      %v1828 = vunpack.c.h.b16 %v926
      %v1829 = vunpack.c.l.b16 %v927
      %v1830 = vunpack.c.h.b16 %v927
      %v1831 = vunpack.c.l.b16 %v928
      %v1832 = vunpack.c.h.b16 %v928
      %v1833 = vunpack.c.l.b16 %v929
      %v1834 = vunpack.c.h.b16 %v929
      %v1835 = vunpack.c.l.b16 %v930
      %v1836 = vunpack.c.h.b16 %v930
      %v1837 = vunpack.c.l.b16 %v931
      %v1838 = vunpack.c.h.b16 %v931
      %v1839 = vunpack.c.l.b16 %v932
      %v1840 = vunpack.c.h.b16 %v932
      %v1841 = vunpack.c.l.b16 %v933
      %v1842 = vunpack.c.h.b16 %v933
      %v1843 = vunpack.c.l.b16 %v934
      %v1844 = vunpack.c.h.b16 %v934
      %v1845 = vunpack.c.l.b16 %v935
      %v1846 = vunpack.c.h.b16 %v935
      %v1847 = vunpack.c.l.b16 %v936
      %v1848 = vunpack.c.h.b16 %v936
      %v1849 = vunpack.c.l.b16 %v937
      %v1850 = vunpack.c.h.b16 %v937
      %v1851 = vunpack.c.l.b16 %v938
      %v1852 = vunpack.c.h.b16 %v938
      %v1853 = vunpack.c.l.b16 %v939
      %v1854 = vunpack.c.h.b16 %v939
      %v1855 = vunpack.c.l.b16 %v940
      %v1856 = vunpack.c.h.b16 %v940
      %v1857 = vunpack.c.l.b16 %v941
      %v1858 = vunpack.c.h.b16 %v941
      %v1859 = vunpack.c.l.b16 %v942
      %v1860 = vunpack.c.h.b16 %v942
      %v1861 = vunpack.c.l.b16 %v943
      %v1862 = vunpack.c.h.b16 %v943
      %v1863 = vunpack.c.l.b16 %v944
      %v1864 = vunpack.c.h.b16 %v944
      %v1865 = vunpack.c.l.b16 %v945
      %v1866 = vunpack.c.h.b16 %v945
      %v1867 = vunpack.c.l.b16 %v946
      %v1868 = vunpack.c.h.b16 %v946
      %v1869 = vunpack.c.l.b16 %v947
      %v1870 = vunpack.c.h.b16 %v947
      %v1871 = vunpack.c.l.b16 %v948
      %v1872 = vunpack.c.h.b16 %v948
      %v1873 = vunpack.c.l.b16 %v949
      %v1874 = vunpack.c.h.b16 %v949
      %v1875 = vunpack.c.l.b16 %v950
      %v1876 = vunpack.c.h.b16 %v950
      %v1877 = vunpack.c.l.b16 %v951
      %v1878 = vunpack.c.h.b16 %v951
      %v1879 = vunpack.c.l.b16 %v952
      %v1880 = vunpack.c.h.b16 %v952
      %v1881 = vunpack.c.l.b16 %v953
      %v1882 = vunpack.c.h.b16 %v953
      %v1883 = vunpack.c.l.b16 %v954
      %v1884 = vunpack.c.h.b16 %v954
      %v1885 = vunpack.c.l.b16 %v955
      %v1886 = vunpack.c.h.b16 %v955
      %v1887 = vunpack.c.l.b16 %v956
      %v1888 = vunpack.c.h.b16 %v956
      %v1889 = vunpack.c.l.b16 %v957
      %v1890 = vunpack.c.h.b16 %v957
      %v1891 = vunpack.c.l.b16 %v958
      %v1892 = vunpack.c.h.b16 %v958
      %v1893 = vunpack.c.l.b16 %v959
      %v1894 = vunpack.c.h.b16 %v959
      %v1895 = vunpack.c.l.b16 %v960
      %v1896 = vunpack.c.h.b16 %v960
      %v1897 = vunpack.c.l.b16 %v961
      %v1898 = vunpack.c.h.b16 %v961
      %v1899 = vunpack.c.l.b16 %v962
      %v1900 = vunpack.c.h.b16 %v962
      %v1901 = vunpack.c.l.b16 %v963
      %v1902 = vunpack.c.h.b16 %v963
      %v1903 = vunpack.c.l.b16 %v964
      %v1904 = vunpack.c.h.b16 %v964
      %v1905 = vunpack.c.l.b16 %v965
      %v1906 = vunpack.c.h.b16 %v965
      %v1907 = vunpack.c.l.b16 %v966
      %v1908 = vunpack.c.h.b16 %v966
      %v1909 = vunpack.c.l.b16 %v967
      %v1910 = vunpack.c.h.b16 %v967
      %v1911 = vunpack.c.l.b16 %v968
      %v1912 = vunpack.c.h.b16 %v968
      %v1913 = vunpack.c.l.b16 %v969
      %v1914 = vunpack.c.h.b16 %v969
      %v1915 = vunpack.c.l.b16 %v970
      %v1916 = vunpack.c.h.b16 %v970
      %v1917 = vunpack.c.l.b16 %v971
      %v1918 = vunpack.c.h.b16 %v971
      %v1919 = vunpack.c.l.b16 %v972
      %v1920 = vunpack.c.h.b16 %v972
      %v1921 = vunpack.c.l.b16 %v973
      %v1922 = vunpack.c.h.b16 %v973
      %v1923 = vunpack.c.l.b16 %v974
      %v1924 = vunpack.c.h.b16 %v974
      %v1925 = vunpack.c.l.b16 %v975
      %v1926 = vunpack.c.h.b16 %v975
      %v1927 = vunpack.c.l.b16 %v976
      %v1928 = vunpack.c.h.b16 %v976
      %v1929 = vunpack.c.l.b16 %v977
      %v1930 = vunpack.c.h.b16 %v977
      %v1931 = vunpack.c.l.b16 %v978
      %v1932 = vunpack.c.h.b16 %v978
      %v1933 = vunpack.c.l.b16 %v979
      %v1934 = vunpack.c.h.b16 %v979
      %v1935 = vunpack.c.l.b16 %v980
      %v1936 = vunpack.c.h.b16 %v980
      %v1937 = vunpack.c.l.b16 %v981
      %v1938 = vunpack.c.h.b16 %v981
      %v1939 = vunpack.c.l.b16 %v982
      %v1940 = vunpack.c.h.b16 %v982
      %v1941 = vunpack.c.l.b16 %v983
      %v1942 = vunpack.c.h.b16 %v983
      %v1943 = vunpack.c.l.b16 %v984
      %v1944 = vunpack.c.h.b16 %v984
      %v1945 = vunpack.c.l.b16 %v985
      %v1946 = vunpack.c.h.b16 %v985
      %v1947 = vunpack.c.l.b16 %v986
      %v1948 = vunpack.c.h.b16 %v986
      %v1949 = vunpack.c.l.b16 %v987
      %v1950 = vunpack.c.h.b16 %v987
      %v1951 = vunpack.c.l.b16 %v988
      %v1952 = vunpack.c.h.b16 %v988
      %v1953 = vunpack.c.l.b16 %v989
      %v1954 = vunpack.c.h.b16 %v989
      %v1955 = vunpack.c.l.b16 %v990
      %v1956 = vunpack.c.h.b16 %v990
      %v1957 = vunpack.c.l.b16 %v991
      %v1958 = vunpack.c.h.b16 %v991
      %v1959 = vunpack.c.l.b16 %v992
      %v1960 = vunpack.c.h.b16 %v992
      %v1961 = vunpack.c.l.b16 %v993
      %v1962 = vunpack.c.h.b16 %v993
      %v1963 = vunpack.c.l.b16 %v994
      %v1964 = vunpack.c.h.b16 %v994
      %v1965 = vunpack.c.l.b16 %v995
      %v1966 = vunpack.c.h.b16 %v995
      %v1967 = vunpack.c.l.b16 %v996
      %v1968 = vunpack.c.h.b16 %v996
      %v1969 = vunpack.c.l.b16 %v997
      %v1970 = vunpack.c.h.b16 %v997
      %v1971 = vunpack.c.l.b16 %v998
      %v1972 = vunpack.c.h.b16 %v998
      %v1973 = vunpack.c.l.b16 %v999
      %v1974 = vunpack.c.h.b16 %v999
      %v1975 = vunpack.c.l.b16 %v1000
      %v1976 = vunpack.c.h.b16 %v1000
      %v1977 = vunpack.c.l.b16 %v1001
      %v1978 = vunpack.c.h.b16 %v1001
      %v1979 = vunpack.c.l.b16 %v1002
      %v1980 = vunpack.c.h.b16 %v1002
      %v1981 = vunpack.c.l.b16 %v1003
      %v1982 = vunpack.c.h.b16 %v1003
      %v1983 = vunpack.c.l.b16 %v1004
      %v1984 = vunpack.c.h.b16 %v1004
      %v1985 = vunpack.c.l.b16 %v1005
      %v1986 = vunpack.c.h.b16 %v1005
      %v1987 = vunpack.c.l.b16 %v1006
      %v1988 = vunpack.c.h.b16 %v1006
      %v1989 = vunpack.c.l.b16 %v1007
      %v1990 = vunpack.c.h.b16 %v1007
      %v1991 = vunpack.c.l.b16 %v1008
      %v1992 = vunpack.c.h.b16 %v1008
      %v1993 = vunpack.c.l.b16 %v1009
      %v1994 = vunpack.c.h.b16 %v1009
      %v1995 = vunpack.c.l.b16 %v1010
      %v1996 = vunpack.c.h.b16 %v1010
      %v1997 = vunpack.c.l.b16 %v1011
      %v1998 = vunpack.c.h.b16 %v1011
      %v1999 = vunpack.c.l.b16 %v1012
      %v2000 = vunpack.c.h.b16 %v1012
      %v2001 = vunpack.c.l.b16 %v1013
      %v2002 = vunpack.c.h.b16 %v1013
      %v2003 = vunpack.c.l.b16 %v1014
      %v2004 = vunpack.c.h.b16 %v1014
      %v2005 = vunpack.c.l.b16 %v1015
      %v2006 = vunpack.c.h.b16 %v1015
      %v2007 = vunpack.c.l.b16 %v1016
      %v2008 = vunpack.c.h.b16 %v1016
      %v2009 = vunpack.c.l.b16 %v1017
      %v2010 = vunpack.c.h.b16 %v1017
      %v2011 = vunpack.c.l.b16 %v1018
      %v2012 = vunpack.c.h.b16 %v1018
      %v2013 = vunpack.c.l.b16 %v1019
      %v2014 = vunpack.c.h.b16 %v1019
      %v2015 = vunpack.c.l.b16 %v1020
      %v2016 = vunpack.c.h.b16 %v1020
      %v2017 = vunpack.c.l.b16 %v1021
      %v2018 = vunpack.c.h.b16 %v1021
      %v2019 = vunpack.c.l.b16 %v1022
      %v2020 = vunpack.c.h.b16 %v1022
      %v2021 = vunpack.c.l.b16 %v1023
      %v2022 = vunpack.c.h.b16 %v1023
      %v2023 = vunpack.c.l.b16 %v1024
      %v2024 = vunpack.c.h.b16 %v1024
      %v2025 = vunpack.c.l.b16 %v1025
      %v2026 = vunpack.c.h.b16 %v1025
      %v2027 = vunpack.c.l.b16 %v1026
      %v2028 = vunpack.c.h.b16 %v1026
      %v2029 = vunpack.c.l.b16 %v1027
      %v2030 = vunpack.c.h.b16 %v1027
      %v2031 = vunpack.c.l.b16 %v1028
      %v2032 = vunpack.c.h.b16 %v1028
      %v2033 = vpack.c.b16 %v1461, %v1457
      %v2034 = vpack.c.b16 %v1462, %v1458
      %v2035 = vpack.c.b16 %v1463, %v1459
      %v2036 = vpack.c.b16 %v1464, %v1460
      %v2037 = vpack.c.b16 %v1469, %v1465
      %v2038 = vpack.c.b16 %v1470, %v1466
      %v2039 = vpack.c.b16 %v1471, %v1467
      %v2040 = vpack.c.b16 %v1472, %v1468
      %v2041 = vpack.c.b16 %v1477, %v1473
      %v2042 = vpack.c.b16 %v1478, %v1474
      %v2043 = vpack.c.b16 %v1479, %v1475
      %v2044 = vpack.c.b16 %v1480, %v1476
      %v2045 = vpack.c.b16 %v1485, %v1481
      %v2046 = vpack.c.b16 %v1486, %v1482
      %v2047 = vpack.c.b16 %v1487, %v1483
      %v2048 = vpack.c.b16 %v1488, %v1484
      %v2049 = vpack.c.b16 %v1493, %v1489
      %v2050 = vpack.c.b16 %v1494, %v1490
      %v2051 = vpack.c.b16 %v1495, %v1491
      %v2052 = vpack.c.b16 %v1496, %v1492
      %v2053 = vpack.c.b16 %v1501, %v1497
      %v2054 = vpack.c.b16 %v1502, %v1498
      %v2055 = vpack.c.b16 %v1503, %v1499
      %v2056 = vpack.c.b16 %v1504, %v1500
      %v2057 = vpack.c.b16 %v1509, %v1505
      %v2058 = vpack.c.b16 %v1510, %v1506
      %v2059 = vpack.c.b16 %v1511, %v1507
      %v2060 = vpack.c.b16 %v1512, %v1508
      %v2061 = vpack.c.b16 %v1517, %v1513
      %v2062 = vpack.c.b16 %v1518, %v1514
      %v2063 = vpack.c.b16 %v1519, %v1515
      %v2064 = vpack.c.b16 %v1520, %v1516
      %v2065 = vpack.c.b16 %v1525, %v1521
      %v2066 = vpack.c.b16 %v1526, %v1522
      %v2067 = vpack.c.b16 %v1527, %v1523
      %v2068 = vpack.c.b16 %v1528, %v1524
      %v2069 = vpack.c.b16 %v1533, %v1529
      %v2070 = vpack.c.b16 %v1534, %v1530
      %v2071 = vpack.c.b16 %v1535, %v1531
      %v2072 = vpack.c.b16 %v1536, %v1532
      %v2073 = vpack.c.b16 %v1541, %v1537
      %v2074 = vpack.c.b16 %v1542, %v1538
      %v2075 = vpack.c.b16 %v1543, %v1539
      %v2076 = vpack.c.b16 %v1544, %v1540
      %v2077 = vpack.c.b16 %v1549, %v1545
      %v2078 = vpack.c.b16 %v1550, %v1546
      %v2079 = vpack.c.b16 %v1551, %v1547
      %v2080 = vpack.c.b16 %v1552, %v1548
      %v2081 = vpack.c.b16 %v1557, %v1553
      %v2082 = vpack.c.b16 %v1558, %v1554
      %v2083 = vpack.c.b16 %v1559, %v1555
      %v2084 = vpack.c.b16 %v1560, %v1556
      %v2085 = vpack.c.b16 %v1565, %v1561
      %v2086 = vpack.c.b16 %v1566, %v1562
      %v2087 = vpack.c.b16 %v1567, %v1563
      %v2088 = vpack.c.b16 %v1568, %v1564
      %v2089 = vpack.c.b16 %v1573, %v1569
      %v2090 = vpack.c.b16 %v1574, %v1570
      %v2091 = vpack.c.b16 %v1575, %v1571
      %v2092 = vpack.c.b16 %v1576, %v1572
      %v2093 = vpack.c.b16 %v1581, %v1577
      %v2094 = vpack.c.b16 %v1582, %v1578
      %v2095 = vpack.c.b16 %v1583, %v1579
      %v2096 = vpack.c.b16 %v1584, %v1580
      %v2097 = vpack.c.b16 %v1589, %v1585
      %v2098 = vpack.c.b16 %v1590, %v1586
      %v2099 = vpack.c.b16 %v1591, %v1587
      %v2100 = vpack.c.b16 %v1592, %v1588
      %v2101 = vpack.c.b16 %v1597, %v1593
      %v2102 = vpack.c.b16 %v1598, %v1594
      %v2103 = vpack.c.b16 %v1599, %v1595
      %v2104 = vpack.c.b16 %v1600, %v1596
      %v2105 = vpack.c.b16 %v1605, %v1601
      %v2106 = vpack.c.b16 %v1606, %v1602
      %v2107 = vpack.c.b16 %v1607, %v1603
      %v2108 = vpack.c.b16 %v1608, %v1604
      %v2109 = vpack.c.b16 %v1613, %v1609
      %v2110 = vpack.c.b16 %v1614, %v1610
      %v2111 = vpack.c.b16 %v1615, %v1611
      %v2112 = vpack.c.b16 %v1616, %v1612
      %v2113 = vpack.c.b16 %v1621, %v1617
      %v2114 = vpack.c.b16 %v1622, %v1618
      %v2115 = vpack.c.b16 %v1623, %v1619
      %v2116 = vpack.c.b16 %v1624, %v1620
      %v2117 = vpack.c.b16 %v1629, %v1625
      %v2118 = vpack.c.b16 %v1630, %v1626
      %v2119 = vpack.c.b16 %v1631, %v1627
      %v2120 = vpack.c.b16 %v1632, %v1628
      %v2121 = vpack.c.b16 %v1637, %v1633
      %v2122 = vpack.c.b16 %v1638, %v1634
      %v2123 = vpack.c.b16 %v1639, %v1635
      %v2124 = vpack.c.b16 %v1640, %v1636
      %v2125 = vpack.c.b16 %v1645, %v1641
      %v2126 = vpack.c.b16 %v1646, %v1642
      %v2127 = vpack.c.b16 %v1647, %v1643
      %v2128 = vpack.c.b16 %v1648, %v1644
      %v2129 = vpack.c.b16 %v1653, %v1649
      %v2130 = vpack.c.b16 %v1654, %v1650
      %v2131 = vpack.c.b16 %v1655, %v1651
      %v2132 = vpack.c.b16 %v1656, %v1652
      %v2133 = vpack.c.b16 %v1661, %v1657
      %v2134 = vpack.c.b16 %v1662, %v1658
      %v2135 = vpack.c.b16 %v1663, %v1659
      %v2136 = vpack.c.b16 %v1664, %v1660
      %v2137 = vpack.c.b16 %v1669, %v1665
      %v2138 = vpack.c.b16 %v1670, %v1666
      %v2139 = vpack.c.b16 %v1671, %v1667
      %v2140 = vpack.c.b16 %v1672, %v1668
      %v2141 = vpack.c.b16 %v1677, %v1673
      %v2142 = vpack.c.b16 %v1678, %v1674
      %v2143 = vpack.c.b16 %v1679, %v1675
      %v2144 = vpack.c.b16 %v1680, %v1676
      %v2145 = vpack.c.b16 %v1685, %v1681
      %v2146 = vpack.c.b16 %v1686, %v1682
      %v2147 = vpack.c.b16 %v1687, %v1683
      %v2148 = vpack.c.b16 %v1688, %v1684
      %v2149 = vpack.c.b16 %v1693, %v1689
      %v2150 = vpack.c.b16 %v1694, %v1690
      %v2151 = vpack.c.b16 %v1695, %v1691
      %v2152 = vpack.c.b16 %v1696, %v1692
      %v2153 = vpack.c.b16 %v1701, %v1697
      %v2154 = vpack.c.b16 %v1702, %v1698
      %v2155 = vpack.c.b16 %v1703, %v1699
      %v2156 = vpack.c.b16 %v1704, %v1700
      %v2157 = vpack.c.b16 %v1709, %v1705
      %v2158 = vpack.c.b16 %v1710, %v1706
      %v2159 = vpack.c.b16 %v1711, %v1707
      %v2160 = vpack.c.b16 %v1712, %v1708
      %v2161 = vpack.c.b16 %v1717, %v1713
      %v2162 = vpack.c.b16 %v1718, %v1714
      %v2163 = vpack.c.b16 %v1719, %v1715
      %v2164 = vpack.c.b16 %v1720, %v1716
      %v2165 = vpack.c.b16 %v1725, %v1721
      %v2166 = vpack.c.b16 %v1726, %v1722
      %v2167 = vpack.c.b16 %v1727, %v1723
      %v2168 = vpack.c.b16 %v1728, %v1724
      %v2169 = vpack.c.b16 %v1733, %v1729
      %v2170 = vpack.c.b16 %v1734, %v1730
      %v2171 = vpack.c.b16 %v1735, %v1731
      %v2172 = vpack.c.b16 %v1736, %v1732
      %v2173 = vpack.c.b16 %v1741, %v1737
      %v2174 = vpack.c.b16 %v1742, %v1738
      %v2175 = vpack.c.b16 %v1743, %v1739
      %v2176 = vpack.c.b16 %v1744, %v1740
      %v2177 = vpack.c.b16 %v1749, %v1745
      %v2178 = vpack.c.b16 %v1750, %v1746
      %v2179 = vpack.c.b16 %v1751, %v1747
      %v2180 = vpack.c.b16 %v1752, %v1748
      %v2181 = vpack.c.b16 %v1757, %v1753
      %v2182 = vpack.c.b16 %v1758, %v1754
      %v2183 = vpack.c.b16 %v1759, %v1755
      %v2184 = vpack.c.b16 %v1760, %v1756
      %v2185 = vpack.c.b16 %v1765, %v1761
      %v2186 = vpack.c.b16 %v1766, %v1762
      %v2187 = vpack.c.b16 %v1767, %v1763
      %v2188 = vpack.c.b16 %v1768, %v1764
      %v2189 = vpack.c.b16 %v1773, %v1769
      %v2190 = vpack.c.b16 %v1774, %v1770
      %v2191 = vpack.c.b16 %v1775, %v1771
      %v2192 = vpack.c.b16 %v1776, %v1772
      %v2193 = vpack.c.b16 %v1781, %v1777
      %v2194 = vpack.c.b16 %v1782, %v1778
      %v2195 = vpack.c.b16 %v1783, %v1779
      %v2196 = vpack.c.b16 %v1784, %v1780
      %v2197 = vpack.c.b16 %v1789, %v1785
      %v2198 = vpack.c.b16 %v1790, %v1786
      %v2199 = vpack.c.b16 %v1791, %v1787
      %v2200 = vpack.c.b16 %v1792, %v1788
      %v2201 = vpack.c.b16 %v1797, %v1793
      %v2202 = vpack.c.b16 %v1798, %v1794
      %v2203 = vpack.c.b16 %v1799, %v1795
      %v2204 = vpack.c.b16 %v1800, %v1796
      %v2205 = vpack.c.b16 %v1805, %v1801
      %v2206 = vpack.c.b16 %v1806, %v1802
      %v2207 = vpack.c.b16 %v1807, %v1803
      %v2208 = vpack.c.b16 %v1808, %v1804
      %v2209 = vpack.c.b16 %v1813, %v1809
      %v2210 = vpack.c.b16 %v1814, %v1810
      %v2211 = vpack.c.b16 %v1815, %v1811
      %v2212 = vpack.c.b16 %v1816, %v1812
      %v2213 = vpack.c.b16 %v1821, %v1817
      %v2214 = vpack.c.b16 %v1822, %v1818
      %v2215 = vpack.c.b16 %v1823, %v1819
      %v2216 = vpack.c.b16 %v1824, %v1820
      %v2217 = vpack.c.b16 %v1829, %v1825
      %v2218 = vpack.c.b16 %v1830, %v1826
      %v2219 = vpack.c.b16 %v1831, %v1827
      %v2220 = vpack.c.b16 %v1832, %v1828
      %v2221 = vpack.c.b16 %v1837, %v1833
      %v2222 = vpack.c.b16 %v1838, %v1834
      %v2223 = vpack.c.b16 %v1839, %v1835
      %v2224 = vpack.c.b16 %v1840, %v1836
      %v2225 = vpack.c.b16 %v1845, %v1841
      %v2226 = vpack.c.b16 %v1846, %v1842
      %v2227 = vpack.c.b16 %v1847, %v1843
      %v2228 = vpack.c.b16 %v1848, %v1844
      %v2229 = vpack.c.b16 %v1853, %v1849
      %v2230 = vpack.c.b16 %v1854, %v1850
      %v2231 = vpack.c.b16 %v1855, %v1851
      %v2232 = vpack.c.b16 %v1856, %v1852
      %v2233 = vpack.c.b16 %v1861, %v1857
      %v2234 = vpack.c.b16 %v1862, %v1858
      %v2235 = vpack.c.b16 %v1863, %v1859
      %v2236 = vpack.c.b16 %v1864, %v1860
      %v2237 = vpack.c.b16 %v1869, %v1865
      %v2238 = vpack.c.b16 %v1870, %v1866
      %v2239 = vpack.c.b16 %v1871, %v1867
      %v2240 = vpack.c.b16 %v1872, %v1868
      %v2241 = vpack.c.b16 %v1877, %v1873
      %v2242 = vpack.c.b16 %v1878, %v1874
      %v2243 = vpack.c.b16 %v1879, %v1875
      %v2244 = vpack.c.b16 %v1880, %v1876
      %v2245 = vpack.c.b16 %v1885, %v1881
      %v2246 = vpack.c.b16 %v1886, %v1882
      %v2247 = vpack.c.b16 %v1887, %v1883
      %v2248 = vpack.c.b16 %v1888, %v1884
      %v2249 = vpack.c.b16 %v1893, %v1889
      %v2250 = vpack.c.b16 %v1894, %v1890
      %v2251 = vpack.c.b16 %v1895, %v1891
      %v2252 = vpack.c.b16 %v1896, %v1892
      %v2253 = vpack.c.b16 %v1901, %v1897
      %v2254 = vpack.c.b16 %v1902, %v1898
      %v2255 = vpack.c.b16 %v1903, %v1899
      %v2256 = vpack.c.b16 %v1904, %v1900
      %v2257 = vpack.c.b16 %v1909, %v1905
      %v2258 = vpack.c.b16 %v1910, %v1906
      %v2259 = vpack.c.b16 %v1911, %v1907
      %v2260 = vpack.c.b16 %v1912, %v1908
      %v2261 = vpack.c.b16 %v1917, %v1913
      %v2262 = vpack.c.b16 %v1918, %v1914
      %v2263 = vpack.c.b16 %v1919, %v1915
      %v2264 = vpack.c.b16 %v1920, %v1916
      %v2265 = vpack.c.b16 %v1925, %v1921
      %v2266 = vpack.c.b16 %v1926, %v1922
      %v2267 = vpack.c.b16 %v1927, %v1923
      %v2268 = vpack.c.b16 %v1928, %v1924
      %v2269 = vpack.c.b16 %v1933, %v1929
      %v2270 = vpack.c.b16 %v1934, %v1930
      %v2271 = vpack.c.b16 %v1935, %v1931
      %v2272 = vpack.c.b16 %v1936, %v1932
      %v2273 = vpack.c.b16 %v1941, %v1937
      %v2274 = vpack.c.b16 %v1942, %v1938
      %v2275 = vpack.c.b16 %v1943, %v1939
      %v2276 = vpack.c.b16 %v1944, %v1940
      %v2277 = vpack.c.b16 %v1949, %v1945
      %v2278 = vpack.c.b16 %v1950, %v1946
      %v2279 = vpack.c.b16 %v1951, %v1947
      %v2280 = vpack.c.b16 %v1952, %v1948
      %v2281 = vpack.c.b16 %v1957, %v1953
      %v2282 = vpack.c.b16 %v1958, %v1954
      %v2283 = vpack.c.b16 %v1959, %v1955
      %v2284 = vpack.c.b16 %v1960, %v1956
      %v2285 = vpack.c.b16 %v1965, %v1961
      %v2286 = vpack.c.b16 %v1966, %v1962
      %v2287 = vpack.c.b16 %v1967, %v1963
      %v2288 = vpack.c.b16 %v1968, %v1964
      %v2289 = vpack.c.b16 %v1973, %v1969
      %v2290 = vpack.c.b16 %v1974, %v1970
      %v2291 = vpack.c.b16 %v1975, %v1971
      %v2292 = vpack.c.b16 %v1976, %v1972
      %v2293 = vpack.c.b16 %v1981, %v1977
      %v2294 = vpack.c.b16 %v1982, %v1978
      %v2295 = vpack.c.b16 %v1983, %v1979
      %v2296 = vpack.c.b16 %v1984, %v1980
      %v2297 = vpack.c.b16 %v1989, %v1985
      %v2298 = vpack.c.b16 %v1990, %v1986
      %v2299 = vpack.c.b16 %v1991, %v1987
      %v2300 = vpack.c.b16 %v1992, %v1988
      %v2301 = vpack.c.b16 %v1997, %v1993
      %v2302 = vpack.c.b16 %v1998, %v1994
      %v2303 = vpack.c.b16 %v1999, %v1995
      %v2304 = vpack.c.b16 %v2000, %v1996
      %v2305 = vpack.c.b16 %v2005, %v2001
      %v2306 = vpack.c.b16 %v2006, %v2002
      %v2307 = vpack.c.b16 %v2007, %v2003
      %v2308 = vpack.c.b16 %v2008, %v2004
      %v2309 = vpack.c.b16 %v2013, %v2009
      %v2310 = vpack.c.b16 %v2014, %v2010
      %v2311 = vpack.c.b16 %v2015, %v2011
      %v2312 = vpack.c.b16 %v2016, %v2012
      %v2313 = vpack.c.b16 %v2021, %v2017
      %v2314 = vpack.c.b16 %v2022, %v2018
      %v2315 = vpack.c.b16 %v2023, %v2019
      %v2316 = vpack.c.b16 %v2024, %v2020
      %v2317 = vpack.c.b16 %v2029, %v2025
      %v2318 = vpack.c.b16 %v2030, %v2026
      %v2319 = vpack.c.b16 %v2031, %v2027
      %v2320 = vpack.c.b16 %v2032, %v2028
      %2609 = vmatprep.subr.bf16.mxu0 %v2062
      %2610 = vmatpush1.bf16.msra.mxu0 %v2061
      %2611 = vmatprep.subr.bf16.mxu0 %v2058
      %2612 = vmatpush1.bf16.msra.mxu0 %v2057
      %2613 = vmatprep.subr.bf16.mxu0 %v2054
      %2614 = vmatpush1.bf16.msra.mxu0 %v2053
      %2615 = vmatprep.subr.bf16.mxu0 %v2050
      %2616 = vmatpush1.bf16.msra.mxu0 %v2049
      %2617 = vmatprep.subr.bf16.mxu0 %v2046
      %2618 = vmatpush1.bf16.msra.mxu0 %v2045
      %2619 = vmatprep.subr.bf16.mxu0 %v2042
      %2620 = vmatpush1.bf16.msra.mxu0 %v2041
      %2621 = vmatprep.subr.bf16.mxu0 %v2038
      %2622 = vmatpush1.bf16.msra.mxu0 %v2037
      %2623 = vmatprep.subr.bf16.mxu0 %v2034
      %2624 = vmatpush1.bf16.msra.mxu0 %v2033
      %2625 = vmatprep.subr.bf16.mxu0 %v2094
      %2626 = vmatpush2.bf16.msra.mxu0 %v2093
      %2627 = vmatprep.subr.bf16.mxu0 %v2090
      %2628 = vmatpush2.bf16.msra.mxu0 %v2089
      %2629 = vmatprep.subr.bf16.mxu0 %v2086
      %2630 = vmatpush2.bf16.msra.mxu0 %v2085
      %2631 = vmatprep.subr.bf16.mxu0 %v2082
      %2632 = vmatpush2.bf16.msra.mxu0 %v2081
      %2633 = vmatprep.subr.bf16.mxu0 %v2078
      %2634 = vmatpush2.bf16.msra.mxu0 %v2077
      %2635 = vmatprep.subr.bf16.mxu0 %v2074
      %2636 = vmatpush2.bf16.msra.mxu0 %v2073
      %2637 = vmatprep.subr.bf16.mxu0 %v2070
      %2638 = vmatpush2.bf16.msra.mxu0 %v2069
      %2639 = vmatprep.subr.bf16.mxu0 %v2066
      %2640 = vmatpush2.bf16.msra.mxu0 %v2065
      %2641 = vmatprep.mubr.bf16.mxu0 %v1056
      %2642 = vmatmul.mubr.bf16.gmra.mxu0 %v1044
      %v2643 = vpop.f32.mrf.mxu0
      %v2644 = vadd.f32 0.0, %v2643
      %v2645 = vpop.f32.mrf.mxu0
      %v2646 = vadd.f32 0.0, %v2645
      %v2647 = vpop.f32.mrf.mxu0
      %v2648 = vadd.f32 0.0, %v2647
      %v2649 = vpop.f32.mrf.mxu0
      %v2650 = vadd.f32 0.0, %v2649
      %2651 = vmatprep.mubr.bf16.mxu0 %v1064
      %2652 = vmatmul.mubr.bf16.gmra.mxu0 %v1035
      %v2653 = vpop.f32.mrf.mxu0
      %v2654 = vadd.f32 0.0, %v2653
      %v2655 = vpop.f32.mrf.mxu0
      %v2656 = vadd.f32 0.0, %v2655
      %v2657 = vpop.f32.mrf.mxu0
      %v2658 = vadd.f32 0.0, %v2657
      %v2659 = vpop.f32.mrf.mxu0
      %v2660 = vadd.f32 0.0, %v2659
      %2661 = vmatprep.mubr.bf16.mxu0 %v1072
      %2662 = vmatmul.mubr.bf16.gmra.mxu0 %v1037
      %v2663 = vpop.f32.mrf.mxu0
      %v2664 = vadd.f32 0.0, %v2663
      %v2665 = vpop.f32.mrf.mxu0
      %v2666 = vadd.f32 0.0, %v2665
      %v2667 = vpop.f32.mrf.mxu0
      %v2668 = vadd.f32 0.0, %v2667
      %v2669 = vpop.f32.mrf.mxu0
      %v2670 = vadd.f32 0.0, %v2669
      %2671 = vmatprep.mubr.bf16.mxu0 %v1075
      %2672 = vmatmul.mubr.bf16.gmra.mxu0 %v1039
      %v2673 = vpop.f32.mrf.mxu0
      %v2674 = vadd.f32 0.0, %v2673
      %v2675 = vpop.f32.mrf.mxu0
      %v2676 = vadd.f32 0.0, %v2675
      %v2677 = vpop.f32.mrf.mxu0
      %v2678 = vpop.f32.mrf.mxu0
      %2679 = vdwg.mxu0
      %2680 = vmatprep.subr.bf16.mxu0 %v2126
      %2681 = vmatpush1.bf16.msra.mxu0 %v2125
      %2682 = vmatprep.subr.bf16.mxu0 %v2122
      %2683 = vmatpush1.bf16.msra.mxu0 %v2121
      %2684 = vmatprep.subr.bf16.mxu0 %v2118
      %2685 = vmatpush1.bf16.msra.mxu0 %v2117
      %2686 = vmatprep.subr.bf16.mxu0 %v2114
      %2687 = vmatpush1.bf16.msra.mxu0 %v2113
      %2688 = vmatprep.subr.bf16.mxu0 %v2110
      %2689 = vmatpush1.bf16.msra.mxu0 %v2109
      %2690 = vmatprep.subr.bf16.mxu0 %v2106
      %2691 = vmatpush1.bf16.msra.mxu0 %v2105
      %2692 = vmatprep.subr.bf16.mxu0 %v2102
      %2693 = vmatpush1.bf16.msra.mxu0 %v2101
      %2694 = vmatprep.subr.bf16.mxu0 %v2098
      %2695 = vmatpush1.bf16.msra.mxu0 %v2097
      %2696 = vmatprep.subr.bf16.mxu0 %v2158
      %2697 = vmatpush2.bf16.msra.mxu0 %v2157
      %2698 = vmatprep.subr.bf16.mxu0 %v2154
      %2699 = vmatpush2.bf16.msra.mxu0 %v2153
      %2700 = vmatprep.subr.bf16.mxu0 %v2150
      %2701 = vmatpush2.bf16.msra.mxu0 %v2149
      %2702 = vmatprep.subr.bf16.mxu0 %v2146
      %2703 = vmatpush2.bf16.msra.mxu0 %v2145
      %2704 = vmatprep.subr.bf16.mxu0 %v2142
      %2705 = vmatpush2.bf16.msra.mxu0 %v2141
      %2706 = vmatprep.subr.bf16.mxu0 %v2138
      %2707 = vmatpush2.bf16.msra.mxu0 %v2137
      %2708 = vmatprep.subr.bf16.mxu0 %v2134
      %2709 = vmatpush2.bf16.msra.mxu0 %v2133
      %2710 = vmatprep.subr.bf16.mxu0 %v2130
      %2711 = vmatpush2.bf16.msra.mxu0 %v2129
      %2712 = vmatprep.mubr.bf16.mxu0 %v1098
      %2713 = vmatmul.mubr.bf16.gmra.mxu0 %v1083
      %v2714 = vpop.f32.mrf.mxu0
      %v2715 = vadd.f32 %v2644, %v2714
      %v2716 = vpop.f32.mrf.mxu0
      %v2717 = vadd.f32 %v2646, %v2716
      %v2718 = vpop.f32.mrf.mxu0
      %v2719 = vadd.f32 %v2648, %v2718
      %v2720 = vpop.f32.mrf.mxu0
      %v2721 = vadd.f32 %v2650, %v2720
      %2722 = vmatprep.mubr.bf16.mxu0 %v1102
      %2723 = vmatmul.mubr.bf16.gmra.mxu0 %v1085
      %v2724 = vpop.f32.mrf.mxu0
      %v2725 = vadd.f32 %v2654, %v2724
      %v2726 = vpop.f32.mrf.mxu0
      %v2727 = vadd.f32 %v2656, %v2726
      %v2728 = vpop.f32.mrf.mxu0
      %v2729 = vadd.f32 %v2658, %v2728
      %v2730 = vpop.f32.mrf.mxu0
      %v2731 = vadd.f32 %v2660, %v2730
      %2732 = vmatprep.mubr.bf16.mxu0 %v1106
      %2733 = vmatmul.mubr.bf16.gmra.mxu0 %v1087
      %v2734 = vpop.f32.mrf.mxu0
      %v2735 = vadd.f32 %v2664, %v2734
      %v2736 = vpop.f32.mrf.mxu0
      %v2737 = vadd.f32 %v2666, %v2736
      %v2738 = vpop.f32.mrf.mxu0
      %v2739 = vadd.f32 %v2668, %v2738
      %v2740 = vpop.f32.mrf.mxu0
      %v2741 = vadd.f32 %v2670, %v2740
      %2742 = vmatprep.mubr.bf16.mxu0 %v1105
      %2743 = vmatmul.mubr.bf16.gmra.mxu0 %v1086
      %v2744 = vpop.f32.mrf.mxu0
      %v2745 = vadd.f32 %v2674, %v2744
      %v2746 = vpop.f32.mrf.mxu0
      %v2747 = vadd.f32 %v2676, %v2746
      %v2748 = vpop.f32.mrf.mxu0
      %v2749 = vpop.f32.mrf.mxu0
      %2750 = vdwg.mxu0
      %2751 = vmatprep.subr.bf16.mxu0 %v2190
      %2752 = vmatpush1.bf16.msra.mxu0 %v2189
      %2753 = vmatprep.subr.bf16.mxu0 %v2186
      %2754 = vmatpush1.bf16.msra.mxu0 %v2185
      %2755 = vmatprep.subr.bf16.mxu0 %v2182
      %2756 = vmatpush1.bf16.msra.mxu0 %v2181
      %2757 = vmatprep.subr.bf16.mxu0 %v2178
      %2758 = vmatpush1.bf16.msra.mxu0 %v2177
      %2759 = vmatprep.subr.bf16.mxu0 %v2174
      %2760 = vmatpush1.bf16.msra.mxu0 %v2173
      %2761 = vmatprep.subr.bf16.mxu0 %v2170
      %2762 = vmatpush1.bf16.msra.mxu0 %v2169
      %2763 = vmatprep.subr.bf16.mxu0 %v2166
      %2764 = vmatpush1.bf16.msra.mxu0 %v2165
      %2765 = vmatprep.subr.bf16.mxu0 %v2162
      %2766 = vmatpush1.bf16.msra.mxu0 %v2161
      %2767 = vmatprep.subr.bf16.mxu0 %v2222
      %2768 = vmatpush2.bf16.msra.mxu0 %v2221
      %2769 = vmatprep.subr.bf16.mxu0 %v2218
      %2770 = vmatpush2.bf16.msra.mxu0 %v2217
      %2771 = vmatprep.subr.bf16.mxu0 %v2214
      %2772 = vmatpush2.bf16.msra.mxu0 %v2213
      %2773 = vmatprep.subr.bf16.mxu0 %v2210
      %2774 = vmatpush2.bf16.msra.mxu0 %v2209
      %2775 = vmatprep.subr.bf16.mxu0 %v2206
      %2776 = vmatpush2.bf16.msra.mxu0 %v2205
      %2777 = vmatprep.subr.bf16.mxu0 %v2202
      %2778 = vmatpush2.bf16.msra.mxu0 %v2201
      %2779 = vmatprep.subr.bf16.mxu0 %v2198
      %2780 = vmatpush2.bf16.msra.mxu0 %v2197
      %2781 = vmatprep.subr.bf16.mxu0 %v2194
      %2782 = vmatpush2.bf16.msra.mxu0 %v2193
      %2783 = vmatprep.mubr.bf16.mxu0 %v1128
      %2784 = vmatmul.mubr.bf16.gmra.mxu0 %v1113
      %v2785 = vpop.f32.mrf.mxu0
      %v2786 = vadd.f32 %v2715, %v2785
      %v2787 = vpop.f32.mrf.mxu0
      %v2788 = vadd.f32 %v2717, %v2787
      %v2789 = vpop.f32.mrf.mxu0
      %v2790 = vadd.f32 %v2719, %v2789
      %v2791 = vpop.f32.mrf.mxu0
      %v2792 = vadd.f32 %v2721, %v2791
      %2793 = vmatprep.mubr.bf16.mxu0 %v1132
      %2794 = vmatmul.mubr.bf16.gmra.mxu0 %v1115
      %v2795 = vpop.f32.mrf.mxu0
      %v2796 = vadd.f32 %v2725, %v2795
      %v2797 = vpop.f32.mrf.mxu0
      %v2798 = vadd.f32 %v2727, %v2797
      %v2799 = vpop.f32.mrf.mxu0
      %v2800 = vadd.f32 %v2729, %v2799
      %v2801 = vpop.f32.mrf.mxu0
      %v2802 = vadd.f32 %v2731, %v2801
      %2803 = vmatprep.mubr.bf16.mxu0 %v1136
      %2804 = vmatmul.mubr.bf16.gmra.mxu0 %v1117
      %v2805 = vpop.f32.mrf.mxu0
      %v2806 = vadd.f32 %v2735, %v2805
      %v2807 = vpop.f32.mrf.mxu0
      %v2808 = vadd.f32 %v2737, %v2807
      %v2809 = vpop.f32.mrf.mxu0
      %v2810 = vadd.f32 %v2739, %v2809
      %v2811 = vpop.f32.mrf.mxu0
      %v2812 = vadd.f32 %v2741, %v2811
      %2813 = vmatprep.mubr.bf16.mxu0 %v1137
      %2814 = vmatmul.mubr.bf16.gmra.mxu0 %v1116
      %v2815 = vpop.f32.mrf.mxu0
      %v2816 = vadd.f32 %v2745, %v2815
      %v2817 = vpop.f32.mrf.mxu0
      %v2818 = vadd.f32 %v2747, %v2817
      %v2819 = vpop.f32.mrf.mxu0
      %v2820 = vpop.f32.mrf.mxu0
      %2821 = vdwg.mxu0
      %2822 = vmatprep.subr.bf16.mxu0 %v2254
      %2823 = vmatpush1.bf16.msra.mxu0 %v2253
      %2824 = vmatprep.subr.bf16.mxu0 %v2250
      %2825 = vmatpush1.bf16.msra.mxu0 %v2249
      %2826 = vmatprep.subr.bf16.mxu0 %v2246
      %2827 = vmatpush1.bf16.msra.mxu0 %v2245
      %2828 = vmatprep.subr.bf16.mxu0 %v2242
      %2829 = vmatpush1.bf16.msra.mxu0 %v2241
      %2830 = vmatprep.subr.bf16.mxu0 %v2238
      %2831 = vmatpush1.bf16.msra.mxu0 %v2237
      %2832 = vmatprep.subr.bf16.mxu0 %v2234
      %2833 = vmatpush1.bf16.msra.mxu0 %v2233
      %2834 = vmatprep.subr.bf16.mxu0 %v2230
      %2835 = vmatpush1.bf16.msra.mxu0 %v2229
      %2836 = vmatprep.subr.bf16.mxu0 %v2226
      %2837 = vmatpush1.bf16.msra.mxu0 %v2225
      %2838 = vmatprep.subr.bf16.mxu0 %v2286
      %2839 = vmatpush2.bf16.msra.mxu0 %v2285
      %2840 = vmatprep.subr.bf16.mxu0 %v2282
      %2841 = vmatpush2.bf16.msra.mxu0 %v2281
      %2842 = vmatprep.subr.bf16.mxu0 %v2278
      %2843 = vmatpush2.bf16.msra.mxu0 %v2277
      %2844 = vmatprep.subr.bf16.mxu0 %v2274
      %2845 = vmatpush2.bf16.msra.mxu0 %v2273
      %2846 = vmatprep.subr.bf16.mxu0 %v2270
      %2847 = vmatpush2.bf16.msra.mxu0 %v2269
      %2848 = vmatprep.subr.bf16.mxu0 %v2266
      %2849 = vmatpush2.bf16.msra.mxu0 %v2265
      %2850 = vmatprep.subr.bf16.mxu0 %v2262
      %2851 = vmatpush2.bf16.msra.mxu0 %v2261
      %2852 = vmatprep.subr.bf16.mxu0 %v2258
      %2853 = vmatpush2.bf16.msra.mxu0 %v2257
      %2854 = vmatprep.mubr.bf16.mxu0 %v1157
      %2855 = vmatmul.mubr.bf16.gmra.mxu0 %v1144
      %v2856 = vpop.f32.mrf.mxu0
      %v2857 = vadd.f32 %v2786, %v2856
      %v2858 = vpop.f32.mrf.mxu0
      %v2859 = vadd.f32 %v2788, %v2858
      %v2860 = vpop.f32.mrf.mxu0
      %v2861 = vadd.f32 %v2790, %v2860
      %v2862 = vpop.f32.mrf.mxu0
      %v2863 = vadd.f32 %v2792, %v2862
      %2864 = vmatprep.mubr.bf16.mxu0 %v1160
      %2865 = vmatmul.mubr.bf16.gmra.mxu0 %v1146
      %v2866 = vpop.f32.mrf.mxu0
      %v2867 = vadd.f32 %v2796, %v2866
      %v2868 = vpop.f32.mrf.mxu0
      %v2869 = vadd.f32 %v2798, %v2868
      %v2870 = vpop.f32.mrf.mxu0
      %v2871 = vadd.f32 %v2800, %v2870
      %v2872 = vpop.f32.mrf.mxu0
      %v2873 = vadd.f32 %v2802, %v2872
      %2874 = vmatprep.mubr.bf16.mxu0 %v1163
      %2875 = vmatmul.mubr.bf16.gmra.mxu0 %v1148
      %v2876 = vpop.f32.mrf.mxu0
      %v2877 = vadd.f32 %v2806, %v2876
      %v2878 = vpop.f32.mrf.mxu0
      %v2879 = vadd.f32 %v2808, %v2878
      %v2880 = vpop.f32.mrf.mxu0
      %v2881 = vadd.f32 %v2810, %v2880
      %v2882 = vpop.f32.mrf.mxu0
      %v2883 = vadd.f32 %v2812, %v2882
      %2884 = vmatprep.mubr.bf16.mxu0 %v1164
      %2885 = vmatmul.mubr.bf16.gmra.mxu0 %v1149
      %v2886 = vpop.f32.mrf.mxu0
      %v2887 = vadd.f32 %v2816, %v2886
      %v2888 = vpop.f32.mrf.mxu0
      %v2889 = vadd.f32 %v2818, %v2888
      %v2890 = vpop.f32.mrf.mxu0
      %v2891 = vpop.f32.mrf.mxu0
      %2892 = vdwg.mxu0
      %2893 = vmatprep.subr.bf16.mxu0 %v2318
      %2894 = vmatpush1.bf16.msra.mxu0 %v2317
      %2895 = vmatprep.subr.bf16.mxu0 %v2314
      %2896 = vmatpush1.bf16.msra.mxu0 %v2313
      %2897 = vmatprep.subr.bf16.mxu0 %v2310
      %2898 = vmatpush1.bf16.msra.mxu0 %v2309
      %2899 = vmatprep.subr.bf16.mxu0 %v2306
      %2900 = vmatpush1.bf16.msra.mxu0 %v2305
      %2901 = vmatprep.subr.bf16.mxu0 %v2302
      %2902 = vmatpush1.bf16.msra.mxu0 %v2301
      %2903 = vmatprep.subr.bf16.mxu0 %v2298
      %2904 = vmatpush1.bf16.msra.mxu0 %v2297
      %2905 = vmatprep.subr.bf16.mxu0 %v2294
      %2906 = vmatpush1.bf16.msra.mxu0 %v2293
      %2907 = vmatprep.subr.bf16.mxu0 %v2290
      %2908 = vmatpush1.bf16.msra.mxu0 %v2289
      %2909 = vmatprep.subr.bf16.mxu0 0
      %2910 = vmatpush2.bf16.msra.mxu0 0
      %2911 = vmatprep.subr.bf16.mxu0 0
      %2912 = vmatpush2.bf16.msra.mxu0 0
      %2913 = vmatprep.subr.bf16.mxu0 0
      %2914 = vmatpush2.bf16.msra.mxu0 0
      %2915 = vmatprep.subr.bf16.mxu0 0
      %2916 = vmatpush2.bf16.msra.mxu0 0
      %2917 = vmatprep.subr.bf16.mxu0 0
      %2918 = vmatpush2.bf16.msra.mxu0 0
      %2919 = vmatprep.subr.bf16.mxu0 0
      %2920 = vmatpush2.bf16.msra.mxu0 0
      %2921 = vmatprep.subr.bf16.mxu0 0
      %2922 = vmatpush2.bf16.msra.mxu0 0
      %2923 = vmatprep.subr.bf16.mxu0 0
      %2924 = vmatpush2.bf16.msra.mxu0 0
      %2925 = vmatprep.mubr.bf16.mxu0 0
      %2926 = vmatmul.mubr.bf16.gmra.mxu0 %v1035
      %v2927 = vpop.f32.mrf.mxu0
      %v2928 = vadd.f32 %v2857, %v2927
      %v2929 = vpop.f32.mrf.mxu0
      %v2930 = vadd.f32 %v2859, %v2929
      %v2931 = vpop.f32.mrf.mxu0
      %v2932 = vadd.f32 %v2861, %v2931
      %v2933 = vpop.f32.mrf.mxu0
      %v2934 = vadd.f32 %v2863, %v2933
      %2935 = vmatprep.mubr.bf16.mxu0 0
      %2936 = vmatmul.mubr.bf16.gmra.mxu0 %v1037
      %v2937 = vpop.f32.mrf.mxu0
      %v2938 = vadd.f32 %v2867, %v2937
      %v2939 = vpop.f32.mrf.mxu0
      %v2940 = vadd.f32 %v2869, %v2939
      %v2941 = vpop.f32.mrf.mxu0
      %v2942 = vadd.f32 %v2871, %v2941
      %v2943 = vpop.f32.mrf.mxu0
      %v2944 = vadd.f32 %v2873, %v2943
      %2945 = vmatprep.mubr.bf16.mxu0 0
      %2946 = vmatmul.mubr.bf16.gmra.mxu0 %v1039
      %v2947 = vpop.f32.mrf.mxu0
      %v2948 = vadd.f32 %v2877, %v2947
      %v2949 = vpop.f32.mrf.mxu0
      %v2950 = vadd.f32 %v2879, %v2949
      %v2951 = vpop.f32.mrf.mxu0
      %v2952 = vadd.f32 %v2881, %v2951
      %v2953 = vpop.f32.mrf.mxu0
      %v2954 = vadd.f32 %v2883, %v2953
      %2955 = vmatprep.mubr.bf16.mxu0 0
      %2956 = vmatmul.mubr.bf16.gmra.mxu0 0
      %v2957 = vpop.f32.mrf.mxu0
      %v2958 = vadd.f32 %v2887, %v2957
      %v2959 = vpop.f32.mrf.mxu0
      %v2960 = vadd.f32 %v2889, %v2959
      %v2961 = vpop.f32.mrf.mxu0
      %v2962 = vpop.f32.mrf.mxu0
      %2963 = vdwg.mxu0
      %2964 = vmatprep.subr.bf16.mxu0 %v2064
      %2965 = vmatpush1.bf16.msra.mxu0 %v2063
      %2966 = vmatprep.subr.bf16.mxu0 %v2060
      %2967 = vmatpush1.bf16.msra.mxu0 %v2059
      %2968 = vmatprep.subr.bf16.mxu0 %v2056
      %2969 = vmatpush1.bf16.msra.mxu0 %v2055
      %2970 = vmatprep.subr.bf16.mxu0 %v2052
      %2971 = vmatpush1.bf16.msra.mxu0 %v2051
      %2972 = vmatprep.subr.bf16.mxu0 %v2048
      %2973 = vmatpush1.bf16.msra.mxu0 %v2047
      %2974 = vmatprep.subr.bf16.mxu0 %v2044
      %2975 = vmatpush1.bf16.msra.mxu0 %v2043
      %2976 = vmatprep.subr.bf16.mxu0 %v2040
      %2977 = vmatpush1.bf16.msra.mxu0 %v2039
      %2978 = vmatprep.subr.bf16.mxu0 %v2036
      %2979 = vmatpush1.bf16.msra.mxu0 %v2035
      %2980 = vmatprep.subr.bf16.mxu0 %v2096
      %2981 = vmatpush2.bf16.msra.mxu0 %v2095
      %2982 = vmatprep.subr.bf16.mxu0 %v2092
      %2983 = vmatpush2.bf16.msra.mxu0 %v2091
      %2984 = vmatprep.subr.bf16.mxu0 %v2088
      %2985 = vmatpush2.bf16.msra.mxu0 %v2087
      %2986 = vmatprep.subr.bf16.mxu0 %v2084
      %2987 = vmatpush2.bf16.msra.mxu0 %v2083
      %2988 = vmatprep.subr.bf16.mxu0 %v2080
      %2989 = vmatpush2.bf16.msra.mxu0 %v2079
      %2990 = vmatprep.subr.bf16.mxu0 %v2076
      %2991 = vmatpush2.bf16.msra.mxu0 %v2075
      %2992 = vmatprep.subr.bf16.mxu0 %v2072
      %2993 = vmatpush2.bf16.msra.mxu0 %v2071
      %2994 = vmatprep.subr.bf16.mxu0 %v2068
      %2995 = vmatpush2.bf16.msra.mxu0 %v2067
      %2996 = vmatprep.mubr.bf16.mxu0 %v1056
      %2997 = vmatmul.mubr.bf16.gmra.mxu0 %v1044
      %v2998 = vpop.f32.mrf.mxu0
      %v2999 = vadd.f32 0.0, %v2998
      %v3000 = vpop.f32.mrf.mxu0
      %v3001 = vadd.f32 0.0, %v3000
      %v3002 = vpop.f32.mrf.mxu0
      %v3003 = vadd.f32 0.0, %v3002
      %v3004 = vpop.f32.mrf.mxu0
      %v3005 = vadd.f32 0.0, %v3004
      %3006 = vmatprep.mubr.bf16.mxu0 %v1064
      %3007 = vmatmul.mubr.bf16.gmra.mxu0 %v1035
      %v3008 = vpop.f32.mrf.mxu0
      %v3009 = vadd.f32 0.0, %v3008
      %v3010 = vpop.f32.mrf.mxu0
      %v3011 = vadd.f32 0.0, %v3010
      %v3012 = vpop.f32.mrf.mxu0
      %v3013 = vadd.f32 0.0, %v3012
      %v3014 = vpop.f32.mrf.mxu0
      %v3015 = vadd.f32 0.0, %v3014
      %3016 = vmatprep.mubr.bf16.mxu0 %v1072
      %3017 = vmatmul.mubr.bf16.gmra.mxu0 %v1037
      %v3018 = vpop.f32.mrf.mxu0
      %v3019 = vadd.f32 0.0, %v3018
      %v3020 = vpop.f32.mrf.mxu0
      %v3021 = vadd.f32 0.0, %v3020
      %v3022 = vpop.f32.mrf.mxu0
      %v3023 = vadd.f32 0.0, %v3022
      %v3024 = vpop.f32.mrf.mxu0
      %v3025 = vadd.f32 0.0, %v3024
      %3026 = vmatprep.mubr.bf16.mxu0 %v1075
      %3027 = vmatmul.mubr.bf16.gmra.mxu0 %v1039
      %v3028 = vpop.f32.mrf.mxu0
      %v3029 = vadd.f32 0.0, %v3028
      %v3030 = vpop.f32.mrf.mxu0
      %v3031 = vadd.f32 0.0, %v3030
      %v3032 = vpop.f32.mrf.mxu0
      %v3033 = vpop.f32.mrf.mxu0
      %3034 = vdwg.mxu0
      %3035 = vmatprep.subr.bf16.mxu0 %v2128
      %3036 = vmatpush1.bf16.msra.mxu0 %v2127
      %3037 = vmatprep.subr.bf16.mxu0 %v2124
      %3038 = vmatpush1.bf16.msra.mxu0 %v2123
      %3039 = vmatprep.subr.bf16.mxu0 %v2120
      %3040 = vmatpush1.bf16.msra.mxu0 %v2119
      %3041 = vmatprep.subr.bf16.mxu0 %v2116
      %3042 = vmatpush1.bf16.msra.mxu0 %v2115
      %3043 = vmatprep.subr.bf16.mxu0 %v2112
      %3044 = vmatpush1.bf16.msra.mxu0 %v2111
      %3045 = vmatprep.subr.bf16.mxu0 %v2108
      %3046 = vmatpush1.bf16.msra.mxu0 %v2107
      %3047 = vmatprep.subr.bf16.mxu0 %v2104
      %3048 = vmatpush1.bf16.msra.mxu0 %v2103
      %3049 = vmatprep.subr.bf16.mxu0 %v2100
      %3050 = vmatpush1.bf16.msra.mxu0 %v2099
      %3051 = vmatprep.subr.bf16.mxu0 %v2160
      %3052 = vmatpush2.bf16.msra.mxu0 %v2159
      %3053 = vmatprep.subr.bf16.mxu0 %v2156
      %3054 = vmatpush2.bf16.msra.mxu0 %v2155
      %3055 = vmatprep.subr.bf16.mxu0 %v2152
      %3056 = vmatpush2.bf16.msra.mxu0 %v2151
      %3057 = vmatprep.subr.bf16.mxu0 %v2148
      %3058 = vmatpush2.bf16.msra.mxu0 %v2147
      %3059 = vmatprep.subr.bf16.mxu0 %v2144
      %3060 = vmatpush2.bf16.msra.mxu0 %v2143
      %3061 = vmatprep.subr.bf16.mxu0 %v2140
      %3062 = vmatpush2.bf16.msra.mxu0 %v2139
      %3063 = vmatprep.subr.bf16.mxu0 %v2136
      %3064 = vmatpush2.bf16.msra.mxu0 %v2135
      %3065 = vmatprep.subr.bf16.mxu0 %v2132
      %3066 = vmatpush2.bf16.msra.mxu0 %v2131
      %3067 = vmatprep.mubr.bf16.mxu0 %v1098
      %3068 = vmatmul.mubr.bf16.gmra.mxu0 %v1083
      %v3069 = vpop.f32.mrf.mxu0
      %v3070 = vadd.f32 %v2999, %v3069
      %v3071 = vpop.f32.mrf.mxu0
      %v3072 = vadd.f32 %v3001, %v3071
      %v3073 = vpop.f32.mrf.mxu0
      %v3074 = vadd.f32 %v3003, %v3073
      %v3075 = vpop.f32.mrf.mxu0
      %v3076 = vadd.f32 %v3005, %v3075
      %3077 = vmatprep.mubr.bf16.mxu0 %v1102
      %3078 = vmatmul.mubr.bf16.gmra.mxu0 %v1085
      %v3079 = vpop.f32.mrf.mxu0
      %v3080 = vadd.f32 %v3009, %v3079
      %v3081 = vpop.f32.mrf.mxu0
      %v3082 = vadd.f32 %v3011, %v3081
      %v3083 = vpop.f32.mrf.mxu0
      %v3084 = vadd.f32 %v3013, %v3083
      %v3085 = vpop.f32.mrf.mxu0
      %v3086 = vadd.f32 %v3015, %v3085
      %3087 = vmatprep.mubr.bf16.mxu0 %v1106
      %3088 = vmatmul.mubr.bf16.gmra.mxu0 %v1087
      %v3089 = vpop.f32.mrf.mxu0
      %v3090 = vadd.f32 %v3019, %v3089
      %v3091 = vpop.f32.mrf.mxu0
      %v3092 = vadd.f32 %v3021, %v3091
      %v3093 = vpop.f32.mrf.mxu0
      %v3094 = vadd.f32 %v3023, %v3093
      %v3095 = vpop.f32.mrf.mxu0
      %v3096 = vadd.f32 %v3025, %v3095
      %3097 = vmatprep.mubr.bf16.mxu0 %v1105
      %3098 = vmatmul.mubr.bf16.gmra.mxu0 %v1086
      %v3099 = vpop.f32.mrf.mxu0
      %v3100 = vadd.f32 %v3029, %v3099
      %v3101 = vpop.f32.mrf.mxu0
      %v3102 = vadd.f32 %v3031, %v3101
      %v3103 = vpop.f32.mrf.mxu0
      %v3104 = vpop.f32.mrf.mxu0
      %3105 = vdwg.mxu0
      %3106 = vmatprep.subr.bf16.mxu0 %v2192
      %3107 = vmatpush1.bf16.msra.mxu0 %v2191
      %3108 = vmatprep.subr.bf16.mxu0 %v2188
      %3109 = vmatpush1.bf16.msra.mxu0 %v2187
      %3110 = vmatprep.subr.bf16.mxu0 %v2184
      %3111 = vmatpush1.bf16.msra.mxu0 %v2183
      %3112 = vmatprep.subr.bf16.mxu0 %v2180
      %3113 = vmatpush1.bf16.msra.mxu0 %v2179
      %3114 = vmatprep.subr.bf16.mxu0 %v2176
      %3115 = vmatpush1.bf16.msra.mxu0 %v2175
      %3116 = vmatprep.subr.bf16.mxu0 %v2172
      %3117 = vmatpush1.bf16.msra.mxu0 %v2171
      %3118 = vmatprep.subr.bf16.mxu0 %v2168
      %3119 = vmatpush1.bf16.msra.mxu0 %v2167
      %3120 = vmatprep.subr.bf16.mxu0 %v2164
      %3121 = vmatpush1.bf16.msra.mxu0 %v2163
      %3122 = vmatprep.subr.bf16.mxu0 %v2224
      %3123 = vmatpush2.bf16.msra.mxu0 %v2223
      %3124 = vmatprep.subr.bf16.mxu0 %v2220
      %3125 = vmatpush2.bf16.msra.mxu0 %v2219
      %3126 = vmatprep.subr.bf16.mxu0 %v2216
      %3127 = vmatpush2.bf16.msra.mxu0 %v2215
      %3128 = vmatprep.subr.bf16.mxu0 %v2212
      %3129 = vmatpush2.bf16.msra.mxu0 %v2211
      %3130 = vmatprep.subr.bf16.mxu0 %v2208
      %3131 = vmatpush2.bf16.msra.mxu0 %v2207
      %3132 = vmatprep.subr.bf16.mxu0 %v2204
      %3133 = vmatpush2.bf16.msra.mxu0 %v2203
      %3134 = vmatprep.subr.bf16.mxu0 %v2200
      %3135 = vmatpush2.bf16.msra.mxu0 %v2199
      %3136 = vmatprep.subr.bf16.mxu0 %v2196
      %3137 = vmatpush2.bf16.msra.mxu0 %v2195
      %3138 = vmatprep.mubr.bf16.mxu0 %v1128
      %3139 = vmatmul.mubr.bf16.gmra.mxu0 %v1113
      %v3140 = vpop.f32.mrf.mxu0
      %v3141 = vadd.f32 %v3070, %v3140
      %v3142 = vpop.f32.mrf.mxu0
      %v3143 = vadd.f32 %v3072, %v3142
      %v3144 = vpop.f32.mrf.mxu0
      %v3145 = vadd.f32 %v3074, %v3144
      %v3146 = vpop.f32.mrf.mxu0
      %v3147 = vadd.f32 %v3076, %v3146
      %3148 = vmatprep.mubr.bf16.mxu0 %v1132
      %3149 = vmatmul.mubr.bf16.gmra.mxu0 %v1115
      %v3150 = vpop.f32.mrf.mxu0
      %v3151 = vadd.f32 %v3080, %v3150
      %v3152 = vpop.f32.mrf.mxu0
      %v3153 = vadd.f32 %v3082, %v3152
      %v3154 = vpop.f32.mrf.mxu0
      %v3155 = vadd.f32 %v3084, %v3154
      %v3156 = vpop.f32.mrf.mxu0
      %v3157 = vadd.f32 %v3086, %v3156
      %3158 = vmatprep.mubr.bf16.mxu0 %v1136
      %3159 = vmatmul.mubr.bf16.gmra.mxu0 %v1117
      %v3160 = vpop.f32.mrf.mxu0
      %v3161 = vadd.f32 %v3090, %v3160
      %v3162 = vpop.f32.mrf.mxu0
      %v3163 = vadd.f32 %v3092, %v3162
      %v3164 = vpop.f32.mrf.mxu0
      %v3165 = vadd.f32 %v3094, %v3164
      %v3166 = vpop.f32.mrf.mxu0
      %v3167 = vadd.f32 %v3096, %v3166
      %3168 = vmatprep.mubr.bf16.mxu0 %v1137
      %3169 = vmatmul.mubr.bf16.gmra.mxu0 %v1116
      %v3170 = vpop.f32.mrf.mxu0
      %v3171 = vadd.f32 %v3100, %v3170
      %v3172 = vpop.f32.mrf.mxu0
      %v3173 = vadd.f32 %v3102, %v3172
      %v3174 = vpop.f32.mrf.mxu0
      %v3175 = vpop.f32.mrf.mxu0
      %3176 = vdwg.mxu0
      %3177 = vmatprep.subr.bf16.mxu0 %v2256
      %3178 = vmatpush1.bf16.msra.mxu0 %v2255
      %3179 = vmatprep.subr.bf16.mxu0 %v2252
      %3180 = vmatpush1.bf16.msra.mxu0 %v2251
      %3181 = vmatprep.subr.bf16.mxu0 %v2248
      %3182 = vmatpush1.bf16.msra.mxu0 %v2247
      %3183 = vmatprep.subr.bf16.mxu0 %v2244
      %3184 = vmatpush1.bf16.msra.mxu0 %v2243
      %3185 = vmatprep.subr.bf16.mxu0 %v2240
      %3186 = vmatpush1.bf16.msra.mxu0 %v2239
      %3187 = vmatprep.subr.bf16.mxu0 %v2236
      %3188 = vmatpush1.bf16.msra.mxu0 %v2235
      %3189 = vmatprep.subr.bf16.mxu0 %v2232
      %3190 = vmatpush1.bf16.msra.mxu0 %v2231
      %3191 = vmatprep.subr.bf16.mxu0 %v2228
      %3192 = vmatpush1.bf16.msra.mxu0 %v2227
      %3193 = vmatprep.subr.bf16.mxu0 %v2288
      %3194 = vmatpush2.bf16.msra.mxu0 %v2287
      %3195 = vmatprep.subr.bf16.mxu0 %v2284
      %3196 = vmatpush2.bf16.msra.mxu0 %v2283
      %3197 = vmatprep.subr.bf16.mxu0 %v2280
      %3198 = vmatpush2.bf16.msra.mxu0 %v2279
      %3199 = vmatprep.subr.bf16.mxu0 %v2276
      %3200 = vmatpush2.bf16.msra.mxu0 %v2275
      %3201 = vmatprep.subr.bf16.mxu0 %v2272
      %3202 = vmatpush2.bf16.msra.mxu0 %v2271
      %3203 = vmatprep.subr.bf16.mxu0 %v2268
      %3204 = vmatpush2.bf16.msra.mxu0 %v2267
      %3205 = vmatprep.subr.bf16.mxu0 %v2264
      %3206 = vmatpush2.bf16.msra.mxu0 %v2263
      %3207 = vmatprep.subr.bf16.mxu0 %v2260
      %3208 = vmatpush2.bf16.msra.mxu0 %v2259
      %3209 = vmatprep.mubr.bf16.mxu0 %v1157
      %3210 = vmatmul.mubr.bf16.gmra.mxu0 %v1144
      %v3211 = vpop.f32.mrf.mxu0
      %v3212 = vadd.f32 %v3141, %v3211
      %v3213 = vpop.f32.mrf.mxu0
      %v3214 = vadd.f32 %v3143, %v3213
      %v3215 = vpop.f32.mrf.mxu0
      %v3216 = vadd.f32 %v3145, %v3215
      %v3217 = vpop.f32.mrf.mxu0
      %v3218 = vadd.f32 %v3147, %v3217
      %3219 = vmatprep.mubr.bf16.mxu0 %v1160
      %3220 = vmatmul.mubr.bf16.gmra.mxu0 %v1146
      %v3221 = vpop.f32.mrf.mxu0
      %v3222 = vadd.f32 %v3151, %v3221
      %v3223 = vpop.f32.mrf.mxu0
      %v3224 = vadd.f32 %v3153, %v3223
      %v3225 = vpop.f32.mrf.mxu0
      %v3226 = vadd.f32 %v3155, %v3225
      %v3227 = vpop.f32.mrf.mxu0
      %v3228 = vadd.f32 %v3157, %v3227
      %3229 = vmatprep.mubr.bf16.mxu0 %v1163
      %3230 = vmatmul.mubr.bf16.gmra.mxu0 %v1148
      %v3231 = vpop.f32.mrf.mxu0
      %v3232 = vadd.f32 %v3161, %v3231
      %v3233 = vpop.f32.mrf.mxu0
      %v3234 = vadd.f32 %v3163, %v3233
      %v3235 = vpop.f32.mrf.mxu0
      %v3236 = vadd.f32 %v3165, %v3235
      %v3237 = vpop.f32.mrf.mxu0
      %v3238 = vadd.f32 %v3167, %v3237
      %3239 = vmatprep.mubr.bf16.mxu0 %v1164
      %3240 = vmatmul.mubr.bf16.gmra.mxu0 %v1149
      %v3241 = vpop.f32.mrf.mxu0
      %v3242 = vadd.f32 %v3171, %v3241
      %v3243 = vpop.f32.mrf.mxu0
      %v3244 = vadd.f32 %v3173, %v3243
      %v3245 = vpop.f32.mrf.mxu0
      %v3246 = vpop.f32.mrf.mxu0
      %3247 = vdwg.mxu0
      %3248 = vmatprep.subr.bf16.mxu0 %v2320
      %3249 = vmatpush1.bf16.msra.mxu0 %v2319
      %3250 = vmatprep.subr.bf16.mxu0 %v2316
      %3251 = vmatpush1.bf16.msra.mxu0 %v2315
      %3252 = vmatprep.subr.bf16.mxu0 %v2312
      %3253 = vmatpush1.bf16.msra.mxu0 %v2311
      %3254 = vmatprep.subr.bf16.mxu0 %v2308
      %3255 = vmatpush1.bf16.msra.mxu0 %v2307
      %3256 = vmatprep.subr.bf16.mxu0 %v2304
      %3257 = vmatpush1.bf16.msra.mxu0 %v2303
      %3258 = vmatprep.subr.bf16.mxu0 %v2300
      %3259 = vmatpush1.bf16.msra.mxu0 %v2299
      %3260 = vmatprep.subr.bf16.mxu0 %v2296
      %3261 = vmatpush1.bf16.msra.mxu0 %v2295
      %3262 = vmatprep.subr.bf16.mxu0 %v2292
      %3263 = vmatpush1.bf16.msra.mxu0 %v2291
      %3264 = vmatprep.subr.bf16.mxu0 0
      %3265 = vmatpush2.bf16.msra.mxu0 0
      %3266 = vmatprep.subr.bf16.mxu0 0
      %3267 = vmatpush2.bf16.msra.mxu0 0
      %3268 = vmatprep.subr.bf16.mxu0 0
      %3269 = vmatpush2.bf16.msra.mxu0 0
      %3270 = vmatprep.subr.bf16.mxu0 0
      %3271 = vmatpush2.bf16.msra.mxu0 0
      %3272 = vmatprep.subr.bf16.mxu0 0
      %3273 = vmatpush2.bf16.msra.mxu0 0
      %3274 = vmatprep.subr.bf16.mxu0 0
      %3275 = vmatpush2.bf16.msra.mxu0 0
      %3276 = vmatprep.subr.bf16.mxu0 0
      %3277 = vmatpush2.bf16.msra.mxu0 0
      %3278 = vmatprep.subr.bf16.mxu0 0
      %3279 = vmatpush2.bf16.msra.mxu0 0
      %3280 = vmatprep.mubr.bf16.mxu0 0
      %3281 = vmatmul.mubr.bf16.gmra.mxu0 %v1035
      %v3282 = vpop.f32.mrf.mxu0
      %v3283 = vadd.f32 %v3212, %v3282
      %v3284 = vpop.f32.mrf.mxu0
      %v3285 = vadd.f32 %v3214, %v3284
      %v3286 = vpop.f32.mrf.mxu0
      %v3287 = vadd.f32 %v3216, %v3286
      %v3288 = vpop.f32.mrf.mxu0
      %v3289 = vadd.f32 %v3218, %v3288
      %3290 = vmatprep.mubr.bf16.mxu0 0
      %3291 = vmatmul.mubr.bf16.gmra.mxu0 %v1037
      %v3292 = vpop.f32.mrf.mxu0
      %v3293 = vadd.f32 %v3222, %v3292
      %v3294 = vpop.f32.mrf.mxu0
      %v3295 = vadd.f32 %v3224, %v3294
      %v3296 = vpop.f32.mrf.mxu0
      %v3297 = vadd.f32 %v3226, %v3296
      %v3298 = vpop.f32.mrf.mxu0
      %v3299 = vadd.f32 %v3228, %v3298
      %3300 = vmatprep.mubr.bf16.mxu0 0
      %3301 = vmatmul.mubr.bf16.gmra.mxu0 %v1039
      %v3302 = vpop.f32.mrf.mxu0
      %v3303 = vadd.f32 %v3232, %v3302
      %v3304 = vpop.f32.mrf.mxu0
      %v3305 = vadd.f32 %v3234, %v3304
      %v3306 = vpop.f32.mrf.mxu0
      %v3307 = vadd.f32 %v3236, %v3306
      %v3308 = vpop.f32.mrf.mxu0
      %v3309 = vadd.f32 %v3238, %v3308
      %3310 = vmatprep.mubr.bf16.mxu0 0
      %3311 = vmatmul.mubr.bf16.gmra.mxu0 0
      %v3312 = vpop.f32.mrf.mxu0
      %v3313 = vadd.f32 %v3242, %v3312
      %v3314 = vpop.f32.mrf.mxu0
      %v3315 = vadd.f32 %v3244, %v3314
      %v3316 = vpop.f32.mrf.mxu0
      %v3317 = vpop.f32.mrf.mxu0
      %3318 = vdwg.mxu0
      %v3607 = vunpack.c.l.b16 %v288
      %v3608 = vunpack.c.h.b16 %v288
      %v3609 = vunpack.c.l.b16 %v289
      %v3610 = vunpack.c.h.b16 %v289
      %v3611 = vunpack.c.l.b16 %v290
      %v3612 = vunpack.c.h.b16 %v290
      %v3613 = vunpack.c.l.b16 %v291
      %v3614 = vunpack.c.h.b16 %v291
      %v3615 = vunpack.c.l.b16 %v292
      %v3616 = vunpack.c.h.b16 %v292
      %v3617 = vunpack.c.l.b16 %v293
      %v3618 = vunpack.c.h.b16 %v293
      %v3619 = vunpack.c.l.b16 %v294
      %v3620 = vunpack.c.h.b16 %v294
      %v3621 = vunpack.c.l.b16 %v295
      %v3622 = vunpack.c.h.b16 %v295
      %v3623 = vunpack.c.l.b16 %v296
      %v3624 = vunpack.c.h.b16 %v296
      %v3625 = vunpack.c.l.b16 %v297
      %v3626 = vunpack.c.h.b16 %v297
      %v3627 = vunpack.c.l.b16 %v298
      %v3628 = vunpack.c.h.b16 %v298
      %v3629 = vunpack.c.l.b16 %v299
      %v3630 = vunpack.c.h.b16 %v299
      %v3631 = vunpack.c.l.b16 %v300
      %v3632 = vunpack.c.h.b16 %v300
      %v3633 = vunpack.c.l.b16 %v301
      %v3634 = vunpack.c.h.b16 %v301
      %v3635 = vunpack.c.l.b16 %v302
      %v3636 = vunpack.c.h.b16 %v302
      %v3637 = vunpack.c.l.b16 %v303
      %v3638 = vunpack.c.h.b16 %v303
      %v3639 = vunpack.c.l.b16 %v304
      %v3640 = vunpack.c.h.b16 %v304
      %v3641 = vunpack.c.l.b16 %v305
      %v3642 = vunpack.c.h.b16 %v305
      %v3643 = vunpack.c.l.b16 %v306
      %v3644 = vunpack.c.h.b16 %v306
      %v3645 = vunpack.c.l.b16 %v307
      %v3646 = vunpack.c.h.b16 %v307
      %v3647 = vunpack.c.l.b16 %v308
      %v3648 = vunpack.c.h.b16 %v308
      %v3649 = vunpack.c.l.b16 %v309
      %v3650 = vunpack.c.h.b16 %v309
      %v3651 = vunpack.c.l.b16 %v310
      %v3652 = vunpack.c.h.b16 %v310
      %v3653 = vunpack.c.l.b16 %v311
      %v3654 = vunpack.c.h.b16 %v311
      %v3655 = vunpack.c.l.b16 %v312
      %v3656 = vunpack.c.h.b16 %v312
      %v3657 = vunpack.c.l.b16 %v313
      %v3658 = vunpack.c.h.b16 %v313
      %v3659 = vunpack.c.l.b16 %v314
      %v3660 = vunpack.c.h.b16 %v314
      %v3661 = vunpack.c.l.b16 %v315
      %v3662 = vunpack.c.h.b16 %v315
      %v3663 = vunpack.c.l.b16 %v316
      %v3664 = vunpack.c.h.b16 %v316
      %v3665 = vunpack.c.l.b16 %v317
      %v3666 = vunpack.c.h.b16 %v317
      %v3667 = vunpack.c.l.b16 %v318
      %v3668 = vunpack.c.h.b16 %v318
      %v3669 = vunpack.c.l.b16 %v319
      %v3670 = vunpack.c.h.b16 %v319
      %v3671 = vunpack.c.l.b16 %v320
      %v3672 = vunpack.c.h.b16 %v320
      %v3673 = vunpack.c.l.b16 %v321
      %v3674 = vunpack.c.h.b16 %v321
      %v3675 = vunpack.c.l.b16 %v322
      %v3676 = vunpack.c.h.b16 %v322
      %v3677 = vunpack.c.l.b16 %v323
      %v3678 = vunpack.c.h.b16 %v323
      %v3679 = vunpack.c.l.b16 %v324
      %v3680 = vunpack.c.h.b16 %v324
      %v3681 = vunpack.c.l.b16 %v325
      %v3682 = vunpack.c.h.b16 %v325
      %v3683 = vunpack.c.l.b16 %v326
      %v3684 = vunpack.c.h.b16 %v326
      %v3685 = vunpack.c.l.b16 %v327
      %v3686 = vunpack.c.h.b16 %v327
      %v3687 = vunpack.c.l.b16 %v328
      %v3688 = vunpack.c.h.b16 %v328
      %v3689 = vunpack.c.l.b16 %v329
      %v3690 = vunpack.c.h.b16 %v329
      %v3691 = vunpack.c.l.b16 %v330
      %v3692 = vunpack.c.h.b16 %v330
      %v3693 = vunpack.c.l.b16 %v331
      %v3694 = vunpack.c.h.b16 %v331
      %v3695 = vunpack.c.l.b16 %v332
      %v3696 = vunpack.c.h.b16 %v332
      %v3697 = vunpack.c.l.b16 %v333
      %v3698 = vunpack.c.h.b16 %v333
      %v3699 = vunpack.c.l.b16 %v334
      %v3700 = vunpack.c.h.b16 %v334
      %v3701 = vunpack.c.l.b16 %v335
      %v3702 = vunpack.c.h.b16 %v335
      %v3703 = vunpack.c.l.b16 %v336
      %v3704 = vunpack.c.h.b16 %v336
      %v3705 = vunpack.c.l.b16 %v337
      %v3706 = vunpack.c.h.b16 %v337
      %v3707 = vunpack.c.l.b16 %v338
      %v3708 = vunpack.c.h.b16 %v338
      %v3709 = vunpack.c.l.b16 %v339
      %v3710 = vunpack.c.h.b16 %v339
      %v3711 = vunpack.c.l.b16 %v340
      %v3712 = vunpack.c.h.b16 %v340
      %v3713 = vunpack.c.l.b16 %v341
      %v3714 = vunpack.c.h.b16 %v341
      %v3715 = vunpack.c.l.b16 %v342
      %v3716 = vunpack.c.h.b16 %v342
      %v3717 = vunpack.c.l.b16 %v343
      %v3718 = vunpack.c.h.b16 %v343
      %v3719 = vunpack.c.l.b16 %v344
      %v3720 = vunpack.c.h.b16 %v344
      %v3721 = vunpack.c.l.b16 %v345
      %v3722 = vunpack.c.h.b16 %v345
      %v3723 = vunpack.c.l.b16 %v346
      %v3724 = vunpack.c.h.b16 %v346
      %v3725 = vunpack.c.l.b16 %v347
      %v3726 = vunpack.c.h.b16 %v347
      %v3727 = vunpack.c.l.b16 %v348
      %v3728 = vunpack.c.h.b16 %v348
      %v3729 = vunpack.c.l.b16 %v349
      %v3730 = vunpack.c.h.b16 %v349
      %v3731 = vunpack.c.l.b16 %v350
      %v3732 = vunpack.c.h.b16 %v350
      %v3733 = vunpack.c.l.b16 %v351
      %v3734 = vunpack.c.h.b16 %v351
      %v3735 = vunpack.c.l.b16 %v352
      %v3736 = vunpack.c.h.b16 %v352
      %v3737 = vunpack.c.l.b16 %v353
      %v3738 = vunpack.c.h.b16 %v353
      %v3739 = vunpack.c.l.b16 %v354
      %v3740 = vunpack.c.h.b16 %v354
      %v3741 = vunpack.c.l.b16 %v355
      %v3742 = vunpack.c.h.b16 %v355
      %v3743 = vunpack.c.l.b16 %v356
      %v3744 = vunpack.c.h.b16 %v356
      %v3745 = vunpack.c.l.b16 %v357
      %v3746 = vunpack.c.h.b16 %v357
      %v3747 = vunpack.c.l.b16 %v358
      %v3748 = vunpack.c.h.b16 %v358
      %v3749 = vunpack.c.l.b16 %v359
      %v3750 = vunpack.c.h.b16 %v359
      %v3751 = vunpack.c.l.b16 %v360
      %v3752 = vunpack.c.h.b16 %v360
      %v3753 = vunpack.c.l.b16 %v361
      %v3754 = vunpack.c.h.b16 %v361
      %v3755 = vunpack.c.l.b16 %v362
      %v3756 = vunpack.c.h.b16 %v362
      %v3757 = vunpack.c.l.b16 %v363
      %v3758 = vunpack.c.h.b16 %v363
      %v3759 = vunpack.c.l.b16 %v364
      %v3760 = vunpack.c.h.b16 %v364
      %v3761 = vunpack.c.l.b16 %v365
      %v3762 = vunpack.c.h.b16 %v365
      %v3763 = vunpack.c.l.b16 %v366
      %v3764 = vunpack.c.h.b16 %v366
      %v3765 = vunpack.c.l.b16 %v367
      %v3766 = vunpack.c.h.b16 %v367
      %v3767 = vunpack.c.l.b16 %v368
      %v3768 = vunpack.c.h.b16 %v368
      %v3769 = vunpack.c.l.b16 %v369
      %v3770 = vunpack.c.h.b16 %v369
      %v3771 = vunpack.c.l.b16 %v370
      %v3772 = vunpack.c.h.b16 %v370
      %v3773 = vunpack.c.l.b16 %v371
      %v3774 = vunpack.c.h.b16 %v371
      %v3775 = vunpack.c.l.b16 %v372
      %v3776 = vunpack.c.h.b16 %v372
      %v3777 = vunpack.c.l.b16 %v373
      %v3778 = vunpack.c.h.b16 %v373
      %v3779 = vunpack.c.l.b16 %v374
      %v3780 = vunpack.c.h.b16 %v374
      %v3781 = vunpack.c.l.b16 %v375
      %v3782 = vunpack.c.h.b16 %v375
      %v3783 = vunpack.c.l.b16 %v376
      %v3784 = vunpack.c.h.b16 %v376
      %v3785 = vunpack.c.l.b16 %v377
      %v3786 = vunpack.c.h.b16 %v377
      %v3787 = vunpack.c.l.b16 %v378
      %v3788 = vunpack.c.h.b16 %v378
      %v3789 = vunpack.c.l.b16 %v379
      %v3790 = vunpack.c.h.b16 %v379
      %v3791 = vunpack.c.l.b16 %v380
      %v3792 = vunpack.c.h.b16 %v380
      %v3793 = vunpack.c.l.b16 %v381
      %v3794 = vunpack.c.h.b16 %v381
      %v3795 = vunpack.c.l.b16 %v382
      %v3796 = vunpack.c.h.b16 %v382
      %v3797 = vunpack.c.l.b16 %v383
      %v3798 = vunpack.c.h.b16 %v383
      %v3799 = vunpack.c.l.b16 %v384
      %v3800 = vunpack.c.h.b16 %v384
      %v3801 = vunpack.c.l.b16 %v385
      %v3802 = vunpack.c.h.b16 %v385
      %v3803 = vunpack.c.l.b16 %v386
      %v3804 = vunpack.c.h.b16 %v386
      %v3805 = vunpack.c.l.b16 %v387
      %v3806 = vunpack.c.h.b16 %v387
      %v3807 = vunpack.c.l.b16 %v388
      %v3808 = vunpack.c.h.b16 %v388
      %v3809 = vunpack.c.l.b16 %v389
      %v3810 = vunpack.c.h.b16 %v389
      %v3811 = vunpack.c.l.b16 %v390
      %v3812 = vunpack.c.h.b16 %v390
      %v3813 = vunpack.c.l.b16 %v391
      %v3814 = vunpack.c.h.b16 %v391
      %v3815 = vunpack.c.l.b16 %v392
      %v3816 = vunpack.c.h.b16 %v392
      %v3817 = vunpack.c.l.b16 %v393
      %v3818 = vunpack.c.h.b16 %v393
      %v3819 = vunpack.c.l.b16 %v394
      %v3820 = vunpack.c.h.b16 %v394
      %v3821 = vunpack.c.l.b16 %v395
      %v3822 = vunpack.c.h.b16 %v395
      %v3823 = vunpack.c.l.b16 %v396
      %v3824 = vunpack.c.h.b16 %v396
      %v3825 = vunpack.c.l.b16 %v397
      %v3826 = vunpack.c.h.b16 %v397
      %v3827 = vunpack.c.l.b16 %v398
      %v3828 = vunpack.c.h.b16 %v398
      %v3829 = vunpack.c.l.b16 %v399
      %v3830 = vunpack.c.h.b16 %v399
      %v3831 = vunpack.c.l.b16 %v400
      %v3832 = vunpack.c.h.b16 %v400
      %v3833 = vunpack.c.l.b16 %v401
      %v3834 = vunpack.c.h.b16 %v401
      %v3835 = vunpack.c.l.b16 %v402
      %v3836 = vunpack.c.h.b16 %v402
      %v3837 = vunpack.c.l.b16 %v403
      %v3838 = vunpack.c.h.b16 %v403
      %v3839 = vunpack.c.l.b16 %v404
      %v3840 = vunpack.c.h.b16 %v404
      %v3841 = vunpack.c.l.b16 %v405
      %v3842 = vunpack.c.h.b16 %v405
      %v3843 = vunpack.c.l.b16 %v406
      %v3844 = vunpack.c.h.b16 %v406
      %v3845 = vunpack.c.l.b16 %v407
      %v3846 = vunpack.c.h.b16 %v407
      %v3847 = vunpack.c.l.b16 %v408
      %v3848 = vunpack.c.h.b16 %v408
      %v3849 = vunpack.c.l.b16 %v409
      %v3850 = vunpack.c.h.b16 %v409
      %v3851 = vunpack.c.l.b16 %v410
      %v3852 = vunpack.c.h.b16 %v410
      %v3853 = vunpack.c.l.b16 %v411
      %v3854 = vunpack.c.h.b16 %v411
      %v3855 = vunpack.c.l.b16 %v412
      %v3856 = vunpack.c.h.b16 %v412
      %v3857 = vunpack.c.l.b16 %v413
      %v3858 = vunpack.c.h.b16 %v413
      %v3859 = vunpack.c.l.b16 %v414
      %v3860 = vunpack.c.h.b16 %v414
      %v3861 = vunpack.c.l.b16 %v415
      %v3862 = vunpack.c.h.b16 %v415
      %v3863 = vunpack.c.l.b16 %v416
      %v3864 = vunpack.c.h.b16 %v416
      %v3865 = vunpack.c.l.b16 %v417
      %v3866 = vunpack.c.h.b16 %v417
      %v3867 = vunpack.c.l.b16 %v418
      %v3868 = vunpack.c.h.b16 %v418
      %v3869 = vunpack.c.l.b16 %v419
      %v3870 = vunpack.c.h.b16 %v419
      %v3871 = vunpack.c.l.b16 %v420
      %v3872 = vunpack.c.h.b16 %v420
      %v3873 = vunpack.c.l.b16 %v421
      %v3874 = vunpack.c.h.b16 %v421
      %v3875 = vunpack.c.l.b16 %v422
      %v3876 = vunpack.c.h.b16 %v422
      %v3877 = vunpack.c.l.b16 %v423
      %v3878 = vunpack.c.h.b16 %v423
      %v3879 = vunpack.c.l.b16 %v424
      %v3880 = vunpack.c.h.b16 %v424
      %v3881 = vunpack.c.l.b16 %v425
      %v3882 = vunpack.c.h.b16 %v425
      %v3883 = vunpack.c.l.b16 %v426
      %v3884 = vunpack.c.h.b16 %v426
      %v3885 = vunpack.c.l.b16 %v427
      %v3886 = vunpack.c.h.b16 %v427
      %v3887 = vunpack.c.l.b16 %v428
      %v3888 = vunpack.c.h.b16 %v428
      %v3889 = vunpack.c.l.b16 %v429
      %v3890 = vunpack.c.h.b16 %v429
      %v3891 = vunpack.c.l.b16 %v430
      %v3892 = vunpack.c.h.b16 %v430
      %v3893 = vunpack.c.l.b16 %v431
      %v3894 = vunpack.c.h.b16 %v431
      %v3895 = vunpack.c.l.b16 %v432
      %v3896 = vunpack.c.h.b16 %v432
      %v3897 = vunpack.c.l.b16 %v433
      %v3898 = vunpack.c.h.b16 %v433
      %v3899 = vunpack.c.l.b16 %v434
      %v3900 = vunpack.c.h.b16 %v434
      %v3901 = vunpack.c.l.b16 %v435
      %v3902 = vunpack.c.h.b16 %v435
      %v3903 = vunpack.c.l.b16 %v436
      %v3904 = vunpack.c.h.b16 %v436
      %v3905 = vunpack.c.l.b16 %v437
      %v3906 = vunpack.c.h.b16 %v437
      %v3907 = vunpack.c.l.b16 %v438
      %v3908 = vunpack.c.h.b16 %v438
      %v3909 = vunpack.c.l.b16 %v439
      %v3910 = vunpack.c.h.b16 %v439
      %v3911 = vunpack.c.l.b16 %v440
      %v3912 = vunpack.c.h.b16 %v440
      %v3913 = vunpack.c.l.b16 %v441
      %v3914 = vunpack.c.h.b16 %v441
      %v3915 = vunpack.c.l.b16 %v442
      %v3916 = vunpack.c.h.b16 %v442
      %v3917 = vunpack.c.l.b16 %v443
      %v3918 = vunpack.c.h.b16 %v443
      %v3919 = vunpack.c.l.b16 %v444
      %v3920 = vunpack.c.h.b16 %v444
      %v3921 = vunpack.c.l.b16 %v445
      %v3922 = vunpack.c.h.b16 %v445
      %v3923 = vunpack.c.l.b16 %v446
      %v3924 = vunpack.c.h.b16 %v446
      %v3925 = vunpack.c.l.b16 %v447
      %v3926 = vunpack.c.h.b16 %v447
      %v3927 = vunpack.c.l.b16 %v448
      %v3928 = vunpack.c.h.b16 %v448
      %v3929 = vunpack.c.l.b16 %v449
      %v3930 = vunpack.c.h.b16 %v449
      %v3931 = vunpack.c.l.b16 %v450
      %v3932 = vunpack.c.h.b16 %v450
      %v3933 = vunpack.c.l.b16 %v451
      %v3934 = vunpack.c.h.b16 %v451
      %v3935 = vunpack.c.l.b16 %v452
      %v3936 = vunpack.c.h.b16 %v452
      %v3937 = vunpack.c.l.b16 %v453
      %v3938 = vunpack.c.h.b16 %v453
      %v3939 = vunpack.c.l.b16 %v454
      %v3940 = vunpack.c.h.b16 %v454
      %v3941 = vunpack.c.l.b16 %v455
      %v3942 = vunpack.c.h.b16 %v455
      %v3943 = vunpack.c.l.b16 %v456
      %v3944 = vunpack.c.h.b16 %v456
      %v3945 = vunpack.c.l.b16 %v457
      %v3946 = vunpack.c.h.b16 %v457
      %v3947 = vunpack.c.l.b16 %v458
      %v3948 = vunpack.c.h.b16 %v458
      %v3949 = vunpack.c.l.b16 %v459
      %v3950 = vunpack.c.h.b16 %v459
      %v3951 = vunpack.c.l.b16 %v460
      %v3952 = vunpack.c.h.b16 %v460
      %v3953 = vunpack.c.l.b16 %v461
      %v3954 = vunpack.c.h.b16 %v461
      %v3955 = vunpack.c.l.b16 %v462
      %v3956 = vunpack.c.h.b16 %v462
      %v3957 = vunpack.c.l.b16 %v463
      %v3958 = vunpack.c.h.b16 %v463
      %v3959 = vunpack.c.l.b16 %v464
      %v3960 = vunpack.c.h.b16 %v464
      %v3961 = vunpack.c.l.b16 %v465
      %v3962 = vunpack.c.h.b16 %v465
      %v3963 = vunpack.c.l.b16 %v466
      %v3964 = vunpack.c.h.b16 %v466
      %v3965 = vunpack.c.l.b16 %v467
      %v3966 = vunpack.c.h.b16 %v467
      %v3967 = vunpack.c.l.b16 %v468
      %v3968 = vunpack.c.h.b16 %v468
      %v3969 = vunpack.c.l.b16 %v469
      %v3970 = vunpack.c.h.b16 %v469
      %v3971 = vunpack.c.l.b16 %v470
      %v3972 = vunpack.c.h.b16 %v470
      %v3973 = vunpack.c.l.b16 %v471
      %v3974 = vunpack.c.h.b16 %v471
      %v3975 = vunpack.c.l.b16 %v472
      %v3976 = vunpack.c.h.b16 %v472
      %v3977 = vunpack.c.l.b16 %v473
      %v3978 = vunpack.c.h.b16 %v473
      %v3979 = vunpack.c.l.b16 %v474
      %v3980 = vunpack.c.h.b16 %v474
      %v3981 = vunpack.c.l.b16 %v475
      %v3982 = vunpack.c.h.b16 %v475
      %v3983 = vunpack.c.l.b16 %v476
      %v3984 = vunpack.c.h.b16 %v476
      %v3985 = vunpack.c.l.b16 %v477
      %v3986 = vunpack.c.h.b16 %v477
      %v3987 = vunpack.c.l.b16 %v478
      %v3988 = vunpack.c.h.b16 %v478
      %v3989 = vunpack.c.l.b16 %v479
      %v3990 = vunpack.c.h.b16 %v479
      %v3991 = vunpack.c.l.b16 %v480
      %v3992 = vunpack.c.h.b16 %v480
      %v3993 = vunpack.c.l.b16 %v481
      %v3994 = vunpack.c.h.b16 %v481
      %v3995 = vunpack.c.l.b16 %v482
      %v3996 = vunpack.c.h.b16 %v482
      %v3997 = vunpack.c.l.b16 %v483
      %v3998 = vunpack.c.h.b16 %v483
      %v3999 = vunpack.c.l.b16 %v484
      %v4000 = vunpack.c.h.b16 %v484
      %v4001 = vunpack.c.l.b16 %v485
      %v4002 = vunpack.c.h.b16 %v485
      %v4003 = vunpack.c.l.b16 %v486
      %v4004 = vunpack.c.h.b16 %v486
      %v4005 = vunpack.c.l.b16 %v487
      %v4006 = vunpack.c.h.b16 %v487
      %v4007 = vunpack.c.l.b16 %v488
      %v4008 = vunpack.c.h.b16 %v488
      %v4009 = vunpack.c.l.b16 %v489
      %v4010 = vunpack.c.h.b16 %v489
      %v4011 = vunpack.c.l.b16 %v490
      %v4012 = vunpack.c.h.b16 %v490
      %v4013 = vunpack.c.l.b16 %v491
      %v4014 = vunpack.c.h.b16 %v491
      %v4015 = vunpack.c.l.b16 %v492
      %v4016 = vunpack.c.h.b16 %v492
      %v4017 = vunpack.c.l.b16 %v493
      %v4018 = vunpack.c.h.b16 %v493
      %v4019 = vunpack.c.l.b16 %v494
      %v4020 = vunpack.c.h.b16 %v494
      %v4021 = vunpack.c.l.b16 %v495
      %v4022 = vunpack.c.h.b16 %v495
      %v4023 = vunpack.c.l.b16 %v496
      %v4024 = vunpack.c.h.b16 %v496
      %v4025 = vunpack.c.l.b16 %v497
      %v4026 = vunpack.c.h.b16 %v497
      %v4027 = vunpack.c.l.b16 %v498
      %v4028 = vunpack.c.h.b16 %v498
      %v4029 = vunpack.c.l.b16 %v499
      %v4030 = vunpack.c.h.b16 %v499
      %v4031 = vunpack.c.l.b16 %v500
      %v4032 = vunpack.c.h.b16 %v500
      %v4033 = vunpack.c.l.b16 %v501
      %v4034 = vunpack.c.h.b16 %v501
      %v4035 = vunpack.c.l.b16 %v502
      %v4036 = vunpack.c.h.b16 %v502
      %v4037 = vunpack.c.l.b16 %v503
      %v4038 = vunpack.c.h.b16 %v503
      %v4039 = vunpack.c.l.b16 %v504
      %v4040 = vunpack.c.h.b16 %v504
      %v4041 = vunpack.c.l.b16 %v505
      %v4042 = vunpack.c.h.b16 %v505
      %v4043 = vunpack.c.l.b16 %v506
      %v4044 = vunpack.c.h.b16 %v506
      %v4045 = vunpack.c.l.b16 %v507
      %v4046 = vunpack.c.h.b16 %v507
      %v4047 = vunpack.c.l.b16 %v508
      %v4048 = vunpack.c.h.b16 %v508
      %v4049 = vunpack.c.l.b16 %v509
      %v4050 = vunpack.c.h.b16 %v509
      %v4051 = vunpack.c.l.b16 %v510
      %v4052 = vunpack.c.h.b16 %v510
      %v4053 = vunpack.c.l.b16 %v511
      %v4054 = vunpack.c.h.b16 %v511
      %v4055 = vunpack.c.l.b16 %v512
      %v4056 = vunpack.c.h.b16 %v512
      %v4057 = vunpack.c.l.b16 %v513
      %v4058 = vunpack.c.h.b16 %v513
      %v4059 = vunpack.c.l.b16 %v514
      %v4060 = vunpack.c.h.b16 %v514
      %v4061 = vunpack.c.l.b16 %v515
      %v4062 = vunpack.c.h.b16 %v515
      %v4063 = vunpack.c.l.b16 %v516
      %v4064 = vunpack.c.h.b16 %v516
      %v4065 = vunpack.c.l.b16 %v517
      %v4066 = vunpack.c.h.b16 %v517
      %v4067 = vunpack.c.l.b16 %v518
      %v4068 = vunpack.c.h.b16 %v518
      %v4069 = vunpack.c.l.b16 %v519
      %v4070 = vunpack.c.h.b16 %v519
      %v4071 = vunpack.c.l.b16 %v520
      %v4072 = vunpack.c.h.b16 %v520
      %v4073 = vunpack.c.l.b16 %v521
      %v4074 = vunpack.c.h.b16 %v521
      %v4075 = vunpack.c.l.b16 %v522
      %v4076 = vunpack.c.h.b16 %v522
      %v4077 = vunpack.c.l.b16 %v523
      %v4078 = vunpack.c.h.b16 %v523
      %v4079 = vunpack.c.l.b16 %v524
      %v4080 = vunpack.c.h.b16 %v524
      %v4081 = vunpack.c.l.b16 %v525
      %v4082 = vunpack.c.h.b16 %v525
      %v4083 = vunpack.c.l.b16 %v526
      %v4084 = vunpack.c.h.b16 %v526
      %v4085 = vunpack.c.l.b16 %v527
      %v4086 = vunpack.c.h.b16 %v527
      %v4087 = vunpack.c.l.b16 %v528
      %v4088 = vunpack.c.h.b16 %v528
      %v4089 = vunpack.c.l.b16 %v529
      %v4090 = vunpack.c.h.b16 %v529
      %v4091 = vunpack.c.l.b16 %v530
      %v4092 = vunpack.c.h.b16 %v530
      %v4093 = vunpack.c.l.b16 %v531
      %v4094 = vunpack.c.h.b16 %v531
      %v4095 = vunpack.c.l.b16 %v532
      %v4096 = vunpack.c.h.b16 %v532
      %v4097 = vunpack.c.l.b16 %v533
      %v4098 = vunpack.c.h.b16 %v533
      %v4099 = vunpack.c.l.b16 %v534
      %v4100 = vunpack.c.h.b16 %v534
      %v4101 = vunpack.c.l.b16 %v535
      %v4102 = vunpack.c.h.b16 %v535
      %v4103 = vunpack.c.l.b16 %v536
      %v4104 = vunpack.c.h.b16 %v536
      %v4105 = vunpack.c.l.b16 %v537
      %v4106 = vunpack.c.h.b16 %v537
      %v4107 = vunpack.c.l.b16 %v538
      %v4108 = vunpack.c.h.b16 %v538
      %v4109 = vunpack.c.l.b16 %v539
      %v4110 = vunpack.c.h.b16 %v539
      %v4111 = vunpack.c.l.b16 %v540
      %v4112 = vunpack.c.h.b16 %v540
      %v4113 = vunpack.c.l.b16 %v541
      %v4114 = vunpack.c.h.b16 %v541
      %v4115 = vunpack.c.l.b16 %v542
      %v4116 = vunpack.c.h.b16 %v542
      %v4117 = vunpack.c.l.b16 %v543
      %v4118 = vunpack.c.h.b16 %v543
      %v4119 = vunpack.c.l.b16 %v544
      %v4120 = vunpack.c.h.b16 %v544
      %v4121 = vunpack.c.l.b16 %v545
      %v4122 = vunpack.c.h.b16 %v545
      %v4123 = vunpack.c.l.b16 %v546
      %v4124 = vunpack.c.h.b16 %v546
      %v4125 = vunpack.c.l.b16 %v547
      %v4126 = vunpack.c.h.b16 %v547
      %v4127 = vunpack.c.l.b16 %v548
      %v4128 = vunpack.c.h.b16 %v548
      %v4129 = vunpack.c.l.b16 %v549
      %v4130 = vunpack.c.h.b16 %v549
      %v4131 = vunpack.c.l.b16 %v550
      %v4132 = vunpack.c.h.b16 %v550
      %v4133 = vunpack.c.l.b16 %v551
      %v4134 = vunpack.c.h.b16 %v551
      %v4135 = vunpack.c.l.b16 %v552
      %v4136 = vunpack.c.h.b16 %v552
      %v4137 = vunpack.c.l.b16 %v553
      %v4138 = vunpack.c.h.b16 %v553
      %v4139 = vunpack.c.l.b16 %v554
      %v4140 = vunpack.c.h.b16 %v554
      %v4141 = vunpack.c.l.b16 %v555
      %v4142 = vunpack.c.h.b16 %v555
      %v4143 = vunpack.c.l.b16 %v556
      %v4144 = vunpack.c.h.b16 %v556
      %v4145 = vunpack.c.l.b16 %v557
      %v4146 = vunpack.c.h.b16 %v557
      %v4147 = vunpack.c.l.b16 %v558
      %v4148 = vunpack.c.h.b16 %v558
      %v4149 = vunpack.c.l.b16 %v559
      %v4150 = vunpack.c.h.b16 %v559
      %v4151 = vunpack.c.l.b16 %v560
      %v4152 = vunpack.c.h.b16 %v560
      %v4153 = vunpack.c.l.b16 %v561
      %v4154 = vunpack.c.h.b16 %v561
      %v4155 = vunpack.c.l.b16 %v562
      %v4156 = vunpack.c.h.b16 %v562
      %v4157 = vunpack.c.l.b16 %v563
      %v4158 = vunpack.c.h.b16 %v563
      %v4159 = vunpack.c.l.b16 %v564
      %v4160 = vunpack.c.h.b16 %v564
      %v4161 = vunpack.c.l.b16 %v565
      %v4162 = vunpack.c.h.b16 %v565
      %v4163 = vunpack.c.l.b16 %v566
      %v4164 = vunpack.c.h.b16 %v566
      %v4165 = vunpack.c.l.b16 %v567
      %v4166 = vunpack.c.h.b16 %v567
      %v4167 = vunpack.c.l.b16 %v568
      %v4168 = vunpack.c.h.b16 %v568
      %v4169 = vunpack.c.l.b16 %v569
      %v4170 = vunpack.c.h.b16 %v569
      %v4171 = vunpack.c.l.b16 %v570
      %v4172 = vunpack.c.h.b16 %v570
      %v4173 = vunpack.c.l.b16 %v571
      %v4174 = vunpack.c.h.b16 %v571
      %v4175 = vunpack.c.l.b16 %v572
      %v4176 = vunpack.c.h.b16 %v572
      %v4177 = vunpack.c.l.b16 %v573
      %v4178 = vunpack.c.h.b16 %v573
      %v4179 = vunpack.c.l.b16 %v574
      %v4180 = vunpack.c.h.b16 %v574
      %v4181 = vunpack.c.l.b16 %v575
      %v4182 = vunpack.c.h.b16 %v575
      %v4183 = vpack.c.b16 %v3611, %v3607
      %v4184 = vpack.c.b16 %v3612, %v3608
      %v4185 = vpack.c.b16 %v3613, %v3609
      %v4186 = vpack.c.b16 %v3614, %v3610
      %v4187 = vpack.c.b16 %v3619, %v3615
      %v4188 = vpack.c.b16 %v3620, %v3616
      %v4189 = vpack.c.b16 %v3621, %v3617
      %v4190 = vpack.c.b16 %v3622, %v3618
      %v4191 = vpack.c.b16 %v3627, %v3623
      %v4192 = vpack.c.b16 %v3628, %v3624
      %v4193 = vpack.c.b16 %v3629, %v3625
      %v4194 = vpack.c.b16 %v3630, %v3626
      %v4195 = vpack.c.b16 %v3635, %v3631
      %v4196 = vpack.c.b16 %v3636, %v3632
      %v4197 = vpack.c.b16 %v3637, %v3633
      %v4198 = vpack.c.b16 %v3638, %v3634
      %v4199 = vpack.c.b16 %v3643, %v3639
      %v4200 = vpack.c.b16 %v3644, %v3640
      %v4201 = vpack.c.b16 %v3645, %v3641
      %v4202 = vpack.c.b16 %v3646, %v3642
      %v4203 = vpack.c.b16 %v3651, %v3647
      %v4204 = vpack.c.b16 %v3652, %v3648
      %v4205 = vpack.c.b16 %v3653, %v3649
      %v4206 = vpack.c.b16 %v3654, %v3650
      %v4207 = vpack.c.b16 %v3659, %v3655
      %v4208 = vpack.c.b16 %v3660, %v3656
      %v4209 = vpack.c.b16 %v3661, %v3657
      %v4210 = vpack.c.b16 %v3662, %v3658
      %v4211 = vpack.c.b16 %v3667, %v3663
      %v4212 = vpack.c.b16 %v3668, %v3664
      %v4213 = vpack.c.b16 %v3669, %v3665
      %v4214 = vpack.c.b16 %v3670, %v3666
      %v4215 = vpack.c.b16 %v3675, %v3671
      %v4216 = vpack.c.b16 %v3676, %v3672
      %v4217 = vpack.c.b16 %v3677, %v3673
      %v4218 = vpack.c.b16 %v3678, %v3674
      %v4219 = vpack.c.b16 %v3683, %v3679
      %v4220 = vpack.c.b16 %v3684, %v3680
      %v4221 = vpack.c.b16 %v3685, %v3681
      %v4222 = vpack.c.b16 %v3686, %v3682
      %v4223 = vpack.c.b16 %v3691, %v3687
      %v4224 = vpack.c.b16 %v3692, %v3688
      %v4225 = vpack.c.b16 %v3693, %v3689
      %v4226 = vpack.c.b16 %v3694, %v3690
      %v4227 = vpack.c.b16 %v3699, %v3695
      %v4228 = vpack.c.b16 %v3700, %v3696
      %v4229 = vpack.c.b16 %v3701, %v3697
      %v4230 = vpack.c.b16 %v3702, %v3698
      %v4231 = vpack.c.b16 %v3707, %v3703
      %v4232 = vpack.c.b16 %v3708, %v3704
      %v4233 = vpack.c.b16 %v3709, %v3705
      %v4234 = vpack.c.b16 %v3710, %v3706
      %v4235 = vpack.c.b16 %v3715, %v3711
      %v4236 = vpack.c.b16 %v3716, %v3712
      %v4237 = vpack.c.b16 %v3717, %v3713
      %v4238 = vpack.c.b16 %v3718, %v3714
      %v4239 = vpack.c.b16 %v3723, %v3719
      %v4240 = vpack.c.b16 %v3724, %v3720
      %v4241 = vpack.c.b16 %v3725, %v3721
      %v4242 = vpack.c.b16 %v3726, %v3722
      %v4243 = vpack.c.b16 %v3731, %v3727
      %v4244 = vpack.c.b16 %v3732, %v3728
      %v4245 = vpack.c.b16 %v3733, %v3729
      %v4246 = vpack.c.b16 %v3734, %v3730
      %v4247 = vpack.c.b16 %v3739, %v3735
      %v4248 = vpack.c.b16 %v3740, %v3736
      %v4249 = vpack.c.b16 %v3741, %v3737
      %v4250 = vpack.c.b16 %v3742, %v3738
      %v4251 = vpack.c.b16 %v3747, %v3743
      %v4252 = vpack.c.b16 %v3748, %v3744
      %v4253 = vpack.c.b16 %v3749, %v3745
      %v4254 = vpack.c.b16 %v3750, %v3746
      %v4255 = vpack.c.b16 %v3755, %v3751
      %v4256 = vpack.c.b16 %v3756, %v3752
      %v4257 = vpack.c.b16 %v3757, %v3753
      %v4258 = vpack.c.b16 %v3758, %v3754
      %v4259 = vpack.c.b16 %v3763, %v3759
      %v4260 = vpack.c.b16 %v3764, %v3760
      %v4261 = vpack.c.b16 %v3765, %v3761
      %v4262 = vpack.c.b16 %v3766, %v3762
      %v4263 = vpack.c.b16 %v3771, %v3767
      %v4264 = vpack.c.b16 %v3772, %v3768
      %v4265 = vpack.c.b16 %v3773, %v3769
      %v4266 = vpack.c.b16 %v3774, %v3770
      %v4267 = vpack.c.b16 %v3779, %v3775
      %v4268 = vpack.c.b16 %v3780, %v3776
      %v4269 = vpack.c.b16 %v3781, %v3777
      %v4270 = vpack.c.b16 %v3782, %v3778
      %v4271 = vpack.c.b16 %v3787, %v3783
      %v4272 = vpack.c.b16 %v3788, %v3784
      %v4273 = vpack.c.b16 %v3789, %v3785
      %v4274 = vpack.c.b16 %v3790, %v3786
      %v4275 = vpack.c.b16 %v3795, %v3791
      %v4276 = vpack.c.b16 %v3796, %v3792
      %v4277 = vpack.c.b16 %v3797, %v3793
      %v4278 = vpack.c.b16 %v3798, %v3794
      %v4279 = vpack.c.b16 %v3803, %v3799
      %v4280 = vpack.c.b16 %v3804, %v3800
      %v4281 = vpack.c.b16 %v3805, %v3801
      %v4282 = vpack.c.b16 %v3806, %v3802
      %v4283 = vpack.c.b16 %v3811, %v3807
      %v4284 = vpack.c.b16 %v3812, %v3808
      %v4285 = vpack.c.b16 %v3813, %v3809
      %v4286 = vpack.c.b16 %v3814, %v3810
      %v4287 = vpack.c.b16 %v3819, %v3815
      %v4288 = vpack.c.b16 %v3820, %v3816
      %v4289 = vpack.c.b16 %v3821, %v3817
      %v4290 = vpack.c.b16 %v3822, %v3818
      %v4291 = vpack.c.b16 %v3827, %v3823
      %v4292 = vpack.c.b16 %v3828, %v3824
      %v4293 = vpack.c.b16 %v3829, %v3825
      %v4294 = vpack.c.b16 %v3830, %v3826
      %v4295 = vpack.c.b16 %v3835, %v3831
      %v4296 = vpack.c.b16 %v3836, %v3832
      %v4297 = vpack.c.b16 %v3837, %v3833
      %v4298 = vpack.c.b16 %v3838, %v3834
      %v4299 = vpack.c.b16 %v3843, %v3839
      %v4300 = vpack.c.b16 %v3844, %v3840
      %v4301 = vpack.c.b16 %v3845, %v3841
      %v4302 = vpack.c.b16 %v3846, %v3842
      %v4303 = vpack.c.b16 %v3851, %v3847
      %v4304 = vpack.c.b16 %v3852, %v3848
      %v4305 = vpack.c.b16 %v3853, %v3849
      %v4306 = vpack.c.b16 %v3854, %v3850
      %v4307 = vpack.c.b16 %v3859, %v3855
      %v4308 = vpack.c.b16 %v3860, %v3856
      %v4309 = vpack.c.b16 %v3861, %v3857
      %v4310 = vpack.c.b16 %v3862, %v3858
      %v4311 = vpack.c.b16 %v3867, %v3863
      %v4312 = vpack.c.b16 %v3868, %v3864
      %v4313 = vpack.c.b16 %v3869, %v3865
      %v4314 = vpack.c.b16 %v3870, %v3866
      %v4315 = vpack.c.b16 %v3875, %v3871
      %v4316 = vpack.c.b16 %v3876, %v3872
      %v4317 = vpack.c.b16 %v3877, %v3873
      %v4318 = vpack.c.b16 %v3878, %v3874
      %v4319 = vpack.c.b16 %v3883, %v3879
      %v4320 = vpack.c.b16 %v3884, %v3880
      %v4321 = vpack.c.b16 %v3885, %v3881
      %v4322 = vpack.c.b16 %v3886, %v3882
      %v4323 = vpack.c.b16 %v3891, %v3887
      %v4324 = vpack.c.b16 %v3892, %v3888
      %v4325 = vpack.c.b16 %v3893, %v3889
      %v4326 = vpack.c.b16 %v3894, %v3890
      %v4327 = vpack.c.b16 %v3899, %v3895
      %v4328 = vpack.c.b16 %v3900, %v3896
      %v4329 = vpack.c.b16 %v3901, %v3897
      %v4330 = vpack.c.b16 %v3902, %v3898
      %v4331 = vpack.c.b16 %v3907, %v3903
      %v4332 = vpack.c.b16 %v3908, %v3904
      %v4333 = vpack.c.b16 %v3909, %v3905
      %v4334 = vpack.c.b16 %v3910, %v3906
      %v4335 = vpack.c.b16 %v3915, %v3911
      %v4336 = vpack.c.b16 %v3916, %v3912
      %v4337 = vpack.c.b16 %v3917, %v3913
      %v4338 = vpack.c.b16 %v3918, %v3914
      %v4339 = vpack.c.b16 %v3923, %v3919
      %v4340 = vpack.c.b16 %v3924, %v3920
      %v4341 = vpack.c.b16 %v3925, %v3921
      %v4342 = vpack.c.b16 %v3926, %v3922
      %v4343 = vpack.c.b16 %v3931, %v3927
      %v4344 = vpack.c.b16 %v3932, %v3928
      %v4345 = vpack.c.b16 %v3933, %v3929
      %v4346 = vpack.c.b16 %v3934, %v3930
      %v4347 = vpack.c.b16 %v3939, %v3935
      %v4348 = vpack.c.b16 %v3940, %v3936
      %v4349 = vpack.c.b16 %v3941, %v3937
      %v4350 = vpack.c.b16 %v3942, %v3938
      %v4351 = vpack.c.b16 %v3947, %v3943
      %v4352 = vpack.c.b16 %v3948, %v3944
      %v4353 = vpack.c.b16 %v3949, %v3945
      %v4354 = vpack.c.b16 %v3950, %v3946
      %v4355 = vpack.c.b16 %v3955, %v3951
      %v4356 = vpack.c.b16 %v3956, %v3952
      %v4357 = vpack.c.b16 %v3957, %v3953
      %v4358 = vpack.c.b16 %v3958, %v3954
      %v4359 = vpack.c.b16 %v3963, %v3959
      %v4360 = vpack.c.b16 %v3964, %v3960
      %v4361 = vpack.c.b16 %v3965, %v3961
      %v4362 = vpack.c.b16 %v3966, %v3962
      %v4363 = vpack.c.b16 %v3971, %v3967
      %v4364 = vpack.c.b16 %v3972, %v3968
      %v4365 = vpack.c.b16 %v3973, %v3969
      %v4366 = vpack.c.b16 %v3974, %v3970
      %v4367 = vpack.c.b16 %v3979, %v3975
      %v4368 = vpack.c.b16 %v3980, %v3976
      %v4369 = vpack.c.b16 %v3981, %v3977
      %v4370 = vpack.c.b16 %v3982, %v3978
      %v4371 = vpack.c.b16 %v3987, %v3983
      %v4372 = vpack.c.b16 %v3988, %v3984
      %v4373 = vpack.c.b16 %v3989, %v3985
      %v4374 = vpack.c.b16 %v3990, %v3986
      %v4375 = vpack.c.b16 %v3995, %v3991
      %v4376 = vpack.c.b16 %v3996, %v3992
      %v4377 = vpack.c.b16 %v3997, %v3993
      %v4378 = vpack.c.b16 %v3998, %v3994
      %v4379 = vpack.c.b16 %v4003, %v3999
      %v4380 = vpack.c.b16 %v4004, %v4000
      %v4381 = vpack.c.b16 %v4005, %v4001
      %v4382 = vpack.c.b16 %v4006, %v4002
      %v4383 = vpack.c.b16 %v4011, %v4007
      %v4384 = vpack.c.b16 %v4012, %v4008
      %v4385 = vpack.c.b16 %v4013, %v4009
      %v4386 = vpack.c.b16 %v4014, %v4010
      %v4387 = vpack.c.b16 %v4019, %v4015
      %v4388 = vpack.c.b16 %v4020, %v4016
      %v4389 = vpack.c.b16 %v4021, %v4017
      %v4390 = vpack.c.b16 %v4022, %v4018
      %v4391 = vpack.c.b16 %v4027, %v4023
      %v4392 = vpack.c.b16 %v4028, %v4024
      %v4393 = vpack.c.b16 %v4029, %v4025
      %v4394 = vpack.c.b16 %v4030, %v4026
      %v4395 = vpack.c.b16 %v4035, %v4031
      %v4396 = vpack.c.b16 %v4036, %v4032
      %v4397 = vpack.c.b16 %v4037, %v4033
      %v4398 = vpack.c.b16 %v4038, %v4034
      %v4399 = vpack.c.b16 %v4043, %v4039
      %v4400 = vpack.c.b16 %v4044, %v4040
      %v4401 = vpack.c.b16 %v4045, %v4041
      %v4402 = vpack.c.b16 %v4046, %v4042
      %v4403 = vpack.c.b16 %v4051, %v4047
      %v4404 = vpack.c.b16 %v4052, %v4048
      %v4405 = vpack.c.b16 %v4053, %v4049
      %v4406 = vpack.c.b16 %v4054, %v4050
      %v4407 = vpack.c.b16 %v4059, %v4055
      %v4408 = vpack.c.b16 %v4060, %v4056
      %v4409 = vpack.c.b16 %v4061, %v4057
      %v4410 = vpack.c.b16 %v4062, %v4058
      %v4411 = vpack.c.b16 %v4067, %v4063
      %v4412 = vpack.c.b16 %v4068, %v4064
      %v4413 = vpack.c.b16 %v4069, %v4065
      %v4414 = vpack.c.b16 %v4070, %v4066
      %v4415 = vpack.c.b16 %v4075, %v4071
      %v4416 = vpack.c.b16 %v4076, %v4072
      %v4417 = vpack.c.b16 %v4077, %v4073
      %v4418 = vpack.c.b16 %v4078, %v4074
      %v4419 = vpack.c.b16 %v4083, %v4079
      %v4420 = vpack.c.b16 %v4084, %v4080
      %v4421 = vpack.c.b16 %v4085, %v4081
      %v4422 = vpack.c.b16 %v4086, %v4082
      %v4423 = vpack.c.b16 %v4091, %v4087
      %v4424 = vpack.c.b16 %v4092, %v4088
      %v4425 = vpack.c.b16 %v4093, %v4089
      %v4426 = vpack.c.b16 %v4094, %v4090
      %v4427 = vpack.c.b16 %v4099, %v4095
      %v4428 = vpack.c.b16 %v4100, %v4096
      %v4429 = vpack.c.b16 %v4101, %v4097
      %v4430 = vpack.c.b16 %v4102, %v4098
      %v4431 = vpack.c.b16 %v4107, %v4103
      %v4432 = vpack.c.b16 %v4108, %v4104
      %v4433 = vpack.c.b16 %v4109, %v4105
      %v4434 = vpack.c.b16 %v4110, %v4106
      %v4435 = vpack.c.b16 %v4115, %v4111
      %v4436 = vpack.c.b16 %v4116, %v4112
      %v4437 = vpack.c.b16 %v4117, %v4113
      %v4438 = vpack.c.b16 %v4118, %v4114
      %v4439 = vpack.c.b16 %v4123, %v4119
      %v4440 = vpack.c.b16 %v4124, %v4120
      %v4441 = vpack.c.b16 %v4125, %v4121
      %v4442 = vpack.c.b16 %v4126, %v4122
      %v4443 = vpack.c.b16 %v4131, %v4127
      %v4444 = vpack.c.b16 %v4132, %v4128
      %v4445 = vpack.c.b16 %v4133, %v4129
      %v4446 = vpack.c.b16 %v4134, %v4130
      %v4447 = vpack.c.b16 %v4139, %v4135
      %v4448 = vpack.c.b16 %v4140, %v4136
      %v4449 = vpack.c.b16 %v4141, %v4137
      %v4450 = vpack.c.b16 %v4142, %v4138
      %v4451 = vpack.c.b16 %v4147, %v4143
      %v4452 = vpack.c.b16 %v4148, %v4144
      %v4453 = vpack.c.b16 %v4149, %v4145
      %v4454 = vpack.c.b16 %v4150, %v4146
      %v4455 = vpack.c.b16 %v4155, %v4151
      %v4456 = vpack.c.b16 %v4156, %v4152
      %v4457 = vpack.c.b16 %v4157, %v4153
      %v4458 = vpack.c.b16 %v4158, %v4154
      %v4459 = vpack.c.b16 %v4163, %v4159
      %v4460 = vpack.c.b16 %v4164, %v4160
      %v4461 = vpack.c.b16 %v4165, %v4161
      %v4462 = vpack.c.b16 %v4166, %v4162
      %v4463 = vpack.c.b16 %v4171, %v4167
      %v4464 = vpack.c.b16 %v4172, %v4168
      %v4465 = vpack.c.b16 %v4173, %v4169
      %v4466 = vpack.c.b16 %v4174, %v4170
      %v4467 = vpack.c.b16 %v4179, %v4175
      %v4468 = vpack.c.b16 %v4180, %v4176
      %v4469 = vpack.c.b16 %v4181, %v4177
      %v4470 = vpack.c.b16 %v4182, %v4178
      %4759 = vmatprep.subr.bf16.mxu0 %v4212
      %4760 = vmatpush1.bf16.msra.mxu0 %v4211
      %4761 = vmatprep.subr.bf16.mxu0 %v4208
      %4762 = vmatpush1.bf16.msra.mxu0 %v4207
      %4763 = vmatprep.subr.bf16.mxu0 %v4204
      %4764 = vmatpush1.bf16.msra.mxu0 %v4203
      %4765 = vmatprep.subr.bf16.mxu0 %v4200
      %4766 = vmatpush1.bf16.msra.mxu0 %v4199
      %4767 = vmatprep.subr.bf16.mxu0 %v4196
      %4768 = vmatpush1.bf16.msra.mxu0 %v4195
      %4769 = vmatprep.subr.bf16.mxu0 %v4192
      %4770 = vmatpush1.bf16.msra.mxu0 %v4191
      %4771 = vmatprep.subr.bf16.mxu0 %v4188
      %4772 = vmatpush1.bf16.msra.mxu0 %v4187
      %4773 = vmatprep.subr.bf16.mxu0 %v4184
      %4774 = vmatpush1.bf16.msra.mxu0 %v4183
      %4775 = vmatprep.subr.bf16.mxu0 %v4244
      %4776 = vmatpush2.bf16.msra.mxu0 %v4243
      %4777 = vmatprep.subr.bf16.mxu0 %v4240
      %4778 = vmatpush2.bf16.msra.mxu0 %v4239
      %4779 = vmatprep.subr.bf16.mxu0 %v4236
      %4780 = vmatpush2.bf16.msra.mxu0 %v4235
      %4781 = vmatprep.subr.bf16.mxu0 %v4232
      %4782 = vmatpush2.bf16.msra.mxu0 %v4231
      %4783 = vmatprep.subr.bf16.mxu0 %v4228
      %4784 = vmatpush2.bf16.msra.mxu0 %v4227
      %4785 = vmatprep.subr.bf16.mxu0 %v4224
      %4786 = vmatpush2.bf16.msra.mxu0 %v4223
      %4787 = vmatprep.subr.bf16.mxu0 %v4220
      %4788 = vmatpush2.bf16.msra.mxu0 %v4219
      %4789 = vmatprep.subr.bf16.mxu0 %v4216
      %4790 = vmatpush2.bf16.msra.mxu0 %v4215
      %4791 = vmatprep.mubr.bf16.mxu0 %v613
      %4792 = vmatmul.mubr.bf16.gmra.mxu0 %v600
      %v4793 = vpop.f32.mrf.mxu0
      %v4794 = vadd.f32 %v2928, %v4793
      %v4795 = vpop.f32.mrf.mxu0
      %v4796 = vadd.f32 %v2930, %v4795
      %v4797 = vpop.f32.mrf.mxu0
      %v4798 = vadd.f32 %v2932, %v4797
      %v4799 = vpop.f32.mrf.mxu0
      %v4800 = vadd.f32 %v2934, %v4799
      %4801 = vmatprep.mubr.bf16.mxu0 %v621
      %4802 = vmatmul.mubr.bf16.gmra.mxu0 %v591
      %v4803 = vpop.f32.mrf.mxu0
      %v4804 = vadd.f32 %v2938, %v4803
      %v4805 = vpop.f32.mrf.mxu0
      %v4806 = vadd.f32 %v2940, %v4805
      %v4807 = vpop.f32.mrf.mxu0
      %v4808 = vadd.f32 %v2942, %v4807
      %v4809 = vpop.f32.mrf.mxu0
      %v4810 = vadd.f32 %v2944, %v4809
      %4811 = vmatprep.mubr.bf16.mxu0 %v629
      %4812 = vmatmul.mubr.bf16.gmra.mxu0 %v592
      %v4813 = vpop.f32.mrf.mxu0
      %v4814 = vadd.f32 %v2948, %v4813
      %v4815 = vpop.f32.mrf.mxu0
      %v4816 = vadd.f32 %v2950, %v4815
      %v4817 = vpop.f32.mrf.mxu0
      %v4818 = vadd.f32 %v2952, %v4817
      %v4819 = vpop.f32.mrf.mxu0
      %v4820 = vadd.f32 %v2954, %v4819
      %4821 = vmatprep.mubr.bf16.mxu0 %v632
      %4822 = vmatmul.mubr.bf16.gmra.mxu0 %v593
      %v4823 = vpop.f32.mrf.mxu0
      %v4824 = vadd.f32 %v2958, %v4823
      %v4825 = vpop.f32.mrf.mxu0
      %v4826 = vadd.f32 %v2960, %v4825
      %v4827 = vpop.f32.mrf.mxu0
      %v4828 = vpop.f32.mrf.mxu0
      %4829 = vdwg.mxu0
      %4830 = vmatprep.subr.bf16.mxu0 %v4276
      %4831 = vmatpush1.bf16.msra.mxu0 %v4275
      %4832 = vmatprep.subr.bf16.mxu0 %v4272
      %4833 = vmatpush1.bf16.msra.mxu0 %v4271
      %4834 = vmatprep.subr.bf16.mxu0 %v4268
      %4835 = vmatpush1.bf16.msra.mxu0 %v4267
      %4836 = vmatprep.subr.bf16.mxu0 %v4264
      %4837 = vmatpush1.bf16.msra.mxu0 %v4263
      %4838 = vmatprep.subr.bf16.mxu0 %v4260
      %4839 = vmatpush1.bf16.msra.mxu0 %v4259
      %4840 = vmatprep.subr.bf16.mxu0 %v4256
      %4841 = vmatpush1.bf16.msra.mxu0 %v4255
      %4842 = vmatprep.subr.bf16.mxu0 %v4252
      %4843 = vmatpush1.bf16.msra.mxu0 %v4251
      %4844 = vmatprep.subr.bf16.mxu0 %v4248
      %4845 = vmatpush1.bf16.msra.mxu0 %v4247
      %4846 = vmatprep.subr.bf16.mxu0 %v4308
      %4847 = vmatpush2.bf16.msra.mxu0 %v4307
      %4848 = vmatprep.subr.bf16.mxu0 %v4304
      %4849 = vmatpush2.bf16.msra.mxu0 %v4303
      %4850 = vmatprep.subr.bf16.mxu0 %v4300
      %4851 = vmatpush2.bf16.msra.mxu0 %v4299
      %4852 = vmatprep.subr.bf16.mxu0 %v4296
      %4853 = vmatpush2.bf16.msra.mxu0 %v4295
      %4854 = vmatprep.subr.bf16.mxu0 %v4292
      %4855 = vmatpush2.bf16.msra.mxu0 %v4291
      %4856 = vmatprep.subr.bf16.mxu0 %v4288
      %4857 = vmatpush2.bf16.msra.mxu0 %v4287
      %4858 = vmatprep.subr.bf16.mxu0 %v4284
      %4859 = vmatpush2.bf16.msra.mxu0 %v4283
      %4860 = vmatprep.subr.bf16.mxu0 %v4280
      %4861 = vmatpush2.bf16.msra.mxu0 %v4279
      %4862 = vmatprep.mubr.bf16.mxu0 %v657
      %4863 = vmatmul.mubr.bf16.gmra.mxu0 %v641
      %v4864 = vpop.f32.mrf.mxu0
      %v4865 = vadd.f32 %v4794, %v4864
      %v4866 = vpop.f32.mrf.mxu0
      %v4867 = vadd.f32 %v4796, %v4866
      %v4868 = vpop.f32.mrf.mxu0
      %v4869 = vadd.f32 %v4798, %v4868
      %v4870 = vpop.f32.mrf.mxu0
      %v4871 = vadd.f32 %v4800, %v4870
      %4872 = vmatprep.mubr.bf16.mxu0 %v661
      %4873 = vmatmul.mubr.bf16.gmra.mxu0 %v643
      %v4874 = vpop.f32.mrf.mxu0
      %v4875 = vadd.f32 %v4804, %v4874
      %v4876 = vpop.f32.mrf.mxu0
      %v4877 = vadd.f32 %v4806, %v4876
      %v4878 = vpop.f32.mrf.mxu0
      %v4879 = vadd.f32 %v4808, %v4878
      %v4880 = vpop.f32.mrf.mxu0
      %v4881 = vadd.f32 %v4810, %v4880
      %4882 = vmatprep.mubr.bf16.mxu0 %v665
      %4883 = vmatmul.mubr.bf16.gmra.mxu0 %v645
      %v4884 = vpop.f32.mrf.mxu0
      %v4885 = vadd.f32 %v4814, %v4884
      %v4886 = vpop.f32.mrf.mxu0
      %v4887 = vadd.f32 %v4816, %v4886
      %v4888 = vpop.f32.mrf.mxu0
      %v4889 = vadd.f32 %v4818, %v4888
      %v4890 = vpop.f32.mrf.mxu0
      %v4891 = vadd.f32 %v4820, %v4890
      %4892 = vmatprep.mubr.bf16.mxu0 %v664
      %4893 = vmatmul.mubr.bf16.gmra.mxu0 %v644
      %v4894 = vpop.f32.mrf.mxu0
      %v4895 = vadd.f32 %v4824, %v4894
      %v4896 = vpop.f32.mrf.mxu0
      %v4897 = vadd.f32 %v4826, %v4896
      %v4898 = vpop.f32.mrf.mxu0
      %v4899 = vpop.f32.mrf.mxu0
      %4900 = vdwg.mxu0
      %4901 = vmatprep.subr.bf16.mxu0 %v4340
      %4902 = vmatpush1.bf16.msra.mxu0 %v4339
      %4903 = vmatprep.subr.bf16.mxu0 %v4336
      %4904 = vmatpush1.bf16.msra.mxu0 %v4335
      %4905 = vmatprep.subr.bf16.mxu0 %v4332
      %4906 = vmatpush1.bf16.msra.mxu0 %v4331
      %4907 = vmatprep.subr.bf16.mxu0 %v4328
      %4908 = vmatpush1.bf16.msra.mxu0 %v4327
      %4909 = vmatprep.subr.bf16.mxu0 %v4324
      %4910 = vmatpush1.bf16.msra.mxu0 %v4323
      %4911 = vmatprep.subr.bf16.mxu0 %v4320
      %4912 = vmatpush1.bf16.msra.mxu0 %v4319
      %4913 = vmatprep.subr.bf16.mxu0 %v4316
      %4914 = vmatpush1.bf16.msra.mxu0 %v4315
      %4915 = vmatprep.subr.bf16.mxu0 %v4312
      %4916 = vmatpush1.bf16.msra.mxu0 %v4311
      %4917 = vmatprep.subr.bf16.mxu0 %v4372
      %4918 = vmatpush2.bf16.msra.mxu0 %v4371
      %4919 = vmatprep.subr.bf16.mxu0 %v4368
      %4920 = vmatpush2.bf16.msra.mxu0 %v4367
      %4921 = vmatprep.subr.bf16.mxu0 %v4364
      %4922 = vmatpush2.bf16.msra.mxu0 %v4363
      %4923 = vmatprep.subr.bf16.mxu0 %v4360
      %4924 = vmatpush2.bf16.msra.mxu0 %v4359
      %4925 = vmatprep.subr.bf16.mxu0 %v4356
      %4926 = vmatpush2.bf16.msra.mxu0 %v4355
      %4927 = vmatprep.subr.bf16.mxu0 %v4352
      %4928 = vmatpush2.bf16.msra.mxu0 %v4351
      %4929 = vmatprep.subr.bf16.mxu0 %v4348
      %4930 = vmatpush2.bf16.msra.mxu0 %v4347
      %4931 = vmatprep.subr.bf16.mxu0 %v4344
      %4932 = vmatpush2.bf16.msra.mxu0 %v4343
      %4933 = vmatprep.mubr.bf16.mxu0 %v689
      %4934 = vmatmul.mubr.bf16.gmra.mxu0 %v673
      %v4935 = vpop.f32.mrf.mxu0
      %v4936 = vadd.f32 %v4865, %v4935
      %v4937 = vpop.f32.mrf.mxu0
      %v4938 = vadd.f32 %v4867, %v4937
      %v4939 = vpop.f32.mrf.mxu0
      %v4940 = vadd.f32 %v4869, %v4939
      %v4941 = vpop.f32.mrf.mxu0
      %v4942 = vadd.f32 %v4871, %v4941
      %4943 = vmatprep.mubr.bf16.mxu0 %v693
      %4944 = vmatmul.mubr.bf16.gmra.mxu0 %v675
      %v4945 = vpop.f32.mrf.mxu0
      %v4946 = vadd.f32 %v4875, %v4945
      %v4947 = vpop.f32.mrf.mxu0
      %v4948 = vadd.f32 %v4877, %v4947
      %v4949 = vpop.f32.mrf.mxu0
      %v4950 = vadd.f32 %v4879, %v4949
      %v4951 = vpop.f32.mrf.mxu0
      %v4952 = vadd.f32 %v4881, %v4951
      %4953 = vmatprep.mubr.bf16.mxu0 %v697
      %4954 = vmatmul.mubr.bf16.gmra.mxu0 %v677
      %v4955 = vpop.f32.mrf.mxu0
      %v4956 = vadd.f32 %v4885, %v4955
      %v4957 = vpop.f32.mrf.mxu0
      %v4958 = vadd.f32 %v4887, %v4957
      %v4959 = vpop.f32.mrf.mxu0
      %v4960 = vadd.f32 %v4889, %v4959
      %v4961 = vpop.f32.mrf.mxu0
      %v4962 = vadd.f32 %v4891, %v4961
      %4963 = vmatprep.mubr.bf16.mxu0 %v701
      %4964 = vmatmul.mubr.bf16.gmra.mxu0 %v676
      %v4965 = vpop.f32.mrf.mxu0
      %v4966 = vadd.f32 %v4895, %v4965
      %v4967 = vpop.f32.mrf.mxu0
      %v4968 = vadd.f32 %v4897, %v4967
      %v4969 = vpop.f32.mrf.mxu0
      %v4970 = vpop.f32.mrf.mxu0
      %4971 = vdwg.mxu0
      %4972 = vmatprep.subr.bf16.mxu0 %v4404
      %4973 = vmatpush1.bf16.msra.mxu0 %v4403
      %4974 = vmatprep.subr.bf16.mxu0 %v4400
      %4975 = vmatpush1.bf16.msra.mxu0 %v4399
      %4976 = vmatprep.subr.bf16.mxu0 %v4396
      %4977 = vmatpush1.bf16.msra.mxu0 %v4395
      %4978 = vmatprep.subr.bf16.mxu0 %v4392
      %4979 = vmatpush1.bf16.msra.mxu0 %v4391
      %4980 = vmatprep.subr.bf16.mxu0 %v4388
      %4981 = vmatpush1.bf16.msra.mxu0 %v4387
      %4982 = vmatprep.subr.bf16.mxu0 %v4384
      %4983 = vmatpush1.bf16.msra.mxu0 %v4383
      %4984 = vmatprep.subr.bf16.mxu0 %v4380
      %4985 = vmatpush1.bf16.msra.mxu0 %v4379
      %4986 = vmatprep.subr.bf16.mxu0 %v4376
      %4987 = vmatpush1.bf16.msra.mxu0 %v4375
      %4988 = vmatprep.subr.bf16.mxu0 %v4436
      %4989 = vmatpush2.bf16.msra.mxu0 %v4435
      %4990 = vmatprep.subr.bf16.mxu0 %v4432
      %4991 = vmatpush2.bf16.msra.mxu0 %v4431
      %4992 = vmatprep.subr.bf16.mxu0 %v4428
      %4993 = vmatpush2.bf16.msra.mxu0 %v4427
      %4994 = vmatprep.subr.bf16.mxu0 %v4424
      %4995 = vmatpush2.bf16.msra.mxu0 %v4423
      %4996 = vmatprep.subr.bf16.mxu0 %v4420
      %4997 = vmatpush2.bf16.msra.mxu0 %v4419
      %4998 = vmatprep.subr.bf16.mxu0 %v4416
      %4999 = vmatpush2.bf16.msra.mxu0 %v4415
      %5000 = vmatprep.subr.bf16.mxu0 %v4412
      %5001 = vmatpush2.bf16.msra.mxu0 %v4411
      %5002 = vmatprep.subr.bf16.mxu0 %v4408
      %5003 = vmatpush2.bf16.msra.mxu0 %v4407
      %5004 = vmatprep.mubr.bf16.mxu0 %v725
      %5005 = vmatmul.mubr.bf16.gmra.mxu0 %v710
      %v5006 = vpop.f32.mrf.mxu0
      %v5007 = vadd.f32 %v4936, %v5006
      %v5008 = vpop.f32.mrf.mxu0
      %v5009 = vadd.f32 %v4938, %v5008
      %v5010 = vpop.f32.mrf.mxu0
      %v5011 = vadd.f32 %v4940, %v5010
      %v5012 = vpop.f32.mrf.mxu0
      %v5013 = vadd.f32 %v4942, %v5012
      %5014 = vmatprep.mubr.bf16.mxu0 %v728
      %5015 = vmatmul.mubr.bf16.gmra.mxu0 %v712
      %v5016 = vpop.f32.mrf.mxu0
      %v5017 = vadd.f32 %v4946, %v5016
      %v5018 = vpop.f32.mrf.mxu0
      %v5019 = vadd.f32 %v4948, %v5018
      %v5020 = vpop.f32.mrf.mxu0
      %v5021 = vadd.f32 %v4950, %v5020
      %v5022 = vpop.f32.mrf.mxu0
      %v5023 = vadd.f32 %v4952, %v5022
      %5024 = vmatprep.mubr.bf16.mxu0 %v731
      %5025 = vmatmul.mubr.bf16.gmra.mxu0 %v714
      %v5026 = vpop.f32.mrf.mxu0
      %v5027 = vadd.f32 %v4956, %v5026
      %v5028 = vpop.f32.mrf.mxu0
      %v5029 = vadd.f32 %v4958, %v5028
      %v5030 = vpop.f32.mrf.mxu0
      %v5031 = vadd.f32 %v4960, %v5030
      %v5032 = vpop.f32.mrf.mxu0
      %v5033 = vadd.f32 %v4962, %v5032
      %5034 = vmatprep.mubr.bf16.mxu0 %v736
      %5035 = vmatmul.mubr.bf16.gmra.mxu0 %v716
      %v5036 = vpop.f32.mrf.mxu0
      %v5037 = vadd.f32 %v4966, %v5036
      %v5038 = vpop.f32.mrf.mxu0
      %v5039 = vadd.f32 %v4968, %v5038
      %v5040 = vpop.f32.mrf.mxu0
      %v5041 = vpop.f32.mrf.mxu0
      %5042 = vdwg.mxu0
      %5043 = vmatprep.subr.bf16.mxu0 %v4468
      %5044 = vmatpush1.bf16.msra.mxu0 %v4467
      %5045 = vmatprep.subr.bf16.mxu0 %v4464
      %5046 = vmatpush1.bf16.msra.mxu0 %v4463
      %5047 = vmatprep.subr.bf16.mxu0 %v4460
      %5048 = vmatpush1.bf16.msra.mxu0 %v4459
      %5049 = vmatprep.subr.bf16.mxu0 %v4456
      %5050 = vmatpush1.bf16.msra.mxu0 %v4455
      %5051 = vmatprep.subr.bf16.mxu0 %v4452
      %5052 = vmatpush1.bf16.msra.mxu0 %v4451
      %5053 = vmatprep.subr.bf16.mxu0 %v4448
      %5054 = vmatpush1.bf16.msra.mxu0 %v4447
      %5055 = vmatprep.subr.bf16.mxu0 %v4444
      %5056 = vmatpush1.bf16.msra.mxu0 %v4443
      %5057 = vmatprep.subr.bf16.mxu0 %v4440
      %5058 = vmatpush1.bf16.msra.mxu0 %v4439
      %5059 = vmatprep.subr.bf16.mxu0 0
      %5060 = vmatpush2.bf16.msra.mxu0 0
      %5061 = vmatprep.subr.bf16.mxu0 0
      %5062 = vmatpush2.bf16.msra.mxu0 0
      %5063 = vmatprep.subr.bf16.mxu0 0
      %5064 = vmatpush2.bf16.msra.mxu0 0
      %5065 = vmatprep.subr.bf16.mxu0 0
      %5066 = vmatpush2.bf16.msra.mxu0 0
      %5067 = vmatprep.subr.bf16.mxu0 0
      %5068 = vmatpush2.bf16.msra.mxu0 0
      %5069 = vmatprep.subr.bf16.mxu0 0
      %5070 = vmatpush2.bf16.msra.mxu0 0
      %5071 = vmatprep.subr.bf16.mxu0 0
      %5072 = vmatpush2.bf16.msra.mxu0 0
      %5073 = vmatprep.subr.bf16.mxu0 0
      %5074 = vmatpush2.bf16.msra.mxu0 0
      %5075 = vmatprep.mubr.bf16.mxu0 0
      %5076 = vmatmul.mubr.bf16.gmra.mxu0 %v591
      %v5077 = vpop.f32.mrf.mxu0
      %v5078 = vadd.f32 %v5007, %v5077
      %v5079 = vpop.f32.mrf.mxu0
      %v5080 = vadd.f32 %v5009, %v5079
      %v5081 = vpop.f32.mrf.mxu0
      %v5082 = vadd.f32 %v5011, %v5081
      %v5083 = vpop.f32.mrf.mxu0
      %v5084 = vadd.f32 %v5013, %v5083
      %5085 = vmatprep.mubr.bf16.mxu0 0
      %5086 = vmatmul.mubr.bf16.gmra.mxu0 %v592
      %v5087 = vpop.f32.mrf.mxu0
      %v5088 = vadd.f32 %v5017, %v5087
      %v5089 = vpop.f32.mrf.mxu0
      %v5090 = vadd.f32 %v5019, %v5089
      %v5091 = vpop.f32.mrf.mxu0
      %v5092 = vadd.f32 %v5021, %v5091
      %v5093 = vpop.f32.mrf.mxu0
      %v5094 = vadd.f32 %v5023, %v5093
      %5095 = vmatprep.mubr.bf16.mxu0 0
      %5096 = vmatmul.mubr.bf16.gmra.mxu0 %v593
      %v5097 = vpop.f32.mrf.mxu0
      %v5098 = vadd.f32 %v5027, %v5097
      %v5099 = vpop.f32.mrf.mxu0
      %v5100 = vadd.f32 %v5029, %v5099
      %v5101 = vpop.f32.mrf.mxu0
      %v5102 = vadd.f32 %v5031, %v5101
      %v5103 = vpop.f32.mrf.mxu0
      %v5104 = vadd.f32 %v5033, %v5103
      %5105 = vmatprep.mubr.bf16.mxu0 0
      %5106 = vmatmul.mubr.bf16.gmra.mxu0 0
      %v5107 = vpop.f32.mrf.mxu0
      %v5108 = vadd.f32 %v5037, %v5107
      %v5109 = vpop.f32.mrf.mxu0
      %v5110 = vadd.f32 %v5039, %v5109
      %v5111 = vpop.f32.mrf.mxu0
      %v5112 = vpop.f32.mrf.mxu0
      %5113 = vdwg.mxu0
      %5114 = vmatprep.subr.bf16.mxu0 %v4214
      %5115 = vmatpush1.bf16.msra.mxu0 %v4213
      %5116 = vmatprep.subr.bf16.mxu0 %v4210
      %5117 = vmatpush1.bf16.msra.mxu0 %v4209
      %5118 = vmatprep.subr.bf16.mxu0 %v4206
      %5119 = vmatpush1.bf16.msra.mxu0 %v4205
      %5120 = vmatprep.subr.bf16.mxu0 %v4202
      %5121 = vmatpush1.bf16.msra.mxu0 %v4201
      %5122 = vmatprep.subr.bf16.mxu0 %v4198
      %5123 = vmatpush1.bf16.msra.mxu0 %v4197
      %5124 = vmatprep.subr.bf16.mxu0 %v4194
      %5125 = vmatpush1.bf16.msra.mxu0 %v4193
      %5126 = vmatprep.subr.bf16.mxu0 %v4190
      %5127 = vmatpush1.bf16.msra.mxu0 %v4189
      %5128 = vmatprep.subr.bf16.mxu0 %v4186
      %5129 = vmatpush1.bf16.msra.mxu0 %v4185
      %5130 = vmatprep.subr.bf16.mxu0 %v4246
      %5131 = vmatpush2.bf16.msra.mxu0 %v4245
      %5132 = vmatprep.subr.bf16.mxu0 %v4242
      %5133 = vmatpush2.bf16.msra.mxu0 %v4241
      %5134 = vmatprep.subr.bf16.mxu0 %v4238
      %5135 = vmatpush2.bf16.msra.mxu0 %v4237
      %5136 = vmatprep.subr.bf16.mxu0 %v4234
      %5137 = vmatpush2.bf16.msra.mxu0 %v4233
      %5138 = vmatprep.subr.bf16.mxu0 %v4230
      %5139 = vmatpush2.bf16.msra.mxu0 %v4229
      %5140 = vmatprep.subr.bf16.mxu0 %v4226
      %5141 = vmatpush2.bf16.msra.mxu0 %v4225
      %5142 = vmatprep.subr.bf16.mxu0 %v4222
      %5143 = vmatpush2.bf16.msra.mxu0 %v4221
      %5144 = vmatprep.subr.bf16.mxu0 %v4218
      %5145 = vmatpush2.bf16.msra.mxu0 %v4217
      %5146 = vmatprep.mubr.bf16.mxu0 %v613
      %5147 = vmatmul.mubr.bf16.gmra.mxu0 %v600
      %v5148 = vpop.f32.mrf.mxu0
      %v5149 = vadd.f32 %v3283, %v5148
      %v5150 = vpop.f32.mrf.mxu0
      %v5151 = vadd.f32 %v3285, %v5150
      %v5152 = vpop.f32.mrf.mxu0
      %v5153 = vadd.f32 %v3287, %v5152
      %v5154 = vpop.f32.mrf.mxu0
      %v5155 = vadd.f32 %v3289, %v5154
      %5156 = vmatprep.mubr.bf16.mxu0 %v621
      %5157 = vmatmul.mubr.bf16.gmra.mxu0 %v591
      %v5158 = vpop.f32.mrf.mxu0
      %v5159 = vadd.f32 %v3293, %v5158
      %v5160 = vpop.f32.mrf.mxu0
      %v5161 = vadd.f32 %v3295, %v5160
      %v5162 = vpop.f32.mrf.mxu0
      %v5163 = vadd.f32 %v3297, %v5162
      %v5164 = vpop.f32.mrf.mxu0
      %v5165 = vadd.f32 %v3299, %v5164
      %5166 = vmatprep.mubr.bf16.mxu0 %v629
      %5167 = vmatmul.mubr.bf16.gmra.mxu0 %v592
      %v5168 = vpop.f32.mrf.mxu0
      %v5169 = vadd.f32 %v3303, %v5168
      %v5170 = vpop.f32.mrf.mxu0
      %v5171 = vadd.f32 %v3305, %v5170
      %v5172 = vpop.f32.mrf.mxu0
      %v5173 = vadd.f32 %v3307, %v5172
      %v5174 = vpop.f32.mrf.mxu0
      %v5175 = vadd.f32 %v3309, %v5174
      %5176 = vmatprep.mubr.bf16.mxu0 %v632
      %5177 = vmatmul.mubr.bf16.gmra.mxu0 %v593
      %v5178 = vpop.f32.mrf.mxu0
      %v5179 = vadd.f32 %v3313, %v5178
      %v5180 = vpop.f32.mrf.mxu0
      %v5181 = vadd.f32 %v3315, %v5180
      %v5182 = vpop.f32.mrf.mxu0
      %v5183 = vpop.f32.mrf.mxu0
      %5184 = vdwg.mxu0
      %5185 = vmatprep.subr.bf16.mxu0 %v4278
      %5186 = vmatpush1.bf16.msra.mxu0 %v4277
      %5187 = vmatprep.subr.bf16.mxu0 %v4274
      %5188 = vmatpush1.bf16.msra.mxu0 %v4273
      %5189 = vmatprep.subr.bf16.mxu0 %v4270
      %5190 = vmatpush1.bf16.msra.mxu0 %v4269
      %5191 = vmatprep.subr.bf16.mxu0 %v4266
      %5192 = vmatpush1.bf16.msra.mxu0 %v4265
      %5193 = vmatprep.subr.bf16.mxu0 %v4262
      %5194 = vmatpush1.bf16.msra.mxu0 %v4261
      %5195 = vmatprep.subr.bf16.mxu0 %v4258
      %5196 = vmatpush1.bf16.msra.mxu0 %v4257
      %5197 = vmatprep.subr.bf16.mxu0 %v4254
      %5198 = vmatpush1.bf16.msra.mxu0 %v4253
      %5199 = vmatprep.subr.bf16.mxu0 %v4250
      %5200 = vmatpush1.bf16.msra.mxu0 %v4249
      %5201 = vmatprep.subr.bf16.mxu0 %v4310
      %5202 = vmatpush2.bf16.msra.mxu0 %v4309
      %5203 = vmatprep.subr.bf16.mxu0 %v4306
      %5204 = vmatpush2.bf16.msra.mxu0 %v4305
      %5205 = vmatprep.subr.bf16.mxu0 %v4302
      %5206 = vmatpush2.bf16.msra.mxu0 %v4301
      %5207 = vmatprep.subr.bf16.mxu0 %v4298
      %5208 = vmatpush2.bf16.msra.mxu0 %v4297
      %5209 = vmatprep.subr.bf16.mxu0 %v4294
      %5210 = vmatpush2.bf16.msra.mxu0 %v4293
      %5211 = vmatprep.subr.bf16.mxu0 %v4290
      %5212 = vmatpush2.bf16.msra.mxu0 %v4289
      %5213 = vmatprep.subr.bf16.mxu0 %v4286
      %5214 = vmatpush2.bf16.msra.mxu0 %v4285
      %5215 = vmatprep.subr.bf16.mxu0 %v4282
      %5216 = vmatpush2.bf16.msra.mxu0 %v4281
      %5217 = vmatprep.mubr.bf16.mxu0 %v657
      %5218 = vmatmul.mubr.bf16.gmra.mxu0 %v641
      %v5219 = vpop.f32.mrf.mxu0
      %v5220 = vadd.f32 %v5149, %v5219
      %v5221 = vpop.f32.mrf.mxu0
      %v5222 = vadd.f32 %v5151, %v5221
      %v5223 = vpop.f32.mrf.mxu0
      %v5224 = vadd.f32 %v5153, %v5223
      %v5225 = vpop.f32.mrf.mxu0
      %v5226 = vadd.f32 %v5155, %v5225
      %5227 = vmatprep.mubr.bf16.mxu0 %v661
      %5228 = vmatmul.mubr.bf16.gmra.mxu0 %v643
      %v5229 = vpop.f32.mrf.mxu0
      %v5230 = vadd.f32 %v5159, %v5229
      %v5231 = vpop.f32.mrf.mxu0
      %v5232 = vadd.f32 %v5161, %v5231
      %v5233 = vpop.f32.mrf.mxu0
      %v5234 = vadd.f32 %v5163, %v5233
      %v5235 = vpop.f32.mrf.mxu0
      %v5236 = vadd.f32 %v5165, %v5235
      %5237 = vmatprep.mubr.bf16.mxu0 %v665
      %5238 = vmatmul.mubr.bf16.gmra.mxu0 %v645
      %v5239 = vpop.f32.mrf.mxu0
      %v5240 = vadd.f32 %v5169, %v5239
      %v5241 = vpop.f32.mrf.mxu0
      %v5242 = vadd.f32 %v5171, %v5241
      %v5243 = vpop.f32.mrf.mxu0
      %v5244 = vadd.f32 %v5173, %v5243
      %v5245 = vpop.f32.mrf.mxu0
      %v5246 = vadd.f32 %v5175, %v5245
      %5247 = vmatprep.mubr.bf16.mxu0 %v664
      %5248 = vmatmul.mubr.bf16.gmra.mxu0 %v644
      %v5249 = vpop.f32.mrf.mxu0
      %v5250 = vadd.f32 %v5179, %v5249
      %v5251 = vpop.f32.mrf.mxu0
      %v5252 = vadd.f32 %v5181, %v5251
      %v5253 = vpop.f32.mrf.mxu0
      %v5254 = vpop.f32.mrf.mxu0
      %5255 = vdwg.mxu0
      %5256 = vmatprep.subr.bf16.mxu0 %v4342
      %5257 = vmatpush1.bf16.msra.mxu0 %v4341
      %5258 = vmatprep.subr.bf16.mxu0 %v4338
      %5259 = vmatpush1.bf16.msra.mxu0 %v4337
      %5260 = vmatprep.subr.bf16.mxu0 %v4334
      %5261 = vmatpush1.bf16.msra.mxu0 %v4333
      %5262 = vmatprep.subr.bf16.mxu0 %v4330
      %5263 = vmatpush1.bf16.msra.mxu0 %v4329
      %5264 = vmatprep.subr.bf16.mxu0 %v4326
      %5265 = vmatpush1.bf16.msra.mxu0 %v4325
      %5266 = vmatprep.subr.bf16.mxu0 %v4322
      %5267 = vmatpush1.bf16.msra.mxu0 %v4321
      %5268 = vmatprep.subr.bf16.mxu0 %v4318
      %5269 = vmatpush1.bf16.msra.mxu0 %v4317
      %5270 = vmatprep.subr.bf16.mxu0 %v4314
      %5271 = vmatpush1.bf16.msra.mxu0 %v4313
      %5272 = vmatprep.subr.bf16.mxu0 %v4374
      %5273 = vmatpush2.bf16.msra.mxu0 %v4373
      %5274 = vmatprep.subr.bf16.mxu0 %v4370
      %5275 = vmatpush2.bf16.msra.mxu0 %v4369
      %5276 = vmatprep.subr.bf16.mxu0 %v4366
      %5277 = vmatpush2.bf16.msra.mxu0 %v4365
      %5278 = vmatprep.subr.bf16.mxu0 %v4362
      %5279 = vmatpush2.bf16.msra.mxu0 %v4361
      %5280 = vmatprep.subr.bf16.mxu0 %v4358
      %5281 = vmatpush2.bf16.msra.mxu0 %v4357
      %5282 = vmatprep.subr.bf16.mxu0 %v4354
      %5283 = vmatpush2.bf16.msra.mxu0 %v4353
      %5284 = vmatprep.subr.bf16.mxu0 %v4350
      %5285 = vmatpush2.bf16.msra.mxu0 %v4349
      %5286 = vmatprep.subr.bf16.mxu0 %v4346
      %5287 = vmatpush2.bf16.msra.mxu0 %v4345
      %5288 = vmatprep.mubr.bf16.mxu0 %v689
      %5289 = vmatmul.mubr.bf16.gmra.mxu0 %v673
      %v5290 = vpop.f32.mrf.mxu0
      %v5291 = vadd.f32 %v5220, %v5290
      %v5292 = vpop.f32.mrf.mxu0
      %v5293 = vadd.f32 %v5222, %v5292
      %v5294 = vpop.f32.mrf.mxu0
      %v5295 = vadd.f32 %v5224, %v5294
      %v5296 = vpop.f32.mrf.mxu0
      %v5297 = vadd.f32 %v5226, %v5296
      %5298 = vmatprep.mubr.bf16.mxu0 %v693
      %5299 = vmatmul.mubr.bf16.gmra.mxu0 %v675
      %v5300 = vpop.f32.mrf.mxu0
      %v5301 = vadd.f32 %v5230, %v5300
      %v5302 = vpop.f32.mrf.mxu0
      %v5303 = vadd.f32 %v5232, %v5302
      %v5304 = vpop.f32.mrf.mxu0
      %v5305 = vadd.f32 %v5234, %v5304
      %v5306 = vpop.f32.mrf.mxu0
      %v5307 = vadd.f32 %v5236, %v5306
      %5308 = vmatprep.mubr.bf16.mxu0 %v697
      %5309 = vmatmul.mubr.bf16.gmra.mxu0 %v677
      %v5310 = vpop.f32.mrf.mxu0
      %v5311 = vadd.f32 %v5240, %v5310
      %v5312 = vpop.f32.mrf.mxu0
      %v5313 = vadd.f32 %v5242, %v5312
      %v5314 = vpop.f32.mrf.mxu0
      %v5315 = vadd.f32 %v5244, %v5314
      %v5316 = vpop.f32.mrf.mxu0
      %v5317 = vadd.f32 %v5246, %v5316
      %5318 = vmatprep.mubr.bf16.mxu0 %v701
      %5319 = vmatmul.mubr.bf16.gmra.mxu0 %v676
      %v5320 = vpop.f32.mrf.mxu0
      %v5321 = vadd.f32 %v5250, %v5320
      %v5322 = vpop.f32.mrf.mxu0
      %v5323 = vadd.f32 %v5252, %v5322
      %v5324 = vpop.f32.mrf.mxu0
      %v5325 = vpop.f32.mrf.mxu0
      %5326 = vdwg.mxu0
      %5327 = vmatprep.subr.bf16.mxu0 %v4406
      %5328 = vmatpush1.bf16.msra.mxu0 %v4405
      %5329 = vmatprep.subr.bf16.mxu0 %v4402
      %5330 = vmatpush1.bf16.msra.mxu0 %v4401
      %5331 = vmatprep.subr.bf16.mxu0 %v4398
      %5332 = vmatpush1.bf16.msra.mxu0 %v4397
      %5333 = vmatprep.subr.bf16.mxu0 %v4394
      %5334 = vmatpush1.bf16.msra.mxu0 %v4393
      %5335 = vmatprep.subr.bf16.mxu0 %v4390
      %5336 = vmatpush1.bf16.msra.mxu0 %v4389
      %5337 = vmatprep.subr.bf16.mxu0 %v4386
      %5338 = vmatpush1.bf16.msra.mxu0 %v4385
      %5339 = vmatprep.subr.bf16.mxu0 %v4382
      %5340 = vmatpush1.bf16.msra.mxu0 %v4381
      %5341 = vmatprep.subr.bf16.mxu0 %v4378
      %5342 = vmatpush1.bf16.msra.mxu0 %v4377
      %5343 = vmatprep.subr.bf16.mxu0 %v4438
      %5344 = vmatpush2.bf16.msra.mxu0 %v4437
      %5345 = vmatprep.subr.bf16.mxu0 %v4434
      %5346 = vmatpush2.bf16.msra.mxu0 %v4433
      %5347 = vmatprep.subr.bf16.mxu0 %v4430
      %5348 = vmatpush2.bf16.msra.mxu0 %v4429
      %5349 = vmatprep.subr.bf16.mxu0 %v4426
      %5350 = vmatpush2.bf16.msra.mxu0 %v4425
      %5351 = vmatprep.subr.bf16.mxu0 %v4422
      %5352 = vmatpush2.bf16.msra.mxu0 %v4421
      %5353 = vmatprep.subr.bf16.mxu0 %v4418
      %5354 = vmatpush2.bf16.msra.mxu0 %v4417
      %5355 = vmatprep.subr.bf16.mxu0 %v4414
      %5356 = vmatpush2.bf16.msra.mxu0 %v4413
      %5357 = vmatprep.subr.bf16.mxu0 %v4410
      %5358 = vmatpush2.bf16.msra.mxu0 %v4409
      %5359 = vmatprep.mubr.bf16.mxu0 %v725
      %5360 = vmatmul.mubr.bf16.gmra.mxu0 %v710
      %v5361 = vpop.f32.mrf.mxu0
      %v5362 = vadd.f32 %v5291, %v5361
      %v5363 = vpop.f32.mrf.mxu0
      %v5364 = vadd.f32 %v5293, %v5363
      %v5365 = vpop.f32.mrf.mxu0
      %v5366 = vadd.f32 %v5295, %v5365
      %v5367 = vpop.f32.mrf.mxu0
      %v5368 = vadd.f32 %v5297, %v5367
      %5369 = vmatprep.mubr.bf16.mxu0 %v728
      %5370 = vmatmul.mubr.bf16.gmra.mxu0 %v712
      %v5371 = vpop.f32.mrf.mxu0
      %v5372 = vadd.f32 %v5301, %v5371
      %v5373 = vpop.f32.mrf.mxu0
      %v5374 = vadd.f32 %v5303, %v5373
      %v5375 = vpop.f32.mrf.mxu0
      %v5376 = vadd.f32 %v5305, %v5375
      %v5377 = vpop.f32.mrf.mxu0
      %v5378 = vadd.f32 %v5307, %v5377
      %5379 = vmatprep.mubr.bf16.mxu0 %v731
      %5380 = vmatmul.mubr.bf16.gmra.mxu0 %v714
      %v5381 = vpop.f32.mrf.mxu0
      %v5382 = vadd.f32 %v5311, %v5381
      %v5383 = vpop.f32.mrf.mxu0
      %v5384 = vadd.f32 %v5313, %v5383
      %v5385 = vpop.f32.mrf.mxu0
      %v5386 = vadd.f32 %v5315, %v5385
      %v5387 = vpop.f32.mrf.mxu0
      %v5388 = vadd.f32 %v5317, %v5387
      %5389 = vmatprep.mubr.bf16.mxu0 %v736
      %5390 = vmatmul.mubr.bf16.gmra.mxu0 %v716
      %v5391 = vpop.f32.mrf.mxu0
      %v5392 = vadd.f32 %v5321, %v5391
      %v5393 = vpop.f32.mrf.mxu0
      %v5394 = vadd.f32 %v5323, %v5393
      %v5395 = vpop.f32.mrf.mxu0
      %v5396 = vpop.f32.mrf.mxu0
      %5397 = vdwg.mxu0
      %5398 = vmatprep.subr.bf16.mxu0 %v4470
      %5399 = vmatpush1.bf16.msra.mxu0 %v4469
      %5400 = vmatprep.subr.bf16.mxu0 %v4466
      %5401 = vmatpush1.bf16.msra.mxu0 %v4465
      %5402 = vmatprep.subr.bf16.mxu0 %v4462
      %5403 = vmatpush1.bf16.msra.mxu0 %v4461
      %5404 = vmatprep.subr.bf16.mxu0 %v4458
      %5405 = vmatpush1.bf16.msra.mxu0 %v4457
      %5406 = vmatprep.subr.bf16.mxu0 %v4454
      %5407 = vmatpush1.bf16.msra.mxu0 %v4453
      %5408 = vmatprep.subr.bf16.mxu0 %v4450
      %5409 = vmatpush1.bf16.msra.mxu0 %v4449
      %5410 = vmatprep.subr.bf16.mxu0 %v4446
      %5411 = vmatpush1.bf16.msra.mxu0 %v4445
      %5412 = vmatprep.subr.bf16.mxu0 %v4442
      %5413 = vmatpush1.bf16.msra.mxu0 %v4441
      %5414 = vmatprep.subr.bf16.mxu0 0
      %5415 = vmatpush2.bf16.msra.mxu0 0
      %5416 = vmatprep.subr.bf16.mxu0 0
      %5417 = vmatpush2.bf16.msra.mxu0 0
      %5418 = vmatprep.subr.bf16.mxu0 0
      %5419 = vmatpush2.bf16.msra.mxu0 0
      %5420 = vmatprep.subr.bf16.mxu0 0
      %5421 = vmatpush2.bf16.msra.mxu0 0
      %5422 = vmatprep.subr.bf16.mxu0 0
      %5423 = vmatpush2.bf16.msra.mxu0 0
      %5424 = vmatprep.subr.bf16.mxu0 0
      %5425 = vmatpush2.bf16.msra.mxu0 0
      %5426 = vmatprep.subr.bf16.mxu0 0
      %5427 = vmatpush2.bf16.msra.mxu0 0
      %5428 = vmatprep.subr.bf16.mxu0 0
      %5429 = vmatpush2.bf16.msra.mxu0 0
      %5430 = vmatprep.mubr.bf16.mxu0 0
      %5431 = vmatmul.mubr.bf16.gmra.mxu0 %v591
      %v5432 = vpop.f32.mrf.mxu0
      %v5433 = vadd.f32 %v5362, %v5432
      %v5434 = vpop.f32.mrf.mxu0
      %v5435 = vadd.f32 %v5364, %v5434
      %v5436 = vpop.f32.mrf.mxu0
      %v5437 = vadd.f32 %v5366, %v5436
      %v5438 = vpop.f32.mrf.mxu0
      %v5439 = vadd.f32 %v5368, %v5438
      %5440 = vmatprep.mubr.bf16.mxu0 0
      %5441 = vmatmul.mubr.bf16.gmra.mxu0 %v592
      %v5442 = vpop.f32.mrf.mxu0
      %v5443 = vadd.f32 %v5372, %v5442
      %v5444 = vpop.f32.mrf.mxu0
      %v5445 = vadd.f32 %v5374, %v5444
      %v5446 = vpop.f32.mrf.mxu0
      %v5447 = vadd.f32 %v5376, %v5446
      %v5448 = vpop.f32.mrf.mxu0
      %v5449 = vadd.f32 %v5378, %v5448
      %5450 = vmatprep.mubr.bf16.mxu0 0
      %5451 = vmatmul.mubr.bf16.gmra.mxu0 %v593
      %v5452 = vpop.f32.mrf.mxu0
      %v5453 = vadd.f32 %v5382, %v5452
      %v5454 = vpop.f32.mrf.mxu0
      %v5455 = vadd.f32 %v5384, %v5454
      %v5456 = vpop.f32.mrf.mxu0
      %v5457 = vadd.f32 %v5386, %v5456
      %v5458 = vpop.f32.mrf.mxu0
      %v5459 = vadd.f32 %v5388, %v5458
      %5460 = vmatprep.mubr.bf16.mxu0 0
      %5461 = vmatmul.mubr.bf16.gmra.mxu0 0
      %v5462 = vpop.f32.mrf.mxu0
      %v5463 = vadd.f32 %v5392, %v5462
      %v5464 = vpop.f32.mrf.mxu0
      %v5465 = vadd.f32 %v5394, %v5464
      %v5466 = vpop.f32.mrf.mxu0
      %v5467 = vpop.f32.mrf.mxu0
      %5468 = vdwg.mxu0
      %v5469 = vld [vmem:[%s3] sm:$0xf]
      %v5471 = vlaneseq
      %v5472 = vshrl.u32 %v5471, 7
      %v5473 = vsub.s32 0, %v5472
      %v5474 = vrot.slane %v5469, %v5473
      %v5475 = vlaneseq
      %v5476 = vshrl.u32 %v5475, 7
      %v5477 = vsub.s32 1, %v5476
      %v5478 = vrot.slane %v5469, %v5477
      %v5479 = vlaneseq
      %v5480 = vshrl.u32 %v5479, 7
      %v5481 = vsub.s32 2, %v5480
      %v5482 = vrot.slane %v5469, %v5481
      %v5483 = vlaneseq
      %v5484 = vshrl.u32 %v5483, 7
      %v5485 = vsub.s32 3, %v5484
      %v5486 = vrot.slane %v5469, %v5485
      %v5491 = vadd.f32 %v5078, %v5474
      %v5492 = vadd.f32 %v5080, %v5478
      %v5493 = vadd.f32 %v5433, %v5482
      %v5494 = vadd.f32 %v5435, %v5486
      %v5495 = vadd.f32 %v5082, %v5474
      %v5496 = vadd.f32 %v5084, %v5478
      %v5497 = vadd.f32 %v5437, %v5482
      %v5498 = vadd.f32 %v5439, %v5486
      %v5499 = vadd.f32 %v5088, %v5474
      %v5500 = vadd.f32 %v5090, %v5478
      %v5501 = vadd.f32 %v5443, %v5482
      %v5502 = vadd.f32 %v5445, %v5486
      %v5503 = vadd.f32 %v5092, %v5474
      %v5504 = vadd.f32 %v5094, %v5478
      %v5505 = vadd.f32 %v5447, %v5482
      %v5506 = vadd.f32 %v5449, %v5486
      %v5507 = vadd.f32 %v5098, %v5474
      %v5508 = vadd.f32 %v5100, %v5478
      %v5509 = vadd.f32 %v5453, %v5482
      %v5510 = vadd.f32 %v5455, %v5486
      %v5511 = vadd.f32 %v5102, %v5474
      %v5512 = vadd.f32 %v5104, %v5478
      %v5513 = vadd.f32 %v5457, %v5482
      %v5514 = vadd.f32 %v5459, %v5486
      %v5515 = vadd.f32 %v5108, %v5474
      %v5516 = vadd.f32 %v5110, %v5478
      %v5517 = vadd.f32 %v5463, %v5482
      %v5518 = vadd.f32 %v5465, %v5486
      %v5519 = vld [vmem:[%s4] sm:$0xff]
      %v5520 = vld [vmem:[%s4 + $0x8] sm:$0xff]
      %v5521 = vld [vmem:[%s4 + $0x10] sm:$0xff]
      %v5522 = vld [vmem:[%s4 + $0x18] sm:$0xff]
      %v5523 = vld [vmem:[%s4 + $0x20] sm:$0xff]
      %v5524 = vld [vmem:[%s4 + $0x28] sm:$0xff]
      %v5525 = vld [vmem:[%s4 + $0x30] sm:$0xff]
      %v5526 = vxor.u32 %v5491, 2147483648
      %v5527 = vxor.u32 %v5495, 2147483648
      %v5528 = vxor.u32 %v5499, 2147483648
      %v5529 = vxor.u32 %v5503, 2147483648
      %v5530 = vxor.u32 %v5507, 2147483648
      %v5531 = vxor.u32 %v5511, 2147483648
      %v5532 = vxor.u32 %v5515, 2147483648
      %v5533 = vmul.f32 %v5526, 1.442695
      %v5534 = vpow.pop %v5533
      %v5535 = vmul.f32 %v5527, 1.442695
      %v5536 = vpow.pop %v5535
      %v5537 = vmul.f32 %v5528, 1.442695
      %v5538 = vpow.pop %v5537
      %v5539 = vmul.f32 %v5529, 1.442695
      %v5540 = vpow.pop %v5539
      %v5541 = vmul.f32 %v5530, 1.442695
      %v5542 = vpow.pop %v5541
      %v5543 = vmul.f32 %v5531, 1.442695
      %v5544 = vpow.pop %v5543
      %v5545 = vmul.f32 %v5532, 1.442695
      %v5546 = vpow.pop %v5545
      %v5547 = vadd.f32 %v5534, 1.0
      %v5548 = vadd.f32 %v5536, 1.0
      %v5549 = vadd.f32 %v5538, 1.0
      %v5550 = vadd.f32 %v5540, 1.0
      %v5551 = vadd.f32 %v5542, 1.0
      %v5552 = vadd.f32 %v5544, 1.0
      %v5553 = vadd.f32 %v5546, 1.0
      %v5554 = vrcp.pop %v5547
      %v5555 = vmul.f32 1.0, %v5554
      %v5556 = vrcp.pop %v5548
      %v5557 = vmul.f32 1.0, %v5556
      %v5558 = vrcp.pop %v5549
      %v5559 = vmul.f32 1.0, %v5558
      %v5560 = vrcp.pop %v5550
      %v5561 = vmul.f32 1.0, %v5560
      %v5562 = vrcp.pop %v5551
      %v5563 = vmul.f32 1.0, %v5562
      %v5564 = vrcp.pop %v5552
      %v5565 = vmul.f32 1.0, %v5564
      %v5566 = vrcp.pop %v5553
      %v5567 = vmul.f32 1.0, %v5566
      %v5568 = vxor.u32 %v5492, 2147483648
      %v5569 = vxor.u32 %v5496, 2147483648
      %v5570 = vxor.u32 %v5500, 2147483648
      %v5571 = vxor.u32 %v5504, 2147483648
      %v5572 = vxor.u32 %v5508, 2147483648
      %v5573 = vxor.u32 %v5512, 2147483648
      %v5574 = vxor.u32 %v5516, 2147483648
      %v5575 = vmul.f32 %v5568, 1.442695
      %v5576 = vpow.pop %v5575
      %v5577 = vmul.f32 %v5569, 1.442695
      %v5578 = vpow.pop %v5577
      %v5579 = vmul.f32 %v5570, 1.442695
      %v5580 = vpow.pop %v5579
      %v5581 = vmul.f32 %v5571, 1.442695
      %v5582 = vpow.pop %v5581
      %v5583 = vmul.f32 %v5572, 1.442695
      %v5584 = vpow.pop %v5583
      %v5585 = vmul.f32 %v5573, 1.442695
      %v5586 = vpow.pop %v5585
      %v5587 = vmul.f32 %v5574, 1.442695
      %v5588 = vpow.pop %v5587
      %v5589 = vadd.f32 %v5576, 1.0
      %v5590 = vadd.f32 %v5578, 1.0
      %v5591 = vadd.f32 %v5580, 1.0
      %v5592 = vadd.f32 %v5582, 1.0
      %v5593 = vadd.f32 %v5584, 1.0
      %v5594 = vadd.f32 %v5586, 1.0
      %v5595 = vadd.f32 %v5588, 1.0
      %v5596 = vrcp.pop %v5589
      %v5597 = vmul.f32 1.0, %v5596
      %v5598 = vrcp.pop %v5590
      %v5599 = vmul.f32 1.0, %v5598
      %v5600 = vrcp.pop %v5591
      %v5601 = vmul.f32 1.0, %v5600
      %v5602 = vrcp.pop %v5592
      %v5603 = vmul.f32 1.0, %v5602
      %v5604 = vrcp.pop %v5593
      %v5605 = vmul.f32 1.0, %v5604
      %v5606 = vrcp.pop %v5594
      %v5607 = vmul.f32 1.0, %v5606
      %v5608 = vrcp.pop %v5595
      %v5609 = vmul.f32 1.0, %v5608
      %v5610 = vxor.u32 %v5493, 2147483648
      %v5611 = vxor.u32 %v5497, 2147483648
      %v5612 = vxor.u32 %v5501, 2147483648
      %v5613 = vxor.u32 %v5505, 2147483648
      %v5614 = vxor.u32 %v5509, 2147483648
      %v5615 = vxor.u32 %v5513, 2147483648
      %v5616 = vxor.u32 %v5517, 2147483648
      %v5617 = vmul.f32 %v5610, 1.442695
      %v5618 = vpow.pop %v5617
      %v5619 = vmul.f32 %v5611, 1.442695
      %v5620 = vpow.pop %v5619
      %v5621 = vmul.f32 %v5612, 1.442695
      %v5622 = vpow.pop %v5621
      %v5623 = vmul.f32 %v5613, 1.442695
      %v5624 = vpow.pop %v5623
      %v5625 = vmul.f32 %v5614, 1.442695
      %v5626 = vpow.pop %v5625
      %v5627 = vmul.f32 %v5615, 1.442695
      %v5628 = vpow.pop %v5627
      %v5629 = vmul.f32 %v5616, 1.442695
      %v5630 = vpow.pop %v5629
      %v5631 = vadd.f32 %v5618, 1.0
      %v5632 = vadd.f32 %v5620, 1.0
      %v5633 = vadd.f32 %v5622, 1.0
      %v5634 = vadd.f32 %v5624, 1.0
      %v5635 = vadd.f32 %v5626, 1.0
      %v5636 = vadd.f32 %v5628, 1.0
      %v5637 = vadd.f32 %v5630, 1.0
      %v5638 = vrcp.pop %v5631
      %v5639 = vmul.f32 1.0, %v5638
      %v5640 = vrcp.pop %v5632
      %v5641 = vmul.f32 1.0, %v5640
      %v5642 = vrcp.pop %v5633
      %v5643 = vmul.f32 1.0, %v5642
      %v5644 = vrcp.pop %v5634
      %v5645 = vmul.f32 1.0, %v5644
      %v5646 = vrcp.pop %v5635
      %v5647 = vmul.f32 1.0, %v5646
      %v5648 = vrcp.pop %v5636
      %v5649 = vmul.f32 1.0, %v5648
      %v5650 = vrcp.pop %v5637
      %v5651 = vmul.f32 1.0, %v5650
      %v5652 = vtanh.pop %v5494
      %v5653 = vtanh.pop %v5498
      %v5654 = vtanh.pop %v5502
      %v5655 = vtanh.pop %v5506
      %v5656 = vtanh.pop %v5510
      %v5657 = vtanh.pop %v5514
      %v5658 = vtanh.pop %v5518
      %v5659 = vld [vmem:[#allocation2] sm:$0xff]
      %v5660 = vld [vmem:[#allocation2 + $0x8] sm:$0xff]
      %v5661 = vld [vmem:[#allocation2 + $0x10] sm:$0xff]
      %v5662 = vld [vmem:[#allocation2 + $0x18] sm:$0xff]
      %v5663 = vld [vmem:[#allocation2 + $0x20] sm:$0xff]
      %v5664 = vld [vmem:[#allocation2 + $0x28] sm:$0xff]
      %v5665 = vld [vmem:[#allocation2 + $0x30] sm:$0xff]
      %v5666 = vmul.f32 %v5597, %v5659
      %v5667 = vmul.f32 %v5599, %v5660
      %v5668 = vmul.f32 %v5601, %v5661
      %v5669 = vmul.f32 %v5603, %v5662
      %v5670 = vmul.f32 %v5605, %v5663
      %v5671 = vmul.f32 %v5607, %v5664
      %v5672 = vmul.f32 %v5609, %v5665
      %v5673 = vmul.f32 %v5555, %v5652
      %v5674 = vmul.f32 %v5557, %v5653
      %v5675 = vmul.f32 %v5559, %v5654
      %v5676 = vmul.f32 %v5561, %v5655
      %v5677 = vmul.f32 %v5563, %v5656
      %v5678 = vmul.f32 %v5565, %v5657
      %v5679 = vmul.f32 %v5567, %v5658
      %v5680 = vadd.f32 %v5666, %v5673
      %v5681 = vadd.f32 %v5667, %v5674
      %v5682 = vadd.f32 %v5668, %v5675
      %v5683 = vadd.f32 %v5669, %v5676
      %v5684 = vadd.f32 %v5670, %v5677
      %v5685 = vadd.f32 %v5671, %v5678
      %v5686 = vadd.f32 %v5672, %v5679
      %5688 = vset.pattern.permute.xlu0 0
      %5689 = vperm.xlu0 %5688, %v5519
      %v5690 = vpop.permute.xlu0 %5689
      %5693 = vset.pattern.permute.xlu0 0
      %5694 = vperm.xlu0 %5693, %v5520
      %v5695 = vpop.permute.xlu0 %5694
      %5698 = vset.pattern.permute.xlu0 0
      %5699 = vperm.xlu0 %5698, %v5521
      %v5700 = vpop.permute.xlu0 %5699
      %5703 = vset.pattern.permute.xlu0 0
      %5704 = vperm.xlu0 %5703, %v5522
      %v5705 = vpop.permute.xlu0 %5704
      %5708 = vset.pattern.permute.xlu0 0
      %5709 = vperm.xlu0 %5708, %v5523
      %v5710 = vpop.permute.xlu0 %5709
      %5713 = vset.pattern.permute.xlu0 0
      %5714 = vperm.xlu0 %5713, %v5524
      %v5715 = vpop.permute.xlu0 %5714
      %5718 = vset.pattern.permute.xlu0 0
      %5719 = vperm.xlu0 %5718, %v5525
      %v5720 = vpop.permute.xlu0 %5719
      %v5722 = vmul.f32 %v5680, %v5690
      %v5723 = vmul.f32 %v5681, %v5695
      %v5724 = vmul.f32 %v5682, %v5700
      %v5725 = vmul.f32 %v5683, %v5705
      %v5726 = vmul.f32 %v5684, %v5710
      %v5727 = vmul.f32 %v5685, %v5715
      %v5728 = vmul.f32 %v5686, %v5720
      %5729 = vst [vmem:[#allocation2] sm:$0xff] %v5722
      %5730 = vst [vmem:[#allocation2 + $0x8] sm:$0xff] %v5723
      %5731 = vst [vmem:[#allocation2 + $0x10] sm:$0xff] %v5724
      %5732 = vst [vmem:[#allocation2 + $0x18] sm:$0xff] %v5725
      %5733 = vst [vmem:[#allocation2 + $0x20] sm:$0xff] %v5726
      %5734 = vst [vmem:[#allocation2 + $0x28] sm:$0xff] %v5727
      %5735 = vst [vmem:[#allocation2 + $0x30] sm:$0xff] %v5728
      %v5736 = vtanh.pop %v5722
      %v5737 = vtanh.pop %v5723
      %v5738 = vtanh.pop %v5724
      %v5739 = vtanh.pop %v5725
      %v5740 = vtanh.pop %v5726
      %v5741 = vtanh.pop %v5727
      %v5742 = vtanh.pop %v5728
      %v5743 = vmul.f32 %v5639, %v5736
      %v5744 = vmul.f32 %v5641, %v5737
      %v5745 = vmul.f32 %v5643, %v5738
      %v5746 = vmul.f32 %v5645, %v5739
      %v5747 = vmul.f32 %v5647, %v5740
      %v5748 = vmul.f32 %v5649, %v5741
      %v5749 = vmul.f32 %v5651, %v5742
      %v5750 = vmul.f32 %v5743, %v5690
      %v5751 = vmul.f32 %v5744, %v5695
      %v5752 = vmul.f32 %v5745, %v5700
      %v5753 = vmul.f32 %v5746, %v5705
      %v5754 = vmul.f32 %v5747, %v5710
      %v5755 = vmul.f32 %v5748, %v5715
      %v5756 = vmul.f32 %v5749, %v5720
      %5757 = vst [vmem:[%s250] sm:$0xff] %v5750
      %5758 = vst [vmem:[%s250 + $0x8] sm:$0xff] %v5751
      %5759 = vst [vmem:[%s250 + $0x10] sm:$0xff] %v5752
      %5760 = vst [vmem:[%s250 + $0x18] sm:$0xff] %v5753
      %5761 = vst [vmem:[%s250 + $0x20] sm:$0xff] %v5754
      %5762 = vst [vmem:[%s250 + $0x28] sm:$0xff] %v5755
      %5763 = vst [vmem:[%s250 + $0x30] sm:$0xff] %v5756
      %p5764 = scmp.lt.s32.totalorder %s20, 1
      %s5765 = scalar_select %p5764, %s20, 1
      %s5766 = smul.addr %s5765, 7
      %s5767 = smul.addr %s5766, 8
      %s5768 = scalar_lea.vmem %s5, %s5767
      // Predicated region
      $region45: #{forward.4} parent=39 // pred_check
        %p5769 = pneg %p158
      $region46: #{forward.4} parent=39 // pred_check_branch
        %5771 = sbr.rel (%p5769) target = $region48
      $region47: #{forward.4} parent=39 // pred_region
        _
      $region48: #{forward.4} parent=39 // pred_fallthru
        _
    $region40: #{forward.4} parent=5 // pred_fallthru
      _
    %p5772 = scmp.le.s32.totalorder 2, %s11
    // Predicated region
    $region49: #{forward.4} parent=5 // pred_check
      %p5773 = pneg %p5772
    $region50: #{forward.4} parent=5 // pred_check_branch
      %5775 = sbr.rel (%p5773) target = $region52
    $region51: #{forward.4} parent=5 // pred_region
      %s5776 = ssub.s32 %s11, 2
      // Predicated region
      $region53: #{forward.4} parent=51 // pred_check
        %p5777 = pneg %p164
      $region54: #{forward.4} parent=51 // pred_check_branch
        %5779 = sbr.rel (%p5777) target = $region56
      $region55: #{forward.4} parent=51 // pred_region
        %p5780 = scmp.lt.s32.totalorder %s22, 1
        %s5781 = scalar_select %p5780, %s22, 1
        %s5782 = smul.addr %s5781, 7
        %s5783 = smul.addr %s5782, 8
        %s5784 = scalar_lea.vmem %s5, %s5783
      $region56: #{forward.4} parent=51 // pred_fallthru
        _
    $region52: #{forward.4} parent=5 // pred_fallthru
      _
  $region6: #{forward.4} parent=0 // loop_footer
    %s15 = sadd.s32 1, %s11
  $region7: #{forward.4} parent=0 // loop_footer_branch
    %10 = sbr.rel target = $region3
  $region8: #{forward.4} parent=0 // loop_exit
    _

// kernel: forward.5
$region0: #{forward.5}
  #allocation0 [shape = 'u32[]', space=smem, size = 0x4, offset = 0x4, fixed_abs, tag = 'smem constant byte address 0x4 - core index']
  #allocation1 [shape = 'u32[144,128]{1,0:T(1,128)}', space=vmem, size = 0x12000, scoped, tag = 'internal scratch']
  %s0 = inlined_call_operand.vmem [shape: f32[2,56,128], index: 0, kind: input, shape index: {}]
  %s1 = inlined_call_operand.vmem [shape: bf16[1152,256], index: 1, kind: input, shape index: {}]
  %s2 = inlined_call_operand.vmem [shape: f32[1,256], index: 2, kind: input, shape index: {}]
  %s3 = inlined_call_operand.vmem [shape: bf16[2304,128], index: 3, kind: input, shape index: {}]
  %s4 = inlined_call_operand.vmem [shape: f32[1,128], index: 4, kind: input, shape index: {}]
  %s5 = inlined_call_operand.vmem [shape: f32[56,128], index: 5, kind: input, shape index: {}]
  %s6 = inlined_call_operand.vmem [shape: f32[56,1], index: 6, kind: input, shape index: {}]
  %s7 = inlined_call_operand.vmem [shape: f32[2,56,128], index: 7, kind: output, shape index: {}]
  %s8 = sld [smem:[#allocation0]]
  $region61: #{forward.5} parent=0
    _
  %s10 = ssub.s32 1, %s8
  %s11 = scalar_select 0, %s10, %s8
  loop: start=0, step=1, limit=4
  $region2: #{forward.5} parent=0 // loop_pre_header
    _
  $region3: #{forward.5} parent=0 // loop_header
    %s13 = sphi 0, %s17
    %p14 = scmp.ge.s32.totalorder %s13, 4
    %s23 = sphi 0, %s25
    %s26 = sphi 0, %s23
    %s27 = sphi 0, %s26
    %s43 = sphi 0, %s27
    %s47 = sphi 0, %s47
    %s49 = sphi 0, %s47
    %s50 = sphi 0, %s49
    %s64 = sphi 0, %s50
    %s68 = sphi 0, %s68
    %s70 = sphi 0, %s68
    %s71 = sphi 0, %s70
    %s85 = sphi 0, %s71
    %s89 = sphi 0, %s89
    %s91 = sphi 0, %s89
    %s92 = sphi 0, %s91
    %s106 = sphi 0, %s92
    %s110 = sphi 0, %s110
    %s112 = sphi 0, %s110
    %s113 = sphi 0, %s112
    %s127 = sphi 0, %s113
    %s131 = sphi 0, %s131
    %s133 = sphi 0, %s131
    %s134 = sphi 0, %s133
    %s148 = sphi 0, %s134
    %s152 = sphi 0, %s152
    %s154 = sphi 0, %s152
    %s155 = sphi 0, %s154
    %s169 = sphi 0, %s155
    %s175 = sphi 0, %s177
    %s178 = sphi 0, %s175
    %s179 = sphi 0, %s178
    %s195 = sphi 0, %s179
  $region4: #{forward.5} parent=0 // loop_header_branch
    %16 = sbr.rel (%p14) target = $region8
  $region5: #{forward.5} parent=0 // loop_body
    %s18 = ssub.s32 %s13, 1
    %s19 = ssub.s32 %s13, 2
    %s20 = sadd.s32 %s13, 1
    %s21 = ssub.s32 %s13, %s20
    %p22 = scmp.eq.s32.totalorder %s21, 0
    %s24 = sadd.s32 %s23, 1
    %s25 = scalar_select %p22, %s23, %s24
    %p28 = pneg %p22
    %p29 = scmp.eq.s32.totalorder %s13, 1
    %p30 = por %p28, %p29
    %p31 = scmp.ne.s32.totalorder %s23, %s26
    %p32 = scmp.eq.s32.totalorder %s13, 0
    %p33 = por %p31, %p32
    %p34 = scmp.ne.s32.totalorder %s23, %s26
    %p35 = scmp.eq.s32.totalorder %s18, 1
    %p36 = por %p34, %p35
    %p37 = scmp.ne.s32.totalorder %s26, %s27
    %p38 = scmp.eq.s32.totalorder %s18, 0
    %p39 = por %p37, %p38
    %p40 = scmp.ne.s32.totalorder %s26, %s27
    %p41 = scmp.eq.s32.totalorder %s19, 1
    %p42 = por %p40, %p41
    %p44 = scmp.ne.s32.totalorder %s27, %s43
    %p45 = scmp.eq.s32.totalorder %s19, 0
    %p46 = por %p44, %p45
    %s48 = sadd.s32 %s47, 1
    %p51 = scmp.eq.s32.totalorder %s13, 1
    %p52 = scmp.ne.s32.totalorder %s47, %s49
    %p53 = scmp.eq.s32.totalorder %s13, 0
    %p54 = por %p52, %p53
    %p55 = scmp.ne.s32.totalorder %s47, %s49
    %p56 = scmp.eq.s32.totalorder %s18, 1
    %p57 = por %p55, %p56
    %p58 = scmp.ne.s32.totalorder %s49, %s50
    %p59 = scmp.eq.s32.totalorder %s18, 0
    %p60 = por %p58, %p59
    %p61 = scmp.ne.s32.totalorder %s49, %s50
    %p62 = scmp.eq.s32.totalorder %s19, 1
    %p63 = por %p61, %p62
    %p65 = scmp.ne.s32.totalorder %s50, %s64
    %p66 = scmp.eq.s32.totalorder %s19, 0
    %p67 = por %p65, %p66
    %s69 = sadd.s32 %s68, 1
    %p72 = scmp.eq.s32.totalorder %s13, 1
    %p73 = scmp.ne.s32.totalorder %s68, %s70
    %p74 = scmp.eq.s32.totalorder %s13, 0
    %p75 = por %p73, %p74
    %p76 = scmp.ne.s32.totalorder %s68, %s70
    %p77 = scmp.eq.s32.totalorder %s18, 1
    %p78 = por %p76, %p77
    %p79 = scmp.ne.s32.totalorder %s70, %s71
    %p80 = scmp.eq.s32.totalorder %s18, 0
    %p81 = por %p79, %p80
    %p82 = scmp.ne.s32.totalorder %s70, %s71
    %p83 = scmp.eq.s32.totalorder %s19, 1
    %p84 = por %p82, %p83
    %p86 = scmp.ne.s32.totalorder %s71, %s85
    %p87 = scmp.eq.s32.totalorder %s19, 0
    %p88 = por %p86, %p87
    %s90 = sadd.s32 %s89, 1
    %p93 = scmp.eq.s32.totalorder %s13, 1
    %p94 = scmp.ne.s32.totalorder %s89, %s91
    %p95 = scmp.eq.s32.totalorder %s13, 0
    %p96 = por %p94, %p95
    %p97 = scmp.ne.s32.totalorder %s89, %s91
    %p98 = scmp.eq.s32.totalorder %s18, 1
    %p99 = por %p97, %p98
    %p100 = scmp.ne.s32.totalorder %s91, %s92
    %p101 = scmp.eq.s32.totalorder %s18, 0
    %p102 = por %p100, %p101
    %p103 = scmp.ne.s32.totalorder %s91, %s92
    %p104 = scmp.eq.s32.totalorder %s19, 1
    %p105 = por %p103, %p104
    %p107 = scmp.ne.s32.totalorder %s92, %s106
    %p108 = scmp.eq.s32.totalorder %s19, 0
    %p109 = por %p107, %p108
    %s111 = sadd.s32 %s110, 1
    %p114 = scmp.eq.s32.totalorder %s13, 1
    %p115 = scmp.ne.s32.totalorder %s110, %s112
    %p116 = scmp.eq.s32.totalorder %s13, 0
    %p117 = por %p115, %p116
    %p118 = scmp.ne.s32.totalorder %s110, %s112
    %p119 = scmp.eq.s32.totalorder %s18, 1
    %p120 = por %p118, %p119
    %p121 = scmp.ne.s32.totalorder %s112, %s113
    %p122 = scmp.eq.s32.totalorder %s18, 0
    %p123 = por %p121, %p122
    %p124 = scmp.ne.s32.totalorder %s112, %s113
    %p125 = scmp.eq.s32.totalorder %s19, 1
    %p126 = por %p124, %p125
    %p128 = scmp.ne.s32.totalorder %s113, %s127
    %p129 = scmp.eq.s32.totalorder %s19, 0
    %p130 = por %p128, %p129
    %s132 = sadd.s32 %s131, 1
    %p135 = scmp.eq.s32.totalorder %s13, 1
    %p136 = scmp.ne.s32.totalorder %s131, %s133
    %p137 = scmp.eq.s32.totalorder %s13, 0
    %p138 = por %p136, %p137
    %p139 = scmp.ne.s32.totalorder %s131, %s133
    %p140 = scmp.eq.s32.totalorder %s18, 1
    %p141 = por %p139, %p140
    %p142 = scmp.ne.s32.totalorder %s133, %s134
    %p143 = scmp.eq.s32.totalorder %s18, 0
    %p144 = por %p142, %p143
    %p145 = scmp.ne.s32.totalorder %s133, %s134
    %p146 = scmp.eq.s32.totalorder %s19, 1
    %p147 = por %p145, %p146
    %p149 = scmp.ne.s32.totalorder %s134, %s148
    %p150 = scmp.eq.s32.totalorder %s19, 0
    %p151 = por %p149, %p150
    %s153 = sadd.s32 %s152, 1
    %p156 = scmp.eq.s32.totalorder %s13, 1
    %p157 = scmp.ne.s32.totalorder %s152, %s154
    %p158 = scmp.eq.s32.totalorder %s13, 0
    %p159 = por %p157, %p158
    %p160 = scmp.ne.s32.totalorder %s152, %s154
    %p161 = scmp.eq.s32.totalorder %s18, 1
    %p162 = por %p160, %p161
    %p163 = scmp.ne.s32.totalorder %s154, %s155
    %p164 = scmp.eq.s32.totalorder %s18, 0
    %p165 = por %p163, %p164
    %p166 = scmp.ne.s32.totalorder %s154, %s155
    %p167 = scmp.eq.s32.totalorder %s19, 1
    %p168 = por %p166, %p167
    %p170 = scmp.ne.s32.totalorder %s155, %s169
    %p171 = scmp.eq.s32.totalorder %s19, 0
    %p172 = por %p170, %p171
    %s173 = ssub.s32 %s13, %s20
    %p174 = scmp.eq.s32.totalorder %s173, 0
    %s176 = sadd.s32 %s175, 1
    %s177 = scalar_select %p174, %s175, %s176
    %p180 = pneg %p174
    %p181 = scmp.eq.s32.totalorder %s13, 1
    %p182 = por %p180, %p181
    %p183 = scmp.ne.s32.totalorder %s175, %s178
    %p184 = scmp.eq.s32.totalorder %s13, 0
    %p185 = por %p183, %p184
    %p186 = scmp.ne.s32.totalorder %s175, %s178
    %p187 = scmp.eq.s32.totalorder %s18, 1
    %p188 = por %p186, %p187
    %p189 = scmp.ne.s32.totalorder %s178, %s179
    %p190 = scmp.eq.s32.totalorder %s18, 0
    %p191 = por %p189, %p190
    %p192 = scmp.ne.s32.totalorder %s178, %s179
    %p193 = scmp.eq.s32.totalorder %s19, 1
    %p194 = por %p192, %p193
    %p196 = scmp.ne.s32.totalorder %s179, %s195
    %p197 = scmp.eq.s32.totalorder %s19, 0
    %p198 = por %p196, %p197
    %p199 = scmp.le.s32.totalorder 1, %s13
    %p200 = scmp.lt.s32.totalorder %s13, 3
    %p201 = pnand %p199, %p200
    %p202 = pneg %p201
    // Predicated region
    $region9: #{forward.5} parent=5 // pred_check
      _
    $region10: #{forward.5} parent=5 // pred_check_branch
      %204 = sbr.rel (%p201) target = $region12
    $region11: #{forward.5} parent=5 // pred_region
      %s205 = ssub.s32 %s13, 1
      // Predicated region
      $region13: #{forward.5} parent=11 // pred_check
        %p206 = pneg %p60
      $region14: #{forward.5} parent=11 // pred_check_branch
        %208 = sbr.rel (%p206) target = $region16
      $region15: #{forward.5} parent=11 // pred_region
        _
      $region16: #{forward.5} parent=11 // pred_fallthru
        _
      // Predicated region
      $region17: #{forward.5} parent=11 // pred_check
        %p209 = pneg %p81
      $region18: #{forward.5} parent=11 // pred_check_branch
        %211 = sbr.rel (%p209) target = $region20
      $region19: #{forward.5} parent=11 // pred_region
        _
      $region20: #{forward.5} parent=11 // pred_fallthru
        _
      // Predicated region
      $region21: #{forward.5} parent=11 // pred_check
        %p212 = pneg %p102
      $region22: #{forward.5} parent=11 // pred_check_branch
        %214 = sbr.rel (%p212) target = $region24
      $region23: #{forward.5} parent=11 // pred_region
        _
      $region24: #{forward.5} parent=11 // pred_fallthru
        _
      // Predicated region
      $region25: #{forward.5} parent=11 // pred_check
        %p215 = pneg %p123
      $region26: #{forward.5} parent=11 // pred_check_branch
        %217 = sbr.rel (%p215) target = $region28
      $region27: #{forward.5} parent=11 // pred_region
        _
      $region28: #{forward.5} parent=11 // pred_fallthru
        _
      // Predicated region
      $region29: #{forward.5} parent=11 // pred_check
        %p218 = pneg %p144
      $region30: #{forward.5} parent=11 // pred_check_branch
        %220 = sbr.rel (%p218) target = $region32
      $region31: #{forward.5} parent=11 // pred_region
        _
      $region32: #{forward.5} parent=11 // pred_fallthru
        _
      // Predicated region
      $region33: #{forward.5} parent=11 // pred_check
        %p221 = pneg %p165
      $region34: #{forward.5} parent=11 // pred_check_branch
        %223 = sbr.rel (%p221) target = $region36
      $region35: #{forward.5} parent=11 // pred_region
        _
      $region36: #{forward.5} parent=11 // pred_fallthru
        _
    $region12: #{forward.5} parent=5 // pred_fallthru
      _
    %p224 = scmp.lt.s32.totalorder %s13, 2
    // Predicated region
    $region37: #{forward.5} parent=5 // pred_check
      %p225 = pneg %p224
    $region38: #{forward.5} parent=5 // pred_check_branch
      %227 = sbr.rel (%p225) target = $region40
    $region39: #{forward.5} parent=5 // pred_region
      // Predicated region
      $region41: #{forward.5} parent=39 // pred_check
        %p228 = pneg %p33
      $region42: #{forward.5} parent=39 // pred_check_branch
        %230 = sbr.rel (%p228) target = $region44
      $region43: #{forward.5} parent=39 // pred_region
        %p231 = scmp.lt.s32.totalorder %s13, 1
        %s232 = scalar_select %p231, %s13, 1
        %s233 = smul.addr %s232, 7
        %s234 = smul.addr %s233, 8
        %s235 = scalar_lea.vmem %s0, %s234
      $region44: #{forward.5} parent=39 // pred_fallthru
        _
    $region40: #{forward.5} parent=5 // pred_fallthru
      _
    %p236 = scmp.le.s32.totalorder 1, %s13
    %p237 = scmp.lt.s32.totalorder %s13, 3
    %p238 = pnand %p236, %p237
    %p239 = pneg %p238
    // Predicated region
    $region45: #{forward.5} parent=5 // pred_check
      _
    $region46: #{forward.5} parent=5 // pred_check_branch
      %241 = sbr.rel (%p238) target = $region48
    $region47: #{forward.5} parent=5 // pred_region
      %s242 = ssub.s32 %s13, 1
      %p243 = scmp.lt.s32.totalorder %s18, 1
      %s244 = scalar_select %p243, %s18, 1
      %s245 = smul.addr %s244, 7
      %s246 = smul.addr %s245, 8
      %s247 = scalar_lea.vmem %s0, %s246
      %p248 = pneg %p39
      %p249 = pneg %p36
      %p250 = pneg %p60
      %p251 = pneg %p57
      %p252 = pneg %p81
      %p253 = pneg %p78
      %p254 = pneg %p102
      %p255 = pneg %p99
      %p256 = pneg %p123
      %p257 = pneg %p120
      %p258 = pneg %p144
      %p259 = pneg %p141
      %p260 = pneg %p165
      %p261 = pneg %p162
      %p262 = pneg %p191
      %p263 = pneg %p188
      %p264 = scmp.lt.s32.totalorder %s18, 1
      %s265 = scalar_select %p264, %s18, 1
      %s266 = smul.addr %s265, 7
      %s267 = smul.addr %s266, 8
      %s268 = scalar_lea.vmem %s7, %s267
      %p269 = scmp.lt.s32.totalorder %s18, 1
      %s270 = scalar_select %p269, %s18, 1
      %s271 = smul.addr %s270, 7
      %s272 = smul.addr %s271, 8
      %s273 = scalar_lea.vmem %s0, %s272
      %p274 = scmp.lt.s32.totalorder %s18, 1
      %s275 = scalar_select %p274, %s18, 1
      %s276 = smul.addr %s275, 7
      %s277 = smul.addr %s276, 8
      %s278 = scalar_lea.vmem %s7, %s277
      %v280 = vld [vmem:[%s273] sm:$0xff]
      %v281 = vld [vmem:[%s273 + $0x8] sm:$0xff]
      %v282 = vld [vmem:[%s273 + $0x10] sm:$0xff]
      %v283 = vld [vmem:[%s273 + $0x18] sm:$0xff]
      %v284 = vld [vmem:[%s273 + $0x20] sm:$0xff]
      %v285 = vld [vmem:[%s273 + $0x28] sm:$0xff]
      %v286 = vld [vmem:[%s273 + $0x30] sm:$0xff]
      %v287 = vpack.c.bf16 %v281, %v280
      %v288 = vpack.c.bf16 %v283, %v282
      %v289 = vpack.c.bf16 %v285, %v284
      %v290 = vpack.c.bf16 %v286, %v286
      %v291 = vld [vmem:[%s6] sm:$0xff]
      %v292 = vld [vmem:[%s6 + $0x8] sm:$0xff]
      %v293 = vld [vmem:[%s6 + $0x10] sm:$0xff]
      %v294 = vld [vmem:[%s6 + $0x18] sm:$0xff]
      %v295 = vld [vmem:[%s6 + $0x20] sm:$0xff]
      %v296 = vld [vmem:[%s6 + $0x28] sm:$0xff]
      %v297 = vld [vmem:[%s6 + $0x30] sm:$0xff]
      %v298 = vld [vmem:[%s1] sm:$0xff]
      %v299 = vld [vmem:[%s1 + $0x8] sm:$0xff]
      %v300 = vld [vmem:[%s1 + $0x10] sm:$0xff]
      %v301 = vld [vmem:[%s1 + $0x18] sm:$0xff]
      %v302 = vld [vmem:[%s1 + $0x20] sm:$0xff]
      %v303 = vld [vmem:[%s1 + $0x28] sm:$0xff]
      %v304 = vld [vmem:[%s1 + $0x30] sm:$0xff]
      %v305 = vld [vmem:[%s1 + $0x38] sm:$0xff]
      %v306 = vld [vmem:[%s1 + $0x40] sm:$0xff]
      %v307 = vld [vmem:[%s1 + $0x48] sm:$0xff]
      %v308 = vld [vmem:[%s1 + $0x50] sm:$0xff]
      %v309 = vld [vmem:[%s1 + $0x58] sm:$0xff]
      %v310 = vld [vmem:[%s1 + $0x60] sm:$0xff]
      %v311 = vld [vmem:[%s1 + $0x68] sm:$0xff]
      %v312 = vld [vmem:[%s1 + $0x70] sm:$0xff]
      %v313 = vld [vmem:[%s1 + $0x78] sm:$0xff]
      %v314 = vld [vmem:[%s1 + $0x80] sm:$0xff]
      %v315 = vld [vmem:[%s1 + $0x88] sm:$0xff]
      %v316 = vld [vmem:[%s1 + $0x90] sm:$0xff]
      %v317 = vld [vmem:[%s1 + $0x98] sm:$0xff]
      %v318 = vld [vmem:[%s1 + $0xa0] sm:$0xff]
      %v319 = vld [vmem:[%s1 + $0xa8] sm:$0xff]
      %v320 = vld [vmem:[%s1 + $0xb0] sm:$0xff]
      %v321 = vld [vmem:[%s1 + $0xb8] sm:$0xff]
      %v322 = vld [vmem:[%s1 + $0xc0] sm:$0xff]
      %v323 = vld [vmem:[%s1 + $0xc8] sm:$0xff]
      %v324 = vld [vmem:[%s1 + $0xd0] sm:$0xff]
      %v325 = vld [vmem:[%s1 + $0xd8] sm:$0xff]
      %v326 = vld [vmem:[%s1 + $0xe0] sm:$0xff]
      %v327 = vld [vmem:[%s1 + $0xe8] sm:$0xff]
      %v328 = vld [vmem:[%s1 + $0xf0] sm:$0xff]
      %v329 = vld [vmem:[%s1 + $0xf8] sm:$0xff]
      %v330 = vld [vmem:[%s1 + $0x100] sm:$0xff]
      %v331 = vld [vmem:[%s1 + $0x108] sm:$0xff]
      %v332 = vld [vmem:[%s1 + $0x110] sm:$0xff]
      %v333 = vld [vmem:[%s1 + $0x118] sm:$0xff]
      %v334 = vld [vmem:[%s1 + $0x120] sm:$0xff]
      %v335 = vld [vmem:[%s1 + $0x128] sm:$0xff]
      %v336 = vld [vmem:[%s1 + $0x130] sm:$0xff]
      %v337 = vld [vmem:[%s1 + $0x138] sm:$0xff]
      %v338 = vld [vmem:[%s1 + $0x140] sm:$0xff]
      %v339 = vld [vmem:[%s1 + $0x148] sm:$0xff]
      %v340 = vld [vmem:[%s1 + $0x150] sm:$0xff]
      %v341 = vld [vmem:[%s1 + $0x158] sm:$0xff]
      %v342 = vld [vmem:[%s1 + $0x160] sm:$0xff]
      %v343 = vld [vmem:[%s1 + $0x168] sm:$0xff]
      %v344 = vld [vmem:[%s1 + $0x170] sm:$0xff]
      %v345 = vld [vmem:[%s1 + $0x178] sm:$0xff]
      %v346 = vld [vmem:[%s1 + $0x180] sm:$0xff]
      %v347 = vld [vmem:[%s1 + $0x188] sm:$0xff]
      %v348 = vld [vmem:[%s1 + $0x190] sm:$0xff]
      %v349 = vld [vmem:[%s1 + $0x198] sm:$0xff]
      %v350 = vld [vmem:[%s1 + $0x1a0] sm:$0xff]
      %v351 = vld [vmem:[%s1 + $0x1a8] sm:$0xff]
      %v352 = vld [vmem:[%s1 + $0x1b0] sm:$0xff]
      %v353 = vld [vmem:[%s1 + $0x1b8] sm:$0xff]
      %v354 = vld [vmem:[%s1 + $0x1c0] sm:$0xff]
      %v355 = vld [vmem:[%s1 + $0x1c8] sm:$0xff]
      %v356 = vld [vmem:[%s1 + $0x1d0] sm:$0xff]
      %v357 = vld [vmem:[%s1 + $0x1d8] sm:$0xff]
      %v358 = vld [vmem:[%s1 + $0x1e0] sm:$0xff]
      %v359 = vld [vmem:[%s1 + $0x1e8] sm:$0xff]
      %v360 = vld [vmem:[%s1 + $0x1f0] sm:$0xff]
      %v361 = vld [vmem:[%s1 + $0x1f8] sm:$0xff]
      %v362 = vld [vmem:[%s1 + $0x200] sm:$0xff]
      %v363 = vld [vmem:[%s1 + $0x208] sm:$0xff]
      %v364 = vld [vmem:[%s1 + $0x210] sm:$0xff]
      %v365 = vld [vmem:[%s1 + $0x218] sm:$0xff]
      %v366 = vld [vmem:[%s1 + $0x220] sm:$0xff]
      %v367 = vld [vmem:[%s1 + $0x228] sm:$0xff]
      %v368 = vld [vmem:[%s1 + $0x230] sm:$0xff]
      %v369 = vld [vmem:[%s1 + $0x238] sm:$0xff]
      %v370 = vld [vmem:[%s1 + $0x240] sm:$0xff]
      %v371 = vld [vmem:[%s1 + $0x248] sm:$0xff]
      %v372 = vld [vmem:[%s1 + $0x250] sm:$0xff]
      %v373 = vld [vmem:[%s1 + $0x258] sm:$0xff]
      %v374 = vld [vmem:[%s1 + $0x260] sm:$0xff]
      %v375 = vld [vmem:[%s1 + $0x268] sm:$0xff]
      %v376 = vld [vmem:[%s1 + $0x270] sm:$0xff]
      %v377 = vld [vmem:[%s1 + $0x278] sm:$0xff]
      %v378 = vld [vmem:[%s1 + $0x280] sm:$0xff]
      %v379 = vld [vmem:[%s1 + $0x288] sm:$0xff]
      %v380 = vld [vmem:[%s1 + $0x290] sm:$0xff]
      %v381 = vld [vmem:[%s1 + $0x298] sm:$0xff]
      %v382 = vld [vmem:[%s1 + $0x2a0] sm:$0xff]
      %v383 = vld [vmem:[%s1 + $0x2a8] sm:$0xff]
      %v384 = vld [vmem:[%s1 + $0x2b0] sm:$0xff]
      %v385 = vld [vmem:[%s1 + $0x2b8] sm:$0xff]
      %v386 = vld [vmem:[%s1 + $0x2c0] sm:$0xff]
      %v387 = vld [vmem:[%s1 + $0x2c8] sm:$0xff]
      %v388 = vld [vmem:[%s1 + $0x2d0] sm:$0xff]
      %v389 = vld [vmem:[%s1 + $0x2d8] sm:$0xff]
      %v390 = vld [vmem:[%s1 + $0x2e0] sm:$0xff]
      %v391 = vld [vmem:[%s1 + $0x2e8] sm:$0xff]
      %v392 = vld [vmem:[%s1 + $0x2f0] sm:$0xff]
      %v393 = vld [vmem:[%s1 + $0x2f8] sm:$0xff]
      %v394 = vld [vmem:[%s1 + $0x300] sm:$0xff]
      %v395 = vld [vmem:[%s1 + $0x308] sm:$0xff]
      %v396 = vld [vmem:[%s1 + $0x310] sm:$0xff]
      %v397 = vld [vmem:[%s1 + $0x318] sm:$0xff]
      %v398 = vld [vmem:[%s1 + $0x320] sm:$0xff]
      %v399 = vld [vmem:[%s1 + $0x328] sm:$0xff]
      %v400 = vld [vmem:[%s1 + $0x330] sm:$0xff]
      %v401 = vld [vmem:[%s1 + $0x338] sm:$0xff]
      %v402 = vld [vmem:[%s1 + $0x340] sm:$0xff]
      %v403 = vld [vmem:[%s1 + $0x348] sm:$0xff]
      %v404 = vld [vmem:[%s1 + $0x350] sm:$0xff]
      %v405 = vld [vmem:[%s1 + $0x358] sm:$0xff]
      %v406 = vld [vmem:[%s1 + $0x360] sm:$0xff]
      %v407 = vld [vmem:[%s1 + $0x368] sm:$0xff]
      %v408 = vld [vmem:[%s1 + $0x370] sm:$0xff]
      %v409 = vld [vmem:[%s1 + $0x378] sm:$0xff]
      %v410 = vld [vmem:[%s1 + $0x380] sm:$0xff]
      %v411 = vld [vmem:[%s1 + $0x388] sm:$0xff]
      %v412 = vld [vmem:[%s1 + $0x390] sm:$0xff]
      %v413 = vld [vmem:[%s1 + $0x398] sm:$0xff]
      %v414 = vld [vmem:[%s1 + $0x3a0] sm:$0xff]
      %v415 = vld [vmem:[%s1 + $0x3a8] sm:$0xff]
      %v416 = vld [vmem:[%s1 + $0x3b0] sm:$0xff]
      %v417 = vld [vmem:[%s1 + $0x3b8] sm:$0xff]
      %v418 = vld [vmem:[%s1 + $0x3c0] sm:$0xff]
      %v419 = vld [vmem:[%s1 + $0x3c8] sm:$0xff]
      %v420 = vld [vmem:[%s1 + $0x3d0] sm:$0xff]
      %v421 = vld [vmem:[%s1 + $0x3d8] sm:$0xff]
      %v422 = vld [vmem:[%s1 + $0x3e0] sm:$0xff]
      %v423 = vld [vmem:[%s1 + $0x3e8] sm:$0xff]
      %v424 = vld [vmem:[%s1 + $0x3f0] sm:$0xff]
      %v425 = vld [vmem:[%s1 + $0x3f8] sm:$0xff]
      %v426 = vld [vmem:[%s1 + $0x400] sm:$0xff]
      %v427 = vld [vmem:[%s1 + $0x408] sm:$0xff]
      %v428 = vld [vmem:[%s1 + $0x410] sm:$0xff]
      %v429 = vld [vmem:[%s1 + $0x418] sm:$0xff]
      %v430 = vld [vmem:[%s1 + $0x420] sm:$0xff]
      %v431 = vld [vmem:[%s1 + $0x428] sm:$0xff]
      %v432 = vld [vmem:[%s1 + $0x430] sm:$0xff]
      %v433 = vld [vmem:[%s1 + $0x438] sm:$0xff]
      %v434 = vld [vmem:[%s1 + $0x440] sm:$0xff]
      %v435 = vld [vmem:[%s1 + $0x448] sm:$0xff]
      %v436 = vld [vmem:[%s1 + $0x450] sm:$0xff]
      %v437 = vld [vmem:[%s1 + $0x458] sm:$0xff]
      %v438 = vld [vmem:[%s1 + $0x460] sm:$0xff]
      %v439 = vld [vmem:[%s1 + $0x468] sm:$0xff]
      %v440 = vld [vmem:[%s1 + $0x470] sm:$0xff]
      %v441 = vld [vmem:[%s1 + $0x478] sm:$0xff]
      %vm446 = vcmask 1043456
      %v447 = vrot.slane %v287, 4
      %v448 = vrot.slane %v288, 4
      %v449 = vsel %vm446, %v447, %v448
      %v450 = vrot.slane %v289, 4
      %v451 = vsel %vm446, %v448, %v450
      %v452 = vrot.slane %v290, 4
      %v453 = vsel %vm446, %v450, %v452
      %vm457 = vcmask 1043456
      %v460 = vsel %vm457, 0, %v447
      %vm462 = vsmask.f32 7424
      %v463 = vshrl.u32 %v460, 16
      %v465 = vshll.u32 %v460, 16
      %v467 = vrot.slane %v465, 1
      %v468 = vor.u32 %v463, %v467
      %v470 = vshll.u32 %v449, 16
      %v472 = vrot.slane %v470, 1
      %v473 = vsel %vm462, %v468, %v472
      %v474 = vshrl.u32 %v449, 16
      %v476 = vor.u32 %v474, %v472
      %v478 = vshll.u32 %v451, 16
      %v480 = vrot.slane %v478, 1
      %v481 = vsel %vm462, %v476, %v480
      %v482 = vshrl.u32 %v451, 16
      %v484 = vor.u32 %v482, %v480
      %v486 = vshll.u32 %v453, 16
      %v488 = vrot.slane %v486, 1
      %v489 = vsel %vm462, %v484, %v488
      %v490 = vshrl.u32 %v453, 16
      %v492 = vor.u32 %v490, %v488
      %vm498 = vcmask 1046528
      %v499 = vrot.slane %v460, 1
      %v500 = vrot.slane %v449, 1
      %v501 = vsel %vm498, %v499, %v500
      %v502 = vrot.slane %v451, 1
      %v503 = vsel %vm498, %v500, %v502
      %v504 = vrot.slane %v453, 1
      %v505 = vsel %vm498, %v502, %v504
      %vm510 = vsmask.f32 4352
      %v511 = vrot.slane %v463, 3
      %v512 = vrot.slane %v465, 4
      %v513 = vor.u32 %v511, %v512
      %v514 = vrot.slane %v474, 3
      %v515 = vrot.slane %v470, 4
      %v516 = vor.u32 %v514, %v515
      %v517 = vsel %vm510, %v513, %v516
      %v518 = vrot.slane %v482, 3
      %v519 = vrot.slane %v478, 4
      %v520 = vor.u32 %v518, %v519
      %v521 = vsel %vm510, %v516, %v520
      %v522 = vrot.slane %v490, 3
      %v523 = vrot.slane %v486, 4
      %v524 = vor.u32 %v522, %v523
      %v525 = vsel %vm510, %v520, %v524
      %v530 = vrot.slane %v460, 4
      %v531 = vrot.slane %v449, 4
      %v532 = vsel %vm446, %v530, %v531
      %v533 = vrot.slane %v451, 4
      %v534 = vsel %vm446, %v531, %v533
      %v535 = vrot.slane %v453, 4
      %v536 = vsel %vm446, %v533, %v535
      %vm541 = vsmask.f32 3328
      %v542 = vrot.slane %v463, 4
      %v543 = vrot.slane %v465, 5
      %v544 = vor.u32 %v542, %v543
      %v545 = vrot.slane %v474, 4
      %v546 = vrot.slane %v470, 5
      %v547 = vor.u32 %v545, %v546
      %v548 = vsel %vm541, %v544, %v547
      %v549 = vrot.slane %v482, 4
      %v550 = vrot.slane %v478, 5
      %v551 = vor.u32 %v549, %v550
      %v552 = vsel %vm541, %v547, %v551
      %v553 = vrot.slane %v490, 4
      %v554 = vrot.slane %v486, 5
      %v555 = vor.u32 %v553, %v554
      %v556 = vsel %vm541, %v551, %v555
      %v557 = vshll.u32 0, 16
      %v559 = vrot.slane %v557, 5
      %v560 = vsel %vm541, %v555, %v559
      %vm566 = vcmask 1040384
      %v567 = vrot.slane %v460, 7
      %v568 = vrot.slane %v449, 7
      %v569 = vsel %vm566, %v567, %v568
      %v570 = vrot.slane %v451, 7
      %v571 = vsel %vm566, %v568, %v570
      %v572 = vrot.slane %v453, 7
      %v573 = vsel %vm566, %v570, %v572
      %v574 = vrot.slane 0, 7
      %v575 = vsel %vm566, %v572, %v574
      %vm580 = vsmask.f32 256
      %v581 = vrot.slane %v463, 7
      %v582 = vrot.slane %v474, 7
      %v583 = vor.u32 %v582, %v470
      %v584 = vsel %vm580, %v581, %v583
      %v585 = vrot.slane %v482, 7
      %v586 = vor.u32 %v585, %v478
      %v587 = vsel %vm580, %v582, %v586
      %v588 = vrot.slane %v490, 7
      %v589 = vor.u32 %v588, %v486
      %v590 = vsel %vm580, %v585, %v589
      %v591 = vshrl.u32 0, 16
      %v593 = vrot.slane %v591, 7
      %v594 = vor.u32 %v593, %v557
      %v595 = vsel %vm580, %v588, %v594
      %v600 = vld [vmem:[%s2] sm:$0x3]
      %v602 = vlaneseq
      %v603 = vshrl.u32 %v602, 7
      %v604 = vsub.s32 0, %v603
      %v605 = vrot.slane %v600, %v604
      %v606 = vlaneseq
      %v607 = vshrl.u32 %v606, 7
      %v608 = vsub.s32 1, %v607
      %v609 = vrot.slane %v600, %v608
      %v756 = vunpack.c.l.b16 %v298
      %v757 = vunpack.c.h.b16 %v298
      %v758 = vunpack.c.l.b16 %v299
      %v759 = vunpack.c.h.b16 %v299
      %v760 = vunpack.c.l.b16 %v300
      %v761 = vunpack.c.h.b16 %v300
      %v762 = vunpack.c.l.b16 %v301
      %v763 = vunpack.c.h.b16 %v301
      %v764 = vunpack.c.l.b16 %v302
      %v765 = vunpack.c.h.b16 %v302
      %v766 = vunpack.c.l.b16 %v303
      %v767 = vunpack.c.h.b16 %v303
      %v768 = vunpack.c.l.b16 %v304
      %v769 = vunpack.c.h.b16 %v304
      %v770 = vunpack.c.l.b16 %v305
      %v771 = vunpack.c.h.b16 %v305
      %v772 = vunpack.c.l.b16 %v306
      %v773 = vunpack.c.h.b16 %v306
      %v774 = vunpack.c.l.b16 %v307
      %v775 = vunpack.c.h.b16 %v307
      %v776 = vunpack.c.l.b16 %v308
      %v777 = vunpack.c.h.b16 %v308
      %v778 = vunpack.c.l.b16 %v309
      %v779 = vunpack.c.h.b16 %v309
      %v780 = vunpack.c.l.b16 %v310
      %v781 = vunpack.c.h.b16 %v310
      %v782 = vunpack.c.l.b16 %v311
      %v783 = vunpack.c.h.b16 %v311
      %v784 = vunpack.c.l.b16 %v312
      %v785 = vunpack.c.h.b16 %v312
      %v786 = vunpack.c.l.b16 %v313
      %v787 = vunpack.c.h.b16 %v313
      %v788 = vunpack.c.l.b16 %v314
      %v789 = vunpack.c.h.b16 %v314
      %v790 = vunpack.c.l.b16 %v315
      %v791 = vunpack.c.h.b16 %v315
      %v792 = vunpack.c.l.b16 %v316
      %v793 = vunpack.c.h.b16 %v316
      %v794 = vunpack.c.l.b16 %v317
      %v795 = vunpack.c.h.b16 %v317
      %v796 = vunpack.c.l.b16 %v318
      %v797 = vunpack.c.h.b16 %v318
      %v798 = vunpack.c.l.b16 %v319
      %v799 = vunpack.c.h.b16 %v319
      %v800 = vunpack.c.l.b16 %v320
      %v801 = vunpack.c.h.b16 %v320
      %v802 = vunpack.c.l.b16 %v321
      %v803 = vunpack.c.h.b16 %v321
      %v804 = vunpack.c.l.b16 %v322
      %v805 = vunpack.c.h.b16 %v322
      %v806 = vunpack.c.l.b16 %v323
      %v807 = vunpack.c.h.b16 %v323
      %v808 = vunpack.c.l.b16 %v324
      %v809 = vunpack.c.h.b16 %v324
      %v810 = vunpack.c.l.b16 %v325
      %v811 = vunpack.c.h.b16 %v325
      %v812 = vunpack.c.l.b16 %v326
      %v813 = vunpack.c.h.b16 %v326
      %v814 = vunpack.c.l.b16 %v327
      %v815 = vunpack.c.h.b16 %v327
      %v816 = vunpack.c.l.b16 %v328
      %v817 = vunpack.c.h.b16 %v328
      %v818 = vunpack.c.l.b16 %v329
      %v819 = vunpack.c.h.b16 %v329
      %v820 = vunpack.c.l.b16 %v330
      %v821 = vunpack.c.h.b16 %v330
      %v822 = vunpack.c.l.b16 %v331
      %v823 = vunpack.c.h.b16 %v331
      %v824 = vunpack.c.l.b16 %v332
      %v825 = vunpack.c.h.b16 %v332
      %v826 = vunpack.c.l.b16 %v333
      %v827 = vunpack.c.h.b16 %v333
      %v828 = vunpack.c.l.b16 %v334
      %v829 = vunpack.c.h.b16 %v334
      %v830 = vunpack.c.l.b16 %v335
      %v831 = vunpack.c.h.b16 %v335
      %v832 = vunpack.c.l.b16 %v336
      %v833 = vunpack.c.h.b16 %v336
      %v834 = vunpack.c.l.b16 %v337
      %v835 = vunpack.c.h.b16 %v337
      %v836 = vunpack.c.l.b16 %v338
      %v837 = vunpack.c.h.b16 %v338
      %v838 = vunpack.c.l.b16 %v339
      %v839 = vunpack.c.h.b16 %v339
      %v840 = vunpack.c.l.b16 %v340
      %v841 = vunpack.c.h.b16 %v340
      %v842 = vunpack.c.l.b16 %v341
      %v843 = vunpack.c.h.b16 %v341
      %v844 = vunpack.c.l.b16 %v342
      %v845 = vunpack.c.h.b16 %v342
      %v846 = vunpack.c.l.b16 %v343
      %v847 = vunpack.c.h.b16 %v343
      %v848 = vunpack.c.l.b16 %v344
      %v849 = vunpack.c.h.b16 %v344
      %v850 = vunpack.c.l.b16 %v345
      %v851 = vunpack.c.h.b16 %v345
      %v852 = vunpack.c.l.b16 %v346
      %v853 = vunpack.c.h.b16 %v346
      %v854 = vunpack.c.l.b16 %v347
      %v855 = vunpack.c.h.b16 %v347
      %v856 = vunpack.c.l.b16 %v348
      %v857 = vunpack.c.h.b16 %v348
      %v858 = vunpack.c.l.b16 %v349
      %v859 = vunpack.c.h.b16 %v349
      %v860 = vunpack.c.l.b16 %v350
      %v861 = vunpack.c.h.b16 %v350
      %v862 = vunpack.c.l.b16 %v351
      %v863 = vunpack.c.h.b16 %v351
      %v864 = vunpack.c.l.b16 %v352
      %v865 = vunpack.c.h.b16 %v352
      %v866 = vunpack.c.l.b16 %v353
      %v867 = vunpack.c.h.b16 %v353
      %v868 = vunpack.c.l.b16 %v354
      %v869 = vunpack.c.h.b16 %v354
      %v870 = vunpack.c.l.b16 %v355
      %v871 = vunpack.c.h.b16 %v355
      %v872 = vunpack.c.l.b16 %v356
      %v873 = vunpack.c.h.b16 %v356
      %v874 = vunpack.c.l.b16 %v357
      %v875 = vunpack.c.h.b16 %v357
      %v876 = vunpack.c.l.b16 %v358
      %v877 = vunpack.c.h.b16 %v358
      %v878 = vunpack.c.l.b16 %v359
      %v879 = vunpack.c.h.b16 %v359
      %v880 = vunpack.c.l.b16 %v360
      %v881 = vunpack.c.h.b16 %v360
      %v882 = vunpack.c.l.b16 %v361
      %v883 = vunpack.c.h.b16 %v361
      %v884 = vunpack.c.l.b16 %v362
      %v885 = vunpack.c.h.b16 %v362
      %v886 = vunpack.c.l.b16 %v363
      %v887 = vunpack.c.h.b16 %v363
      %v888 = vunpack.c.l.b16 %v364
      %v889 = vunpack.c.h.b16 %v364
      %v890 = vunpack.c.l.b16 %v365
      %v891 = vunpack.c.h.b16 %v365
      %v892 = vunpack.c.l.b16 %v366
      %v893 = vunpack.c.h.b16 %v366
      %v894 = vunpack.c.l.b16 %v367
      %v895 = vunpack.c.h.b16 %v367
      %v896 = vunpack.c.l.b16 %v368
      %v897 = vunpack.c.h.b16 %v368
      %v898 = vunpack.c.l.b16 %v369
      %v899 = vunpack.c.h.b16 %v369
      %v900 = vunpack.c.l.b16 %v370
      %v901 = vunpack.c.h.b16 %v370
      %v902 = vunpack.c.l.b16 %v371
      %v903 = vunpack.c.h.b16 %v371
      %v904 = vunpack.c.l.b16 %v372
      %v905 = vunpack.c.h.b16 %v372
      %v906 = vunpack.c.l.b16 %v373
      %v907 = vunpack.c.h.b16 %v373
      %v908 = vunpack.c.l.b16 %v374
      %v909 = vunpack.c.h.b16 %v374
      %v910 = vunpack.c.l.b16 %v375
      %v911 = vunpack.c.h.b16 %v375
      %v912 = vunpack.c.l.b16 %v376
      %v913 = vunpack.c.h.b16 %v376
      %v914 = vunpack.c.l.b16 %v377
      %v915 = vunpack.c.h.b16 %v377
      %v916 = vunpack.c.l.b16 %v378
      %v917 = vunpack.c.h.b16 %v378
      %v918 = vunpack.c.l.b16 %v379
      %v919 = vunpack.c.h.b16 %v379
      %v920 = vunpack.c.l.b16 %v380
      %v921 = vunpack.c.h.b16 %v380
      %v922 = vunpack.c.l.b16 %v381
      %v923 = vunpack.c.h.b16 %v381
      %v924 = vunpack.c.l.b16 %v382
      %v925 = vunpack.c.h.b16 %v382
      %v926 = vunpack.c.l.b16 %v383
      %v927 = vunpack.c.h.b16 %v383
      %v928 = vunpack.c.l.b16 %v384
      %v929 = vunpack.c.h.b16 %v384
      %v930 = vunpack.c.l.b16 %v385
      %v931 = vunpack.c.h.b16 %v385
      %v932 = vunpack.c.l.b16 %v386
      %v933 = vunpack.c.h.b16 %v386
      %v934 = vunpack.c.l.b16 %v387
      %v935 = vunpack.c.h.b16 %v387
      %v936 = vunpack.c.l.b16 %v388
      %v937 = vunpack.c.h.b16 %v388
      %v938 = vunpack.c.l.b16 %v389
      %v939 = vunpack.c.h.b16 %v389
      %v940 = vunpack.c.l.b16 %v390
      %v941 = vunpack.c.h.b16 %v390
      %v942 = vunpack.c.l.b16 %v391
      %v943 = vunpack.c.h.b16 %v391
      %v944 = vunpack.c.l.b16 %v392
      %v945 = vunpack.c.h.b16 %v392
      %v946 = vunpack.c.l.b16 %v393
      %v947 = vunpack.c.h.b16 %v393
      %v948 = vunpack.c.l.b16 %v394
      %v949 = vunpack.c.h.b16 %v394
      %v950 = vunpack.c.l.b16 %v395
      %v951 = vunpack.c.h.b16 %v395
      %v952 = vunpack.c.l.b16 %v396
      %v953 = vunpack.c.h.b16 %v396
      %v954 = vunpack.c.l.b16 %v397
      %v955 = vunpack.c.h.b16 %v397
      %v956 = vunpack.c.l.b16 %v398
      %v957 = vunpack.c.h.b16 %v398
      %v958 = vunpack.c.l.b16 %v399
      %v959 = vunpack.c.h.b16 %v399
      %v960 = vunpack.c.l.b16 %v400
      %v961 = vunpack.c.h.b16 %v400
      %v962 = vunpack.c.l.b16 %v401
      %v963 = vunpack.c.h.b16 %v401
      %v964 = vunpack.c.l.b16 %v402
      %v965 = vunpack.c.h.b16 %v402
      %v966 = vunpack.c.l.b16 %v403
      %v967 = vunpack.c.h.b16 %v403
      %v968 = vunpack.c.l.b16 %v404
      %v969 = vunpack.c.h.b16 %v404
      %v970 = vunpack.c.l.b16 %v405
      %v971 = vunpack.c.h.b16 %v405
      %v972 = vunpack.c.l.b16 %v406
      %v973 = vunpack.c.h.b16 %v406
      %v974 = vunpack.c.l.b16 %v407
      %v975 = vunpack.c.h.b16 %v407
      %v976 = vunpack.c.l.b16 %v408
      %v977 = vunpack.c.h.b16 %v408
      %v978 = vunpack.c.l.b16 %v409
      %v979 = vunpack.c.h.b16 %v409
      %v980 = vunpack.c.l.b16 %v410
      %v981 = vunpack.c.h.b16 %v410
      %v982 = vunpack.c.l.b16 %v411
      %v983 = vunpack.c.h.b16 %v411
      %v984 = vunpack.c.l.b16 %v412
      %v985 = vunpack.c.h.b16 %v412
      %v986 = vunpack.c.l.b16 %v413
      %v987 = vunpack.c.h.b16 %v413
      %v988 = vunpack.c.l.b16 %v414
      %v989 = vunpack.c.h.b16 %v414
      %v990 = vunpack.c.l.b16 %v415
      %v991 = vunpack.c.h.b16 %v415
      %v992 = vunpack.c.l.b16 %v416
      %v993 = vunpack.c.h.b16 %v416
      %v994 = vunpack.c.l.b16 %v417
      %v995 = vunpack.c.h.b16 %v417
      %v996 = vunpack.c.l.b16 %v418
      %v997 = vunpack.c.h.b16 %v418
      %v998 = vunpack.c.l.b16 %v419
      %v999 = vunpack.c.h.b16 %v419
      %v1000 = vunpack.c.l.b16 %v420
      %v1001 = vunpack.c.h.b16 %v420
      %v1002 = vunpack.c.l.b16 %v421
      %v1003 = vunpack.c.h.b16 %v421
      %v1004 = vunpack.c.l.b16 %v422
      %v1005 = vunpack.c.h.b16 %v422
      %v1006 = vunpack.c.l.b16 %v423
      %v1007 = vunpack.c.h.b16 %v423
      %v1008 = vunpack.c.l.b16 %v424
      %v1009 = vunpack.c.h.b16 %v424
      %v1010 = vunpack.c.l.b16 %v425
      %v1011 = vunpack.c.h.b16 %v425
      %v1012 = vunpack.c.l.b16 %v426
      %v1013 = vunpack.c.h.b16 %v426
      %v1014 = vunpack.c.l.b16 %v427
      %v1015 = vunpack.c.h.b16 %v427
      %v1016 = vunpack.c.l.b16 %v428
      %v1017 = vunpack.c.h.b16 %v428
      %v1018 = vunpack.c.l.b16 %v429
      %v1019 = vunpack.c.h.b16 %v429
      %v1020 = vunpack.c.l.b16 %v430
      %v1021 = vunpack.c.h.b16 %v430
      %v1022 = vunpack.c.l.b16 %v431
      %v1023 = vunpack.c.h.b16 %v431
      %v1024 = vunpack.c.l.b16 %v432
      %v1025 = vunpack.c.h.b16 %v432
      %v1026 = vunpack.c.l.b16 %v433
      %v1027 = vunpack.c.h.b16 %v433
      %v1028 = vunpack.c.l.b16 %v434
      %v1029 = vunpack.c.h.b16 %v434
      %v1030 = vunpack.c.l.b16 %v435
      %v1031 = vunpack.c.h.b16 %v435
      %v1032 = vunpack.c.l.b16 %v436
      %v1033 = vunpack.c.h.b16 %v436
      %v1034 = vunpack.c.l.b16 %v437
      %v1035 = vunpack.c.h.b16 %v437
      %v1036 = vunpack.c.l.b16 %v438
      %v1037 = vunpack.c.h.b16 %v438
      %v1038 = vunpack.c.l.b16 %v439
      %v1039 = vunpack.c.h.b16 %v439
      %v1040 = vunpack.c.l.b16 %v440
      %v1041 = vunpack.c.h.b16 %v440
      %v1042 = vunpack.c.l.b16 %v441
      %v1043 = vunpack.c.h.b16 %v441
      %v1044 = vpack.c.b16 %v758, %v756
      %v1045 = vpack.c.b16 %v759, %v757
      %v1046 = vpack.c.b16 %v762, %v760
      %v1047 = vpack.c.b16 %v763, %v761
      %v1048 = vpack.c.b16 %v766, %v764
      %v1049 = vpack.c.b16 %v767, %v765
      %v1050 = vpack.c.b16 %v770, %v768
      %v1051 = vpack.c.b16 %v771, %v769
      %v1052 = vpack.c.b16 %v774, %v772
      %v1053 = vpack.c.b16 %v775, %v773
      %v1054 = vpack.c.b16 %v778, %v776
      %v1055 = vpack.c.b16 %v779, %v777
      %v1056 = vpack.c.b16 %v782, %v780
      %v1057 = vpack.c.b16 %v783, %v781
      %v1058 = vpack.c.b16 %v786, %v784
      %v1059 = vpack.c.b16 %v787, %v785
      %v1060 = vpack.c.b16 %v790, %v788
      %v1061 = vpack.c.b16 %v791, %v789
      %v1062 = vpack.c.b16 %v794, %v792
      %v1063 = vpack.c.b16 %v795, %v793
      %v1064 = vpack.c.b16 %v798, %v796
      %v1065 = vpack.c.b16 %v799, %v797
      %v1066 = vpack.c.b16 %v802, %v800
      %v1067 = vpack.c.b16 %v803, %v801
      %v1068 = vpack.c.b16 %v806, %v804
      %v1069 = vpack.c.b16 %v807, %v805
      %v1070 = vpack.c.b16 %v810, %v808
      %v1071 = vpack.c.b16 %v811, %v809
      %v1072 = vpack.c.b16 %v814, %v812
      %v1073 = vpack.c.b16 %v815, %v813
      %v1074 = vpack.c.b16 %v818, %v816
      %v1075 = vpack.c.b16 %v819, %v817
      %v1076 = vpack.c.b16 %v822, %v820
      %v1077 = vpack.c.b16 %v823, %v821
      %v1078 = vpack.c.b16 %v826, %v824
      %v1079 = vpack.c.b16 %v827, %v825
      %v1080 = vpack.c.b16 %v830, %v828
      %v1081 = vpack.c.b16 %v831, %v829
      %v1082 = vpack.c.b16 %v834, %v832
      %v1083 = vpack.c.b16 %v835, %v833
      %v1084 = vpack.c.b16 %v838, %v836
      %v1085 = vpack.c.b16 %v839, %v837
      %v1086 = vpack.c.b16 %v842, %v840
      %v1087 = vpack.c.b16 %v843, %v841
      %v1088 = vpack.c.b16 %v846, %v844
      %v1089 = vpack.c.b16 %v847, %v845
      %v1090 = vpack.c.b16 %v850, %v848
      %v1091 = vpack.c.b16 %v851, %v849
      %v1092 = vpack.c.b16 %v854, %v852
      %v1093 = vpack.c.b16 %v855, %v853
      %v1094 = vpack.c.b16 %v858, %v856
      %v1095 = vpack.c.b16 %v859, %v857
      %v1096 = vpack.c.b16 %v862, %v860
      %v1097 = vpack.c.b16 %v863, %v861
      %v1098 = vpack.c.b16 %v866, %v864
      %v1099 = vpack.c.b16 %v867, %v865
      %v1100 = vpack.c.b16 %v870, %v868
      %v1101 = vpack.c.b16 %v871, %v869
      %v1102 = vpack.c.b16 %v874, %v872
      %v1103 = vpack.c.b16 %v875, %v873
      %v1104 = vpack.c.b16 %v878, %v876
      %v1105 = vpack.c.b16 %v879, %v877
      %v1106 = vpack.c.b16 %v882, %v880
      %v1107 = vpack.c.b16 %v883, %v881
      %v1108 = vpack.c.b16 %v886, %v884
      %v1109 = vpack.c.b16 %v887, %v885
      %v1110 = vpack.c.b16 %v890, %v888
      %v1111 = vpack.c.b16 %v891, %v889
      %v1112 = vpack.c.b16 %v894, %v892
      %v1113 = vpack.c.b16 %v895, %v893
      %v1114 = vpack.c.b16 %v898, %v896
      %v1115 = vpack.c.b16 %v899, %v897
      %v1116 = vpack.c.b16 %v902, %v900
      %v1117 = vpack.c.b16 %v903, %v901
      %v1118 = vpack.c.b16 %v906, %v904
      %v1119 = vpack.c.b16 %v907, %v905
      %v1120 = vpack.c.b16 %v910, %v908
      %v1121 = vpack.c.b16 %v911, %v909
      %v1122 = vpack.c.b16 %v914, %v912
      %v1123 = vpack.c.b16 %v915, %v913
      %v1124 = vpack.c.b16 %v918, %v916
      %v1125 = vpack.c.b16 %v919, %v917
      %v1126 = vpack.c.b16 %v922, %v920
      %v1127 = vpack.c.b16 %v923, %v921
      %v1128 = vpack.c.b16 %v926, %v924
      %v1129 = vpack.c.b16 %v927, %v925
      %v1130 = vpack.c.b16 %v930, %v928
      %v1131 = vpack.c.b16 %v931, %v929
      %v1132 = vpack.c.b16 %v934, %v932
      %v1133 = vpack.c.b16 %v935, %v933
      %v1134 = vpack.c.b16 %v938, %v936
      %v1135 = vpack.c.b16 %v939, %v937
      %v1136 = vpack.c.b16 %v942, %v940
      %v1137 = vpack.c.b16 %v943, %v941
      %v1138 = vpack.c.b16 %v946, %v944
      %v1139 = vpack.c.b16 %v947, %v945
      %v1140 = vpack.c.b16 %v950, %v948
      %v1141 = vpack.c.b16 %v951, %v949
      %v1142 = vpack.c.b16 %v954, %v952
      %v1143 = vpack.c.b16 %v955, %v953
      %v1144 = vpack.c.b16 %v958, %v956
      %v1145 = vpack.c.b16 %v959, %v957
      %v1146 = vpack.c.b16 %v962, %v960
      %v1147 = vpack.c.b16 %v963, %v961
      %v1148 = vpack.c.b16 %v966, %v964
      %v1149 = vpack.c.b16 %v967, %v965
      %v1150 = vpack.c.b16 %v970, %v968
      %v1151 = vpack.c.b16 %v971, %v969
      %v1152 = vpack.c.b16 %v974, %v972
      %v1153 = vpack.c.b16 %v975, %v973
      %v1154 = vpack.c.b16 %v978, %v976
      %v1155 = vpack.c.b16 %v979, %v977
      %v1156 = vpack.c.b16 %v982, %v980
      %v1157 = vpack.c.b16 %v983, %v981
      %v1158 = vpack.c.b16 %v986, %v984
      %v1159 = vpack.c.b16 %v987, %v985
      %v1160 = vpack.c.b16 %v990, %v988
      %v1161 = vpack.c.b16 %v991, %v989
      %v1162 = vpack.c.b16 %v994, %v992
      %v1163 = vpack.c.b16 %v995, %v993
      %v1164 = vpack.c.b16 %v998, %v996
      %v1165 = vpack.c.b16 %v999, %v997
      %v1166 = vpack.c.b16 %v1002, %v1000
      %v1167 = vpack.c.b16 %v1003, %v1001
      %v1168 = vpack.c.b16 %v1006, %v1004
      %v1169 = vpack.c.b16 %v1007, %v1005
      %v1170 = vpack.c.b16 %v1010, %v1008
      %v1171 = vpack.c.b16 %v1011, %v1009
      %v1172 = vpack.c.b16 %v1014, %v1012
      %v1173 = vpack.c.b16 %v1015, %v1013
      %v1174 = vpack.c.b16 %v1018, %v1016
      %v1175 = vpack.c.b16 %v1019, %v1017
      %v1176 = vpack.c.b16 %v1022, %v1020
      %v1177 = vpack.c.b16 %v1023, %v1021
      %v1178 = vpack.c.b16 %v1026, %v1024
      %v1179 = vpack.c.b16 %v1027, %v1025
      %v1180 = vpack.c.b16 %v1030, %v1028
      %v1181 = vpack.c.b16 %v1031, %v1029
      %v1182 = vpack.c.b16 %v1034, %v1032
      %v1183 = vpack.c.b16 %v1035, %v1033
      %v1184 = vpack.c.b16 %v1038, %v1036
      %v1185 = vpack.c.b16 %v1039, %v1037
      %v1186 = vpack.c.b16 %v1042, %v1040
      %v1187 = vpack.c.b16 %v1043, %v1041
      %1332 = vmatprep.subr.bf16.mxu0 %v1059
      %1333 = vmatpush1.bf16.msra.mxu0 %v1058
      %1334 = vmatprep.subr.bf16.mxu0 %v1057
      %1335 = vmatpush1.bf16.msra.mxu0 %v1056
      %1336 = vmatprep.subr.bf16.mxu0 %v1055
      %1337 = vmatpush1.bf16.msra.mxu0 %v1054
      %1338 = vmatprep.subr.bf16.mxu0 %v1053
      %1339 = vmatpush1.bf16.msra.mxu0 %v1052
      %1340 = vmatprep.subr.bf16.mxu0 %v1051
      %1341 = vmatpush1.bf16.msra.mxu0 %v1050
      %1342 = vmatprep.subr.bf16.mxu0 %v1049
      %1343 = vmatpush1.bf16.msra.mxu0 %v1048
      %1344 = vmatprep.subr.bf16.mxu0 %v1047
      %1345 = vmatpush1.bf16.msra.mxu0 %v1046
      %1346 = vmatprep.subr.bf16.mxu0 %v1045
      %1347 = vmatpush1.bf16.msra.mxu0 %v1044
      %1348 = vmatprep.subr.bf16.mxu0 %v1075
      %1349 = vmatpush2.bf16.msra.mxu0 %v1074
      %1350 = vmatprep.subr.bf16.mxu0 %v1073
      %1351 = vmatpush2.bf16.msra.mxu0 %v1072
      %1352 = vmatprep.subr.bf16.mxu0 %v1071
      %1353 = vmatpush2.bf16.msra.mxu0 %v1070
      %1354 = vmatprep.subr.bf16.mxu0 %v1069
      %1355 = vmatpush2.bf16.msra.mxu0 %v1068
      %1356 = vmatprep.subr.bf16.mxu0 %v1067
      %1357 = vmatpush2.bf16.msra.mxu0 %v1066
      %1358 = vmatprep.subr.bf16.mxu0 %v1065
      %1359 = vmatpush2.bf16.msra.mxu0 %v1064
      %1360 = vmatprep.subr.bf16.mxu0 %v1063
      %1361 = vmatpush2.bf16.msra.mxu0 %v1062
      %1362 = vmatprep.subr.bf16.mxu0 %v1061
      %1363 = vmatpush2.bf16.msra.mxu0 %v1060
      %1364 = vmatprep.mubr.bf16.mxu0 %v473
      %1365 = vmatmul.mubr.bf16.gmra.mxu0 %v460
      %v1366 = vpop.f32.mrf.mxu0
      %v1367 = vadd.f32 %v605, %v1366
      %v1368 = vpop.f32.mrf.mxu0
      %v1369 = vadd.f32 %v609, %v1368
      %v1370 = vpop.f32.mrf.mxu0
      %v1371 = vadd.f32 %v605, %v1370
      %v1372 = vpop.f32.mrf.mxu0
      %v1373 = vadd.f32 %v609, %v1372
      %1374 = vmatprep.mubr.bf16.mxu0 %v481
      %1375 = vmatmul.mubr.bf16.gmra.mxu0 %v449
      %v1376 = vpop.f32.mrf.mxu0
      %v1377 = vadd.f32 %v605, %v1376
      %v1378 = vpop.f32.mrf.mxu0
      %v1379 = vadd.f32 %v609, %v1378
      %v1380 = vpop.f32.mrf.mxu0
      %v1381 = vadd.f32 %v605, %v1380
      %v1382 = vpop.f32.mrf.mxu0
      %v1383 = vadd.f32 %v609, %v1382
      %1384 = vmatprep.mubr.bf16.mxu0 %v489
      %1385 = vmatmul.mubr.bf16.gmra.mxu0 %v451
      %v1386 = vpop.f32.mrf.mxu0
      %v1387 = vadd.f32 %v605, %v1386
      %v1388 = vpop.f32.mrf.mxu0
      %v1389 = vadd.f32 %v609, %v1388
      %v1390 = vpop.f32.mrf.mxu0
      %v1391 = vadd.f32 %v605, %v1390
      %v1392 = vpop.f32.mrf.mxu0
      %v1393 = vadd.f32 %v609, %v1392
      %1394 = vmatprep.mubr.bf16.mxu0 %v492
      %1395 = vmatmul.mubr.bf16.gmra.mxu0 %v453
      %v1396 = vpop.f32.mrf.mxu0
      %v1397 = vadd.f32 %v605, %v1396
      %v1398 = vpop.f32.mrf.mxu0
      %v1399 = vadd.f32 %v609, %v1398
      %v1400 = vpop.f32.mrf.mxu0
      %v1401 = vpop.f32.mrf.mxu0
      %1402 = vdwg.mxu0
      %1403 = vmatprep.subr.bf16.mxu0 %v1091
      %1404 = vmatpush1.bf16.msra.mxu0 %v1090
      %1405 = vmatprep.subr.bf16.mxu0 %v1089
      %1406 = vmatpush1.bf16.msra.mxu0 %v1088
      %1407 = vmatprep.subr.bf16.mxu0 %v1087
      %1408 = vmatpush1.bf16.msra.mxu0 %v1086
      %1409 = vmatprep.subr.bf16.mxu0 %v1085
      %1410 = vmatpush1.bf16.msra.mxu0 %v1084
      %1411 = vmatprep.subr.bf16.mxu0 %v1083
      %1412 = vmatpush1.bf16.msra.mxu0 %v1082
      %1413 = vmatprep.subr.bf16.mxu0 %v1081
      %1414 = vmatpush1.bf16.msra.mxu0 %v1080
      %1415 = vmatprep.subr.bf16.mxu0 %v1079
      %1416 = vmatpush1.bf16.msra.mxu0 %v1078
      %1417 = vmatprep.subr.bf16.mxu0 %v1077
      %1418 = vmatpush1.bf16.msra.mxu0 %v1076
      %1419 = vmatprep.subr.bf16.mxu0 %v1107
      %1420 = vmatpush2.bf16.msra.mxu0 %v1106
      %1421 = vmatprep.subr.bf16.mxu0 %v1105
      %1422 = vmatpush2.bf16.msra.mxu0 %v1104
      %1423 = vmatprep.subr.bf16.mxu0 %v1103
      %1424 = vmatpush2.bf16.msra.mxu0 %v1102
      %1425 = vmatprep.subr.bf16.mxu0 %v1101
      %1426 = vmatpush2.bf16.msra.mxu0 %v1100
      %1427 = vmatprep.subr.bf16.mxu0 %v1099
      %1428 = vmatpush2.bf16.msra.mxu0 %v1098
      %1429 = vmatprep.subr.bf16.mxu0 %v1097
      %1430 = vmatpush2.bf16.msra.mxu0 %v1096
      %1431 = vmatprep.subr.bf16.mxu0 %v1095
      %1432 = vmatpush2.bf16.msra.mxu0 %v1094
      %1433 = vmatprep.subr.bf16.mxu0 %v1093
      %1434 = vmatpush2.bf16.msra.mxu0 %v1092
      %1435 = vmatprep.mubr.bf16.mxu0 %v517
      %1436 = vmatmul.mubr.bf16.gmra.mxu0 %v501
      %v1437 = vpop.f32.mrf.mxu0
      %v1438 = vadd.f32 %v1367, %v1437
      %v1439 = vpop.f32.mrf.mxu0
      %v1440 = vadd.f32 %v1369, %v1439
      %v1441 = vpop.f32.mrf.mxu0
      %v1442 = vadd.f32 %v1371, %v1441
      %v1443 = vpop.f32.mrf.mxu0
      %v1444 = vadd.f32 %v1373, %v1443
      %1445 = vmatprep.mubr.bf16.mxu0 %v521
      %1446 = vmatmul.mubr.bf16.gmra.mxu0 %v503
      %v1447 = vpop.f32.mrf.mxu0
      %v1448 = vadd.f32 %v1377, %v1447
      %v1449 = vpop.f32.mrf.mxu0
      %v1450 = vadd.f32 %v1379, %v1449
      %v1451 = vpop.f32.mrf.mxu0
      %v1452 = vadd.f32 %v1381, %v1451
      %v1453 = vpop.f32.mrf.mxu0
      %v1454 = vadd.f32 %v1383, %v1453
      %1455 = vmatprep.mubr.bf16.mxu0 %v525
      %1456 = vmatmul.mubr.bf16.gmra.mxu0 %v505
      %v1457 = vpop.f32.mrf.mxu0
      %v1458 = vadd.f32 %v1387, %v1457
      %v1459 = vpop.f32.mrf.mxu0
      %v1460 = vadd.f32 %v1389, %v1459
      %v1461 = vpop.f32.mrf.mxu0
      %v1462 = vadd.f32 %v1391, %v1461
      %v1463 = vpop.f32.mrf.mxu0
      %v1464 = vadd.f32 %v1393, %v1463
      %1465 = vmatprep.mubr.bf16.mxu0 %v524
      %1466 = vmatmul.mubr.bf16.gmra.mxu0 %v504
      %v1467 = vpop.f32.mrf.mxu0
      %v1468 = vadd.f32 %v1397, %v1467
      %v1469 = vpop.f32.mrf.mxu0
      %v1470 = vadd.f32 %v1399, %v1469
      %v1471 = vpop.f32.mrf.mxu0
      %v1472 = vpop.f32.mrf.mxu0
      %1473 = vdwg.mxu0
      %1474 = vmatprep.subr.bf16.mxu0 %v1123
      %1475 = vmatpush1.bf16.msra.mxu0 %v1122
      %1476 = vmatprep.subr.bf16.mxu0 %v1121
      %1477 = vmatpush1.bf16.msra.mxu0 %v1120
      %1478 = vmatprep.subr.bf16.mxu0 %v1119
      %1479 = vmatpush1.bf16.msra.mxu0 %v1118
      %1480 = vmatprep.subr.bf16.mxu0 %v1117
      %1481 = vmatpush1.bf16.msra.mxu0 %v1116
      %1482 = vmatprep.subr.bf16.mxu0 %v1115
      %1483 = vmatpush1.bf16.msra.mxu0 %v1114
      %1484 = vmatprep.subr.bf16.mxu0 %v1113
      %1485 = vmatpush1.bf16.msra.mxu0 %v1112
      %1486 = vmatprep.subr.bf16.mxu0 %v1111
      %1487 = vmatpush1.bf16.msra.mxu0 %v1110
      %1488 = vmatprep.subr.bf16.mxu0 %v1109
      %1489 = vmatpush1.bf16.msra.mxu0 %v1108
      %1490 = vmatprep.subr.bf16.mxu0 %v1139
      %1491 = vmatpush2.bf16.msra.mxu0 %v1138
      %1492 = vmatprep.subr.bf16.mxu0 %v1137
      %1493 = vmatpush2.bf16.msra.mxu0 %v1136
      %1494 = vmatprep.subr.bf16.mxu0 %v1135
      %1495 = vmatpush2.bf16.msra.mxu0 %v1134
      %1496 = vmatprep.subr.bf16.mxu0 %v1133
      %1497 = vmatpush2.bf16.msra.mxu0 %v1132
      %1498 = vmatprep.subr.bf16.mxu0 %v1131
      %1499 = vmatpush2.bf16.msra.mxu0 %v1130
      %1500 = vmatprep.subr.bf16.mxu0 %v1129
      %1501 = vmatpush2.bf16.msra.mxu0 %v1128
      %1502 = vmatprep.subr.bf16.mxu0 %v1127
      %1503 = vmatpush2.bf16.msra.mxu0 %v1126
      %1504 = vmatprep.subr.bf16.mxu0 %v1125
      %1505 = vmatpush2.bf16.msra.mxu0 %v1124
      %1506 = vmatprep.mubr.bf16.mxu0 %v548
      %1507 = vmatmul.mubr.bf16.gmra.mxu0 %v532
      %v1508 = vpop.f32.mrf.mxu0
      %v1509 = vadd.f32 %v1438, %v1508
      %v1510 = vpop.f32.mrf.mxu0
      %v1511 = vadd.f32 %v1440, %v1510
      %v1512 = vpop.f32.mrf.mxu0
      %v1513 = vadd.f32 %v1442, %v1512
      %v1514 = vpop.f32.mrf.mxu0
      %v1515 = vadd.f32 %v1444, %v1514
      %1516 = vmatprep.mubr.bf16.mxu0 %v552
      %1517 = vmatmul.mubr.bf16.gmra.mxu0 %v534
      %v1518 = vpop.f32.mrf.mxu0
      %v1519 = vadd.f32 %v1448, %v1518
      %v1520 = vpop.f32.mrf.mxu0
      %v1521 = vadd.f32 %v1450, %v1520
      %v1522 = vpop.f32.mrf.mxu0
      %v1523 = vadd.f32 %v1452, %v1522
      %v1524 = vpop.f32.mrf.mxu0
      %v1525 = vadd.f32 %v1454, %v1524
      %1526 = vmatprep.mubr.bf16.mxu0 %v556
      %1527 = vmatmul.mubr.bf16.gmra.mxu0 %v536
      %v1528 = vpop.f32.mrf.mxu0
      %v1529 = vadd.f32 %v1458, %v1528
      %v1530 = vpop.f32.mrf.mxu0
      %v1531 = vadd.f32 %v1460, %v1530
      %v1532 = vpop.f32.mrf.mxu0
      %v1533 = vadd.f32 %v1462, %v1532
      %v1534 = vpop.f32.mrf.mxu0
      %v1535 = vadd.f32 %v1464, %v1534
      %1536 = vmatprep.mubr.bf16.mxu0 %v560
      %1537 = vmatmul.mubr.bf16.gmra.mxu0 %v535
      %v1538 = vpop.f32.mrf.mxu0
      %v1539 = vadd.f32 %v1468, %v1538
      %v1540 = vpop.f32.mrf.mxu0
      %v1541 = vadd.f32 %v1470, %v1540
      %v1542 = vpop.f32.mrf.mxu0
      %v1543 = vpop.f32.mrf.mxu0
      %1544 = vdwg.mxu0
      %1545 = vmatprep.subr.bf16.mxu0 %v1155
      %1546 = vmatpush1.bf16.msra.mxu0 %v1154
      %1547 = vmatprep.subr.bf16.mxu0 %v1153
      %1548 = vmatpush1.bf16.msra.mxu0 %v1152
      %1549 = vmatprep.subr.bf16.mxu0 %v1151
      %1550 = vmatpush1.bf16.msra.mxu0 %v1150
      %1551 = vmatprep.subr.bf16.mxu0 %v1149
      %1552 = vmatpush1.bf16.msra.mxu0 %v1148
      %1553 = vmatprep.subr.bf16.mxu0 %v1147
      %1554 = vmatpush1.bf16.msra.mxu0 %v1146
      %1555 = vmatprep.subr.bf16.mxu0 %v1145
      %1556 = vmatpush1.bf16.msra.mxu0 %v1144
      %1557 = vmatprep.subr.bf16.mxu0 %v1143
      %1558 = vmatpush1.bf16.msra.mxu0 %v1142
      %1559 = vmatprep.subr.bf16.mxu0 %v1141
      %1560 = vmatpush1.bf16.msra.mxu0 %v1140
      %1561 = vmatprep.subr.bf16.mxu0 %v1171
      %1562 = vmatpush2.bf16.msra.mxu0 %v1170
      %1563 = vmatprep.subr.bf16.mxu0 %v1169
      %1564 = vmatpush2.bf16.msra.mxu0 %v1168
      %1565 = vmatprep.subr.bf16.mxu0 %v1167
      %1566 = vmatpush2.bf16.msra.mxu0 %v1166
      %1567 = vmatprep.subr.bf16.mxu0 %v1165
      %1568 = vmatpush2.bf16.msra.mxu0 %v1164
      %1569 = vmatprep.subr.bf16.mxu0 %v1163
      %1570 = vmatpush2.bf16.msra.mxu0 %v1162
      %1571 = vmatprep.subr.bf16.mxu0 %v1161
      %1572 = vmatpush2.bf16.msra.mxu0 %v1160
      %1573 = vmatprep.subr.bf16.mxu0 %v1159
      %1574 = vmatpush2.bf16.msra.mxu0 %v1158
      %1575 = vmatprep.subr.bf16.mxu0 %v1157
      %1576 = vmatpush2.bf16.msra.mxu0 %v1156
      %1577 = vmatprep.mubr.bf16.mxu0 %v584
      %1578 = vmatmul.mubr.bf16.gmra.mxu0 %v569
      %v1579 = vpop.f32.mrf.mxu0
      %v1580 = vadd.f32 %v1509, %v1579
      %v1581 = vpop.f32.mrf.mxu0
      %v1582 = vadd.f32 %v1511, %v1581
      %v1583 = vpop.f32.mrf.mxu0
      %v1584 = vadd.f32 %v1513, %v1583
      %v1585 = vpop.f32.mrf.mxu0
      %v1586 = vadd.f32 %v1515, %v1585
      %1587 = vmatprep.mubr.bf16.mxu0 %v587
      %1588 = vmatmul.mubr.bf16.gmra.mxu0 %v571
      %v1589 = vpop.f32.mrf.mxu0
      %v1590 = vadd.f32 %v1519, %v1589
      %v1591 = vpop.f32.mrf.mxu0
      %v1592 = vadd.f32 %v1521, %v1591
      %v1593 = vpop.f32.mrf.mxu0
      %v1594 = vadd.f32 %v1523, %v1593
      %v1595 = vpop.f32.mrf.mxu0
      %v1596 = vadd.f32 %v1525, %v1595
      %1597 = vmatprep.mubr.bf16.mxu0 %v590
      %1598 = vmatmul.mubr.bf16.gmra.mxu0 %v573
      %v1599 = vpop.f32.mrf.mxu0
      %v1600 = vadd.f32 %v1529, %v1599
      %v1601 = vpop.f32.mrf.mxu0
      %v1602 = vadd.f32 %v1531, %v1601
      %v1603 = vpop.f32.mrf.mxu0
      %v1604 = vadd.f32 %v1533, %v1603
      %v1605 = vpop.f32.mrf.mxu0
      %v1606 = vadd.f32 %v1535, %v1605
      %1607 = vmatprep.mubr.bf16.mxu0 %v595
      %1608 = vmatmul.mubr.bf16.gmra.mxu0 %v575
      %v1609 = vpop.f32.mrf.mxu0
      %v1610 = vadd.f32 %v1539, %v1609
      %v1611 = vpop.f32.mrf.mxu0
      %v1612 = vadd.f32 %v1541, %v1611
      %v1613 = vpop.f32.mrf.mxu0
      %v1614 = vpop.f32.mrf.mxu0
      %1615 = vdwg.mxu0
      %1616 = vmatprep.subr.bf16.mxu0 %v1187
      %1617 = vmatpush1.bf16.msra.mxu0 %v1186
      %1618 = vmatprep.subr.bf16.mxu0 %v1185
      %1619 = vmatpush1.bf16.msra.mxu0 %v1184
      %1620 = vmatprep.subr.bf16.mxu0 %v1183
      %1621 = vmatpush1.bf16.msra.mxu0 %v1182
      %1622 = vmatprep.subr.bf16.mxu0 %v1181
      %1623 = vmatpush1.bf16.msra.mxu0 %v1180
      %1624 = vmatprep.subr.bf16.mxu0 %v1179
      %1625 = vmatpush1.bf16.msra.mxu0 %v1178
      %1626 = vmatprep.subr.bf16.mxu0 %v1177
      %1627 = vmatpush1.bf16.msra.mxu0 %v1176
      %1628 = vmatprep.subr.bf16.mxu0 %v1175
      %1629 = vmatpush1.bf16.msra.mxu0 %v1174
      %1630 = vmatprep.subr.bf16.mxu0 %v1173
      %1631 = vmatpush1.bf16.msra.mxu0 %v1172
      %1632 = vmatprep.subr.bf16.mxu0 0
      %1633 = vmatpush2.bf16.msra.mxu0 0
      %1634 = vmatprep.subr.bf16.mxu0 0
      %1635 = vmatpush2.bf16.msra.mxu0 0
      %1636 = vmatprep.subr.bf16.mxu0 0
      %1637 = vmatpush2.bf16.msra.mxu0 0
      %1638 = vmatprep.subr.bf16.mxu0 0
      %1639 = vmatpush2.bf16.msra.mxu0 0
      %1640 = vmatprep.subr.bf16.mxu0 0
      %1641 = vmatpush2.bf16.msra.mxu0 0
      %1642 = vmatprep.subr.bf16.mxu0 0
      %1643 = vmatpush2.bf16.msra.mxu0 0
      %1644 = vmatprep.subr.bf16.mxu0 0
      %1645 = vmatpush2.bf16.msra.mxu0 0
      %1646 = vmatprep.subr.bf16.mxu0 0
      %1647 = vmatpush2.bf16.msra.mxu0 0
      %1648 = vmatprep.mubr.bf16.mxu0 0
      %1649 = vmatmul.mubr.bf16.gmra.mxu0 %v449
      %v1650 = vpop.f32.mrf.mxu0
      %v1651 = vadd.f32 %v1580, %v1650
      %v1652 = vpop.f32.mrf.mxu0
      %v1653 = vadd.f32 %v1582, %v1652
      %v1654 = vpop.f32.mrf.mxu0
      %v1655 = vadd.f32 %v1584, %v1654
      %v1656 = vpop.f32.mrf.mxu0
      %v1657 = vadd.f32 %v1586, %v1656
      %1658 = vmatprep.mubr.bf16.mxu0 0
      %1659 = vmatmul.mubr.bf16.gmra.mxu0 %v451
      %v1660 = vpop.f32.mrf.mxu0
      %v1661 = vadd.f32 %v1590, %v1660
      %v1662 = vpop.f32.mrf.mxu0
      %v1663 = vadd.f32 %v1592, %v1662
      %v1664 = vpop.f32.mrf.mxu0
      %v1665 = vadd.f32 %v1594, %v1664
      %v1666 = vpop.f32.mrf.mxu0
      %v1667 = vadd.f32 %v1596, %v1666
      %1668 = vmatprep.mubr.bf16.mxu0 0
      %1669 = vmatmul.mubr.bf16.gmra.mxu0 %v453
      %v1670 = vpop.f32.mrf.mxu0
      %v1671 = vadd.f32 %v1600, %v1670
      %v1672 = vpop.f32.mrf.mxu0
      %v1673 = vadd.f32 %v1602, %v1672
      %v1674 = vpop.f32.mrf.mxu0
      %v1675 = vadd.f32 %v1604, %v1674
      %v1676 = vpop.f32.mrf.mxu0
      %v1677 = vadd.f32 %v1606, %v1676
      %1678 = vmatprep.mubr.bf16.mxu0 0
      %1679 = vmatmul.mubr.bf16.gmra.mxu0 0
      %v1680 = vpop.f32.mrf.mxu0
      %v1681 = vadd.f32 %v1610, %v1680
      %v1682 = vpop.f32.mrf.mxu0
      %v1683 = vadd.f32 %v1612, %v1682
      %v1684 = vpop.f32.mrf.mxu0
      %v1685 = vpop.f32.mrf.mxu0
      %1686 = vdwg.mxu0
      %v1687 = vmax.f32 %v1651, 0.0
      %v1688 = vmax.f32 %v1653, 0.0
      %v1689 = vmax.f32 %v1655, 0.0
      %v1690 = vmax.f32 %v1657, 0.0
      %v1691 = vmax.f32 %v1661, 0.0
      %v1692 = vmax.f32 %v1663, 0.0
      %v1693 = vmax.f32 %v1665, 0.0
      %v1694 = vmax.f32 %v1667, 0.0
      %v1695 = vmax.f32 %v1671, 0.0
      %v1696 = vmax.f32 %v1673, 0.0
      %v1697 = vmax.f32 %v1675, 0.0
      %v1698 = vmax.f32 %v1677, 0.0
      %v1699 = vmax.f32 %v1681, 0.0
      %v1700 = vmax.f32 %v1683, 0.0
      %1702 = vset.pattern.permute.xlu0 0
      %1703 = vperm.xlu0 %1702, %v291
      %v1704 = vpop.permute.xlu0 %1703
      %1707 = vset.pattern.permute.xlu0 0
      %1708 = vperm.xlu0 %1707, %v292
      %v1709 = vpop.permute.xlu0 %1708
      %1712 = vset.pattern.permute.xlu0 0
      %1713 = vperm.xlu0 %1712, %v293
      %v1714 = vpop.permute.xlu0 %1713
      %1717 = vset.pattern.permute.xlu0 0
      %1718 = vperm.xlu0 %1717, %v294
      %v1719 = vpop.permute.xlu0 %1718
      %1722 = vset.pattern.permute.xlu0 0
      %1723 = vperm.xlu0 %1722, %v295
      %v1724 = vpop.permute.xlu0 %1723
      %1727 = vset.pattern.permute.xlu0 0
      %1728 = vperm.xlu0 %1727, %v296
      %v1729 = vpop.permute.xlu0 %1728
      %1732 = vset.pattern.permute.xlu0 0
      %1733 = vperm.xlu0 %1732, %v297
      %v1734 = vpop.permute.xlu0 %1733
      %v1736 = vmul.f32 %v1687, %v1704
      %v1737 = vmul.f32 %v1688, %v1704
      %v1738 = vmul.f32 %v1689, %v1709
      %v1739 = vmul.f32 %v1690, %v1709
      %v1740 = vmul.f32 %v1691, %v1714
      %v1741 = vmul.f32 %v1692, %v1714
      %v1742 = vmul.f32 %v1693, %v1719
      %v1743 = vmul.f32 %v1694, %v1719
      %v1744 = vmul.f32 %v1695, %v1724
      %v1745 = vmul.f32 %v1696, %v1724
      %v1746 = vmul.f32 %v1697, %v1729
      %v1747 = vmul.f32 %v1698, %v1729
      %v1748 = vmul.f32 %v1699, %v1734
      %v1749 = vmul.f32 %v1700, %v1734
      %v1750 = vpack.c.bf16 %v1738, %v1736
      %v1751 = vpack.c.bf16 %v1739, %v1737
      %v1752 = vpack.c.bf16 %v1742, %v1740
      %v1753 = vpack.c.bf16 %v1743, %v1741
      %v1754 = vpack.c.bf16 %v1746, %v1744
      %v1755 = vpack.c.bf16 %v1747, %v1745
      %v1756 = vpack.c.bf16 %v1748, %v1748
      %v1757 = vpack.c.bf16 %v1749, %v1749
      %v1758 = vld [vmem:[%s3] sm:$0xf]
      %v1759 = vld [vmem:[%s3 + $0x4] sm:$0xf]
      %v1760 = vld [vmem:[%s3 + $0x8] sm:$0xf]
      %v1761 = vld [vmem:[%s3 + $0xc] sm:$0xf]
      %v1762 = vld [vmem:[%s3 + $0x10] sm:$0xf]
      %v1763 = vld [vmem:[%s3 + $0x14] sm:$0xf]
      %v1764 = vld [vmem:[%s3 + $0x18] sm:$0xf]
      %v1765 = vld [vmem:[%s3 + $0x1c] sm:$0xf]
      %v1766 = vld [vmem:[%s3 + $0x20] sm:$0xf]
      %v1767 = vld [vmem:[%s3 + $0x24] sm:$0xf]
      %v1768 = vld [vmem:[%s3 + $0x28] sm:$0xf]
      %v1769 = vld [vmem:[%s3 + $0x2c] sm:$0xf]
      %v1770 = vld [vmem:[%s3 + $0x30] sm:$0xf]
      %v1771 = vld [vmem:[%s3 + $0x34] sm:$0xf]
      %v1772 = vld [vmem:[%s3 + $0x38] sm:$0xf]
      %v1773 = vld [vmem:[%s3 + $0x3c] sm:$0xf]
      %v1774 = vld [vmem:[%s3 + $0x40] sm:$0xf]
      %v1775 = vld [vmem:[%s3 + $0x44] sm:$0xf]
      %v1776 = vld [vmem:[%s3 + $0x48] sm:$0xf]
      %v1777 = vld [vmem:[%s3 + $0x4c] sm:$0xf]
      %v1778 = vld [vmem:[%s3 + $0x50] sm:$0xf]
      %v1779 = vld [vmem:[%s3 + $0x54] sm:$0xf]
      %v1780 = vld [vmem:[%s3 + $0x58] sm:$0xf]
      %v1781 = vld [vmem:[%s3 + $0x5c] sm:$0xf]
      %v1782 = vld [vmem:[%s3 + $0x60] sm:$0xf]
      %v1783 = vld [vmem:[%s3 + $0x64] sm:$0xf]
      %v1784 = vld [vmem:[%s3 + $0x68] sm:$0xf]
      %v1785 = vld [vmem:[%s3 + $0x6c] sm:$0xf]
      %v1786 = vld [vmem:[%s3 + $0x70] sm:$0xf]
      %v1787 = vld [vmem:[%s3 + $0x74] sm:$0xf]
      %v1788 = vld [vmem:[%s3 + $0x78] sm:$0xf]
      %v1789 = vld [vmem:[%s3 + $0x7c] sm:$0xf]
      %v1790 = vld [vmem:[%s3 + $0x80] sm:$0xf]
      %v1791 = vld [vmem:[%s3 + $0x84] sm:$0xf]
      %v1792 = vld [vmem:[%s3 + $0x88] sm:$0xf]
      %v1793 = vld [vmem:[%s3 + $0x8c] sm:$0xf]
      %v1794 = vld [vmem:[%s3 + $0x90] sm:$0xf]
      %v1795 = vld [vmem:[%s3 + $0x94] sm:$0xf]
      %v1796 = vld [vmem:[%s3 + $0x98] sm:$0xf]
      %v1797 = vld [vmem:[%s3 + $0x9c] sm:$0xf]
      %v1798 = vld [vmem:[%s3 + $0xa0] sm:$0xf]
      %v1799 = vld [vmem:[%s3 + $0xa4] sm:$0xf]
      %v1800 = vld [vmem:[%s3 + $0xa8] sm:$0xf]
      %v1801 = vld [vmem:[%s3 + $0xac] sm:$0xf]
      %v1802 = vld [vmem:[%s3 + $0xb0] sm:$0xf]
      %v1803 = vld [vmem:[%s3 + $0xb4] sm:$0xf]
      %v1804 = vld [vmem:[%s3 + $0xb8] sm:$0xf]
      %v1805 = vld [vmem:[%s3 + $0xbc] sm:$0xf]
      %v1806 = vld [vmem:[%s3 + $0xc0] sm:$0xf]
      %v1807 = vld [vmem:[%s3 + $0xc4] sm:$0xf]
      %v1808 = vld [vmem:[%s3 + $0xc8] sm:$0xf]
      %v1809 = vld [vmem:[%s3 + $0xcc] sm:$0xf]
      %v1810 = vld [vmem:[%s3 + $0xd0] sm:$0xf]
      %v1811 = vld [vmem:[%s3 + $0xd4] sm:$0xf]
      %v1812 = vld [vmem:[%s3 + $0xd8] sm:$0xf]
      %v1813 = vld [vmem:[%s3 + $0xdc] sm:$0xf]
      %v1814 = vld [vmem:[%s3 + $0xe0] sm:$0xf]
      %v1815 = vld [vmem:[%s3 + $0xe4] sm:$0xf]
      %v1816 = vld [vmem:[%s3 + $0xe8] sm:$0xf]
      %v1817 = vld [vmem:[%s3 + $0xec] sm:$0xf]
      %v1818 = vld [vmem:[%s3 + $0xf0] sm:$0xf]
      %v1819 = vld [vmem:[%s3 + $0xf4] sm:$0xf]
      %v1820 = vld [vmem:[%s3 + $0xf8] sm:$0xf]
      %v1821 = vld [vmem:[%s3 + $0xfc] sm:$0xf]
      %v1822 = vld [vmem:[%s3 + $0x100] sm:$0xf]
      %v1823 = vld [vmem:[%s3 + $0x104] sm:$0xf]
      %v1824 = vld [vmem:[%s3 + $0x108] sm:$0xf]
      %v1825 = vld [vmem:[%s3 + $0x10c] sm:$0xf]
      %v1826 = vld [vmem:[%s3 + $0x110] sm:$0xf]
      %v1827 = vld [vmem:[%s3 + $0x114] sm:$0xf]
      %v1828 = vld [vmem:[%s3 + $0x118] sm:$0xf]
      %v1829 = vld [vmem:[%s3 + $0x11c] sm:$0xf]
      %v1830 = vld [vmem:[%s3 + $0x120] sm:$0xf]
      %v1831 = vld [vmem:[%s3 + $0x124] sm:$0xf]
      %v1832 = vld [vmem:[%s3 + $0x128] sm:$0xf]
      %v1833 = vld [vmem:[%s3 + $0x12c] sm:$0xf]
      %v1834 = vld [vmem:[%s3 + $0x130] sm:$0xf]
      %v1835 = vld [vmem:[%s3 + $0x134] sm:$0xf]
      %v1836 = vld [vmem:[%s3 + $0x138] sm:$0xf]
      %v1837 = vld [vmem:[%s3 + $0x13c] sm:$0xf]
      %v1838 = vld [vmem:[%s3 + $0x140] sm:$0xf]
      %v1839 = vld [vmem:[%s3 + $0x144] sm:$0xf]
      %v1840 = vld [vmem:[%s3 + $0x148] sm:$0xf]
      %v1841 = vld [vmem:[%s3 + $0x14c] sm:$0xf]
      %v1842 = vld [vmem:[%s3 + $0x150] sm:$0xf]
      %v1843 = vld [vmem:[%s3 + $0x154] sm:$0xf]
      %v1844 = vld [vmem:[%s3 + $0x158] sm:$0xf]
      %v1845 = vld [vmem:[%s3 + $0x15c] sm:$0xf]
      %v1846 = vld [vmem:[%s3 + $0x160] sm:$0xf]
      %v1847 = vld [vmem:[%s3 + $0x164] sm:$0xf]
      %v1848 = vld [vmem:[%s3 + $0x168] sm:$0xf]
      %v1849 = vld [vmem:[%s3 + $0x16c] sm:$0xf]
      %v1850 = vld [vmem:[%s3 + $0x170] sm:$0xf]
      %v1851 = vld [vmem:[%s3 + $0x174] sm:$0xf]
      %v1852 = vld [vmem:[%s3 + $0x178] sm:$0xf]
      %v1853 = vld [vmem:[%s3 + $0x17c] sm:$0xf]
      %v1854 = vld [vmem:[%s3 + $0x180] sm:$0xf]
      %v1855 = vld [vmem:[%s3 + $0x184] sm:$0xf]
      %v1856 = vld [vmem:[%s3 + $0x188] sm:$0xf]
      %v1857 = vld [vmem:[%s3 + $0x18c] sm:$0xf]
      %v1858 = vld [vmem:[%s3 + $0x190] sm:$0xf]
      %v1859 = vld [vmem:[%s3 + $0x194] sm:$0xf]
      %v1860 = vld [vmem:[%s3 + $0x198] sm:$0xf]
      %v1861 = vld [vmem:[%s3 + $0x19c] sm:$0xf]
      %v1862 = vld [vmem:[%s3 + $0x1a0] sm:$0xf]
      %v1863 = vld [vmem:[%s3 + $0x1a4] sm:$0xf]
      %v1864 = vld [vmem:[%s3 + $0x1a8] sm:$0xf]
      %v1865 = vld [vmem:[%s3 + $0x1ac] sm:$0xf]
      %v1866 = vld [vmem:[%s3 + $0x1b0] sm:$0xf]
      %v1867 = vld [vmem:[%s3 + $0x1b4] sm:$0xf]
      %v1868 = vld [vmem:[%s3 + $0x1b8] sm:$0xf]
      %v1869 = vld [vmem:[%s3 + $0x1bc] sm:$0xf]
      %v1870 = vld [vmem:[%s3 + $0x1c0] sm:$0xf]
      %v1871 = vld [vmem:[%s3 + $0x1c4] sm:$0xf]
      %v1872 = vld [vmem:[%s3 + $0x1c8] sm:$0xf]
      %v1873 = vld [vmem:[%s3 + $0x1cc] sm:$0xf]
      %v1874 = vld [vmem:[%s3 + $0x1d0] sm:$0xf]
      %v1875 = vld [vmem:[%s3 + $0x1d4] sm:$0xf]
      %v1876 = vld [vmem:[%s3 + $0x1d8] sm:$0xf]
      %v1877 = vld [vmem:[%s3 + $0x1dc] sm:$0xf]
      %v1878 = vld [vmem:[%s3 + $0x1e0] sm:$0xf]
      %v1879 = vld [vmem:[%s3 + $0x1e4] sm:$0xf]
      %v1880 = vld [vmem:[%s3 + $0x1e8] sm:$0xf]
      %v1881 = vld [vmem:[%s3 + $0x1ec] sm:$0xf]
      %v1882 = vld [vmem:[%s3 + $0x1f0] sm:$0xf]
      %v1883 = vld [vmem:[%s3 + $0x1f4] sm:$0xf]
      %v1884 = vld [vmem:[%s3 + $0x1f8] sm:$0xf]
      %v1885 = vld [vmem:[%s3 + $0x1fc] sm:$0xf]
      %v1886 = vld [vmem:[%s3 + $0x200] sm:$0xf]
      %v1887 = vld [vmem:[%s3 + $0x204] sm:$0xf]
      %v1888 = vld [vmem:[%s3 + $0x208] sm:$0xf]
      %v1889 = vld [vmem:[%s3 + $0x20c] sm:$0xf]
      %v1890 = vld [vmem:[%s3 + $0x210] sm:$0xf]
      %v1891 = vld [vmem:[%s3 + $0x214] sm:$0xf]
      %v1892 = vld [vmem:[%s3 + $0x218] sm:$0xf]
      %v1893 = vld [vmem:[%s3 + $0x21c] sm:$0xf]
      %v1894 = vld [vmem:[%s3 + $0x220] sm:$0xf]
      %v1895 = vld [vmem:[%s3 + $0x224] sm:$0xf]
      %v1896 = vld [vmem:[%s3 + $0x228] sm:$0xf]
      %v1897 = vld [vmem:[%s3 + $0x22c] sm:$0xf]
      %v1898 = vld [vmem:[%s3 + $0x230] sm:$0xf]
      %v1899 = vld [vmem:[%s3 + $0x234] sm:$0xf]
      %v1900 = vld [vmem:[%s3 + $0x238] sm:$0xf]
      %v1901 = vld [vmem:[%s3 + $0x23c] sm:$0xf]
      %v1902 = vld [vmem:[%s3 + $0x240] sm:$0xf]
      %v1903 = vld [vmem:[%s3 + $0x244] sm:$0xf]
      %v1904 = vld [vmem:[%s3 + $0x248] sm:$0xf]
      %v1905 = vld [vmem:[%s3 + $0x24c] sm:$0xf]
      %v1906 = vld [vmem:[%s3 + $0x250] sm:$0xf]
      %v1907 = vld [vmem:[%s3 + $0x254] sm:$0xf]
      %v1908 = vld [vmem:[%s3 + $0x258] sm:$0xf]
      %v1909 = vld [vmem:[%s3 + $0x25c] sm:$0xf]
      %v1910 = vld [vmem:[%s3 + $0x260] sm:$0xf]
      %v1911 = vld [vmem:[%s3 + $0x264] sm:$0xf]
      %v1912 = vld [vmem:[%s3 + $0x268] sm:$0xf]
      %v1913 = vld [vmem:[%s3 + $0x26c] sm:$0xf]
      %v1914 = vld [vmem:[%s3 + $0x270] sm:$0xf]
      %v1915 = vld [vmem:[%s3 + $0x274] sm:$0xf]
      %v1916 = vld [vmem:[%s3 + $0x278] sm:$0xf]
      %v1917 = vld [vmem:[%s3 + $0x27c] sm:$0xf]
      %v1918 = vld [vmem:[%s3 + $0x280] sm:$0xf]
      %v1919 = vld [vmem:[%s3 + $0x284] sm:$0xf]
      %v1920 = vld [vmem:[%s3 + $0x288] sm:$0xf]
      %v1921 = vld [vmem:[%s3 + $0x28c] sm:$0xf]
      %v1922 = vld [vmem:[%s3 + $0x290] sm:$0xf]
      %v1923 = vld [vmem:[%s3 + $0x294] sm:$0xf]
      %v1924 = vld [vmem:[%s3 + $0x298] sm:$0xf]
      %v1925 = vld [vmem:[%s3 + $0x29c] sm:$0xf]
      %v1926 = vld [vmem:[%s3 + $0x2a0] sm:$0xf]
      %v1927 = vld [vmem:[%s3 + $0x2a4] sm:$0xf]
      %v1928 = vld [vmem:[%s3 + $0x2a8] sm:$0xf]
      %v1929 = vld [vmem:[%s3 + $0x2ac] sm:$0xf]
      %v1930 = vld [vmem:[%s3 + $0x2b0] sm:$0xf]
      %v1931 = vld [vmem:[%s3 + $0x2b4] sm:$0xf]
      %v1932 = vld [vmem:[%s3 + $0x2b8] sm:$0xf]
      %v1933 = vld [vmem:[%s3 + $0x2bc] sm:$0xf]
      %v1934 = vld [vmem:[%s3 + $0x2c0] sm:$0xf]
      %v1935 = vld [vmem:[%s3 + $0x2c4] sm:$0xf]
      %v1936 = vld [vmem:[%s3 + $0x2c8] sm:$0xf]
      %v1937 = vld [vmem:[%s3 + $0x2cc] sm:$0xf]
      %v1938 = vld [vmem:[%s3 + $0x2d0] sm:$0xf]
      %v1939 = vld [vmem:[%s3 + $0x2d4] sm:$0xf]
      %v1940 = vld [vmem:[%s3 + $0x2d8] sm:$0xf]
      %v1941 = vld [vmem:[%s3 + $0x2dc] sm:$0xf]
      %v1942 = vld [vmem:[%s3 + $0x2e0] sm:$0xf]
      %v1943 = vld [vmem:[%s3 + $0x2e4] sm:$0xf]
      %v1944 = vld [vmem:[%s3 + $0x2e8] sm:$0xf]
      %v1945 = vld [vmem:[%s3 + $0x2ec] sm:$0xf]
      %v1946 = vld [vmem:[%s3 + $0x2f0] sm:$0xf]
      %v1947 = vld [vmem:[%s3 + $0x2f4] sm:$0xf]
      %v1948 = vld [vmem:[%s3 + $0x2f8] sm:$0xf]
      %v1949 = vld [vmem:[%s3 + $0x2fc] sm:$0xf]
      %v1950 = vld [vmem:[%s3 + $0x300] sm:$0xf]
      %v1951 = vld [vmem:[%s3 + $0x304] sm:$0xf]
      %v1952 = vld [vmem:[%s3 + $0x308] sm:$0xf]
      %v1953 = vld [vmem:[%s3 + $0x30c] sm:$0xf]
      %v1954 = vld [vmem:[%s3 + $0x310] sm:$0xf]
      %v1955 = vld [vmem:[%s3 + $0x314] sm:$0xf]
      %v1956 = vld [vmem:[%s3 + $0x318] sm:$0xf]
      %v1957 = vld [vmem:[%s3 + $0x31c] sm:$0xf]
      %v1958 = vld [vmem:[%s3 + $0x320] sm:$0xf]
      %v1959 = vld [vmem:[%s3 + $0x324] sm:$0xf]
      %v1960 = vld [vmem:[%s3 + $0x328] sm:$0xf]
      %v1961 = vld [vmem:[%s3 + $0x32c] sm:$0xf]
      %v1962 = vld [vmem:[%s3 + $0x330] sm:$0xf]
      %v1963 = vld [vmem:[%s3 + $0x334] sm:$0xf]
      %v1964 = vld [vmem:[%s3 + $0x338] sm:$0xf]
      %v1965 = vld [vmem:[%s3 + $0x33c] sm:$0xf]
      %v1966 = vld [vmem:[%s3 + $0x340] sm:$0xf]
      %v1967 = vld [vmem:[%s3 + $0x344] sm:$0xf]
      %v1968 = vld [vmem:[%s3 + $0x348] sm:$0xf]
      %v1969 = vld [vmem:[%s3 + $0x34c] sm:$0xf]
      %v1970 = vld [vmem:[%s3 + $0x350] sm:$0xf]
      %v1971 = vld [vmem:[%s3 + $0x354] sm:$0xf]
      %v1972 = vld [vmem:[%s3 + $0x358] sm:$0xf]
      %v1973 = vld [vmem:[%s3 + $0x35c] sm:$0xf]
      %v1974 = vld [vmem:[%s3 + $0x360] sm:$0xf]
      %v1975 = vld [vmem:[%s3 + $0x364] sm:$0xf]
      %v1976 = vld [vmem:[%s3 + $0x368] sm:$0xf]
      %v1977 = vld [vmem:[%s3 + $0x36c] sm:$0xf]
      %v1978 = vld [vmem:[%s3 + $0x370] sm:$0xf]
      %v1979 = vld [vmem:[%s3 + $0x374] sm:$0xf]
      %v1980 = vld [vmem:[%s3 + $0x378] sm:$0xf]
      %v1981 = vld [vmem:[%s3 + $0x37c] sm:$0xf]
      %v1982 = vld [vmem:[%s3 + $0x380] sm:$0xf]
      %v1983 = vld [vmem:[%s3 + $0x384] sm:$0xf]
      %v1984 = vld [vmem:[%s3 + $0x388] sm:$0xf]
      %v1985 = vld [vmem:[%s3 + $0x38c] sm:$0xf]
      %v1986 = vld [vmem:[%s3 + $0x390] sm:$0xf]
      %v1987 = vld [vmem:[%s3 + $0x394] sm:$0xf]
      %v1988 = vld [vmem:[%s3 + $0x398] sm:$0xf]
      %v1989 = vld [vmem:[%s3 + $0x39c] sm:$0xf]
      %v1990 = vld [vmem:[%s3 + $0x3a0] sm:$0xf]
      %v1991 = vld [vmem:[%s3 + $0x3a4] sm:$0xf]
      %v1992 = vld [vmem:[%s3 + $0x3a8] sm:$0xf]
      %v1993 = vld [vmem:[%s3 + $0x3ac] sm:$0xf]
      %v1994 = vld [vmem:[%s3 + $0x3b0] sm:$0xf]
      %v1995 = vld [vmem:[%s3 + $0x3b4] sm:$0xf]
      %v1996 = vld [vmem:[%s3 + $0x3b8] sm:$0xf]
      %v1997 = vld [vmem:[%s3 + $0x3bc] sm:$0xf]
      %v1998 = vld [vmem:[%s3 + $0x3c0] sm:$0xf]
      %v1999 = vld [vmem:[%s3 + $0x3c4] sm:$0xf]
      %v2000 = vld [vmem:[%s3 + $0x3c8] sm:$0xf]
      %v2001 = vld [vmem:[%s3 + $0x3cc] sm:$0xf]
      %v2002 = vld [vmem:[%s3 + $0x3d0] sm:$0xf]
      %v2003 = vld [vmem:[%s3 + $0x3d4] sm:$0xf]
      %v2004 = vld [vmem:[%s3 + $0x3d8] sm:$0xf]
      %v2005 = vld [vmem:[%s3 + $0x3dc] sm:$0xf]
      %v2006 = vld [vmem:[%s3 + $0x3e0] sm:$0xf]
      %v2007 = vld [vmem:[%s3 + $0x3e4] sm:$0xf]
      %v2008 = vld [vmem:[%s3 + $0x3e8] sm:$0xf]
      %v2009 = vld [vmem:[%s3 + $0x3ec] sm:$0xf]
      %v2010 = vld [vmem:[%s3 + $0x3f0] sm:$0xf]
      %v2011 = vld [vmem:[%s3 + $0x3f4] sm:$0xf]
      %v2012 = vld [vmem:[%s3 + $0x3f8] sm:$0xf]
      %v2013 = vld [vmem:[%s3 + $0x3fc] sm:$0xf]
      %v2014 = vld [vmem:[%s3 + $0x400] sm:$0xf]
      %v2015 = vld [vmem:[%s3 + $0x404] sm:$0xf]
      %v2016 = vld [vmem:[%s3 + $0x408] sm:$0xf]
      %v2017 = vld [vmem:[%s3 + $0x40c] sm:$0xf]
      %v2018 = vld [vmem:[%s3 + $0x410] sm:$0xf]
      %v2019 = vld [vmem:[%s3 + $0x414] sm:$0xf]
      %v2020 = vld [vmem:[%s3 + $0x418] sm:$0xf]
      %v2021 = vld [vmem:[%s3 + $0x41c] sm:$0xf]
      %v2022 = vld [vmem:[%s3 + $0x420] sm:$0xf]
      %v2023 = vld [vmem:[%s3 + $0x424] sm:$0xf]
      %v2024 = vld [vmem:[%s3 + $0x428] sm:$0xf]
      %v2025 = vld [vmem:[%s3 + $0x42c] sm:$0xf]
      %v2026 = vld [vmem:[%s3 + $0x430] sm:$0xf]
      %v2027 = vld [vmem:[%s3 + $0x434] sm:$0xf]
      %v2028 = vld [vmem:[%s3 + $0x438] sm:$0xf]
      %v2029 = vld [vmem:[%s3 + $0x43c] sm:$0xf]
      %v2030 = vld [vmem:[%s3 + $0x440] sm:$0xf]
      %v2031 = vld [vmem:[%s3 + $0x444] sm:$0xf]
      %v2032 = vld [vmem:[%s3 + $0x448] sm:$0xf]
      %v2033 = vld [vmem:[%s3 + $0x44c] sm:$0xf]
      %v2034 = vld [vmem:[%s3 + $0x450] sm:$0xf]
      %v2035 = vld [vmem:[%s3 + $0x454] sm:$0xf]
      %v2036 = vld [vmem:[%s3 + $0x458] sm:$0xf]
      %v2037 = vld [vmem:[%s3 + $0x45c] sm:$0xf]
      %v2038 = vld [vmem:[%s3 + $0x460] sm:$0xf]
      %v2039 = vld [vmem:[%s3 + $0x464] sm:$0xf]
      %v2040 = vld [vmem:[%s3 + $0x468] sm:$0xf]
      %v2041 = vld [vmem:[%s3 + $0x46c] sm:$0xf]
      %v2042 = vld [vmem:[%s3 + $0x470] sm:$0xf]
      %v2043 = vld [vmem:[%s3 + $0x474] sm:$0xf]
      %v2044 = vld [vmem:[%s3 + $0x478] sm:$0xf]
      %v2045 = vld [vmem:[%s3 + $0x47c] sm:$0xf]
      %v2054 = vrot.slane %v1750, 4
      %v2055 = vrot.slane %v1751, 4
      %v2056 = vrot.slane %v1752, 4
      %v2057 = vsel %vm446, %v2054, %v2056
      %v2058 = vrot.slane %v1753, 4
      %v2059 = vsel %vm446, %v2055, %v2058
      %v2060 = vrot.slane %v1754, 4
      %v2061 = vsel %vm446, %v2056, %v2060
      %v2062 = vrot.slane %v1755, 4
      %v2063 = vsel %vm446, %v2058, %v2062
      %v2064 = vrot.slane %v1756, 4
      %v2065 = vsel %vm446, %v2060, %v2064
      %v2066 = vrot.slane %v1757, 4
      %v2067 = vsel %vm446, %v2062, %v2066
      %v2075 = vsel %vm457, 0, %v2054
      %v2078 = vsel %vm457, 0, %v2055
      %v2080 = vshrl.u32 %v2075, 16
      %v2082 = vshll.u32 %v2075, 16
      %v2084 = vrot.slane %v2082, 1
      %v2085 = vor.u32 %v2080, %v2084
      %v2087 = vshll.u32 %v2057, 16
      %v2089 = vrot.slane %v2087, 1
      %v2090 = vsel %vm462, %v2085, %v2089
      %v2091 = vshrl.u32 %v2078, 16
      %v2093 = vshll.u32 %v2078, 16
      %v2095 = vrot.slane %v2093, 1
      %v2096 = vor.u32 %v2091, %v2095
      %v2098 = vshll.u32 %v2059, 16
      %v2100 = vrot.slane %v2098, 1
      %v2101 = vsel %vm462, %v2096, %v2100
      %v2102 = vshrl.u32 %v2057, 16
      %v2104 = vor.u32 %v2102, %v2089
      %v2106 = vshll.u32 %v2061, 16
      %v2108 = vrot.slane %v2106, 1
      %v2109 = vsel %vm462, %v2104, %v2108
      %v2110 = vshrl.u32 %v2059, 16
      %v2112 = vor.u32 %v2110, %v2100
      %v2114 = vshll.u32 %v2063, 16
      %v2116 = vrot.slane %v2114, 1
      %v2117 = vsel %vm462, %v2112, %v2116
      %v2118 = vshrl.u32 %v2061, 16
      %v2120 = vor.u32 %v2118, %v2108
      %v2122 = vshll.u32 %v2065, 16
      %v2124 = vrot.slane %v2122, 1
      %v2125 = vsel %vm462, %v2120, %v2124
      %v2126 = vshrl.u32 %v2063, 16
      %v2128 = vor.u32 %v2126, %v2116
      %v2130 = vshll.u32 %v2067, 16
      %v2132 = vrot.slane %v2130, 1
      %v2133 = vsel %vm462, %v2128, %v2132
      %v2134 = vshrl.u32 %v2065, 16
      %v2136 = vor.u32 %v2134, %v2124
      %v2137 = vshrl.u32 %v2067, 16
      %v2139 = vor.u32 %v2137, %v2132
      %v2150 = vrot.slane %v2075, 1
      %v2151 = vrot.slane %v2057, 1
      %v2152 = vsel %vm498, %v2150, %v2151
      %v2153 = vrot.slane %v2078, 1
      %v2154 = vrot.slane %v2059, 1
      %v2155 = vsel %vm498, %v2153, %v2154
      %v2156 = vrot.slane %v2061, 1
      %v2157 = vsel %vm498, %v2151, %v2156
      %v2158 = vrot.slane %v2063, 1
      %v2159 = vsel %vm498, %v2154, %v2158
      %v2160 = vrot.slane %v2065, 1
      %v2161 = vsel %vm498, %v2156, %v2160
      %v2162 = vrot.slane %v2067, 1
      %v2163 = vsel %vm498, %v2158, %v2162
      %v2172 = vrot.slane %v2080, 3
      %v2173 = vrot.slane %v2082, 4
      %v2174 = vor.u32 %v2172, %v2173
      %v2175 = vrot.slane %v2102, 3
      %v2176 = vrot.slane %v2087, 4
      %v2177 = vor.u32 %v2175, %v2176
      %v2178 = vsel %vm510, %v2174, %v2177
      %v2179 = vrot.slane %v2091, 3
      %v2180 = vrot.slane %v2093, 4
      %v2181 = vor.u32 %v2179, %v2180
      %v2182 = vrot.slane %v2110, 3
      %v2183 = vrot.slane %v2098, 4
      %v2184 = vor.u32 %v2182, %v2183
      %v2185 = vsel %vm510, %v2181, %v2184
      %v2186 = vrot.slane %v2118, 3
      %v2187 = vrot.slane %v2106, 4
      %v2188 = vor.u32 %v2186, %v2187
      %v2189 = vsel %vm510, %v2177, %v2188
      %v2190 = vrot.slane %v2126, 3
      %v2191 = vrot.slane %v2114, 4
      %v2192 = vor.u32 %v2190, %v2191
      %v2193 = vsel %vm510, %v2184, %v2192
      %v2194 = vrot.slane %v2134, 3
      %v2195 = vrot.slane %v2122, 4
      %v2196 = vor.u32 %v2194, %v2195
      %v2197 = vsel %vm510, %v2188, %v2196
      %v2198 = vrot.slane %v2137, 3
      %v2199 = vrot.slane %v2130, 4
      %v2200 = vor.u32 %v2198, %v2199
      %v2201 = vsel %vm510, %v2192, %v2200
      %v2210 = vrot.slane %v2075, 4
      %v2211 = vrot.slane %v2057, 4
      %v2212 = vsel %vm446, %v2210, %v2211
      %v2213 = vrot.slane %v2078, 4
      %v2214 = vrot.slane %v2059, 4
      %v2215 = vsel %vm446, %v2213, %v2214
      %v2216 = vrot.slane %v2061, 4
      %v2217 = vsel %vm446, %v2211, %v2216
      %v2218 = vrot.slane %v2063, 4
      %v2219 = vsel %vm446, %v2214, %v2218
      %v2220 = vrot.slane %v2065, 4
      %v2221 = vsel %vm446, %v2216, %v2220
      %v2222 = vrot.slane %v2067, 4
      %v2223 = vsel %vm446, %v2218, %v2222
      %v2232 = vrot.slane %v2080, 4
      %v2233 = vrot.slane %v2082, 5
      %v2234 = vor.u32 %v2232, %v2233
      %v2235 = vrot.slane %v2102, 4
      %v2236 = vrot.slane %v2087, 5
      %v2237 = vor.u32 %v2235, %v2236
      %v2238 = vsel %vm541, %v2234, %v2237
      %v2239 = vrot.slane %v2091, 4
      %v2240 = vrot.slane %v2093, 5
      %v2241 = vor.u32 %v2239, %v2240
      %v2242 = vrot.slane %v2110, 4
      %v2243 = vrot.slane %v2098, 5
      %v2244 = vor.u32 %v2242, %v2243
      %v2245 = vsel %vm541, %v2241, %v2244
      %v2246 = vrot.slane %v2118, 4
      %v2247 = vrot.slane %v2106, 5
      %v2248 = vor.u32 %v2246, %v2247
      %v2249 = vsel %vm541, %v2237, %v2248
      %v2250 = vrot.slane %v2126, 4
      %v2251 = vrot.slane %v2114, 5
      %v2252 = vor.u32 %v2250, %v2251
      %v2253 = vsel %vm541, %v2244, %v2252
      %v2254 = vrot.slane %v2134, 4
      %v2255 = vrot.slane %v2122, 5
      %v2256 = vor.u32 %v2254, %v2255
      %v2257 = vsel %vm541, %v2248, %v2256
      %v2258 = vrot.slane %v2137, 4
      %v2259 = vrot.slane %v2130, 5
      %v2260 = vor.u32 %v2258, %v2259
      %v2261 = vsel %vm541, %v2252, %v2260
      %v2262 = vsel %vm541, %v2256, %v559
      %v2263 = vsel %vm541, %v2260, %v559
      %v2272 = vrot.slane %v2075, 7
      %v2273 = vrot.slane %v2057, 7
      %v2274 = vsel %vm566, %v2272, %v2273
      %v2275 = vrot.slane %v2078, 7
      %v2276 = vrot.slane %v2059, 7
      %v2277 = vsel %vm566, %v2275, %v2276
      %v2278 = vrot.slane %v2061, 7
      %v2279 = vsel %vm566, %v2273, %v2278
      %v2280 = vrot.slane %v2063, 7
      %v2281 = vsel %vm566, %v2276, %v2280
      %v2282 = vrot.slane %v2065, 7
      %v2283 = vsel %vm566, %v2278, %v2282
      %v2284 = vrot.slane %v2067, 7
      %v2285 = vsel %vm566, %v2280, %v2284
      %v2286 = vsel %vm566, %v2282, %v574
      %v2287 = vsel %vm566, %v2284, %v574
      %v2296 = vrot.slane %v2080, 7
      %v2297 = vrot.slane %v2102, 7
      %v2298 = vor.u32 %v2297, %v2087
      %v2299 = vsel %vm580, %v2296, %v2298
      %v2300 = vrot.slane %v2091, 7
      %v2301 = vrot.slane %v2110, 7
      %v2302 = vor.u32 %v2301, %v2098
      %v2303 = vsel %vm580, %v2300, %v2302
      %v2304 = vrot.slane %v2118, 7
      %v2305 = vor.u32 %v2304, %v2106
      %v2306 = vsel %vm580, %v2297, %v2305
      %v2307 = vrot.slane %v2126, 7
      %v2308 = vor.u32 %v2307, %v2114
      %v2309 = vsel %vm580, %v2301, %v2308
      %v2310 = vrot.slane %v2134, 7
      %v2311 = vor.u32 %v2310, %v2122
      %v2312 = vsel %vm580, %v2304, %v2311
      %v2313 = vrot.slane %v2137, 7
      %v2314 = vor.u32 %v2313, %v2130
      %v2315 = vsel %vm580, %v2307, %v2314
      %v2316 = vsel %vm580, %v2310, %v594
      %v2317 = vsel %vm580, %v2313, %v594
      %v2326 = vld [vmem:[%s4] sm:$0x1]
      %v2328 = vlaneseq
      %v2329 = vshrl.u32 %v2328, 7
      %v2330 = vsub.s32 0, %v2329
      %v2331 = vrot.slane %v2326, %v2330
      %v2621 = vunpack.c.l.b16 %v1758
      %v2622 = vunpack.c.l.b16 %v1759
      %v2623 = vunpack.c.l.b16 %v1760
      %v2624 = vunpack.c.l.b16 %v1761
      %v2625 = vunpack.c.l.b16 %v1762
      %v2626 = vunpack.c.l.b16 %v1763
      %v2627 = vunpack.c.l.b16 %v1764
      %v2628 = vunpack.c.l.b16 %v1765
      %v2629 = vunpack.c.l.b16 %v1766
      %v2630 = vunpack.c.l.b16 %v1767
      %v2631 = vunpack.c.l.b16 %v1768
      %v2632 = vunpack.c.l.b16 %v1769
      %v2633 = vunpack.c.l.b16 %v1770
      %v2634 = vunpack.c.l.b16 %v1771
      %v2635 = vunpack.c.l.b16 %v1772
      %v2636 = vunpack.c.l.b16 %v1773
      %v2637 = vunpack.c.l.b16 %v1774
      %v2638 = vunpack.c.l.b16 %v1775
      %v2639 = vunpack.c.l.b16 %v1776
      %v2640 = vunpack.c.l.b16 %v1777
      %v2641 = vunpack.c.l.b16 %v1778
      %v2642 = vunpack.c.l.b16 %v1779
      %v2643 = vunpack.c.l.b16 %v1780
      %v2644 = vunpack.c.l.b16 %v1781
      %v2645 = vunpack.c.l.b16 %v1782
      %v2646 = vunpack.c.l.b16 %v1783
      %v2647 = vunpack.c.l.b16 %v1784
      %v2648 = vunpack.c.l.b16 %v1785
      %v2649 = vunpack.c.l.b16 %v1786
      %v2650 = vunpack.c.l.b16 %v1787
      %v2651 = vunpack.c.l.b16 %v1788
      %v2652 = vunpack.c.l.b16 %v1789
      %v2653 = vunpack.c.l.b16 %v1790
      %v2654 = vunpack.c.l.b16 %v1791
      %v2655 = vunpack.c.l.b16 %v1792
      %v2656 = vunpack.c.l.b16 %v1793
      %v2657 = vunpack.c.l.b16 %v1794
      %v2658 = vunpack.c.l.b16 %v1795
      %v2659 = vunpack.c.l.b16 %v1796
      %v2660 = vunpack.c.l.b16 %v1797
      %v2661 = vunpack.c.l.b16 %v1798
      %v2662 = vunpack.c.l.b16 %v1799
      %v2663 = vunpack.c.l.b16 %v1800
      %v2664 = vunpack.c.l.b16 %v1801
      %v2665 = vunpack.c.l.b16 %v1802
      %v2666 = vunpack.c.l.b16 %v1803
      %v2667 = vunpack.c.l.b16 %v1804
      %v2668 = vunpack.c.l.b16 %v1805
      %v2669 = vunpack.c.l.b16 %v1806
      %v2670 = vunpack.c.l.b16 %v1807
      %v2671 = vunpack.c.l.b16 %v1808
      %v2672 = vunpack.c.l.b16 %v1809
      %v2673 = vunpack.c.l.b16 %v1810
      %v2674 = vunpack.c.l.b16 %v1811
      %v2675 = vunpack.c.l.b16 %v1812
      %v2676 = vunpack.c.l.b16 %v1813
      %v2677 = vunpack.c.l.b16 %v1814
      %v2678 = vunpack.c.l.b16 %v1815
      %v2679 = vunpack.c.l.b16 %v1816
      %v2680 = vunpack.c.l.b16 %v1817
      %v2681 = vunpack.c.l.b16 %v1818
      %v2682 = vunpack.c.l.b16 %v1819
      %v2683 = vunpack.c.l.b16 %v1820
      %v2684 = vunpack.c.l.b16 %v1821
      %v2685 = vunpack.c.l.b16 %v1822
      %v2686 = vunpack.c.l.b16 %v1823
      %v2687 = vunpack.c.l.b16 %v1824
      %v2688 = vunpack.c.l.b16 %v1825
      %v2689 = vunpack.c.l.b16 %v1826
      %v2690 = vunpack.c.l.b16 %v1827
      %v2691 = vunpack.c.l.b16 %v1828
      %v2692 = vunpack.c.l.b16 %v1829
      %v2693 = vunpack.c.l.b16 %v1830
      %v2694 = vunpack.c.l.b16 %v1831
      %v2695 = vunpack.c.l.b16 %v1832
      %v2696 = vunpack.c.l.b16 %v1833
      %v2697 = vunpack.c.l.b16 %v1834
      %v2698 = vunpack.c.l.b16 %v1835
      %v2699 = vunpack.c.l.b16 %v1836
      %v2700 = vunpack.c.l.b16 %v1837
      %v2701 = vunpack.c.l.b16 %v1838
      %v2702 = vunpack.c.l.b16 %v1839
      %v2703 = vunpack.c.l.b16 %v1840
      %v2704 = vunpack.c.l.b16 %v1841
      %v2705 = vunpack.c.l.b16 %v1842
      %v2706 = vunpack.c.l.b16 %v1843
      %v2707 = vunpack.c.l.b16 %v1844
      %v2708 = vunpack.c.l.b16 %v1845
      %v2709 = vunpack.c.l.b16 %v1846
      %v2710 = vunpack.c.l.b16 %v1847
      %v2711 = vunpack.c.l.b16 %v1848
      %v2712 = vunpack.c.l.b16 %v1849
      %v2713 = vunpack.c.l.b16 %v1850
      %v2714 = vunpack.c.l.b16 %v1851
      %v2715 = vunpack.c.l.b16 %v1852
      %v2716 = vunpack.c.l.b16 %v1853
      %v2717 = vunpack.c.l.b16 %v1854
      %v2718 = vunpack.c.l.b16 %v1855
      %v2719 = vunpack.c.l.b16 %v1856
      %v2720 = vunpack.c.l.b16 %v1857
      %v2721 = vunpack.c.l.b16 %v1858
      %v2722 = vunpack.c.l.b16 %v1859
      %v2723 = vunpack.c.l.b16 %v1860
      %v2724 = vunpack.c.l.b16 %v1861
      %v2725 = vunpack.c.l.b16 %v1862
      %v2726 = vunpack.c.l.b16 %v1863
      %v2727 = vunpack.c.l.b16 %v1864
      %v2728 = vunpack.c.l.b16 %v1865
      %v2729 = vunpack.c.l.b16 %v1866
      %v2730 = vunpack.c.l.b16 %v1867
      %v2731 = vunpack.c.l.b16 %v1868
      %v2732 = vunpack.c.l.b16 %v1869
      %v2733 = vunpack.c.l.b16 %v1870
      %v2734 = vunpack.c.l.b16 %v1871
      %v2735 = vunpack.c.l.b16 %v1872
      %v2736 = vunpack.c.l.b16 %v1873
      %v2737 = vunpack.c.l.b16 %v1874
      %v2738 = vunpack.c.l.b16 %v1875
      %v2739 = vunpack.c.l.b16 %v1876
      %v2740 = vunpack.c.l.b16 %v1877
      %v2741 = vunpack.c.l.b16 %v1878
      %v2742 = vunpack.c.l.b16 %v1879
      %v2743 = vunpack.c.l.b16 %v1880
      %v2744 = vunpack.c.l.b16 %v1881
      %v2745 = vunpack.c.l.b16 %v1882
      %v2746 = vunpack.c.l.b16 %v1883
      %v2747 = vunpack.c.l.b16 %v1884
      %v2748 = vunpack.c.l.b16 %v1885
      %v2749 = vunpack.c.l.b16 %v1886
      %v2750 = vunpack.c.l.b16 %v1887
      %v2751 = vunpack.c.l.b16 %v1888
      %v2752 = vunpack.c.l.b16 %v1889
      %v2753 = vunpack.c.l.b16 %v1890
      %v2754 = vunpack.c.l.b16 %v1891
      %v2755 = vunpack.c.l.b16 %v1892
      %v2756 = vunpack.c.l.b16 %v1893
      %v2757 = vunpack.c.l.b16 %v1894
      %v2758 = vunpack.c.l.b16 %v1895
      %v2759 = vunpack.c.l.b16 %v1896
      %v2760 = vunpack.c.l.b16 %v1897
      %v2761 = vunpack.c.l.b16 %v1898
      %v2762 = vunpack.c.l.b16 %v1899
      %v2763 = vunpack.c.l.b16 %v1900
      %v2764 = vunpack.c.l.b16 %v1901
      %v2765 = vunpack.c.l.b16 %v1902
      %v2766 = vunpack.c.l.b16 %v1903
      %v2767 = vunpack.c.l.b16 %v1904
      %v2768 = vunpack.c.l.b16 %v1905
      %v2769 = vunpack.c.l.b16 %v1906
      %v2770 = vunpack.c.l.b16 %v1907
      %v2771 = vunpack.c.l.b16 %v1908
      %v2772 = vunpack.c.l.b16 %v1909
      %v2773 = vunpack.c.l.b16 %v1910
      %v2774 = vunpack.c.l.b16 %v1911
      %v2775 = vunpack.c.l.b16 %v1912
      %v2776 = vunpack.c.l.b16 %v1913
      %v2777 = vunpack.c.l.b16 %v1914
      %v2778 = vunpack.c.l.b16 %v1915
      %v2779 = vunpack.c.l.b16 %v1916
      %v2780 = vunpack.c.l.b16 %v1917
      %v2781 = vunpack.c.l.b16 %v1918
      %v2782 = vunpack.c.l.b16 %v1919
      %v2783 = vunpack.c.l.b16 %v1920
      %v2784 = vunpack.c.l.b16 %v1921
      %v2785 = vunpack.c.l.b16 %v1922
      %v2786 = vunpack.c.l.b16 %v1923
      %v2787 = vunpack.c.l.b16 %v1924
      %v2788 = vunpack.c.l.b16 %v1925
      %v2789 = vunpack.c.l.b16 %v1926
      %v2790 = vunpack.c.l.b16 %v1927
      %v2791 = vunpack.c.l.b16 %v1928
      %v2792 = vunpack.c.l.b16 %v1929
      %v2793 = vunpack.c.l.b16 %v1930
      %v2794 = vunpack.c.l.b16 %v1931
      %v2795 = vunpack.c.l.b16 %v1932
      %v2796 = vunpack.c.l.b16 %v1933
      %v2797 = vunpack.c.l.b16 %v1934
      %v2798 = vunpack.c.l.b16 %v1935
      %v2799 = vunpack.c.l.b16 %v1936
      %v2800 = vunpack.c.l.b16 %v1937
      %v2801 = vunpack.c.l.b16 %v1938
      %v2802 = vunpack.c.l.b16 %v1939
      %v2803 = vunpack.c.l.b16 %v1940
      %v2804 = vunpack.c.l.b16 %v1941
      %v2805 = vunpack.c.l.b16 %v1942
      %v2806 = vunpack.c.l.b16 %v1943
      %v2807 = vunpack.c.l.b16 %v1944
      %v2808 = vunpack.c.l.b16 %v1945
      %v2809 = vunpack.c.l.b16 %v1946
      %v2810 = vunpack.c.l.b16 %v1947
      %v2811 = vunpack.c.l.b16 %v1948
      %v2812 = vunpack.c.l.b16 %v1949
      %v2813 = vunpack.c.l.b16 %v1950
      %v2814 = vunpack.c.l.b16 %v1951
      %v2815 = vunpack.c.l.b16 %v1952
      %v2816 = vunpack.c.l.b16 %v1953
      %v2817 = vunpack.c.l.b16 %v1954
      %v2818 = vunpack.c.l.b16 %v1955
      %v2819 = vunpack.c.l.b16 %v1956
      %v2820 = vunpack.c.l.b16 %v1957
      %v2821 = vunpack.c.l.b16 %v1958
      %v2822 = vunpack.c.l.b16 %v1959
      %v2823 = vunpack.c.l.b16 %v1960
      %v2824 = vunpack.c.l.b16 %v1961
      %v2825 = vunpack.c.l.b16 %v1962
      %v2826 = vunpack.c.l.b16 %v1963
      %v2827 = vunpack.c.l.b16 %v1964
      %v2828 = vunpack.c.l.b16 %v1965
      %v2829 = vunpack.c.l.b16 %v1966
      %v2830 = vunpack.c.l.b16 %v1967
      %v2831 = vunpack.c.l.b16 %v1968
      %v2832 = vunpack.c.l.b16 %v1969
      %v2833 = vunpack.c.l.b16 %v1970
      %v2834 = vunpack.c.l.b16 %v1971
      %v2835 = vunpack.c.l.b16 %v1972
      %v2836 = vunpack.c.l.b16 %v1973
      %v2837 = vunpack.c.l.b16 %v1974
      %v2838 = vunpack.c.l.b16 %v1975
      %v2839 = vunpack.c.l.b16 %v1976
      %v2840 = vunpack.c.l.b16 %v1977
      %v2841 = vunpack.c.l.b16 %v1978
      %v2842 = vunpack.c.l.b16 %v1979
      %v2843 = vunpack.c.l.b16 %v1980
      %v2844 = vunpack.c.l.b16 %v1981
      %v2845 = vunpack.c.l.b16 %v1982
      %v2846 = vunpack.c.l.b16 %v1983
      %v2847 = vunpack.c.l.b16 %v1984
      %v2848 = vunpack.c.l.b16 %v1985
      %v2849 = vunpack.c.l.b16 %v1986
      %v2850 = vunpack.c.l.b16 %v1987
      %v2851 = vunpack.c.l.b16 %v1988
      %v2852 = vunpack.c.l.b16 %v1989
      %v2853 = vunpack.c.l.b16 %v1990
      %v2854 = vunpack.c.l.b16 %v1991
      %v2855 = vunpack.c.l.b16 %v1992
      %v2856 = vunpack.c.l.b16 %v1993
      %v2857 = vunpack.c.l.b16 %v1994
      %v2858 = vunpack.c.l.b16 %v1995
      %v2859 = vunpack.c.l.b16 %v1996
      %v2860 = vunpack.c.l.b16 %v1997
      %v2861 = vunpack.c.l.b16 %v1998
      %v2862 = vunpack.c.l.b16 %v1999
      %v2863 = vunpack.c.l.b16 %v2000
      %v2864 = vunpack.c.l.b16 %v2001
      %v2865 = vunpack.c.l.b16 %v2002
      %v2866 = vunpack.c.l.b16 %v2003
      %v2867 = vunpack.c.l.b16 %v2004
      %v2868 = vunpack.c.l.b16 %v2005
      %v2869 = vunpack.c.l.b16 %v2006
      %v2870 = vunpack.c.l.b16 %v2007
      %v2871 = vunpack.c.l.b16 %v2008
      %v2872 = vunpack.c.l.b16 %v2009
      %v2873 = vunpack.c.l.b16 %v2010
      %v2874 = vunpack.c.l.b16 %v2011
      %v2875 = vunpack.c.l.b16 %v2012
      %v2876 = vunpack.c.l.b16 %v2013
      %v2877 = vunpack.c.l.b16 %v2014
      %v2878 = vunpack.c.l.b16 %v2015
      %v2879 = vunpack.c.l.b16 %v2016
      %v2880 = vunpack.c.l.b16 %v2017
      %v2881 = vunpack.c.l.b16 %v2018
      %v2882 = vunpack.c.l.b16 %v2019
      %v2883 = vunpack.c.l.b16 %v2020
      %v2884 = vunpack.c.l.b16 %v2021
      %v2885 = vunpack.c.l.b16 %v2022
      %v2886 = vunpack.c.l.b16 %v2023
      %v2887 = vunpack.c.l.b16 %v2024
      %v2888 = vunpack.c.l.b16 %v2025
      %v2889 = vunpack.c.l.b16 %v2026
      %v2890 = vunpack.c.l.b16 %v2027
      %v2891 = vunpack.c.l.b16 %v2028
      %v2892 = vunpack.c.l.b16 %v2029
      %v2893 = vunpack.c.l.b16 %v2030
      %v2894 = vunpack.c.l.b16 %v2031
      %v2895 = vunpack.c.l.b16 %v2032
      %v2896 = vunpack.c.l.b16 %v2033
      %v2897 = vunpack.c.l.b16 %v2034
      %v2898 = vunpack.c.l.b16 %v2035
      %v2899 = vunpack.c.l.b16 %v2036
      %v2900 = vunpack.c.l.b16 %v2037
      %v2901 = vunpack.c.l.b16 %v2038
      %v2902 = vunpack.c.l.b16 %v2039
      %v2903 = vunpack.c.l.b16 %v2040
      %v2904 = vunpack.c.l.b16 %v2041
      %v2905 = vunpack.c.l.b16 %v2042
      %v2906 = vunpack.c.l.b16 %v2043
      %v2907 = vunpack.c.l.b16 %v2044
      %v2908 = vunpack.c.l.b16 %v2045
      %v2909 = vpack.c.b16 %v2622, %v2621
      %v2910 = vpack.c.b16 %v2624, %v2623
      %v2911 = vpack.c.b16 %v2626, %v2625
      %v2912 = vpack.c.b16 %v2628, %v2627
      %v2913 = vpack.c.b16 %v2630, %v2629
      %v2914 = vpack.c.b16 %v2632, %v2631
      %v2915 = vpack.c.b16 %v2634, %v2633
      %v2916 = vpack.c.b16 %v2636, %v2635
      %v2917 = vpack.c.b16 %v2638, %v2637
      %v2918 = vpack.c.b16 %v2640, %v2639
      %v2919 = vpack.c.b16 %v2642, %v2641
      %v2920 = vpack.c.b16 %v2644, %v2643
      %v2921 = vpack.c.b16 %v2646, %v2645
      %v2922 = vpack.c.b16 %v2648, %v2647
      %v2923 = vpack.c.b16 %v2650, %v2649
      %v2924 = vpack.c.b16 %v2652, %v2651
      %v2925 = vpack.c.b16 %v2654, %v2653
      %v2926 = vpack.c.b16 %v2656, %v2655
      %v2927 = vpack.c.b16 %v2658, %v2657
      %v2928 = vpack.c.b16 %v2660, %v2659
      %v2929 = vpack.c.b16 %v2662, %v2661
      %v2930 = vpack.c.b16 %v2664, %v2663
      %v2931 = vpack.c.b16 %v2666, %v2665
      %v2932 = vpack.c.b16 %v2668, %v2667
      %v2933 = vpack.c.b16 %v2670, %v2669
      %v2934 = vpack.c.b16 %v2672, %v2671
      %v2935 = vpack.c.b16 %v2674, %v2673
      %v2936 = vpack.c.b16 %v2676, %v2675
      %v2937 = vpack.c.b16 %v2678, %v2677
      %v2938 = vpack.c.b16 %v2680, %v2679
      %v2939 = vpack.c.b16 %v2682, %v2681
      %v2940 = vpack.c.b16 %v2684, %v2683
      %v2941 = vpack.c.b16 %v2686, %v2685
      %v2942 = vpack.c.b16 %v2688, %v2687
      %v2943 = vpack.c.b16 %v2690, %v2689
      %v2944 = vpack.c.b16 %v2692, %v2691
      %v2945 = vpack.c.b16 %v2694, %v2693
      %v2946 = vpack.c.b16 %v2696, %v2695
      %v2947 = vpack.c.b16 %v2698, %v2697
      %v2948 = vpack.c.b16 %v2700, %v2699
      %v2949 = vpack.c.b16 %v2702, %v2701
      %v2950 = vpack.c.b16 %v2704, %v2703
      %v2951 = vpack.c.b16 %v2706, %v2705
      %v2952 = vpack.c.b16 %v2708, %v2707
      %v2953 = vpack.c.b16 %v2710, %v2709
      %v2954 = vpack.c.b16 %v2712, %v2711
      %v2955 = vpack.c.b16 %v2714, %v2713
      %v2956 = vpack.c.b16 %v2716, %v2715
      %v2957 = vpack.c.b16 %v2718, %v2717
      %v2958 = vpack.c.b16 %v2720, %v2719
      %v2959 = vpack.c.b16 %v2722, %v2721
      %v2960 = vpack.c.b16 %v2724, %v2723
      %v2961 = vpack.c.b16 %v2726, %v2725
      %v2962 = vpack.c.b16 %v2728, %v2727
      %v2963 = vpack.c.b16 %v2730, %v2729
      %v2964 = vpack.c.b16 %v2732, %v2731
      %v2965 = vpack.c.b16 %v2734, %v2733
      %v2966 = vpack.c.b16 %v2736, %v2735
      %v2967 = vpack.c.b16 %v2738, %v2737
      %v2968 = vpack.c.b16 %v2740, %v2739
      %v2969 = vpack.c.b16 %v2742, %v2741
      %v2970 = vpack.c.b16 %v2744, %v2743
      %v2971 = vpack.c.b16 %v2746, %v2745
      %v2972 = vpack.c.b16 %v2748, %v2747
      %v2973 = vpack.c.b16 %v2750, %v2749
      %v2974 = vpack.c.b16 %v2752, %v2751
      %v2975 = vpack.c.b16 %v2754, %v2753
      %v2976 = vpack.c.b16 %v2756, %v2755
      %v2977 = vpack.c.b16 %v2758, %v2757
      %v2978 = vpack.c.b16 %v2760, %v2759
      %v2979 = vpack.c.b16 %v2762, %v2761
      %v2980 = vpack.c.b16 %v2764, %v2763
      %v2981 = vpack.c.b16 %v2766, %v2765
      %v2982 = vpack.c.b16 %v2768, %v2767
      %v2983 = vpack.c.b16 %v2770, %v2769
      %v2984 = vpack.c.b16 %v2772, %v2771
      %v2985 = vpack.c.b16 %v2774, %v2773
      %v2986 = vpack.c.b16 %v2776, %v2775
      %v2987 = vpack.c.b16 %v2778, %v2777
      %v2988 = vpack.c.b16 %v2780, %v2779
      %v2989 = vpack.c.b16 %v2782, %v2781
      %v2990 = vpack.c.b16 %v2784, %v2783
      %v2991 = vpack.c.b16 %v2786, %v2785
      %v2992 = vpack.c.b16 %v2788, %v2787
      %v2993 = vpack.c.b16 %v2790, %v2789
      %v2994 = vpack.c.b16 %v2792, %v2791
      %v2995 = vpack.c.b16 %v2794, %v2793
      %v2996 = vpack.c.b16 %v2796, %v2795
      %v2997 = vpack.c.b16 %v2798, %v2797
      %v2998 = vpack.c.b16 %v2800, %v2799
      %v2999 = vpack.c.b16 %v2802, %v2801
      %v3000 = vpack.c.b16 %v2804, %v2803
      %v3001 = vpack.c.b16 %v2806, %v2805
      %v3002 = vpack.c.b16 %v2808, %v2807
      %v3003 = vpack.c.b16 %v2810, %v2809
      %v3004 = vpack.c.b16 %v2812, %v2811
      %v3005 = vpack.c.b16 %v2814, %v2813
      %v3006 = vpack.c.b16 %v2816, %v2815
      %v3007 = vpack.c.b16 %v2818, %v2817
      %v3008 = vpack.c.b16 %v2820, %v2819
      %v3009 = vpack.c.b16 %v2822, %v2821
      %v3010 = vpack.c.b16 %v2824, %v2823
      %v3011 = vpack.c.b16 %v2826, %v2825
      %v3012 = vpack.c.b16 %v2828, %v2827
      %v3013 = vpack.c.b16 %v2830, %v2829
      %v3014 = vpack.c.b16 %v2832, %v2831
      %v3015 = vpack.c.b16 %v2834, %v2833
      %v3016 = vpack.c.b16 %v2836, %v2835
      %v3017 = vpack.c.b16 %v2838, %v2837
      %v3018 = vpack.c.b16 %v2840, %v2839
      %v3019 = vpack.c.b16 %v2842, %v2841
      %v3020 = vpack.c.b16 %v2844, %v2843
      %v3021 = vpack.c.b16 %v2846, %v2845
      %v3022 = vpack.c.b16 %v2848, %v2847
      %v3023 = vpack.c.b16 %v2850, %v2849
      %v3024 = vpack.c.b16 %v2852, %v2851
      %v3025 = vpack.c.b16 %v2854, %v2853
      %v3026 = vpack.c.b16 %v2856, %v2855
      %v3027 = vpack.c.b16 %v2858, %v2857
      %v3028 = vpack.c.b16 %v2860, %v2859
      %v3029 = vpack.c.b16 %v2862, %v2861
      %v3030 = vpack.c.b16 %v2864, %v2863
      %v3031 = vpack.c.b16 %v2866, %v2865
      %v3032 = vpack.c.b16 %v2868, %v2867
      %v3033 = vpack.c.b16 %v2870, %v2869
      %v3034 = vpack.c.b16 %v2872, %v2871
      %v3035 = vpack.c.b16 %v2874, %v2873
      %v3036 = vpack.c.b16 %v2876, %v2875
      %v3037 = vpack.c.b16 %v2878, %v2877
      %v3038 = vpack.c.b16 %v2880, %v2879
      %v3039 = vpack.c.b16 %v2882, %v2881
      %v3040 = vpack.c.b16 %v2884, %v2883
      %v3041 = vpack.c.b16 %v2886, %v2885
      %v3042 = vpack.c.b16 %v2888, %v2887
      %v3043 = vpack.c.b16 %v2890, %v2889
      %v3044 = vpack.c.b16 %v2892, %v2891
      %v3045 = vpack.c.b16 %v2894, %v2893
      %v3046 = vpack.c.b16 %v2896, %v2895
      %v3047 = vpack.c.b16 %v2898, %v2897
      %v3048 = vpack.c.b16 %v2900, %v2899
      %v3049 = vpack.c.b16 %v2902, %v2901
      %v3050 = vpack.c.b16 %v2904, %v2903
      %v3051 = vpack.c.b16 %v2906, %v2905
      %v3052 = vpack.c.b16 %v2908, %v2907
      %3197 = vmatprep.subr.bf16.mxu0 0
      %3198 = vmatpush1.bf16.msra.mxu0 %v2916
      %3199 = vmatprep.subr.bf16.mxu0 0
      %3200 = vmatpush1.bf16.msra.mxu0 %v2915
      %3201 = vmatprep.subr.bf16.mxu0 0
      %3202 = vmatpush1.bf16.msra.mxu0 %v2914
      %3203 = vmatprep.subr.bf16.mxu0 0
      %3204 = vmatpush1.bf16.msra.mxu0 %v2913
      %3205 = vmatprep.subr.bf16.mxu0 0
      %3206 = vmatpush1.bf16.msra.mxu0 %v2912
      %3207 = vmatprep.subr.bf16.mxu0 0
      %3208 = vmatpush1.bf16.msra.mxu0 %v2911
      %3209 = vmatprep.subr.bf16.mxu0 0
      %3210 = vmatpush1.bf16.msra.mxu0 %v2910
      %3211 = vmatprep.subr.bf16.mxu0 0
      %3212 = vmatpush1.bf16.msra.mxu0 %v2909
      %3213 = vmatprep.subr.bf16.mxu0 0
      %3214 = vmatpush2.bf16.msra.mxu0 %v2924
      %3215 = vmatprep.subr.bf16.mxu0 0
      %3216 = vmatpush2.bf16.msra.mxu0 %v2923
      %3217 = vmatprep.subr.bf16.mxu0 0
      %3218 = vmatpush2.bf16.msra.mxu0 %v2922
      %3219 = vmatprep.subr.bf16.mxu0 0
      %3220 = vmatpush2.bf16.msra.mxu0 %v2921
      %3221 = vmatprep.subr.bf16.mxu0 0
      %3222 = vmatpush2.bf16.msra.mxu0 %v2920
      %3223 = vmatprep.subr.bf16.mxu0 0
      %3224 = vmatpush2.bf16.msra.mxu0 %v2919
      %3225 = vmatprep.subr.bf16.mxu0 0
      %3226 = vmatpush2.bf16.msra.mxu0 %v2918
      %3227 = vmatprep.subr.bf16.mxu0 0
      %3228 = vmatpush2.bf16.msra.mxu0 %v2917
      %3229 = vmatprep.mubr.bf16.mxu0 %v2078
      %3230 = vmatmul.mubr.bf16.gmra.mxu0 %v2075
      %v3231 = vpop.f32.mrf.mxu0
      %v3232 = vadd.f32 %v2331, %v3231
      %v3233 = vpop.f32.mrf.mxu0
      %v3234 = vpop.f32.mrf.mxu0
      %v3235 = vadd.f32 %v2331, %v3234
      %v3236 = vpop.f32.mrf.mxu0
      %3237 = vmatprep.mubr.bf16.mxu0 %v2059
      %3238 = vmatmul.mubr.bf16.gmra.mxu0 %v2057
      %v3239 = vpop.f32.mrf.mxu0
      %v3240 = vadd.f32 %v2331, %v3239
      %v3241 = vpop.f32.mrf.mxu0
      %v3242 = vpop.f32.mrf.mxu0
      %v3243 = vadd.f32 %v2331, %v3242
      %v3244 = vpop.f32.mrf.mxu0
      %3245 = vmatprep.mubr.bf16.mxu0 %v2063
      %3246 = vmatmul.mubr.bf16.gmra.mxu0 %v2061
      %v3247 = vpop.f32.mrf.mxu0
      %v3248 = vadd.f32 %v2331, %v3247
      %v3249 = vpop.f32.mrf.mxu0
      %v3250 = vpop.f32.mrf.mxu0
      %v3251 = vadd.f32 %v2331, %v3250
      %v3252 = vpop.f32.mrf.mxu0
      %3253 = vmatprep.mubr.bf16.mxu0 %v2067
      %3254 = vmatmul.mubr.bf16.gmra.mxu0 %v2065
      %v3255 = vpop.f32.mrf.mxu0
      %v3256 = vadd.f32 %v2331, %v3255
      %v3257 = vpop.f32.mrf.mxu0
      %v3258 = vpop.f32.mrf.mxu0
      %v3259 = vpop.f32.mrf.mxu0
      %3260 = vdwg.mxu0
      %3261 = vmatprep.subr.bf16.mxu0 0
      %3262 = vmatpush1.bf16.msra.mxu0 %v2932
      %3263 = vmatprep.subr.bf16.mxu0 0
      %3264 = vmatpush1.bf16.msra.mxu0 %v2931
      %3265 = vmatprep.subr.bf16.mxu0 0
      %3266 = vmatpush1.bf16.msra.mxu0 %v2930
      %3267 = vmatprep.subr.bf16.mxu0 0
      %3268 = vmatpush1.bf16.msra.mxu0 %v2929
      %3269 = vmatprep.subr.bf16.mxu0 0
      %3270 = vmatpush1.bf16.msra.mxu0 %v2928
      %3271 = vmatprep.subr.bf16.mxu0 0
      %3272 = vmatpush1.bf16.msra.mxu0 %v2927
      %3273 = vmatprep.subr.bf16.mxu0 0
      %3274 = vmatpush1.bf16.msra.mxu0 %v2926
      %3275 = vmatprep.subr.bf16.mxu0 0
      %3276 = vmatpush1.bf16.msra.mxu0 %v2925
      %3277 = vmatprep.subr.bf16.mxu0 0
      %3278 = vmatpush2.bf16.msra.mxu0 %v2940
      %3279 = vmatprep.subr.bf16.mxu0 0
      %3280 = vmatpush2.bf16.msra.mxu0 %v2939
      %3281 = vmatprep.subr.bf16.mxu0 0
      %3282 = vmatpush2.bf16.msra.mxu0 %v2938
      %3283 = vmatprep.subr.bf16.mxu0 0
      %3284 = vmatpush2.bf16.msra.mxu0 %v2937
      %3285 = vmatprep.subr.bf16.mxu0 0
      %3286 = vmatpush2.bf16.msra.mxu0 %v2936
      %3287 = vmatprep.subr.bf16.mxu0 0
      %3288 = vmatpush2.bf16.msra.mxu0 %v2935
      %3289 = vmatprep.subr.bf16.mxu0 0
      %3290 = vmatpush2.bf16.msra.mxu0 %v2934
      %3291 = vmatprep.subr.bf16.mxu0 0
      %3292 = vmatpush2.bf16.msra.mxu0 %v2933
      %3293 = vmatprep.mubr.bf16.mxu0 %v2101
      %3294 = vmatmul.mubr.bf16.gmra.mxu0 %v2090
      %v3295 = vpop.f32.mrf.mxu0
      %v3296 = vadd.f32 %v3232, %v3295
      %v3297 = vpop.f32.mrf.mxu0
      %v3298 = vpop.f32.mrf.mxu0
      %v3299 = vadd.f32 %v3235, %v3298
      %v3300 = vpop.f32.mrf.mxu0
      %3301 = vmatprep.mubr.bf16.mxu0 %v2117
      %3302 = vmatmul.mubr.bf16.gmra.mxu0 %v2109
      %v3303 = vpop.f32.mrf.mxu0
      %v3304 = vadd.f32 %v3240, %v3303
      %v3305 = vpop.f32.mrf.mxu0
      %v3306 = vpop.f32.mrf.mxu0
      %v3307 = vadd.f32 %v3243, %v3306
      %v3308 = vpop.f32.mrf.mxu0
      %3309 = vmatprep.mubr.bf16.mxu0 %v2133
      %3310 = vmatmul.mubr.bf16.gmra.mxu0 %v2125
      %v3311 = vpop.f32.mrf.mxu0
      %v3312 = vadd.f32 %v3248, %v3311
      %v3313 = vpop.f32.mrf.mxu0
      %v3314 = vpop.f32.mrf.mxu0
      %v3315 = vadd.f32 %v3251, %v3314
      %v3316 = vpop.f32.mrf.mxu0
      %3317 = vmatprep.mubr.bf16.mxu0 %v2139
      %3318 = vmatmul.mubr.bf16.gmra.mxu0 %v2136
      %v3319 = vpop.f32.mrf.mxu0
      %v3320 = vadd.f32 %v3256, %v3319
      %v3321 = vpop.f32.mrf.mxu0
      %v3322 = vpop.f32.mrf.mxu0
      %v3323 = vpop.f32.mrf.mxu0
      %3324 = vdwg.mxu0
      %3325 = vmatprep.subr.bf16.mxu0 0
      %3326 = vmatpush1.bf16.msra.mxu0 %v2948
      %3327 = vmatprep.subr.bf16.mxu0 0
      %3328 = vmatpush1.bf16.msra.mxu0 %v2947
      %3329 = vmatprep.subr.bf16.mxu0 0
      %3330 = vmatpush1.bf16.msra.mxu0 %v2946
      %3331 = vmatprep.subr.bf16.mxu0 0
      %3332 = vmatpush1.bf16.msra.mxu0 %v2945
      %3333 = vmatprep.subr.bf16.mxu0 0
      %3334 = vmatpush1.bf16.msra.mxu0 %v2944
      %3335 = vmatprep.subr.bf16.mxu0 0
      %3336 = vmatpush1.bf16.msra.mxu0 %v2943
      %3337 = vmatprep.subr.bf16.mxu0 0
      %3338 = vmatpush1.bf16.msra.mxu0 %v2942
      %3339 = vmatprep.subr.bf16.mxu0 0
      %3340 = vmatpush1.bf16.msra.mxu0 %v2941
      %3341 = vmatprep.subr.bf16.mxu0 0
      %3342 = vmatpush2.bf16.msra.mxu0 %v2956
      %3343 = vmatprep.subr.bf16.mxu0 0
      %3344 = vmatpush2.bf16.msra.mxu0 %v2955
      %3345 = vmatprep.subr.bf16.mxu0 0
      %3346 = vmatpush2.bf16.msra.mxu0 %v2954
      %3347 = vmatprep.subr.bf16.mxu0 0
      %3348 = vmatpush2.bf16.msra.mxu0 %v2953
      %3349 = vmatprep.subr.bf16.mxu0 0
      %3350 = vmatpush2.bf16.msra.mxu0 %v2952
      %3351 = vmatprep.subr.bf16.mxu0 0
      %3352 = vmatpush2.bf16.msra.mxu0 %v2951
      %3353 = vmatprep.subr.bf16.mxu0 0
      %3354 = vmatpush2.bf16.msra.mxu0 %v2950
      %3355 = vmatprep.subr.bf16.mxu0 0
      %3356 = vmatpush2.bf16.msra.mxu0 %v2949
      %3357 = vmatprep.mubr.bf16.mxu0 %v2155
      %3358 = vmatmul.mubr.bf16.gmra.mxu0 %v2152
      %v3359 = vpop.f32.mrf.mxu0
      %v3360 = vadd.f32 %v3296, %v3359
      %v3361 = vpop.f32.mrf.mxu0
      %v3362 = vpop.f32.mrf.mxu0
      %v3363 = vadd.f32 %v3299, %v3362
      %v3364 = vpop.f32.mrf.mxu0
      %3365 = vmatprep.mubr.bf16.mxu0 %v2159
      %3366 = vmatmul.mubr.bf16.gmra.mxu0 %v2157
      %v3367 = vpop.f32.mrf.mxu0
      %v3368 = vadd.f32 %v3304, %v3367
      %v3369 = vpop.f32.mrf.mxu0
      %v3370 = vpop.f32.mrf.mxu0
      %v3371 = vadd.f32 %v3307, %v3370
      %v3372 = vpop.f32.mrf.mxu0
      %3373 = vmatprep.mubr.bf16.mxu0 %v2163
      %3374 = vmatmul.mubr.bf16.gmra.mxu0 %v2161
      %v3375 = vpop.f32.mrf.mxu0
      %v3376 = vadd.f32 %v3312, %v3375
      %v3377 = vpop.f32.mrf.mxu0
      %v3378 = vpop.f32.mrf.mxu0
      %v3379 = vadd.f32 %v3315, %v3378
      %v3380 = vpop.f32.mrf.mxu0
      %3381 = vmatprep.mubr.bf16.mxu0 %v2162
      %3382 = vmatmul.mubr.bf16.gmra.mxu0 %v2160
      %v3383 = vpop.f32.mrf.mxu0
      %v3384 = vadd.f32 %v3320, %v3383
      %v3385 = vpop.f32.mrf.mxu0
      %v3386 = vpop.f32.mrf.mxu0
      %v3387 = vpop.f32.mrf.mxu0
      %3388 = vdwg.mxu0
      %3389 = vmatprep.subr.bf16.mxu0 0
      %3390 = vmatpush1.bf16.msra.mxu0 %v2964
      %3391 = vmatprep.subr.bf16.mxu0 0
      %3392 = vmatpush1.bf16.msra.mxu0 %v2963
      %3393 = vmatprep.subr.bf16.mxu0 0
      %3394 = vmatpush1.bf16.msra.mxu0 %v2962
      %3395 = vmatprep.subr.bf16.mxu0 0
      %3396 = vmatpush1.bf16.msra.mxu0 %v2961
      %3397 = vmatprep.subr.bf16.mxu0 0
      %3398 = vmatpush1.bf16.msra.mxu0 %v2960
      %3399 = vmatprep.subr.bf16.mxu0 0
      %3400 = vmatpush1.bf16.msra.mxu0 %v2959
      %3401 = vmatprep.subr.bf16.mxu0 0
      %3402 = vmatpush1.bf16.msra.mxu0 %v2958
      %3403 = vmatprep.subr.bf16.mxu0 0
      %3404 = vmatpush1.bf16.msra.mxu0 %v2957
      %3405 = vmatprep.subr.bf16.mxu0 0
      %3406 = vmatpush2.bf16.msra.mxu0 %v2972
      %3407 = vmatprep.subr.bf16.mxu0 0
      %3408 = vmatpush2.bf16.msra.mxu0 %v2971
      %3409 = vmatprep.subr.bf16.mxu0 0
      %3410 = vmatpush2.bf16.msra.mxu0 %v2970
      %3411 = vmatprep.subr.bf16.mxu0 0
      %3412 = vmatpush2.bf16.msra.mxu0 %v2969
      %3413 = vmatprep.subr.bf16.mxu0 0
      %3414 = vmatpush2.bf16.msra.mxu0 %v2968
      %3415 = vmatprep.subr.bf16.mxu0 0
      %3416 = vmatpush2.bf16.msra.mxu0 %v2967
      %3417 = vmatprep.subr.bf16.mxu0 0
      %3418 = vmatpush2.bf16.msra.mxu0 %v2966
      %3419 = vmatprep.subr.bf16.mxu0 0
      %3420 = vmatpush2.bf16.msra.mxu0 %v2965
      %3421 = vmatprep.mubr.bf16.mxu0 %v2185
      %3422 = vmatmul.mubr.bf16.gmra.mxu0 %v2178
      %v3423 = vpop.f32.mrf.mxu0
      %v3424 = vadd.f32 %v3360, %v3423
      %v3425 = vpop.f32.mrf.mxu0
      %v3426 = vpop.f32.mrf.mxu0
      %v3427 = vadd.f32 %v3363, %v3426
      %v3428 = vpop.f32.mrf.mxu0
      %3429 = vmatprep.mubr.bf16.mxu0 %v2193
      %3430 = vmatmul.mubr.bf16.gmra.mxu0 %v2189
      %v3431 = vpop.f32.mrf.mxu0
      %v3432 = vadd.f32 %v3368, %v3431
      %v3433 = vpop.f32.mrf.mxu0
      %v3434 = vpop.f32.mrf.mxu0
      %v3435 = vadd.f32 %v3371, %v3434
      %v3436 = vpop.f32.mrf.mxu0
      %3437 = vmatprep.mubr.bf16.mxu0 %v2201
      %3438 = vmatmul.mubr.bf16.gmra.mxu0 %v2197
      %v3439 = vpop.f32.mrf.mxu0
      %v3440 = vadd.f32 %v3376, %v3439
      %v3441 = vpop.f32.mrf.mxu0
      %v3442 = vpop.f32.mrf.mxu0
      %v3443 = vadd.f32 %v3379, %v3442
      %v3444 = vpop.f32.mrf.mxu0
      %3445 = vmatprep.mubr.bf16.mxu0 %v2200
      %3446 = vmatmul.mubr.bf16.gmra.mxu0 %v2196
      %v3447 = vpop.f32.mrf.mxu0
      %v3448 = vadd.f32 %v3384, %v3447
      %v3449 = vpop.f32.mrf.mxu0
      %v3450 = vpop.f32.mrf.mxu0
      %v3451 = vpop.f32.mrf.mxu0
      %3452 = vdwg.mxu0
      %3453 = vmatprep.subr.bf16.mxu0 0
      %3454 = vmatpush1.bf16.msra.mxu0 %v2980
      %3455 = vmatprep.subr.bf16.mxu0 0
      %3456 = vmatpush1.bf16.msra.mxu0 %v2979
      %3457 = vmatprep.subr.bf16.mxu0 0
      %3458 = vmatpush1.bf16.msra.mxu0 %v2978
      %3459 = vmatprep.subr.bf16.mxu0 0
      %3460 = vmatpush1.bf16.msra.mxu0 %v2977
      %3461 = vmatprep.subr.bf16.mxu0 0
      %3462 = vmatpush1.bf16.msra.mxu0 %v2976
      %3463 = vmatprep.subr.bf16.mxu0 0
      %3464 = vmatpush1.bf16.msra.mxu0 %v2975
      %3465 = vmatprep.subr.bf16.mxu0 0
      %3466 = vmatpush1.bf16.msra.mxu0 %v2974
      %3467 = vmatprep.subr.bf16.mxu0 0
      %3468 = vmatpush1.bf16.msra.mxu0 %v2973
      %3469 = vmatprep.subr.bf16.mxu0 0
      %3470 = vmatpush2.bf16.msra.mxu0 %v2988
      %3471 = vmatprep.subr.bf16.mxu0 0
      %3472 = vmatpush2.bf16.msra.mxu0 %v2987
      %3473 = vmatprep.subr.bf16.mxu0 0
      %3474 = vmatpush2.bf16.msra.mxu0 %v2986
      %3475 = vmatprep.subr.bf16.mxu0 0
      %3476 = vmatpush2.bf16.msra.mxu0 %v2985
      %3477 = vmatprep.subr.bf16.mxu0 0
      %3478 = vmatpush2.bf16.msra.mxu0 %v2984
      %3479 = vmatprep.subr.bf16.mxu0 0
      %3480 = vmatpush2.bf16.msra.mxu0 %v2983
      %3481 = vmatprep.subr.bf16.mxu0 0
      %3482 = vmatpush2.bf16.msra.mxu0 %v2982
      %3483 = vmatprep.subr.bf16.mxu0 0
      %3484 = vmatpush2.bf16.msra.mxu0 %v2981
      %3485 = vmatprep.mubr.bf16.mxu0 %v2215
      %3486 = vmatmul.mubr.bf16.gmra.mxu0 %v2212
      %v3487 = vpop.f32.mrf.mxu0
      %v3488 = vadd.f32 %v3424, %v3487
      %v3489 = vpop.f32.mrf.mxu0
      %v3490 = vpop.f32.mrf.mxu0
      %v3491 = vadd.f32 %v3427, %v3490
      %v3492 = vpop.f32.mrf.mxu0
      %3493 = vmatprep.mubr.bf16.mxu0 %v2219
      %3494 = vmatmul.mubr.bf16.gmra.mxu0 %v2217
      %v3495 = vpop.f32.mrf.mxu0
      %v3496 = vadd.f32 %v3432, %v3495
      %v3497 = vpop.f32.mrf.mxu0
      %v3498 = vpop.f32.mrf.mxu0
      %v3499 = vadd.f32 %v3435, %v3498
      %v3500 = vpop.f32.mrf.mxu0
      %3501 = vmatprep.mubr.bf16.mxu0 %v2223
      %3502 = vmatmul.mubr.bf16.gmra.mxu0 %v2221
      %v3503 = vpop.f32.mrf.mxu0
      %v3504 = vadd.f32 %v3440, %v3503
      %v3505 = vpop.f32.mrf.mxu0
      %v3506 = vpop.f32.mrf.mxu0
      %v3507 = vadd.f32 %v3443, %v3506
      %v3508 = vpop.f32.mrf.mxu0
      %3509 = vmatprep.mubr.bf16.mxu0 %v2222
      %3510 = vmatmul.mubr.bf16.gmra.mxu0 %v2220
      %v3511 = vpop.f32.mrf.mxu0
      %v3512 = vadd.f32 %v3448, %v3511
      %v3513 = vpop.f32.mrf.mxu0
      %v3514 = vpop.f32.mrf.mxu0
      %v3515 = vpop.f32.mrf.mxu0
      %3516 = vdwg.mxu0
      %3517 = vmatprep.subr.bf16.mxu0 0
      %3518 = vmatpush1.bf16.msra.mxu0 %v2996
      %3519 = vmatprep.subr.bf16.mxu0 0
      %3520 = vmatpush1.bf16.msra.mxu0 %v2995
      %3521 = vmatprep.subr.bf16.mxu0 0
      %3522 = vmatpush1.bf16.msra.mxu0 %v2994
      %3523 = vmatprep.subr.bf16.mxu0 0
      %3524 = vmatpush1.bf16.msra.mxu0 %v2993
      %3525 = vmatprep.subr.bf16.mxu0 0
      %3526 = vmatpush1.bf16.msra.mxu0 %v2992
      %3527 = vmatprep.subr.bf16.mxu0 0
      %3528 = vmatpush1.bf16.msra.mxu0 %v2991
      %3529 = vmatprep.subr.bf16.mxu0 0
      %3530 = vmatpush1.bf16.msra.mxu0 %v2990
      %3531 = vmatprep.subr.bf16.mxu0 0
      %3532 = vmatpush1.bf16.msra.mxu0 %v2989
      %3533 = vmatprep.subr.bf16.mxu0 0
      %3534 = vmatpush2.bf16.msra.mxu0 %v3004
      %3535 = vmatprep.subr.bf16.mxu0 0
      %3536 = vmatpush2.bf16.msra.mxu0 %v3003
      %3537 = vmatprep.subr.bf16.mxu0 0
      %3538 = vmatpush2.bf16.msra.mxu0 %v3002
      %3539 = vmatprep.subr.bf16.mxu0 0
      %3540 = vmatpush2.bf16.msra.mxu0 %v3001
      %3541 = vmatprep.subr.bf16.mxu0 0
      %3542 = vmatpush2.bf16.msra.mxu0 %v3000
      %3543 = vmatprep.subr.bf16.mxu0 0
      %3544 = vmatpush2.bf16.msra.mxu0 %v2999
      %3545 = vmatprep.subr.bf16.mxu0 0
      %3546 = vmatpush2.bf16.msra.mxu0 %v2998
      %3547 = vmatprep.subr.bf16.mxu0 0
      %3548 = vmatpush2.bf16.msra.mxu0 %v2997
      %3549 = vmatprep.mubr.bf16.mxu0 %v2245
      %3550 = vmatmul.mubr.bf16.gmra.mxu0 %v2238
      %v3551 = vpop.f32.mrf.mxu0
      %v3552 = vadd.f32 %v3488, %v3551
      %v3553 = vpop.f32.mrf.mxu0
      %v3554 = vpop.f32.mrf.mxu0
      %v3555 = vadd.f32 %v3491, %v3554
      %v3556 = vpop.f32.mrf.mxu0
      %3557 = vmatprep.mubr.bf16.mxu0 %v2253
      %3558 = vmatmul.mubr.bf16.gmra.mxu0 %v2249
      %v3559 = vpop.f32.mrf.mxu0
      %v3560 = vadd.f32 %v3496, %v3559
      %v3561 = vpop.f32.mrf.mxu0
      %v3562 = vpop.f32.mrf.mxu0
      %v3563 = vadd.f32 %v3499, %v3562
      %v3564 = vpop.f32.mrf.mxu0
      %3565 = vmatprep.mubr.bf16.mxu0 %v2261
      %3566 = vmatmul.mubr.bf16.gmra.mxu0 %v2257
      %v3567 = vpop.f32.mrf.mxu0
      %v3568 = vadd.f32 %v3504, %v3567
      %v3569 = vpop.f32.mrf.mxu0
      %v3570 = vpop.f32.mrf.mxu0
      %v3571 = vadd.f32 %v3507, %v3570
      %v3572 = vpop.f32.mrf.mxu0
      %3573 = vmatprep.mubr.bf16.mxu0 %v2263
      %3574 = vmatmul.mubr.bf16.gmra.mxu0 %v2262
      %v3575 = vpop.f32.mrf.mxu0
      %v3576 = vadd.f32 %v3512, %v3575
      %v3577 = vpop.f32.mrf.mxu0
      %v3578 = vpop.f32.mrf.mxu0
      %v3579 = vpop.f32.mrf.mxu0
      %3580 = vdwg.mxu0
      %3581 = vmatprep.subr.bf16.mxu0 0
      %3582 = vmatpush1.bf16.msra.mxu0 %v3012
      %3583 = vmatprep.subr.bf16.mxu0 0
      %3584 = vmatpush1.bf16.msra.mxu0 %v3011
      %3585 = vmatprep.subr.bf16.mxu0 0
      %3586 = vmatpush1.bf16.msra.mxu0 %v3010
      %3587 = vmatprep.subr.bf16.mxu0 0
      %3588 = vmatpush1.bf16.msra.mxu0 %v3009
      %3589 = vmatprep.subr.bf16.mxu0 0
      %3590 = vmatpush1.bf16.msra.mxu0 %v3008
      %3591 = vmatprep.subr.bf16.mxu0 0
      %3592 = vmatpush1.bf16.msra.mxu0 %v3007
      %3593 = vmatprep.subr.bf16.mxu0 0
      %3594 = vmatpush1.bf16.msra.mxu0 %v3006
      %3595 = vmatprep.subr.bf16.mxu0 0
      %3596 = vmatpush1.bf16.msra.mxu0 %v3005
      %3597 = vmatprep.subr.bf16.mxu0 0
      %3598 = vmatpush2.bf16.msra.mxu0 %v3020
      %3599 = vmatprep.subr.bf16.mxu0 0
      %3600 = vmatpush2.bf16.msra.mxu0 %v3019
      %3601 = vmatprep.subr.bf16.mxu0 0
      %3602 = vmatpush2.bf16.msra.mxu0 %v3018
      %3603 = vmatprep.subr.bf16.mxu0 0
      %3604 = vmatpush2.bf16.msra.mxu0 %v3017
      %3605 = vmatprep.subr.bf16.mxu0 0
      %3606 = vmatpush2.bf16.msra.mxu0 %v3016
      %3607 = vmatprep.subr.bf16.mxu0 0
      %3608 = vmatpush2.bf16.msra.mxu0 %v3015
      %3609 = vmatprep.subr.bf16.mxu0 0
      %3610 = vmatpush2.bf16.msra.mxu0 %v3014
      %3611 = vmatprep.subr.bf16.mxu0 0
      %3612 = vmatpush2.bf16.msra.mxu0 %v3013
      %3613 = vmatprep.mubr.bf16.mxu0 %v2277
      %3614 = vmatmul.mubr.bf16.gmra.mxu0 %v2274
      %v3615 = vpop.f32.mrf.mxu0
      %v3616 = vadd.f32 %v3552, %v3615
      %v3617 = vpop.f32.mrf.mxu0
      %v3618 = vpop.f32.mrf.mxu0
      %v3619 = vadd.f32 %v3555, %v3618
      %v3620 = vpop.f32.mrf.mxu0
      %3621 = vmatprep.mubr.bf16.mxu0 %v2281
      %3622 = vmatmul.mubr.bf16.gmra.mxu0 %v2279
      %v3623 = vpop.f32.mrf.mxu0
      %v3624 = vadd.f32 %v3560, %v3623
      %v3625 = vpop.f32.mrf.mxu0
      %v3626 = vpop.f32.mrf.mxu0
      %v3627 = vadd.f32 %v3563, %v3626
      %v3628 = vpop.f32.mrf.mxu0
      %3629 = vmatprep.mubr.bf16.mxu0 %v2285
      %3630 = vmatmul.mubr.bf16.gmra.mxu0 %v2283
      %v3631 = vpop.f32.mrf.mxu0
      %v3632 = vadd.f32 %v3568, %v3631
      %v3633 = vpop.f32.mrf.mxu0
      %v3634 = vpop.f32.mrf.mxu0
      %v3635 = vadd.f32 %v3571, %v3634
      %v3636 = vpop.f32.mrf.mxu0
      %3637 = vmatprep.mubr.bf16.mxu0 %v2287
      %3638 = vmatmul.mubr.bf16.gmra.mxu0 %v2286
      %v3639 = vpop.f32.mrf.mxu0
      %v3640 = vadd.f32 %v3576, %v3639
      %v3641 = vpop.f32.mrf.mxu0
      %v3642 = vpop.f32.mrf.mxu0
      %v3643 = vpop.f32.mrf.mxu0
      %3644 = vdwg.mxu0
      %3645 = vmatprep.subr.bf16.mxu0 0
      %3646 = vmatpush1.bf16.msra.mxu0 %v3028
      %3647 = vmatprep.subr.bf16.mxu0 0
      %3648 = vmatpush1.bf16.msra.mxu0 %v3027
      %3649 = vmatprep.subr.bf16.mxu0 0
      %3650 = vmatpush1.bf16.msra.mxu0 %v3026
      %3651 = vmatprep.subr.bf16.mxu0 0
      %3652 = vmatpush1.bf16.msra.mxu0 %v3025
      %3653 = vmatprep.subr.bf16.mxu0 0
      %3654 = vmatpush1.bf16.msra.mxu0 %v3024
      %3655 = vmatprep.subr.bf16.mxu0 0
      %3656 = vmatpush1.bf16.msra.mxu0 %v3023
      %3657 = vmatprep.subr.bf16.mxu0 0
      %3658 = vmatpush1.bf16.msra.mxu0 %v3022
      %3659 = vmatprep.subr.bf16.mxu0 0
      %3660 = vmatpush1.bf16.msra.mxu0 %v3021
      %3661 = vmatprep.subr.bf16.mxu0 0
      %3662 = vmatpush2.bf16.msra.mxu0 %v3036
      %3663 = vmatprep.subr.bf16.mxu0 0
      %3664 = vmatpush2.bf16.msra.mxu0 %v3035
      %3665 = vmatprep.subr.bf16.mxu0 0
      %3666 = vmatpush2.bf16.msra.mxu0 %v3034
      %3667 = vmatprep.subr.bf16.mxu0 0
      %3668 = vmatpush2.bf16.msra.mxu0 %v3033
      %3669 = vmatprep.subr.bf16.mxu0 0
      %3670 = vmatpush2.bf16.msra.mxu0 %v3032
      %3671 = vmatprep.subr.bf16.mxu0 0
      %3672 = vmatpush2.bf16.msra.mxu0 %v3031
      %3673 = vmatprep.subr.bf16.mxu0 0
      %3674 = vmatpush2.bf16.msra.mxu0 %v3030
      %3675 = vmatprep.subr.bf16.mxu0 0
      %3676 = vmatpush2.bf16.msra.mxu0 %v3029
      %3677 = vmatprep.mubr.bf16.mxu0 %v2303
      %3678 = vmatmul.mubr.bf16.gmra.mxu0 %v2299
      %v3679 = vpop.f32.mrf.mxu0
      %v3680 = vadd.f32 %v3616, %v3679
      %v3681 = vpop.f32.mrf.mxu0
      %v3682 = vpop.f32.mrf.mxu0
      %v3683 = vadd.f32 %v3619, %v3682
      %v3684 = vpop.f32.mrf.mxu0
      %3685 = vmatprep.mubr.bf16.mxu0 %v2309
      %3686 = vmatmul.mubr.bf16.gmra.mxu0 %v2306
      %v3687 = vpop.f32.mrf.mxu0
      %v3688 = vadd.f32 %v3624, %v3687
      %v3689 = vpop.f32.mrf.mxu0
      %v3690 = vpop.f32.mrf.mxu0
      %v3691 = vadd.f32 %v3627, %v3690
      %v3692 = vpop.f32.mrf.mxu0
      %3693 = vmatprep.mubr.bf16.mxu0 %v2315
      %3694 = vmatmul.mubr.bf16.gmra.mxu0 %v2312
      %v3695 = vpop.f32.mrf.mxu0
      %v3696 = vadd.f32 %v3632, %v3695
      %v3697 = vpop.f32.mrf.mxu0
      %v3698 = vpop.f32.mrf.mxu0
      %v3699 = vadd.f32 %v3635, %v3698
      %v3700 = vpop.f32.mrf.mxu0
      %3701 = vmatprep.mubr.bf16.mxu0 %v2317
      %3702 = vmatmul.mubr.bf16.gmra.mxu0 %v2316
      %v3703 = vpop.f32.mrf.mxu0
      %v3704 = vadd.f32 %v3640, %v3703
      %v3705 = vpop.f32.mrf.mxu0
      %v3706 = vpop.f32.mrf.mxu0
      %v3707 = vpop.f32.mrf.mxu0
      %3708 = vdwg.mxu0
      %3709 = vmatprep.subr.bf16.mxu0 0
      %3710 = vmatpush1.bf16.msra.mxu0 %v3044
      %3711 = vmatprep.subr.bf16.mxu0 0
      %3712 = vmatpush1.bf16.msra.mxu0 %v3043
      %3713 = vmatprep.subr.bf16.mxu0 0
      %3714 = vmatpush1.bf16.msra.mxu0 %v3042
      %3715 = vmatprep.subr.bf16.mxu0 0
      %3716 = vmatpush1.bf16.msra.mxu0 %v3041
      %3717 = vmatprep.subr.bf16.mxu0 0
      %3718 = vmatpush1.bf16.msra.mxu0 %v3040
      %3719 = vmatprep.subr.bf16.mxu0 0
      %3720 = vmatpush1.bf16.msra.mxu0 %v3039
      %3721 = vmatprep.subr.bf16.mxu0 0
      %3722 = vmatpush1.bf16.msra.mxu0 %v3038
      %3723 = vmatprep.subr.bf16.mxu0 0
      %3724 = vmatpush1.bf16.msra.mxu0 %v3037
      %3725 = vmatprep.subr.bf16.mxu0 0
      %3726 = vmatpush2.bf16.msra.mxu0 %v3052
      %3727 = vmatprep.subr.bf16.mxu0 0
      %3728 = vmatpush2.bf16.msra.mxu0 %v3051
      %3729 = vmatprep.subr.bf16.mxu0 0
      %3730 = vmatpush2.bf16.msra.mxu0 %v3050
      %3731 = vmatprep.subr.bf16.mxu0 0
      %3732 = vmatpush2.bf16.msra.mxu0 %v3049
      %3733 = vmatprep.subr.bf16.mxu0 0
      %3734 = vmatpush2.bf16.msra.mxu0 %v3048
      %3735 = vmatprep.subr.bf16.mxu0 0
      %3736 = vmatpush2.bf16.msra.mxu0 %v3047
      %3737 = vmatprep.subr.bf16.mxu0 0
      %3738 = vmatpush2.bf16.msra.mxu0 %v3046
      %3739 = vmatprep.subr.bf16.mxu0 0
      %3740 = vmatpush2.bf16.msra.mxu0 %v3045
      %3741 = vmatprep.mubr.bf16.mxu0 %v2059
      %3742 = vmatmul.mubr.bf16.gmra.mxu0 %v2057
      %v3743 = vpop.f32.mrf.mxu0
      %v3744 = vadd.f32 %v3680, %v3743
      %v3745 = vpop.f32.mrf.mxu0
      %v3746 = vpop.f32.mrf.mxu0
      %v3747 = vadd.f32 %v3683, %v3746
      %v3748 = vpop.f32.mrf.mxu0
      %3749 = vmatprep.mubr.bf16.mxu0 %v2063
      %3750 = vmatmul.mubr.bf16.gmra.mxu0 %v2061
      %v3751 = vpop.f32.mrf.mxu0
      %v3752 = vadd.f32 %v3688, %v3751
      %v3753 = vpop.f32.mrf.mxu0
      %v3754 = vpop.f32.mrf.mxu0
      %v3755 = vadd.f32 %v3691, %v3754
      %v3756 = vpop.f32.mrf.mxu0
      %3757 = vmatprep.mubr.bf16.mxu0 %v2067
      %3758 = vmatmul.mubr.bf16.gmra.mxu0 %v2065
      %v3759 = vpop.f32.mrf.mxu0
      %v3760 = vadd.f32 %v3696, %v3759
      %v3761 = vpop.f32.mrf.mxu0
      %v3762 = vpop.f32.mrf.mxu0
      %v3763 = vadd.f32 %v3699, %v3762
      %v3764 = vpop.f32.mrf.mxu0
      %3765 = vmatprep.mubr.bf16.mxu0 0
      %3766 = vmatmul.mubr.bf16.gmra.mxu0 0
      %v3767 = vpop.f32.mrf.mxu0
      %v3768 = vadd.f32 %v3704, %v3767
      %v3769 = vpop.f32.mrf.mxu0
      %v3770 = vpop.f32.mrf.mxu0
      %v3771 = vpop.f32.mrf.mxu0
      %3772 = vdwg.mxu0
      %v3773 = vld [vmem:[%s5] sm:$0xff]
      %v3774 = vld [vmem:[%s5 + $0x8] sm:$0xff]
      %v3775 = vld [vmem:[%s5 + $0x10] sm:$0xff]
      %v3776 = vld [vmem:[%s5 + $0x18] sm:$0xff]
      %v3777 = vld [vmem:[%s5 + $0x20] sm:$0xff]
      %v3778 = vld [vmem:[%s5 + $0x28] sm:$0xff]
      %v3779 = vld [vmem:[%s5 + $0x30] sm:$0xff]
      %v3780 = vmin.f32 %v3744, 18.420681
      %v3781 = vmin.f32 %v3747, 18.420681
      %v3782 = vmin.f32 %v3752, 18.420681
      %v3783 = vmin.f32 %v3755, 18.420681
      %v3784 = vmin.f32 %v3760, 18.420681
      %v3785 = vmin.f32 %v3763, 18.420681
      %v3786 = vmin.f32 %v3768, 18.420681
      %v3787 = vmul.f32 %v3780, 1.442695
      %v3788 = vpow.pop %v3787
      %v3789 = vmul.f32 %v3781, 1.442695
      %v3790 = vpow.pop %v3789
      %v3791 = vmul.f32 %v3782, 1.442695
      %v3792 = vpow.pop %v3791
      %v3793 = vmul.f32 %v3783, 1.442695
      %v3794 = vpow.pop %v3793
      %v3795 = vmul.f32 %v3784, 1.442695
      %v3796 = vpow.pop %v3795
      %v3797 = vmul.f32 %v3785, 1.442695
      %v3798 = vpow.pop %v3797
      %v3799 = vmul.f32 %v3786, 1.442695
      %v3800 = vpow.pop %v3799
      %v3801 = vadd.f32 %v3788, 1.0
      %v3802 = vadd.f32 %v3790, 1.0
      %v3803 = vadd.f32 %v3792, 1.0
      %v3804 = vadd.f32 %v3794, 1.0
      %v3805 = vadd.f32 %v3796, 1.0
      %v3806 = vadd.f32 %v3798, 1.0
      %v3807 = vadd.f32 %v3800, 1.0
      %3809 = vset.pattern.permute.xlu0 20
      %3810 = vperm.xlu0 %3809, %v3788
      %v3811 = vpop.permute.xlu0 %3810
      %3814 = vset.pattern.permute.xlu0 20
      %3815 = vperm.xlu0 %3814, %v3790
      %v3816 = vpop.permute.xlu0 %3815
      %3819 = vset.pattern.permute.xlu0 20
      %3820 = vperm.xlu0 %3819, %v3792
      %v3821 = vpop.permute.xlu0 %3820
      %3824 = vset.pattern.permute.xlu0 20
      %3825 = vperm.xlu0 %3824, %v3794
      %v3826 = vpop.permute.xlu0 %3825
      %3829 = vset.pattern.permute.xlu0 20
      %3830 = vperm.xlu0 %3829, %v3796
      %v3831 = vpop.permute.xlu0 %3830
      %3834 = vset.pattern.permute.xlu0 20
      %3835 = vperm.xlu0 %3834, %v3798
      %v3836 = vpop.permute.xlu0 %3835
      %3839 = vset.pattern.permute.xlu0 20
      %3840 = vperm.xlu0 %3839, %v3800
      %v3841 = vpop.permute.xlu0 %3840
      %v3843 = vadd.f32 %v3801, %v3811
      %v3844 = vadd.f32 %v3802, %v3816
      %v3845 = vadd.f32 %v3803, %v3821
      %v3846 = vadd.f32 %v3804, %v3826
      %v3847 = vadd.f32 %v3805, %v3831
      %v3848 = vadd.f32 %v3806, %v3836
      %v3849 = vadd.f32 %v3807, %v3841
      %v3850 = vlog2.pop %v3843
      %v3851 = vmul.f32 %v3850, 0.6931472
      %v3852 = vlog2.pop %v3844
      %v3853 = vmul.f32 %v3852, 0.6931472
      %v3854 = vlog2.pop %v3845
      %v3855 = vmul.f32 %v3854, 0.6931472
      %v3856 = vlog2.pop %v3846
      %v3857 = vmul.f32 %v3856, 0.6931472
      %v3858 = vlog2.pop %v3847
      %v3859 = vmul.f32 %v3858, 0.6931472
      %v3860 = vlog2.pop %v3848
      %v3861 = vmul.f32 %v3860, 0.6931472
      %v3862 = vlog2.pop %v3849
      %v3863 = vmul.f32 %v3862, 0.6931472
      %3865 = vset.pattern.permute.xlu0 20
      %3866 = vperm.xlu0 %3865, %v3744
      %v3867 = vpop.permute.xlu0 %3866
      %3870 = vset.pattern.permute.xlu0 20
      %3871 = vperm.xlu0 %3870, %v3747
      %v3872 = vpop.permute.xlu0 %3871
      %3875 = vset.pattern.permute.xlu0 20
      %3876 = vperm.xlu0 %3875, %v3752
      %v3877 = vpop.permute.xlu0 %3876
      %3880 = vset.pattern.permute.xlu0 20
      %3881 = vperm.xlu0 %3880, %v3755
      %v3882 = vpop.permute.xlu0 %3881
      %3885 = vset.pattern.permute.xlu0 20
      %3886 = vperm.xlu0 %3885, %v3760
      %v3887 = vpop.permute.xlu0 %3886
      %3890 = vset.pattern.permute.xlu0 20
      %3891 = vperm.xlu0 %3890, %v3763
      %v3892 = vpop.permute.xlu0 %3891
      %3895 = vset.pattern.permute.xlu0 20
      %3896 = vperm.xlu0 %3895, %v3768
      %v3897 = vpop.permute.xlu0 %3896
      %v3899 = vadd.f32 %v3744, %v3867
      %v3900 = vadd.f32 %v3747, %v3872
      %v3901 = vadd.f32 %v3752, %v3877
      %v3902 = vadd.f32 %v3755, %v3882
      %v3903 = vadd.f32 %v3760, %v3887
      %v3904 = vadd.f32 %v3763, %v3892
      %v3905 = vadd.f32 %v3768, %v3897
      %v3906 = vsub.f32 %v3899, %v3851
      %v3907 = vsub.f32 %v3900, %v3853
      %v3908 = vsub.f32 %v3901, %v3855
      %v3909 = vsub.f32 %v3902, %v3857
      %v3910 = vsub.f32 %v3903, %v3859
      %v3911 = vsub.f32 %v3904, %v3861
      %v3912 = vsub.f32 %v3905, %v3863
      %3920 = vrot.lane.b32.xlu0 %v3773, 19
      %v3921 = vpop.permute.xlu0 %3920
      %3922 = vrot.lane.b32.xlu0 %v3774, 19
      %v3923 = vpop.permute.xlu0 %3922
      %3924 = vrot.lane.b32.xlu0 %v3775, 19
      %v3925 = vpop.permute.xlu0 %3924
      %3926 = vrot.lane.b32.xlu0 %v3776, 19
      %v3927 = vpop.permute.xlu0 %3926
      %3928 = vrot.lane.b32.xlu0 %v3777, 19
      %v3929 = vpop.permute.xlu0 %3928
      %3930 = vrot.lane.b32.xlu0 %v3778, 19
      %v3931 = vpop.permute.xlu0 %3930
      %3932 = vrot.lane.b32.xlu0 %v3779, 19
      %v3933 = vpop.permute.xlu0 %3932
      %v3941 = vmul.f32 %v3744, %v3921
      %v3942 = vmul.f32 %v3747, %v3923
      %v3943 = vmul.f32 %v3752, %v3925
      %v3944 = vmul.f32 %v3755, %v3927
      %v3945 = vmul.f32 %v3760, %v3929
      %v3946 = vmul.f32 %v3763, %v3931
      %v3947 = vmul.f32 %v3768, %v3933
      %v3948 = vmax.f32 %v3941, -32.0
      %v3949 = vmax.f32 %v3942, -32.0
      %v3950 = vmax.f32 %v3943, -32.0
      %v3951 = vmax.f32 %v3944, -32.0
      %v3952 = vmax.f32 %v3945, -32.0
      %v3953 = vmax.f32 %v3946, -32.0
      %v3954 = vmax.f32 %v3947, -32.0
      %v3955 = vmin.f32 %v3948, 32.0
      %v3956 = vmin.f32 %v3949, 32.0
      %v3957 = vmin.f32 %v3950, 32.0
      %v3958 = vmin.f32 %v3951, 32.0
      %v3959 = vmin.f32 %v3952, 32.0
      %v3960 = vmin.f32 %v3953, 32.0
      %v3961 = vmin.f32 %v3954, 32.0
      %3969 = vrot.lane.b32.xlu0 %v3955, 107
      %v3970 = vpop.permute.xlu0 %3969
      %3971 = vrot.lane.b32.xlu0 %v3956, 107
      %v3972 = vpop.permute.xlu0 %3971
      %3973 = vrot.lane.b32.xlu0 %v3957, 107
      %v3974 = vpop.permute.xlu0 %3973
      %3975 = vrot.lane.b32.xlu0 %v3958, 107
      %v3976 = vpop.permute.xlu0 %3975
      %3977 = vrot.lane.b32.xlu0 %v3959, 107
      %v3978 = vpop.permute.xlu0 %3977
      %3979 = vrot.lane.b32.xlu0 %v3960, 107
      %v3980 = vpop.permute.xlu0 %3979
      %3981 = vrot.lane.b32.xlu0 %v3961, 107
      %v3982 = vpop.permute.xlu0 %3981
      %v3990 = vadd.f32 %v3773, %v3970
      %v3991 = vadd.f32 %v3774, %v3972
      %v3992 = vadd.f32 %v3775, %v3974
      %v3993 = vadd.f32 %v3776, %v3976
      %v3994 = vadd.f32 %v3777, %v3978
      %v3995 = vadd.f32 %v3778, %v3980
      %v3996 = vadd.f32 %v3779, %v3982
      %v3997 = vmin.f32 %v3744, 4.1351666
      %v3998 = vmin.f32 %v3747, 4.1351666
      %v3999 = vmin.f32 %v3752, 4.1351666
      %v4000 = vmin.f32 %v3755, 4.1351666
      %v4001 = vmin.f32 %v3760, 4.1351666
      %v4002 = vmin.f32 %v3763, 4.1351666
      %v4003 = vmin.f32 %v3768, 4.1351666
      %v4004 = vmul.f32 %v3997, 1.442695
      %v4005 = vpow.pop %v4004
      %v4006 = vmul.f32 %v3998, 1.442695
      %v4007 = vpow.pop %v4006
      %v4008 = vmul.f32 %v3999, 1.442695
      %v4009 = vpow.pop %v4008
      %v4010 = vmul.f32 %v4000, 1.442695
      %v4011 = vpow.pop %v4010
      %v4012 = vmul.f32 %v4001, 1.442695
      %v4013 = vpow.pop %v4012
      %v4014 = vmul.f32 %v4002, 1.442695
      %v4015 = vpow.pop %v4014
      %v4016 = vmul.f32 %v4003, 1.442695
      %v4017 = vpow.pop %v4016
      %4025 = vrot.lane.b32.xlu0 %v4005, 107
      %v4026 = vpop.permute.xlu0 %4025
      %4027 = vrot.lane.b32.xlu0 %v4007, 107
      %v4028 = vpop.permute.xlu0 %4027
      %4029 = vrot.lane.b32.xlu0 %v4009, 107
      %v4030 = vpop.permute.xlu0 %4029
      %4031 = vrot.lane.b32.xlu0 %v4011, 107
      %v4032 = vpop.permute.xlu0 %4031
      %4033 = vrot.lane.b32.xlu0 %v4013, 107
      %v4034 = vpop.permute.xlu0 %4033
      %4035 = vrot.lane.b32.xlu0 %v4015, 107
      %v4036 = vpop.permute.xlu0 %4035
      %4037 = vrot.lane.b32.xlu0 %v4017, 107
      %v4038 = vpop.permute.xlu0 %4037
      %v4046 = vmul.f32 %v3773, %v4026
      %v4047 = vmul.f32 %v3774, %v4028
      %v4048 = vmul.f32 %v3775, %v4030
      %v4049 = vmul.f32 %v3776, %v4032
      %v4050 = vmul.f32 %v3777, %v4034
      %v4051 = vmul.f32 %v3778, %v4036
      %v4052 = vmul.f32 %v3779, %v4038
      %v4053 = vmul.f32 %v4046, 0.5
      %v4054 = vmul.f32 %v4047, 0.5
      %v4055 = vmul.f32 %v4048, 0.5
      %v4056 = vmul.f32 %v4049, 0.5
      %v4057 = vmul.f32 %v4050, 0.5
      %v4058 = vmul.f32 %v4051, 0.5
      %v4059 = vmul.f32 %v4052, 0.5
      %4067 = vrot.lane.b32.xlu0 %v4053, 126
      %v4068 = vpop.permute.xlu0 %4067
      %4069 = vrot.lane.b32.xlu0 %v4054, 126
      %v4070 = vpop.permute.xlu0 %4069
      %4071 = vrot.lane.b32.xlu0 %v4055, 126
      %v4072 = vpop.permute.xlu0 %4071
      %4073 = vrot.lane.b32.xlu0 %v4056, 126
      %v4074 = vpop.permute.xlu0 %4073
      %4075 = vrot.lane.b32.xlu0 %v4057, 126
      %v4076 = vpop.permute.xlu0 %4075
      %4077 = vrot.lane.b32.xlu0 %v4058, 126
      %v4078 = vpop.permute.xlu0 %4077
      %4079 = vrot.lane.b32.xlu0 %v4059, 126
      %v4080 = vpop.permute.xlu0 %4079
      %v4088 = vsub.f32 %v3990, %v4068
      %v4089 = vsub.f32 %v3991, %v4070
      %v4090 = vsub.f32 %v3992, %v4072
      %v4091 = vsub.f32 %v3993, %v4074
      %v4092 = vsub.f32 %v3994, %v4076
      %v4093 = vsub.f32 %v3995, %v4078
      %v4094 = vsub.f32 %v3996, %v4080
      %v4095 = vadd.f32 %v3990, %v4068
      %v4096 = vadd.f32 %v3991, %v4070
      %v4097 = vadd.f32 %v3992, %v4072
      %v4098 = vadd.f32 %v3993, %v4074
      %v4099 = vadd.f32 %v3994, %v4076
      %v4100 = vadd.f32 %v3995, %v4078
      %v4101 = vadd.f32 %v3996, %v4080
      %4109 = vrot.lane.b32.xlu0 %v4088, 20
      %v4110 = vpop.permute.xlu0 %4109
      %4111 = vrot.lane.b32.xlu0 %v4089, 20
      %v4112 = vpop.permute.xlu0 %4111
      %4113 = vrot.lane.b32.xlu0 %v4090, 20
      %v4114 = vpop.permute.xlu0 %4113
      %4115 = vrot.lane.b32.xlu0 %v4091, 20
      %v4116 = vpop.permute.xlu0 %4115
      %4117 = vrot.lane.b32.xlu0 %v4092, 20
      %v4118 = vpop.permute.xlu0 %4117
      %4119 = vrot.lane.b32.xlu0 %v4093, 20
      %v4120 = vpop.permute.xlu0 %4119
      %4121 = vrot.lane.b32.xlu0 %v4094, 20
      %v4122 = vpop.permute.xlu0 %4121
      %4137 = vrot.lane.b32.xlu0 %v4095, 22
      %v4138 = vpop.permute.xlu0 %4137
      %4139 = vrot.lane.b32.xlu0 %v4096, 22
      %v4140 = vpop.permute.xlu0 %4139
      %4141 = vrot.lane.b32.xlu0 %v4097, 22
      %v4142 = vpop.permute.xlu0 %4141
      %4143 = vrot.lane.b32.xlu0 %v4098, 22
      %v4144 = vpop.permute.xlu0 %4143
      %4145 = vrot.lane.b32.xlu0 %v4099, 22
      %v4146 = vpop.permute.xlu0 %4145
      %4147 = vrot.lane.b32.xlu0 %v4100, 22
      %v4148 = vpop.permute.xlu0 %4147
      %4149 = vrot.lane.b32.xlu0 %v4101, 22
      %v4150 = vpop.permute.xlu0 %4149
      %4158 = vrot.lane.b32.xlu0 %v3744, 3
      %v4159 = vpop.permute.xlu0 %4158
      %4160 = vrot.lane.b32.xlu0 %v3747, 3
      %v4161 = vpop.permute.xlu0 %4160
      %4162 = vrot.lane.b32.xlu0 %v3752, 3
      %v4163 = vpop.permute.xlu0 %4162
      %4164 = vrot.lane.b32.xlu0 %v3755, 3
      %v4165 = vpop.permute.xlu0 %4164
      %4166 = vrot.lane.b32.xlu0 %v3760, 3
      %v4167 = vpop.permute.xlu0 %4166
      %4168 = vrot.lane.b32.xlu0 %v3763, 3
      %v4169 = vpop.permute.xlu0 %4168
      %4170 = vrot.lane.b32.xlu0 %v3768, 3
      %v4171 = vpop.permute.xlu0 %4170
      %vm4179 = vcmask 162816
      %v4180 = vsel %vm4179, %v3906, %v4110
      %v4181 = vsel %vm4179, %v3907, %v4112
      %v4182 = vsel %vm4179, %v3908, %v4114
      %v4183 = vsel %vm4179, %v3909, %v4116
      %v4184 = vsel %vm4179, %v3910, %v4118
      %v4185 = vsel %vm4179, %v3911, %v4120
      %v4186 = vsel %vm4179, %v3912, %v4122
      %vm4187 = vcmask 179200
      %v4188 = vsel %vm4187, %v4180, %v4138
      %v4189 = vsel %vm4187, %v4181, %v4140
      %v4190 = vsel %vm4187, %v4182, %v4142
      %v4191 = vsel %vm4187, %v4183, %v4144
      %v4192 = vsel %vm4187, %v4184, %v4146
      %v4193 = vsel %vm4187, %v4185, %v4148
      %v4194 = vsel %vm4187, %v4186, %v4150
      %vm4195 = vcmask 195584
      %v4196 = vsel %vm4195, %v4188, %v4159
      %v4197 = vsel %vm4195, %v4189, %v4161
      %v4198 = vsel %vm4195, %v4190, %v4163
      %v4199 = vsel %vm4195, %v4191, %v4165
      %v4200 = vsel %vm4195, %v4192, %v4167
      %v4201 = vsel %vm4195, %v4193, %v4169
      %v4202 = vsel %vm4195, %v4194, %v4171
      %vm4203 = vcmask 228352
      %v4204 = vsel %vm4203, %v4196, 0.0
      %v4205 = vsel %vm4203, %v4197, 0.0
      %v4206 = vsel %vm4203, %v4198, 0.0
      %v4207 = vsel %vm4203, %v4199, 0.0
      %v4208 = vsel %vm4203, %v4200, 0.0
      %v4209 = vsel %vm4203, %v4201, 0.0
      %v4210 = vsel %vm4203, %v4202, 0.0
      %4211 = vset.pattern.permute.xlu0 52
      %4212 = vperm.xlu0 %4211, %v3788
      %v4213 = vpop.permute.xlu0 %4212
      %4215 = vset.pattern.permute.xlu0 52
      %4216 = vperm.xlu0 %4215, %v3790
      %v4217 = vpop.permute.xlu0 %4216
      %4219 = vset.pattern.permute.xlu0 52
      %4220 = vperm.xlu0 %4219, %v3792
      %v4221 = vpop.permute.xlu0 %4220
      %4223 = vset.pattern.permute.xlu0 52
      %4224 = vperm.xlu0 %4223, %v3794
      %v4225 = vpop.permute.xlu0 %4224
      %4227 = vset.pattern.permute.xlu0 52
      %4228 = vperm.xlu0 %4227, %v3796
      %v4229 = vpop.permute.xlu0 %4228
      %4231 = vset.pattern.permute.xlu0 52
      %4232 = vperm.xlu0 %4231, %v3798
      %v4233 = vpop.permute.xlu0 %4232
      %4235 = vset.pattern.permute.xlu0 52
      %4236 = vperm.xlu0 %4235, %v3800
      %v4237 = vpop.permute.xlu0 %4236
      %v4239 = vadd.f32 %v3801, %v4213
      %v4240 = vadd.f32 %v3802, %v4217
      %v4241 = vadd.f32 %v3803, %v4221
      %v4242 = vadd.f32 %v3804, %v4225
      %v4243 = vadd.f32 %v3805, %v4229
      %v4244 = vadd.f32 %v3806, %v4233
      %v4245 = vadd.f32 %v3807, %v4237
      %v4246 = vlog2.pop %v4239
      %v4247 = vmul.f32 %v4246, 0.6931472
      %v4248 = vlog2.pop %v4240
      %v4249 = vmul.f32 %v4248, 0.6931472
      %v4250 = vlog2.pop %v4241
      %v4251 = vmul.f32 %v4250, 0.6931472
      %v4252 = vlog2.pop %v4242
      %v4253 = vmul.f32 %v4252, 0.6931472
      %v4254 = vlog2.pop %v4243
      %v4255 = vmul.f32 %v4254, 0.6931472
      %v4256 = vlog2.pop %v4244
      %v4257 = vmul.f32 %v4256, 0.6931472
      %v4258 = vlog2.pop %v4245
      %v4259 = vmul.f32 %v4258, 0.6931472
      %4260 = vset.pattern.permute.xlu0 52
      %4261 = vperm.xlu0 %4260, %v3744
      %v4262 = vpop.permute.xlu0 %4261
      %4264 = vset.pattern.permute.xlu0 52
      %4265 = vperm.xlu0 %4264, %v3747
      %v4266 = vpop.permute.xlu0 %4265
      %4268 = vset.pattern.permute.xlu0 52
      %4269 = vperm.xlu0 %4268, %v3752
      %v4270 = vpop.permute.xlu0 %4269
      %4272 = vset.pattern.permute.xlu0 52
      %4273 = vperm.xlu0 %4272, %v3755
      %v4274 = vpop.permute.xlu0 %4273
      %4276 = vset.pattern.permute.xlu0 52
      %4277 = vperm.xlu0 %4276, %v3760
      %v4278 = vpop.permute.xlu0 %4277
      %4280 = vset.pattern.permute.xlu0 52
      %4281 = vperm.xlu0 %4280, %v3763
      %v4282 = vpop.permute.xlu0 %4281
      %4284 = vset.pattern.permute.xlu0 52
      %4285 = vperm.xlu0 %4284, %v3768
      %v4286 = vpop.permute.xlu0 %4285
      %v4288 = vadd.f32 %v3744, %v4262
      %v4289 = vadd.f32 %v3747, %v4266
      %v4290 = vadd.f32 %v3752, %v4270
      %v4291 = vadd.f32 %v3755, %v4274
      %v4292 = vadd.f32 %v3760, %v4278
      %v4293 = vadd.f32 %v3763, %v4282
      %v4294 = vadd.f32 %v3768, %v4286
      %v4295 = vsub.f32 %v4288, %v4247
      %v4296 = vsub.f32 %v4289, %v4249
      %v4297 = vsub.f32 %v4290, %v4251
      %v4298 = vsub.f32 %v4291, %v4253
      %v4299 = vsub.f32 %v4292, %v4255
      %v4300 = vsub.f32 %v4293, %v4257
      %v4301 = vsub.f32 %v4294, %v4259
      %4309 = vrot.lane.b32.xlu0 %v4295, 96
      %v4310 = vpop.permute.xlu0 %4309
      %4311 = vrot.lane.b32.xlu0 %v4296, 96
      %v4312 = vpop.permute.xlu0 %4311
      %4313 = vrot.lane.b32.xlu0 %v4297, 96
      %v4314 = vpop.permute.xlu0 %4313
      %4315 = vrot.lane.b32.xlu0 %v4298, 96
      %v4316 = vpop.permute.xlu0 %4315
      %4317 = vrot.lane.b32.xlu0 %v4299, 96
      %v4318 = vpop.permute.xlu0 %4317
      %4319 = vrot.lane.b32.xlu0 %v4300, 96
      %v4320 = vpop.permute.xlu0 %4319
      %4321 = vrot.lane.b32.xlu0 %v4301, 96
      %v4322 = vpop.permute.xlu0 %4321
      %4330 = vrot.lane.b32.xlu0 %v4088, 116
      %v4331 = vpop.permute.xlu0 %4330
      %4332 = vrot.lane.b32.xlu0 %v4089, 116
      %v4333 = vpop.permute.xlu0 %4332
      %4334 = vrot.lane.b32.xlu0 %v4090, 116
      %v4335 = vpop.permute.xlu0 %4334
      %4336 = vrot.lane.b32.xlu0 %v4091, 116
      %v4337 = vpop.permute.xlu0 %4336
      %4338 = vrot.lane.b32.xlu0 %v4092, 116
      %v4339 = vpop.permute.xlu0 %4338
      %4340 = vrot.lane.b32.xlu0 %v4093, 116
      %v4341 = vpop.permute.xlu0 %4340
      %4342 = vrot.lane.b32.xlu0 %v4094, 116
      %v4343 = vpop.permute.xlu0 %4342
      %4351 = vrot.lane.b32.xlu0 %v4095, 118
      %v4352 = vpop.permute.xlu0 %4351
      %4353 = vrot.lane.b32.xlu0 %v4096, 118
      %v4354 = vpop.permute.xlu0 %4353
      %4355 = vrot.lane.b32.xlu0 %v4097, 118
      %v4356 = vpop.permute.xlu0 %4355
      %4357 = vrot.lane.b32.xlu0 %v4098, 118
      %v4358 = vpop.permute.xlu0 %4357
      %4359 = vrot.lane.b32.xlu0 %v4099, 118
      %v4360 = vpop.permute.xlu0 %4359
      %4361 = vrot.lane.b32.xlu0 %v4100, 118
      %v4362 = vpop.permute.xlu0 %4361
      %4363 = vrot.lane.b32.xlu0 %v4101, 118
      %v4364 = vpop.permute.xlu0 %4363
      %4372 = vrot.lane.b32.xlu0 %v3744, 99
      %v4373 = vpop.permute.xlu0 %4372
      %4374 = vrot.lane.b32.xlu0 %v3747, 99
      %v4375 = vpop.permute.xlu0 %4374
      %4376 = vrot.lane.b32.xlu0 %v3752, 99
      %v4377 = vpop.permute.xlu0 %4376
      %4378 = vrot.lane.b32.xlu0 %v3755, 99
      %v4379 = vpop.permute.xlu0 %4378
      %4380 = vrot.lane.b32.xlu0 %v3760, 99
      %v4381 = vpop.permute.xlu0 %4380
      %4382 = vrot.lane.b32.xlu0 %v3763, 99
      %v4383 = vpop.permute.xlu0 %4382
      %4384 = vrot.lane.b32.xlu0 %v3768, 99
      %v4385 = vpop.permute.xlu0 %4384
      %v4393 = vsel %vm4179, %v4310, %v4331
      %v4394 = vsel %vm4179, %v4312, %v4333
      %v4395 = vsel %vm4179, %v4314, %v4335
      %v4396 = vsel %vm4179, %v4316, %v4337
      %v4397 = vsel %vm4179, %v4318, %v4339
      %v4398 = vsel %vm4179, %v4320, %v4341
      %v4399 = vsel %vm4179, %v4322, %v4343
      %v4400 = vsel %vm4187, %v4393, %v4352
      %v4401 = vsel %vm4187, %v4394, %v4354
      %v4402 = vsel %vm4187, %v4395, %v4356
      %v4403 = vsel %vm4187, %v4396, %v4358
      %v4404 = vsel %vm4187, %v4397, %v4360
      %v4405 = vsel %vm4187, %v4398, %v4362
      %v4406 = vsel %vm4187, %v4399, %v4364
      %v4407 = vsel %vm4195, %v4400, %v4373
      %v4408 = vsel %vm4195, %v4401, %v4375
      %v4409 = vsel %vm4195, %v4402, %v4377
      %v4410 = vsel %vm4195, %v4403, %v4379
      %v4411 = vsel %vm4195, %v4404, %v4381
      %v4412 = vsel %vm4195, %v4405, %v4383
      %v4413 = vsel %vm4195, %v4406, %v4385
      %v4414 = vsel %vm4203, %v4407, 0.0
      %v4415 = vsel %vm4203, %v4408, 0.0
      %v4416 = vsel %vm4203, %v4409, 0.0
      %v4417 = vsel %vm4203, %v4410, 0.0
      %v4418 = vsel %vm4203, %v4411, 0.0
      %v4419 = vsel %vm4203, %v4412, 0.0
      %v4420 = vsel %vm4203, %v4413, 0.0
      %4421 = vset.pattern.permute.xlu0 84
      %4422 = vperm.xlu0 %4421, %v3788
      %v4423 = vpop.permute.xlu0 %4422
      %4425 = vset.pattern.permute.xlu0 84
      %4426 = vperm.xlu0 %4425, %v3790
      %v4427 = vpop.permute.xlu0 %4426
      %4429 = vset.pattern.permute.xlu0 84
      %4430 = vperm.xlu0 %4429, %v3792
      %v4431 = vpop.permute.xlu0 %4430
      %4433 = vset.pattern.permute.xlu0 84
      %4434 = vperm.xlu0 %4433, %v3794
      %v4435 = vpop.permute.xlu0 %4434
      %4437 = vset.pattern.permute.xlu0 84
      %4438 = vperm.xlu0 %4437, %v3796
      %v4439 = vpop.permute.xlu0 %4438
      %4441 = vset.pattern.permute.xlu0 84
      %4442 = vperm.xlu0 %4441, %v3798
      %v4443 = vpop.permute.xlu0 %4442
      %4445 = vset.pattern.permute.xlu0 84
      %4446 = vperm.xlu0 %4445, %v3800
      %v4447 = vpop.permute.xlu0 %4446
      %v4449 = vadd.f32 %v3801, %v4423
      %v4450 = vadd.f32 %v3802, %v4427
      %v4451 = vadd.f32 %v3803, %v4431
      %v4452 = vadd.f32 %v3804, %v4435
      %v4453 = vadd.f32 %v3805, %v4439
      %v4454 = vadd.f32 %v3806, %v4443
      %v4455 = vadd.f32 %v3807, %v4447
      %v4456 = vlog2.pop %v4449
      %v4457 = vmul.f32 %v4456, 0.6931472
      %v4458 = vlog2.pop %v4450
      %v4459 = vmul.f32 %v4458, 0.6931472
      %v4460 = vlog2.pop %v4451
      %v4461 = vmul.f32 %v4460, 0.6931472
      %v4462 = vlog2.pop %v4452
      %v4463 = vmul.f32 %v4462, 0.6931472
      %v4464 = vlog2.pop %v4453
      %v4465 = vmul.f32 %v4464, 0.6931472
      %v4466 = vlog2.pop %v4454
      %v4467 = vmul.f32 %v4466, 0.6931472
      %v4468 = vlog2.pop %v4455
      %v4469 = vmul.f32 %v4468, 0.6931472
      %4470 = vset.pattern.permute.xlu0 84
      %4471 = vperm.xlu0 %4470, %v3744
      %v4472 = vpop.permute.xlu0 %4471
      %4474 = vset.pattern.permute.xlu0 84
      %4475 = vperm.xlu0 %4474, %v3747
      %v4476 = vpop.permute.xlu0 %4475
      %4478 = vset.pattern.permute.xlu0 84
      %4479 = vperm.xlu0 %4478, %v3752
      %v4480 = vpop.permute.xlu0 %4479
      %4482 = vset.pattern.permute.xlu0 84
      %4483 = vperm.xlu0 %4482, %v3755
      %v4484 = vpop.permute.xlu0 %4483
      %4486 = vset.pattern.permute.xlu0 84
      %4487 = vperm.xlu0 %4486, %v3760
      %v4488 = vpop.permute.xlu0 %4487
      %4490 = vset.pattern.permute.xlu0 84
      %4491 = vperm.xlu0 %4490, %v3763
      %v4492 = vpop.permute.xlu0 %4491
      %4494 = vset.pattern.permute.xlu0 84
      %4495 = vperm.xlu0 %4494, %v3768
      %v4496 = vpop.permute.xlu0 %4495
      %v4498 = vadd.f32 %v3744, %v4472
      %v4499 = vadd.f32 %v3747, %v4476
      %v4500 = vadd.f32 %v3752, %v4480
      %v4501 = vadd.f32 %v3755, %v4484
      %v4502 = vadd.f32 %v3760, %v4488
      %v4503 = vadd.f32 %v3763, %v4492
      %v4504 = vadd.f32 %v3768, %v4496
      %v4505 = vsub.f32 %v4498, %v4457
      %v4506 = vsub.f32 %v4499, %v4459
      %v4507 = vsub.f32 %v4500, %v4461
      %v4508 = vsub.f32 %v4501, %v4463
      %v4509 = vsub.f32 %v4502, %v4465
      %v4510 = vsub.f32 %v4503, %v4467
      %v4511 = vsub.f32 %v4504, %v4469
      %4519 = vrot.lane.b32.xlu0 %v4505, 64
      %v4520 = vpop.permute.xlu0 %4519
      %4521 = vrot.lane.b32.xlu0 %v4506, 64
      %v4522 = vpop.permute.xlu0 %4521
      %4523 = vrot.lane.b32.xlu0 %v4507, 64
      %v4524 = vpop.permute.xlu0 %4523
      %4525 = vrot.lane.b32.xlu0 %v4508, 64
      %v4526 = vpop.permute.xlu0 %4525
      %4527 = vrot.lane.b32.xlu0 %v4509, 64
      %v4528 = vpop.permute.xlu0 %4527
      %4529 = vrot.lane.b32.xlu0 %v4510, 64
      %v4530 = vpop.permute.xlu0 %4529
      %4531 = vrot.lane.b32.xlu0 %v4511, 64
      %v4532 = vpop.permute.xlu0 %4531
      %4540 = vrot.lane.b32.xlu0 %v4088, 84
      %v4541 = vpop.permute.xlu0 %4540
      %4542 = vrot.lane.b32.xlu0 %v4089, 84
      %v4543 = vpop.permute.xlu0 %4542
      %4544 = vrot.lane.b32.xlu0 %v4090, 84
      %v4545 = vpop.permute.xlu0 %4544
      %4546 = vrot.lane.b32.xlu0 %v4091, 84
      %v4547 = vpop.permute.xlu0 %4546
      %4548 = vrot.lane.b32.xlu0 %v4092, 84
      %v4549 = vpop.permute.xlu0 %4548
      %4550 = vrot.lane.b32.xlu0 %v4093, 84
      %v4551 = vpop.permute.xlu0 %4550
      %4552 = vrot.lane.b32.xlu0 %v4094, 84
      %v4553 = vpop.permute.xlu0 %4552
      %4561 = vrot.lane.b32.xlu0 %v4095, 86
      %v4562 = vpop.permute.xlu0 %4561
      %4563 = vrot.lane.b32.xlu0 %v4096, 86
      %v4564 = vpop.permute.xlu0 %4563
      %4565 = vrot.lane.b32.xlu0 %v4097, 86
      %v4566 = vpop.permute.xlu0 %4565
      %4567 = vrot.lane.b32.xlu0 %v4098, 86
      %v4568 = vpop.permute.xlu0 %4567
      %4569 = vrot.lane.b32.xlu0 %v4099, 86
      %v4570 = vpop.permute.xlu0 %4569
      %4571 = vrot.lane.b32.xlu0 %v4100, 86
      %v4572 = vpop.permute.xlu0 %4571
      %4573 = vrot.lane.b32.xlu0 %v4101, 86
      %v4574 = vpop.permute.xlu0 %4573
      %4582 = vrot.lane.b32.xlu0 %v3744, 67
      %v4583 = vpop.permute.xlu0 %4582
      %4584 = vrot.lane.b32.xlu0 %v3747, 67
      %v4585 = vpop.permute.xlu0 %4584
      %4586 = vrot.lane.b32.xlu0 %v3752, 67
      %v4587 = vpop.permute.xlu0 %4586
      %4588 = vrot.lane.b32.xlu0 %v3755, 67
      %v4589 = vpop.permute.xlu0 %4588
      %4590 = vrot.lane.b32.xlu0 %v3760, 67
      %v4591 = vpop.permute.xlu0 %4590
      %4592 = vrot.lane.b32.xlu0 %v3763, 67
      %v4593 = vpop.permute.xlu0 %4592
      %4594 = vrot.lane.b32.xlu0 %v3768, 67
      %v4595 = vpop.permute.xlu0 %4594
      %v4603 = vsel %vm4179, %v4520, %v4541
      %v4604 = vsel %vm4179, %v4522, %v4543
      %v4605 = vsel %vm4179, %v4524, %v4545
      %v4606 = vsel %vm4179, %v4526, %v4547
      %v4607 = vsel %vm4179, %v4528, %v4549
      %v4608 = vsel %vm4179, %v4530, %v4551
      %v4609 = vsel %vm4179, %v4532, %v4553
      %v4610 = vsel %vm4187, %v4603, %v4562
      %v4611 = vsel %vm4187, %v4604, %v4564
      %v4612 = vsel %vm4187, %v4605, %v4566
      %v4613 = vsel %vm4187, %v4606, %v4568
      %v4614 = vsel %vm4187, %v4607, %v4570
      %v4615 = vsel %vm4187, %v4608, %v4572
      %v4616 = vsel %vm4187, %v4609, %v4574
      %v4617 = vsel %vm4195, %v4610, %v4583
      %v4618 = vsel %vm4195, %v4611, %v4585
      %v4619 = vsel %vm4195, %v4612, %v4587
      %v4620 = vsel %vm4195, %v4613, %v4589
      %v4621 = vsel %vm4195, %v4614, %v4591
      %v4622 = vsel %vm4195, %v4615, %v4593
      %v4623 = vsel %vm4195, %v4616, %v4595
      %v4624 = vsel %vm4203, %v4617, 0.0
      %v4625 = vsel %vm4203, %v4618, 0.0
      %v4626 = vsel %vm4203, %v4619, 0.0
      %v4627 = vsel %vm4203, %v4620, 0.0
      %v4628 = vsel %vm4203, %v4621, 0.0
      %v4629 = vsel %vm4203, %v4622, 0.0
      %v4630 = vsel %vm4203, %v4623, 0.0
      %4638 = vrot.lane.b32.xlu0 %v4414, 32
      %v4639 = vpop.permute.xlu0 %4638
      %4640 = vrot.lane.b32.xlu0 %v4415, 32
      %v4641 = vpop.permute.xlu0 %4640
      %4642 = vrot.lane.b32.xlu0 %v4416, 32
      %v4643 = vpop.permute.xlu0 %4642
      %4644 = vrot.lane.b32.xlu0 %v4417, 32
      %v4645 = vpop.permute.xlu0 %4644
      %4646 = vrot.lane.b32.xlu0 %v4418, 32
      %v4647 = vpop.permute.xlu0 %4646
      %4648 = vrot.lane.b32.xlu0 %v4419, 32
      %v4649 = vpop.permute.xlu0 %4648
      %4650 = vrot.lane.b32.xlu0 %v4420, 32
      %v4651 = vpop.permute.xlu0 %4650
      %4666 = vrot.lane.b32.xlu0 %v4624, 64
      %v4667 = vpop.permute.xlu0 %4666
      %4668 = vrot.lane.b32.xlu0 %v4625, 64
      %v4669 = vpop.permute.xlu0 %4668
      %4670 = vrot.lane.b32.xlu0 %v4626, 64
      %v4671 = vpop.permute.xlu0 %4670
      %4672 = vrot.lane.b32.xlu0 %v4627, 64
      %v4673 = vpop.permute.xlu0 %4672
      %4674 = vrot.lane.b32.xlu0 %v4628, 64
      %v4675 = vpop.permute.xlu0 %4674
      %4676 = vrot.lane.b32.xlu0 %v4629, 64
      %v4677 = vpop.permute.xlu0 %4676
      %4678 = vrot.lane.b32.xlu0 %v4630, 64
      %v4679 = vpop.permute.xlu0 %4678
      %vm4687 = vcmask 261120
      %v4688 = vsel %vm4687, %v4204, %v4639
      %v4689 = vsel %vm4687, %v4205, %v4641
      %v4690 = vsel %vm4687, %v4206, %v4643
      %v4691 = vsel %vm4687, %v4207, %v4645
      %v4692 = vsel %vm4687, %v4208, %v4647
      %v4693 = vsel %vm4687, %v4209, %v4649
      %v4694 = vsel %vm4687, %v4210, %v4651
      %vm4695 = vcmask 523264
      %v4696 = vsel %vm4695, %v4688, %v4667
      %v4697 = vsel %vm4695, %v4689, %v4669
      %v4698 = vsel %vm4695, %v4690, %v4671
      %v4699 = vsel %vm4695, %v4691, %v4673
      %v4700 = vsel %vm4695, %v4692, %v4675
      %v4701 = vsel %vm4695, %v4693, %v4677
      %v4702 = vsel %vm4695, %v4694, %v4679
      %vm4703 = vcmask 785408
      %v4704 = vsel %vm4703, %v4696, 0.0
      %v4705 = vsel %vm4703, %v4697, 0.0
      %v4706 = vsel %vm4703, %v4698, 0.0
      %v4707 = vsel %vm4703, %v4699, 0.0
      %v4708 = vsel %vm4703, %v4700, 0.0
      %v4709 = vsel %vm4703, %v4701, 0.0
      %v4710 = vsel %vm4703, %v4702, 0.0
      %v4711 = vmul.f32 %v4704, %v1704
      %v4712 = vmul.f32 %v4705, %v1709
      %v4713 = vmul.f32 %v4706, %v1714
      %v4714 = vmul.f32 %v4707, %v1719
      %v4715 = vmul.f32 %v4708, %v1724
      %v4716 = vmul.f32 %v4709, %v1729
      %v4717 = vmul.f32 %v4710, %v1734
      %4718 = vst [vmem:[%s278] sm:$0xff] %v4711
      %4719 = vst [vmem:[%s278 + $0x8] sm:$0xff] %v4712
      %4720 = vst [vmem:[%s278 + $0x10] sm:$0xff] %v4713
      %4721 = vst [vmem:[%s278 + $0x18] sm:$0xff] %v4714
      %4722 = vst [vmem:[%s278 + $0x20] sm:$0xff] %v4715
      %4723 = vst [vmem:[%s278 + $0x28] sm:$0xff] %v4716
      %4724 = vst [vmem:[%s278 + $0x30] sm:$0xff] %v4717
      %p4725 = scmp.lt.s32.totalorder %s18, 1
      %s4726 = scalar_select %p4725, %s18, 1
      %s4727 = smul.addr %s4726, 7
      %s4728 = smul.addr %s4727, 8
      %s4729 = scalar_lea.vmem %s7, %s4728
      // Predicated region
      $region49: #{forward.5} parent=47 // pred_check
        %p4730 = pneg %p188
      $region50: #{forward.5} parent=47 // pred_check_branch
        %4732 = sbr.rel (%p4730) target = $region52
      $region51: #{forward.5} parent=47 // pred_region
        _
      $region52: #{forward.5} parent=47 // pred_fallthru
        _
    $region48: #{forward.5} parent=5 // pred_fallthru
      _
    %p4733 = scmp.le.s32.totalorder 2, %s13
    // Predicated region
    $region53: #{forward.5} parent=5 // pred_check
      %p4734 = pneg %p4733
    $region54: #{forward.5} parent=5 // pred_check_branch
      %4736 = sbr.rel (%p4734) target = $region56
    $region55: #{forward.5} parent=5 // pred_region
      %s4737 = ssub.s32 %s13, 2
      // Predicated region
      $region57: #{forward.5} parent=55 // pred_check
        %p4738 = pneg %p194
      $region58: #{forward.5} parent=55 // pred_check_branch
        %4740 = sbr.rel (%p4738) target = $region60
      $region59: #{forward.5} parent=55 // pred_region
        %p4741 = scmp.lt.s32.totalorder %s19, 1
        %s4742 = scalar_select %p4741, %s19, 1
        %s4743 = smul.addr %s4742, 7
        %s4744 = smul.addr %s4743, 8
        %s4745 = scalar_lea.vmem %s7, %s4744
      $region60: #{forward.5} parent=55 // pred_fallthru
        _
    $region56: #{forward.5} parent=5 // pred_fallthru
      _
  $region6: #{forward.5} parent=0 // loop_footer
    %s17 = sadd.s32 1, %s13
  $region7: #{forward.5} parent=0 // loop_footer_branch
    %12 = sbr.rel target = $region3
  $region8: #{forward.5} parent=0 // loop_exit
    _

</llo_original>
